<compile_context>
chip_gen: v5e
topology: v5e:2x2
jax: 0.10.0
libtpu: 0.0.40
codegen_flags: <defaults>
</compile_context>

<pallas_src>
import jax
import jax.numpy as jnp
from jax.experimental import pallas as pl
from jax.experimental.pallas import tpu as pltpu

# ----------------------------- configuration --------------------------------
BASE_DIM = 8                      # args.base_dim (small synthetic choice)
N_BLOCKS = 4                      # n_blocks in the module
HIDDEN = 32                       # decoder hidden size
NET_IN = BASE_DIM + 24            # fc_p2 input dim  = 32
C_IN = 32 + BASE_DIM              # fc_c[i] input dim = 40
LANES = 128                       # padded hidden width == one vreg of lanes
LEAKY_SLOPE = 0.2                 # module: self.actvn = lambda x: F.leaky_relu(x, 0.2)


# ------------------------------- kernel -------------------------------------
def _decoder_kernel(net_ref, c_ref, wp2_ref, wcw_ref, w0_ref, w1_ref, misc_ref,
                    out_ref):
    # misc_ref layout (16, 128), f32:
    #   row 0        : fc_p2 bias           (lanes >= 32 are 0)
    #   rows 1..4    : fc_c[i] bias
    #   rows 5..8    : fc_0[i] bias
    #   rows 9..12   : fc_1[i] bias
    #   row 13       : fc_out bias, broadcast to all 128 lanes
    #   row 14       : fc_out weight row    (lanes >= 32 are 0)
    misc = misc_ref[...]                         # hoisted: single VMEM load
    net_in = net_ref[...]                        # (TM, NET_IN) bf16
    c_feat = c_ref[...]                          # (TM, C_IN)   bf16
    tm = net_in.shape[0]
    g = tm // LANES

    # net = fc_p2(net); bf16 operands, f32 accumulation; lanes >= HIDDEN stay 0.
    net = jnp.dot(net_in, wp2_ref[...],
                  preferred_element_type=jnp.float32) + misc[0]

    # All four fc_c projections in one wide bf16 matmul (N = 4*128 output lanes).
    # Each projection lives in its own 128-lane group -> whole-vreg slices below.
    c_all = jnp.dot(c_feat, wcw_ref[...], preferred_element_type=jnp.float32)

    # Residual decoder blocks (static unroll, n_blocks = 4), f32 running state.
    for i in range(N_BLOCKS):
        net = net + c_all[:, i * LANES:(i + 1) * LANES] + misc[1 + i]
        # ResnetBlockFC(32): identity shortcut (size_in == size_out)
        h = jnp.dot(jnp.maximum(net, 0.0).astype(jnp.bfloat16), w0_ref[i],
                    preferred_element_type=jnp.float32) + misc[5 + i]
        dx = jnp.dot(jnp.maximum(h, 0.0).astype(jnp.bfloat16), w1_ref[i],
                     preferred_element_type=jnp.float32) + misc[9 + i]
        net = net + dx

    # out = fc_out(leaky_relu(net, 0.2)) — per 128-row tile: XLU transpose puts the
    # rows on lanes, then a tiny (1,128)x(128,128) bf16 MXU matvec produces a
    # lane-dense (1,128) result row.  No sublane->lane relayout of the output.
    act = jnp.where(net > 0, net, LEAKY_SLOPE * net)          # (TM, 128) f32
    wout_row = misc[14:15].astype(jnp.bfloat16)               # (1, 128)  bf16
    rows = []
    for p in range(g):
        tile_t = act[p * LANES:(p + 1) * LANES, :].T          # (128,128) f32 vxpose
        rows.append(jnp.dot(wout_row, tile_t.astype(jnp.bfloat16),
                            preferred_element_type=jnp.float32))   # (1, 128) f32
    out_block = jnp.concatenate(rows, axis=0)                 # (g, 128)
    out_ref[...] = (out_block + misc[13]).reshape(1, g, LANES)


# ------------------------------ wrapper --------------------------------------
def _choose_tile(rows):
    """Pick a row tile (multiple of 128).

    Prefers large tiles (up to 2048 rows/step) to amortize per-step pipeline
    overhead, and rounds the step count up to an EVEN number so the 1-D
    'parallel' grid splits evenly across v7x's two TensorCores.  A larger tile
    is only accepted if its padding waste stays within ~3% of the best option.
    """
    rows128 = -(-rows // LANES) * LANES
    candidates = (2048, 1024, 512, 256, 128)

    def plan(tm):
        n = -(-rows128 // tm)
        n += n % 2                          # even step count (v7x TC parity)
        return n, rows128 / (n * tm)        # (steps, useful fraction)

    best_frac = max(plan(tm)[1] for tm in candidates)
    tm = next(t for t in candidates if plan(t)[1] >= best_frac - 0.03)
    n_steps, _ = plan(tm)
    return tm, n_steps * tm


def pack_params(params):
    """Zero-pad all weights to 128 output lanes (bf16) and pack biases + fc_out row."""
    wp2, bp2, wc, bc, w0, b0, w1, b1, wout, bout = params
    f32, bf16 = jnp.float32, jnp.bfloat16

    wp2_pad = jnp.zeros((NET_IN, LANES), f32).at[:, :HIDDEN].set(wp2).astype(bf16)

    wcw = jnp.zeros((C_IN, N_BLOCKS * LANES), f32)
    for i in range(N_BLOCKS):
        wcw = wcw.at[:, i * LANES:i * LANES + HIDDEN].set(wc[i])
    wcw = wcw.astype(bf16)

    w0_pad = (jnp.zeros((N_BLOCKS, LANES, LANES), f32)
              .at[:, :HIDDEN, :HIDDEN].set(w0).astype(bf16))
    w1_pad = (jnp.zeros((N_BLOCKS, LANES, LANES), f32)
              .at[:, :HIDDEN, :HIDDEN].set(w1).astype(bf16))

    misc = jnp.zeros((16, LANES), f32)
    misc = misc.at[0, :HIDDEN].set(bp2)
    misc = misc.at[1:1 + N_BLOCKS, :HIDDEN].set(bc)
    misc = misc.at[5:5 + N_BLOCKS, :HIDDEN].set(b0)
    misc = misc.at[9:9 + N_BLOCKS, :HIDDEN].set(b1)
    misc = misc.at[13, :].set(bout)           # scalar broadcast to all lanes
    misc = misc.at[14, :HIDDEN].set(wout)
    return wp2_pad, wcw, w0_pad, w1_pad, misc


@jax.jit
def decoder_head(net_in, c_feat, packed):
    """net_in: (B, N, NET_IN) f32, c_feat: (B, N, C_IN) f32 -> (B, N) f32."""
    B, N, _ = net_in.shape
    rows = B * N
    tm, rows_pad = _choose_tile(rows)
    n_steps = rows_pad // tm
    g = tm // LANES

    # bf16 inputs: halves the per-step input DMA and feeds the bf16 MXU path.
    net2d = net_in.reshape(rows, NET_IN).astype(jnp.bfloat16)
    c2d = c_feat.reshape(rows, C_IN).astype(jnp.bfloat16)
    if rows_pad != rows:
        pad = rows_pad - rows
        net2d = jnp.pad(net2d, ((0, pad), (0, 0)))
        c2d = jnp.pad(c2d, ((0, pad), (0, 0)))

    wp2_pad, wcw, w0_pad, w1_pad, misc = packed

    def full(a):
        return pl.BlockSpec(a.shape, lambda i, _nd=a.ndim: (0,) * _nd)

    grid_spec = pltpu.PrefetchScalarGridSpec(
        num_scalar_prefetch=0,
        grid=(n_steps,),
        in_specs=[
            pl.BlockSpec((tm, NET_IN), lambda i: (i, 0)),
            pl.BlockSpec((tm, C_IN), lambda i: (i, 0)),
            full(wp2_pad), full(wcw), full(w0_pad), full(w1_pad), full(misc),
        ],
        out_specs=pl.BlockSpec((1, g, LANES), lambda i: (i, 0, 0)),
    )

    out3 = pl.pallas_call(
        _decoder_kernel,
        out_shape=jax.ShapeDtypeStruct((n_steps, g, LANES), jnp.float32),
        grid_spec=grid_spec,
        compiler_params=pltpu.CompilerParams(
            dimension_semantics=("parallel",),
            vmem_limit_bytes=32 * 1024 * 1024),
    )(net2d, c2d, wp2_pad, wcw, w0_pad, w1_pad, misc)

    return out3.reshape(rows_pad)[:rows].reshape(B, N)


# --------------------------- reference (pure JAX) ----------------------------
def decoder_head_ref(net_in, c_feat, params):
    """Mirrors the kernel numerics: bf16 matmul operands, f32 accumulation."""
    wp2, bp2, wc, bc, w0, b0, w1, b1, wout, bout = params
    bf = jnp.bfloat16

    def mm(a, w):
        return jnp.einsum('...k,kh->...h', a.astype(bf), w.astype(bf),
                          preferred_element_type=jnp.float32)

    net = mm(net_in, wp2) + bp2
    for i in range(N_BLOCKS):
        net = net + mm(c_feat, wc[i]) + bc[i]
        h = mm(jnp.maximum(net, 0.0), w0[i]) + b0[i]
        dx = mm(jnp.maximum(h, 0.0), w1[i]) + b1[i]
        net = net + dx
    act = jnp.where(net > 0, net, LEAKY_SLOPE * net)
    return jnp.einsum('...k,k->...', act.astype(bf), wout.astype(bf),
                      preferred_element_type=jnp.float32) + bout


# ------------------------------ param init ----------------------------------
def init_params(key):
    def lin(k, fan_in, fan_out):
        kw, kb = jax.random.split(k)
        bound = 1.0 / jnp.sqrt(fan_in)
        w = jax.random.uniform(kw, (fan_in, fan_out), jnp.float32, -bound, bound)
        b = jax.random.uniform(kb, (fan_out,), jnp.float32, -bound, bound)
        return w, b

    keys = jax.random.split(key, 2 + 3 * N_BLOCKS)
    wp2, bp2 = lin(keys[0], NET_IN, HIDDEN)

    wc_l, bc_l, w0_l, b0_l, w1_l, b1_l = [], [], [], [], [], []
    for i in range(N_BLOCKS):
        w, b = lin(keys[1 + 3 * i], C_IN, HIDDEN); wc_l.append(w); bc_l.append(b)
        w, b = lin(keys[2 + 3 * i], HIDDEN, HIDDEN); w0_l.append(w); b0_l.append(b)
        # NOTE: PyTorch's ResnetBlockFC zero-inits fc_1.weight; random values are
        # used here (distinct keys) so the fc_1 matmul path is actually exercised.
        w, b = lin(keys[3 + 3 * i], HIDDEN, HIDDEN); w1_l.append(w); b1_l.append(b)
    wc = jnp.stack(wc_l); bc = jnp.stack(bc_l)
    w0 = jnp.stack(w0_l); b0 = jnp.stack(b0_l)
    w1 = jnp.stack(w1_l); b1 = jnp.stack(b1_l)

    wout_m, bout_v = lin(keys[1 + 3 * N_BLOCKS], HIDDEN, 1)
    wout = wout_m[:, 0]            # (HIDDEN,)
    bout = bout_v[0]               # scalar
    return wp2, bp2, wc, bc, w0, b0, w1, b1, wout, bout


# --------------------------------- main --------------------------------------
if __name__ == "__main__":
    key = jax.random.PRNGKey(0)
    k_net, k_c, k_par = jax.random.split(key, 3)

    # Synthetic stand-ins for the (unavailable) vector-neuron front-end outputs:
    #   net_in : output of std_feature2, channel-last  (B, N, base_dim+24)
    #   c_feat : output of std_feature1, channel-last  (B, N, 32+base_dim)
    B, N = 2, 1024          # rows = 2048 -> TM=1024, 2 grid steps (even: v7x parity)
    net_in = jax.random.normal(k_net, (B, N, NET_IN), jnp.float32)
    c_feat = jax.random.normal(k_c, (B, N, C_IN), jnp.float32)

    params = init_params(k_par)
    packed = pack_params(params)

    out = decoder_head(net_in, c_feat, packed)
    out = jax.block_until_ready(out)

    ref = decoder_head_ref(net_in, c_feat, params)
    assert out.shape == (B, N)
    max_err = float(jnp.max(jnp.abs(out - ref)))
    assert jnp.allclose(out, ref, atol=1e-3, rtol=1e-3), \
        f"mismatch vs JAX reference (max abs err {max_err})"

    print("KERNEL_OK")
</pallas_src>

<mosaic_0001>
module attributes {stable_mosaic.version = 11 : i64} {
  func.func @_decoder_kernel(%arg0: i32, %arg1: memref<1024x32xbf16, #tpu.memory_space<vmem>>, %arg2: memref<1024x40xbf16, #tpu.memory_space<vmem>>, %arg3: memref<32x128xbf16, #tpu.memory_space<vmem>>, %arg4: memref<40x512xbf16, #tpu.memory_space<vmem>>, %arg5: memref<4x128x128xbf16, #tpu.memory_space<vmem>>, %arg6: memref<4x128x128xbf16, #tpu.memory_space<vmem>>, %arg7: memref<16x128xf32, #tpu.memory_space<vmem>>, %arg8: memref<1x8x128xf32, #tpu.memory_space<vmem>>) attributes {dimension_semantics = [#tpu.dimension_semantics<parallel>], iteration_bounds = array<i64: 2>, scalar_prefetch = 0 : i64, scratch_operands = 0 : i64, tpu.core_type = #tpu.core_type<tc>, window_params = [{transform_indices = @transform_0, window_bounds = array<i64: 1024, 32>}, {transform_indices = @transform_1, window_bounds = array<i64: 1024, 40>}, {pipeline_mode = #tpu.pipeline_mode<synchronous>, transform_indices = @transform_2, window_bounds = array<i64: 32, 128>}, {pipeline_mode = #tpu.pipeline_mode<synchronous>, transform_indices = @transform_3, window_bounds = array<i64: 40, 512>}, {pipeline_mode = #tpu.pipeline_mode<synchronous>, transform_indices = @transform_4, window_bounds = array<i64: 4, 128, 128>}, {pipeline_mode = #tpu.pipeline_mode<synchronous>, transform_indices = @transform_5, window_bounds = array<i64: 4, 128, 128>}, {pipeline_mode = #tpu.pipeline_mode<synchronous>, transform_indices = @transform_6, window_bounds = array<i64: 16, 128>}, {transform_indices = @transform_7, window_bounds = array<i64: 1, 8, 128>}]} {
    %c0 = arith.constant 0 : index
    %c0_0 = arith.constant 0 : index
    %0 = vector.load %arg7[%c0, %c0_0] : memref<16x128xf32, #tpu.memory_space<vmem>>, vector<16x128xf32>
    %c0_1 = arith.constant 0 : index
    %c0_2 = arith.constant 0 : index
    %1 = vector.load %arg1[%c0_1, %c0_2] : memref<1024x32xbf16, #tpu.memory_space<vmem>>, vector<1024x32xbf16>
    %c0_3 = arith.constant 0 : index
    %c0_4 = arith.constant 0 : index
    %2 = vector.load %arg2[%c0_3, %c0_4] : memref<1024x40xbf16, #tpu.memory_space<vmem>>, vector<1024x40xbf16>
    %c0_5 = arith.constant 0 : index
    %c0_6 = arith.constant 0 : index
    %3 = vector.load %arg3[%c0_5, %c0_6] : memref<32x128xbf16, #tpu.memory_space<vmem>>, vector<32x128xbf16>
    %cst = arith.constant dense<0.000000e+00> : vector<1024x128xf32>
    %4 = tpu.matmul %1, %3, %cst {dimension_numbers = #tpu.dot_dimension_numbers<[1], [0], [0], [1], [0, 0, 1, 1], [], []>} : vector<1024x32xbf16>, vector<32x128xbf16>, vector<1024x128xf32> -> vector<1024x128xf32>
    %5 = vector.extract_strided_slice %0 {offsets = [0, 0], sizes = [1, 128], strides = [1, 1]} : vector<16x128xf32> to vector<1x128xf32>
    %6 = vector.shape_cast %5 : vector<1x128xf32> to vector<128xf32>
    %7 = vector.shape_cast %6 : vector<128xf32> to vector<1x128xf32>
    %8 = vector.broadcast %7 : vector<1x128xf32> to vector<1024x128xf32>
    %9 = arith.addf %4, %8 : vector<1024x128xf32>
    %c0_7 = arith.constant 0 : index
    %c0_8 = arith.constant 0 : index
    %10 = vector.load %arg4[%c0_7, %c0_8] : memref<40x512xbf16, #tpu.memory_space<vmem>>, vector<40x512xbf16>
    %cst_9 = arith.constant dense<0.000000e+00> : vector<1024x512xf32>
    %11 = tpu.matmul %2, %10, %cst_9 {dimension_numbers = #tpu.dot_dimension_numbers<[1], [0], [0], [1], [0, 0, 1, 1], [], []>} : vector<1024x40xbf16>, vector<40x512xbf16>, vector<1024x512xf32> -> vector<1024x512xf32>
    %12 = vector.extract_strided_slice %11 {offsets = [0, 0], sizes = [1024, 128], strides = [1, 1]} : vector<1024x512xf32> to vector<1024x128xf32>
    %13 = arith.addf %9, %12 : vector<1024x128xf32>
    %14 = vector.extract_strided_slice %0 {offsets = [1, 0], sizes = [1, 128], strides = [1, 1]} : vector<16x128xf32> to vector<1x128xf32>
    %15 = vector.shape_cast %14 : vector<1x128xf32> to vector<128xf32>
    %16 = vector.shape_cast %15 : vector<128xf32> to vector<1x128xf32>
    %17 = vector.broadcast %16 : vector<1x128xf32> to vector<1024x128xf32>
    %18 = arith.addf %13, %17 : vector<1024x128xf32>
    %cst_10 = arith.constant 0.000000e+00 : f32
    %19 = vector.broadcast %cst_10 : f32 to vector<1024x128xf32>
    %20 = arith.maximumf %18, %19 : vector<1024x128xf32>
    %21 = arith.truncf %20 : vector<1024x128xf32> to vector<1024x128xbf16>
    %c0_11 = arith.constant 0 : index
    %c0_12 = arith.constant 0 : index
    %c0_13 = arith.constant 0 : index
    %22 = vector.load %arg5[%c0_11, %c0_12, %c0_13] : memref<4x128x128xbf16, #tpu.memory_space<vmem>>, vector<1x128x128xbf16>
    %23 = vector.shape_cast %22 : vector<1x128x128xbf16> to vector<128x128xbf16>
    %cst_14 = arith.constant dense<0.000000e+00> : vector<1024x128xf32>
    %24 = tpu.matmul %21, %23, %cst_14 {dimension_numbers = #tpu.dot_dimension_numbers<[1], [0], [0], [1], [0, 0, 1, 1], [], []>} : vector<1024x128xbf16>, vector<128x128xbf16>, vector<1024x128xf32> -> vector<1024x128xf32>
    %25 = vector.extract_strided_slice %0 {offsets = [5, 0], sizes = [1, 128], strides = [1, 1]} : vector<16x128xf32> to vector<1x128xf32>
    %26 = vector.shape_cast %25 : vector<1x128xf32> to vector<128xf32>
    %27 = vector.shape_cast %26 : vector<128xf32> to vector<1x128xf32>
    %28 = vector.broadcast %27 : vector<1x128xf32> to vector<1024x128xf32>
    %29 = arith.addf %24, %28 : vector<1024x128xf32>
    %cst_15 = arith.constant 0.000000e+00 : f32
    %30 = vector.broadcast %cst_15 : f32 to vector<1024x128xf32>
    %31 = arith.maximumf %29, %30 : vector<1024x128xf32>
    %32 = arith.truncf %31 : vector<1024x128xf32> to vector<1024x128xbf16>
    %c0_16 = arith.constant 0 : index
    %c0_17 = arith.constant 0 : index
    %c0_18 = arith.constant 0 : index
    %33 = vector.load %arg6[%c0_16, %c0_17, %c0_18] : memref<4x128x128xbf16, #tpu.memory_space<vmem>>, vector<1x128x128xbf16>
    %34 = vector.shape_cast %33 : vector<1x128x128xbf16> to vector<128x128xbf16>
    %cst_19 = arith.constant dense<0.000000e+00> : vector<1024x128xf32>
    %35 = tpu.matmul %32, %34, %cst_19 {dimension_numbers = #tpu.dot_dimension_numbers<[1], [0], [0], [1], [0, 0, 1, 1], [], []>} : vector<1024x128xbf16>, vector<128x128xbf16>, vector<1024x128xf32> -> vector<1024x128xf32>
    %36 = vector.extract_strided_slice %0 {offsets = [9, 0], sizes = [1, 128], strides = [1, 1]} : vector<16x128xf32> to vector<1x128xf32>
    %37 = vector.shape_cast %36 : vector<1x128xf32> to vector<128xf32>
    %38 = vector.shape_cast %37 : vector<128xf32> to vector<1x128xf32>
    %39 = vector.broadcast %38 : vector<1x128xf32> to vector<1024x128xf32>
    %40 = arith.addf %35, %39 : vector<1024x128xf32>
    %41 = arith.addf %18, %40 : vector<1024x128xf32>
    %42 = vector.extract_strided_slice %11 {offsets = [0, 128], sizes = [1024, 128], strides = [1, 1]} : vector<1024x512xf32> to vector<1024x128xf32>
    %43 = arith.addf %41, %42 : vector<1024x128xf32>
    %44 = vector.extract_strided_slice %0 {offsets = [2, 0], sizes = [1, 128], strides = [1, 1]} : vector<16x128xf32> to vector<1x128xf32>
    %45 = vector.shape_cast %44 : vector<1x128xf32> to vector<128xf32>
    %46 = vector.shape_cast %45 : vector<128xf32> to vector<1x128xf32>
    %47 = vector.broadcast %46 : vector<1x128xf32> to vector<1024x128xf32>
    %48 = arith.addf %43, %47 : vector<1024x128xf32>
    %cst_20 = arith.constant 0.000000e+00 : f32
    %49 = vector.broadcast %cst_20 : f32 to vector<1024x128xf32>
    %50 = arith.maximumf %48, %49 : vector<1024x128xf32>
    %51 = arith.truncf %50 : vector<1024x128xf32> to vector<1024x128xbf16>
    %c1 = arith.constant 1 : index
    %c0_21 = arith.constant 0 : index
    %c0_22 = arith.constant 0 : index
    %52 = vector.load %arg5[%c1, %c0_21, %c0_22] : memref<4x128x128xbf16, #tpu.memory_space<vmem>>, vector<1x128x128xbf16>
    %53 = vector.shape_cast %52 : vector<1x128x128xbf16> to vector<128x128xbf16>
    %cst_23 = arith.constant dense<0.000000e+00> : vector<1024x128xf32>
    %54 = tpu.matmul %51, %53, %cst_23 {dimension_numbers = #tpu.dot_dimension_numbers<[1], [0], [0], [1], [0, 0, 1, 1], [], []>} : vector<1024x128xbf16>, vector<128x128xbf16>, vector<1024x128xf32> -> vector<1024x128xf32>
    %55 = vector.extract_strided_slice %0 {offsets = [6, 0], sizes = [1, 128], strides = [1, 1]} : vector<16x128xf32> to vector<1x128xf32>
    %56 = vector.shape_cast %55 : vector<1x128xf32> to vector<128xf32>
    %57 = vector.shape_cast %56 : vector<128xf32> to vector<1x128xf32>
    %58 = vector.broadcast %57 : vector<1x128xf32> to vector<1024x128xf32>
    %59 = arith.addf %54, %58 : vector<1024x128xf32>
    %cst_24 = arith.constant 0.000000e+00 : f32
    %60 = vector.broadcast %cst_24 : f32 to vector<1024x128xf32>
    %61 = arith.maximumf %59, %60 : vector<1024x128xf32>
    %62 = arith.truncf %61 : vector<1024x128xf32> to vector<1024x128xbf16>
    %c1_25 = arith.constant 1 : index
    %c0_26 = arith.constant 0 : index
    %c0_27 = arith.constant 0 : index
    %63 = vector.load %arg6[%c1_25, %c0_26, %c0_27] : memref<4x128x128xbf16, #tpu.memory_space<vmem>>, vector<1x128x128xbf16>
    %64 = vector.shape_cast %63 : vector<1x128x128xbf16> to vector<128x128xbf16>
    %cst_28 = arith.constant dense<0.000000e+00> : vector<1024x128xf32>
    %65 = tpu.matmul %62, %64, %cst_28 {dimension_numbers = #tpu.dot_dimension_numbers<[1], [0], [0], [1], [0, 0, 1, 1], [], []>} : vector<1024x128xbf16>, vector<128x128xbf16>, vector<1024x128xf32> -> vector<1024x128xf32>
    %66 = vector.extract_strided_slice %0 {offsets = [10, 0], sizes = [1, 128], strides = [1, 1]} : vector<16x128xf32> to vector<1x128xf32>
    %67 = vector.shape_cast %66 : vector<1x128xf32> to vector<128xf32>
    %68 = vector.shape_cast %67 : vector<128xf32> to vector<1x128xf32>
    %69 = vector.broadcast %68 : vector<1x128xf32> to vector<1024x128xf32>
    %70 = arith.addf %65, %69 : vector<1024x128xf32>
    %71 = arith.addf %48, %70 : vector<1024x128xf32>
    %72 = vector.extract_strided_slice %11 {offsets = [0, 256], sizes = [1024, 128], strides = [1, 1]} : vector<1024x512xf32> to vector<1024x128xf32>
    %73 = arith.addf %71, %72 : vector<1024x128xf32>
    %74 = vector.extract_strided_slice %0 {offsets = [3, 0], sizes = [1, 128], strides = [1, 1]} : vector<16x128xf32> to vector<1x128xf32>
    %75 = vector.shape_cast %74 : vector<1x128xf32> to vector<128xf32>
    %76 = vector.shape_cast %75 : vector<128xf32> to vector<1x128xf32>
    %77 = vector.broadcast %76 : vector<1x128xf32> to vector<1024x128xf32>
    %78 = arith.addf %73, %77 : vector<1024x128xf32>
    %cst_29 = arith.constant 0.000000e+00 : f32
    %79 = vector.broadcast %cst_29 : f32 to vector<1024x128xf32>
    %80 = arith.maximumf %78, %79 : vector<1024x128xf32>
    %81 = arith.truncf %80 : vector<1024x128xf32> to vector<1024x128xbf16>
    %c2 = arith.constant 2 : index
    %c0_30 = arith.constant 0 : index
    %c0_31 = arith.constant 0 : index
    %82 = vector.load %arg5[%c2, %c0_30, %c0_31] : memref<4x128x128xbf16, #tpu.memory_space<vmem>>, vector<1x128x128xbf16>
    %83 = vector.shape_cast %82 : vector<1x128x128xbf16> to vector<128x128xbf16>
    %cst_32 = arith.constant dense<0.000000e+00> : vector<1024x128xf32>
    %84 = tpu.matmul %81, %83, %cst_32 {dimension_numbers = #tpu.dot_dimension_numbers<[1], [0], [0], [1], [0, 0, 1, 1], [], []>} : vector<1024x128xbf16>, vector<128x128xbf16>, vector<1024x128xf32> -> vector<1024x128xf32>
    %85 = vector.extract_strided_slice %0 {offsets = [7, 0], sizes = [1, 128], strides = [1, 1]} : vector<16x128xf32> to vector<1x128xf32>
    %86 = vector.shape_cast %85 : vector<1x128xf32> to vector<128xf32>
    %87 = vector.shape_cast %86 : vector<128xf32> to vector<1x128xf32>
    %88 = vector.broadcast %87 : vector<1x128xf32> to vector<1024x128xf32>
    %89 = arith.addf %84, %88 : vector<1024x128xf32>
    %cst_33 = arith.constant 0.000000e+00 : f32
    %90 = vector.broadcast %cst_33 : f32 to vector<1024x128xf32>
    %91 = arith.maximumf %89, %90 : vector<1024x128xf32>
    %92 = arith.truncf %91 : vector<1024x128xf32> to vector<1024x128xbf16>
    %c2_34 = arith.constant 2 : index
    %c0_35 = arith.constant 0 : index
    %c0_36 = arith.constant 0 : index
    %93 = vector.load %arg6[%c2_34, %c0_35, %c0_36] : memref<4x128x128xbf16, #tpu.memory_space<vmem>>, vector<1x128x128xbf16>
    %94 = vector.shape_cast %93 : vector<1x128x128xbf16> to vector<128x128xbf16>
    %cst_37 = arith.constant dense<0.000000e+00> : vector<1024x128xf32>
    %95 = tpu.matmul %92, %94, %cst_37 {dimension_numbers = #tpu.dot_dimension_numbers<[1], [0], [0], [1], [0, 0, 1, 1], [], []>} : vector<1024x128xbf16>, vector<128x128xbf16>, vector<1024x128xf32> -> vector<1024x128xf32>
    %96 = vector.extract_strided_slice %0 {offsets = [11, 0], sizes = [1, 128], strides = [1, 1]} : vector<16x128xf32> to vector<1x128xf32>
    %97 = vector.shape_cast %96 : vector<1x128xf32> to vector<128xf32>
    %98 = vector.shape_cast %97 : vector<128xf32> to vector<1x128xf32>
    %99 = vector.broadcast %98 : vector<1x128xf32> to vector<1024x128xf32>
    %100 = arith.addf %95, %99 : vector<1024x128xf32>
    %101 = arith.addf %78, %100 : vector<1024x128xf32>
    %102 = vector.extract_strided_slice %11 {offsets = [0, 384], sizes = [1024, 128], strides = [1, 1]} : vector<1024x512xf32> to vector<1024x128xf32>
    %103 = arith.addf %101, %102 : vector<1024x128xf32>
    %104 = vector.extract_strided_slice %0 {offsets = [4, 0], sizes = [1, 128], strides = [1, 1]} : vector<16x128xf32> to vector<1x128xf32>
    %105 = vector.shape_cast %104 : vector<1x128xf32> to vector<128xf32>
    %106 = vector.shape_cast %105 : vector<128xf32> to vector<1x128xf32>
    %107 = vector.broadcast %106 : vector<1x128xf32> to vector<1024x128xf32>
    %108 = arith.addf %103, %107 : vector<1024x128xf32>
    %cst_38 = arith.constant 0.000000e+00 : f32
    %109 = vector.broadcast %cst_38 : f32 to vector<1024x128xf32>
    %110 = arith.maximumf %108, %109 : vector<1024x128xf32>
    %111 = arith.truncf %110 : vector<1024x128xf32> to vector<1024x128xbf16>
    %c3 = arith.constant 3 : index
    %c0_39 = arith.constant 0 : index
    %c0_40 = arith.constant 0 : index
    %112 = vector.load %arg5[%c3, %c0_39, %c0_40] : memref<4x128x128xbf16, #tpu.memory_space<vmem>>, vector<1x128x128xbf16>
    %113 = vector.shape_cast %112 : vector<1x128x128xbf16> to vector<128x128xbf16>
    %cst_41 = arith.constant dense<0.000000e+00> : vector<1024x128xf32>
    %114 = tpu.matmul %111, %113, %cst_41 {dimension_numbers = #tpu.dot_dimension_numbers<[1], [0], [0], [1], [0, 0, 1, 1], [], []>} : vector<1024x128xbf16>, vector<128x128xbf16>, vector<1024x128xf32> -> vector<1024x128xf32>
    %115 = vector.extract_strided_slice %0 {offsets = [8, 0], sizes = [1, 128], strides = [1, 1]} : vector<16x128xf32> to vector<1x128xf32>
    %116 = vector.shape_cast %115 : vector<1x128xf32> to vector<128xf32>
    %117 = vector.shape_cast %116 : vector<128xf32> to vector<1x128xf32>
    %118 = vector.broadcast %117 : vector<1x128xf32> to vector<1024x128xf32>
    %119 = arith.addf %114, %118 : vector<1024x128xf32>
    %cst_42 = arith.constant 0.000000e+00 : f32
    %120 = vector.broadcast %cst_42 : f32 to vector<1024x128xf32>
    %121 = arith.maximumf %119, %120 : vector<1024x128xf32>
    %122 = arith.truncf %121 : vector<1024x128xf32> to vector<1024x128xbf16>
    %c3_43 = arith.constant 3 : index
    %c0_44 = arith.constant 0 : index
    %c0_45 = arith.constant 0 : index
    %123 = vector.load %arg6[%c3_43, %c0_44, %c0_45] : memref<4x128x128xbf16, #tpu.memory_space<vmem>>, vector<1x128x128xbf16>
    %124 = vector.shape_cast %123 : vector<1x128x128xbf16> to vector<128x128xbf16>
    %cst_46 = arith.constant dense<0.000000e+00> : vector<1024x128xf32>
    %125 = tpu.matmul %122, %124, %cst_46 {dimension_numbers = #tpu.dot_dimension_numbers<[1], [0], [0], [1], [0, 0, 1, 1], [], []>} : vector<1024x128xbf16>, vector<128x128xbf16>, vector<1024x128xf32> -> vector<1024x128xf32>
    %126 = vector.extract_strided_slice %0 {offsets = [12, 0], sizes = [1, 128], strides = [1, 1]} : vector<16x128xf32> to vector<1x128xf32>
    %127 = vector.shape_cast %126 : vector<1x128xf32> to vector<128xf32>
    %128 = vector.shape_cast %127 : vector<128xf32> to vector<1x128xf32>
    %129 = vector.broadcast %128 : vector<1x128xf32> to vector<1024x128xf32>
    %130 = arith.addf %125, %129 : vector<1024x128xf32>
    %131 = arith.addf %108, %130 : vector<1024x128xf32>
    %cst_47 = arith.constant 0.000000e+00 : f32
    %132 = vector.broadcast %cst_47 : f32 to vector<1024x128xf32>
    %133 = arith.cmpf ogt, %131, %132 : vector<1024x128xf32>
    %cst_48 = arith.constant 2.000000e-01 : f32
    %134 = vector.broadcast %cst_48 : f32 to vector<1024x128xf32>
    %135 = arith.mulf %134, %131 : vector<1024x128xf32>
    %136 = arith.select %133, %131, %135 : vector<1024x128xi1>, vector<1024x128xf32>
    %137 = vector.extract_strided_slice %0 {offsets = [14, 0], sizes = [1, 128], strides = [1, 1]} : vector<16x128xf32> to vector<1x128xf32>
    %138 = arith.truncf %137 : vector<1x128xf32> to vector<1x128xbf16>
    %139 = vector.extract_strided_slice %136 {offsets = [0, 0], sizes = [128, 128], strides = [1, 1]} : vector<1024x128xf32> to vector<128x128xf32>
    %140 = tpu.transpose %139, [1, 0] : vector<128x128xf32> -> vector<128x128xf32>
    %141 = arith.truncf %140 : vector<128x128xf32> to vector<128x128xbf16>
    %cst_49 = arith.constant dense<0.000000e+00> : vector<1x128xf32>
    %142 = tpu.matmul %138, %141, %cst_49 {dimension_numbers = #tpu.dot_dimension_numbers<[1], [0], [0], [1], [0, 0, 1, 1], [], []>} : vector<1x128xbf16>, vector<128x128xbf16>, vector<1x128xf32> -> vector<1x128xf32>
    %143 = vector.extract_strided_slice %136 {offsets = [128, 0], sizes = [128, 128], strides = [1, 1]} : vector<1024x128xf32> to vector<128x128xf32>
    %144 = tpu.transpose %143, [1, 0] : vector<128x128xf32> -> vector<128x128xf32>
    %145 = arith.truncf %144 : vector<128x128xf32> to vector<128x128xbf16>
    %cst_50 = arith.constant dense<0.000000e+00> : vector<1x128xf32>
    %146 = tpu.matmul %138, %145, %cst_50 {dimension_numbers = #tpu.dot_dimension_numbers<[1], [0], [0], [1], [0, 0, 1, 1], [], []>} : vector<1x128xbf16>, vector<128x128xbf16>, vector<1x128xf32> -> vector<1x128xf32>
    %147 = vector.extract_strided_slice %136 {offsets = [256, 0], sizes = [128, 128], strides = [1, 1]} : vector<1024x128xf32> to vector<128x128xf32>
    %148 = tpu.transpose %147, [1, 0] : vector<128x128xf32> -> vector<128x128xf32>
    %149 = arith.truncf %148 : vector<128x128xf32> to vector<128x128xbf16>
    %cst_51 = arith.constant dense<0.000000e+00> : vector<1x128xf32>
    %150 = tpu.matmul %138, %149, %cst_51 {dimension_numbers = #tpu.dot_dimension_numbers<[1], [0], [0], [1], [0, 0, 1, 1], [], []>} : vector<1x128xbf16>, vector<128x128xbf16>, vector<1x128xf32> -> vector<1x128xf32>
    %151 = vector.extract_strided_slice %136 {offsets = [384, 0], sizes = [128, 128], strides = [1, 1]} : vector<1024x128xf32> to vector<128x128xf32>
    %152 = tpu.transpose %151, [1, 0] : vector<128x128xf32> -> vector<128x128xf32>
    %153 = arith.truncf %152 : vector<128x128xf32> to vector<128x128xbf16>
    %cst_52 = arith.constant dense<0.000000e+00> : vector<1x128xf32>
    %154 = tpu.matmul %138, %153, %cst_52 {dimension_numbers = #tpu.dot_dimension_numbers<[1], [0], [0], [1], [0, 0, 1, 1], [], []>} : vector<1x128xbf16>, vector<128x128xbf16>, vector<1x128xf32> -> vector<1x128xf32>
    %155 = vector.extract_strided_slice %136 {offsets = [512, 0], sizes = [128, 128], strides = [1, 1]} : vector<1024x128xf32> to vector<128x128xf32>
    %156 = tpu.transpose %155, [1, 0] : vector<128x128xf32> -> vector<128x128xf32>
    %157 = arith.truncf %156 : vector<128x128xf32> to vector<128x128xbf16>
    %cst_53 = arith.constant dense<0.000000e+00> : vector<1x128xf32>
    %158 = tpu.matmul %138, %157, %cst_53 {dimension_numbers = #tpu.dot_dimension_numbers<[1], [0], [0], [1], [0, 0, 1, 1], [], []>} : vector<1x128xbf16>, vector<128x128xbf16>, vector<1x128xf32> -> vector<1x128xf32>
    %159 = vector.extract_strided_slice %136 {offsets = [640, 0], sizes = [128, 128], strides = [1, 1]} : vector<1024x128xf32> to vector<128x128xf32>
    %160 = tpu.transpose %159, [1, 0] : vector<128x128xf32> -> vector<128x128xf32>
    %161 = arith.truncf %160 : vector<128x128xf32> to vector<128x128xbf16>
    %cst_54 = arith.constant dense<0.000000e+00> : vector<1x128xf32>
    %162 = tpu.matmul %138, %161, %cst_54 {dimension_numbers = #tpu.dot_dimension_numbers<[1], [0], [0], [1], [0, 0, 1, 1], [], []>} : vector<1x128xbf16>, vector<128x128xbf16>, vector<1x128xf32> -> vector<1x128xf32>
    %163 = vector.extract_strided_slice %136 {offsets = [768, 0], sizes = [128, 128], strides = [1, 1]} : vector<1024x128xf32> to vector<128x128xf32>
    %164 = tpu.transpose %163, [1, 0] : vector<128x128xf32> -> vector<128x128xf32>
    %165 = arith.truncf %164 : vector<128x128xf32> to vector<128x128xbf16>
    %cst_55 = arith.constant dense<0.000000e+00> : vector<1x128xf32>
    %166 = tpu.matmul %138, %165, %cst_55 {dimension_numbers = #tpu.dot_dimension_numbers<[1], [0], [0], [1], [0, 0, 1, 1], [], []>} : vector<1x128xbf16>, vector<128x128xbf16>, vector<1x128xf32> -> vector<1x128xf32>
    %167 = vector.extract_strided_slice %136 {offsets = [896, 0], sizes = [128, 128], strides = [1, 1]} : vector<1024x128xf32> to vector<128x128xf32>
    %168 = tpu.transpose %167, [1, 0] : vector<128x128xf32> -> vector<128x128xf32>
    %169 = arith.truncf %168 : vector<128x128xf32> to vector<128x128xbf16>
    %cst_56 = arith.constant dense<0.000000e+00> : vector<1x128xf32>
    %170 = tpu.matmul %138, %169, %cst_56 {dimension_numbers = #tpu.dot_dimension_numbers<[1], [0], [0], [1], [0, 0, 1, 1], [], []>} : vector<1x128xbf16>, vector<128x128xbf16>, vector<1x128xf32> -> vector<1x128xf32>
    %171 = tpu.concatenate %142, %146, %150, %154, %158, %162, %166, %170 in 0 : vector<1x128xf32>, vector<1x128xf32>, vector<1x128xf32>, vector<1x128xf32>, vector<1x128xf32>, vector<1x128xf32>, vector<1x128xf32>, vector<1x128xf32> -> vector<8x128xf32>
    %172 = vector.extract_strided_slice %0 {offsets = [13, 0], sizes = [1, 128], strides = [1, 1]} : vector<16x128xf32> to vector<1x128xf32>
    %173 = vector.shape_cast %172 : vector<1x128xf32> to vector<128xf32>
    %174 = vector.shape_cast %173 : vector<128xf32> to vector<1x128xf32>
    %175 = vector.broadcast %174 : vector<1x128xf32> to vector<8x128xf32>
    %176 = arith.addf %171, %175 : vector<8x128xf32>
    %177 = vector.shape_cast %176 : vector<8x128xf32> to vector<1x8x128xf32>
    %c0_57 = arith.constant 0 : index
    %c0_58 = arith.constant 0 : index
    %c0_59 = arith.constant 0 : index
    %178 = vector.load %arg8[%c0_57, %c0_58, %c0_59] : memref<1x8x128xf32, #tpu.memory_space<vmem>>, vector<1x8x128xf32>
    tpu.vector_store %arg8[%c0_57, %c0_58, %c0_59], %177 {strides = array<i32>} : memref<1x8x128xf32, #tpu.memory_space<vmem>>, vector<1x8x128xf32>,
    return
  }
  func.func @transform_0(%arg0: i32) -> (i32, i32) {
    %c0_i32 = arith.constant 0 : i32
    %c0_i32_0 = arith.constant 0 : i32
    return %arg0, %c0_i32 : i32, i32
  }
  func.func @transform_1(%arg0: i32) -> (i32, i32) {
    %c0_i32 = arith.constant 0 : i32
    %c0_i32_0 = arith.constant 0 : i32
    return %arg0, %c0_i32 : i32, i32
  }
  func.func @transform_2(%arg0: i32) -> (i32, i32) {
    %c0_i32 = arith.constant 0 : i32
    %c0_i32_0 = arith.constant 0 : i32
    %c0_i32_1 = arith.constant 0 : i32
    return %c0_i32, %c0_i32_0 : i32, i32
  }
  func.func @transform_3(%arg0: i32) -> (i32, i32) {
    %c0_i32 = arith.constant 0 : i32
    %c0_i32_0 = arith.constant 0 : i32
    %c0_i32_1 = arith.constant 0 : i32
    return %c0_i32, %c0_i32_0 : i32, i32
  }
  func.func @transform_4(%arg0: i32) -> (i32, i32, i32) {
    %c0_i32 = arith.constant 0 : i32
    %c0_i32_0 = arith.constant 0 : i32
    %c0_i32_1 = arith.constant 0 : i32
    %c0_i32_2 = arith.constant 0 : i32
    return %c0_i32, %c0_i32_0, %c0_i32_1 : i32, i32, i32
  }
  func.func @transform_5(%arg0: i32) -> (i32, i32, i32) {
    %c0_i32 = arith.constant 0 : i32
    %c0_i32_0 = arith.constant 0 : i32
    %c0_i32_1 = arith.constant 0 : i32
    %c0_i32_2 = arith.constant 0 : i32
    return %c0_i32, %c0_i32_0, %c0_i32_1 : i32, i32, i32
  }
  func.func @transform_6(%arg0: i32) -> (i32, i32) {
    %c0_i32 = arith.constant 0 : i32
    %c0_i32_0 = arith.constant 0 : i32
    %c0_i32_1 = arith.constant 0 : i32
    return %c0_i32, %c0_i32_0 : i32, i32
  }
  func.func @transform_7(%arg0: i32) -> (i32, i32, i32) {
    %c0_i32 = arith.constant 0 : i32
    %c0_i32_0 = arith.constant 0 : i32
    %c0_i32_1 = arith.constant 0 : i32
    return %arg0, %c0_i32, %c0_i32_0 : i32, i32, i32
  }
}

</mosaic_0001>

<llo_original>
// kernel: decoder_head.1
$region0: #{decoder_head.1}
  #allocation0 [shape = 'u32[]', space=smem, size = 0x4, offset = 0x4, fixed_abs, tag = 'smem constant byte address 0x4 - core index']
  #allocation1 [shape = 'u32[72,128]{1,0:T(1,128)}', space=vmem, size = 0x9000, scoped, tag = 'internal scratch']
  %s0 = inlined_call_operand.vmem [shape: bf16[2048,32], index: 0, kind: input, shape index: {}]
  %s1 = inlined_call_operand.vmem [shape: bf16[2048,40], index: 1, kind: input, shape index: {}]
  %s2 = inlined_call_operand.vmem [shape: bf16[32,128], index: 2, kind: input, shape index: {}]
  %s3 = inlined_call_operand.vmem [shape: bf16[40,512], index: 3, kind: input, shape index: {}]
  %s4 = inlined_call_operand.vmem [shape: bf16[4,128,128], index: 4, kind: input, shape index: {}]
  %s5 = inlined_call_operand.vmem [shape: bf16[4,128,128], index: 5, kind: input, shape index: {}]
  %s6 = inlined_call_operand.vmem [shape: f32[16,128], index: 6, kind: input, shape index: {}]
  %s7 = inlined_call_operand.vmem [shape: f32[2,8,128], index: 7, kind: output, shape index: {}]
  %s8 = sld [smem:[#allocation0]]
  $region61: #{decoder_head.1} parent=0
    _
  %s10 = ssub.s32 1, %s8
  %s11 = scalar_select 0, %s10, %s8
  loop: start=0, step=1, limit=4
  $region2: #{decoder_head.1} parent=0 // loop_pre_header
    _
  $region3: #{decoder_head.1} parent=0 // loop_header
    %s13 = sphi 0, %s17
    %p14 = scmp.ge.s32.totalorder %s13, 4
    %s23 = sphi 0, %s25
    %s26 = sphi 0, %s23
    %s27 = sphi 0, %s26
    %s43 = sphi 0, %s27
    %s49 = sphi 0, %s51
    %s52 = sphi 0, %s49
    %s53 = sphi 0, %s52
    %s69 = sphi 0, %s53
    %s73 = sphi 0, %s73
    %s75 = sphi 0, %s73
    %s76 = sphi 0, %s75
    %s90 = sphi 0, %s76
    %s94 = sphi 0, %s94
    %s96 = sphi 0, %s94
    %s97 = sphi 0, %s96
    %s111 = sphi 0, %s97
    %s115 = sphi 0, %s115
    %s117 = sphi 0, %s115
    %s118 = sphi 0, %s117
    %s132 = sphi 0, %s118
    %s136 = sphi 0, %s136
    %s138 = sphi 0, %s136
    %s139 = sphi 0, %s138
    %s153 = sphi 0, %s139
    %s157 = sphi 0, %s157
    %s159 = sphi 0, %s157
    %s160 = sphi 0, %s159
    %s174 = sphi 0, %s160
    %s180 = sphi 0, %s182
    %s183 = sphi 0, %s180
    %s184 = sphi 0, %s183
    %s200 = sphi 0, %s184
  $region4: #{decoder_head.1} parent=0 // loop_header_branch
    %16 = sbr.rel (%p14) target = $region8
  $region5: #{decoder_head.1} parent=0 // loop_body
    %s18 = ssub.s32 %s13, 1
    %s19 = ssub.s32 %s13, 2
    %s20 = sadd.s32 %s13, 1
    %s21 = ssub.s32 %s13, %s20
    %p22 = scmp.eq.s32.totalorder %s21, 0
    %s24 = sadd.s32 %s23, 1
    %s25 = scalar_select %p22, %s23, %s24
    %p28 = pneg %p22
    %p29 = scmp.eq.s32.totalorder %s13, 1
    %p30 = por %p28, %p29
    %p31 = scmp.ne.s32.totalorder %s23, %s26
    %p32 = scmp.eq.s32.totalorder %s13, 0
    %p33 = por %p31, %p32
    %p34 = scmp.ne.s32.totalorder %s23, %s26
    %p35 = scmp.eq.s32.totalorder %s18, 1
    %p36 = por %p34, %p35
    %p37 = scmp.ne.s32.totalorder %s26, %s27
    %p38 = scmp.eq.s32.totalorder %s18, 0
    %p39 = por %p37, %p38
    %p40 = scmp.ne.s32.totalorder %s26, %s27
    %p41 = scmp.eq.s32.totalorder %s19, 1
    %p42 = por %p40, %p41
    %p44 = scmp.ne.s32.totalorder %s27, %s43
    %p45 = scmp.eq.s32.totalorder %s19, 0
    %p46 = por %p44, %p45
    %s47 = ssub.s32 %s13, %s20
    %p48 = scmp.eq.s32.totalorder %s47, 0
    %s50 = sadd.s32 %s49, 1
    %s51 = scalar_select %p48, %s49, %s50
    %p54 = pneg %p48
    %p55 = scmp.eq.s32.totalorder %s13, 1
    %p56 = por %p54, %p55
    %p57 = scmp.ne.s32.totalorder %s49, %s52
    %p58 = scmp.eq.s32.totalorder %s13, 0
    %p59 = por %p57, %p58
    %p60 = scmp.ne.s32.totalorder %s49, %s52
    %p61 = scmp.eq.s32.totalorder %s18, 1
    %p62 = por %p60, %p61
    %p63 = scmp.ne.s32.totalorder %s52, %s53
    %p64 = scmp.eq.s32.totalorder %s18, 0
    %p65 = por %p63, %p64
    %p66 = scmp.ne.s32.totalorder %s52, %s53
    %p67 = scmp.eq.s32.totalorder %s19, 1
    %p68 = por %p66, %p67
    %p70 = scmp.ne.s32.totalorder %s53, %s69
    %p71 = scmp.eq.s32.totalorder %s19, 0
    %p72 = por %p70, %p71
    %s74 = sadd.s32 %s73, 1
    %p77 = scmp.eq.s32.totalorder %s13, 1
    %p78 = scmp.ne.s32.totalorder %s73, %s75
    %p79 = scmp.eq.s32.totalorder %s13, 0
    %p80 = por %p78, %p79
    %p81 = scmp.ne.s32.totalorder %s73, %s75
    %p82 = scmp.eq.s32.totalorder %s18, 1
    %p83 = por %p81, %p82
    %p84 = scmp.ne.s32.totalorder %s75, %s76
    %p85 = scmp.eq.s32.totalorder %s18, 0
    %p86 = por %p84, %p85
    %p87 = scmp.ne.s32.totalorder %s75, %s76
    %p88 = scmp.eq.s32.totalorder %s19, 1
    %p89 = por %p87, %p88
    %p91 = scmp.ne.s32.totalorder %s76, %s90
    %p92 = scmp.eq.s32.totalorder %s19, 0
    %p93 = por %p91, %p92
    %s95 = sadd.s32 %s94, 1
    %p98 = scmp.eq.s32.totalorder %s13, 1
    %p99 = scmp.ne.s32.totalorder %s94, %s96
    %p100 = scmp.eq.s32.totalorder %s13, 0
    %p101 = por %p99, %p100
    %p102 = scmp.ne.s32.totalorder %s94, %s96
    %p103 = scmp.eq.s32.totalorder %s18, 1
    %p104 = por %p102, %p103
    %p105 = scmp.ne.s32.totalorder %s96, %s97
    %p106 = scmp.eq.s32.totalorder %s18, 0
    %p107 = por %p105, %p106
    %p108 = scmp.ne.s32.totalorder %s96, %s97
    %p109 = scmp.eq.s32.totalorder %s19, 1
    %p110 = por %p108, %p109
    %p112 = scmp.ne.s32.totalorder %s97, %s111
    %p113 = scmp.eq.s32.totalorder %s19, 0
    %p114 = por %p112, %p113
    %s116 = sadd.s32 %s115, 1
    %p119 = scmp.eq.s32.totalorder %s13, 1
    %p120 = scmp.ne.s32.totalorder %s115, %s117
    %p121 = scmp.eq.s32.totalorder %s13, 0
    %p122 = por %p120, %p121
    %p123 = scmp.ne.s32.totalorder %s115, %s117
    %p124 = scmp.eq.s32.totalorder %s18, 1
    %p125 = por %p123, %p124
    %p126 = scmp.ne.s32.totalorder %s117, %s118
    %p127 = scmp.eq.s32.totalorder %s18, 0
    %p128 = por %p126, %p127
    %p129 = scmp.ne.s32.totalorder %s117, %s118
    %p130 = scmp.eq.s32.totalorder %s19, 1
    %p131 = por %p129, %p130
    %p133 = scmp.ne.s32.totalorder %s118, %s132
    %p134 = scmp.eq.s32.totalorder %s19, 0
    %p135 = por %p133, %p134
    %s137 = sadd.s32 %s136, 1
    %p140 = scmp.eq.s32.totalorder %s13, 1
    %p141 = scmp.ne.s32.totalorder %s136, %s138
    %p142 = scmp.eq.s32.totalorder %s13, 0
    %p143 = por %p141, %p142
    %p144 = scmp.ne.s32.totalorder %s136, %s138
    %p145 = scmp.eq.s32.totalorder %s18, 1
    %p146 = por %p144, %p145
    %p147 = scmp.ne.s32.totalorder %s138, %s139
    %p148 = scmp.eq.s32.totalorder %s18, 0
    %p149 = por %p147, %p148
    %p150 = scmp.ne.s32.totalorder %s138, %s139
    %p151 = scmp.eq.s32.totalorder %s19, 1
    %p152 = por %p150, %p151
    %p154 = scmp.ne.s32.totalorder %s139, %s153
    %p155 = scmp.eq.s32.totalorder %s19, 0
    %p156 = por %p154, %p155
    %s158 = sadd.s32 %s157, 1
    %p161 = scmp.eq.s32.totalorder %s13, 1
    %p162 = scmp.ne.s32.totalorder %s157, %s159
    %p163 = scmp.eq.s32.totalorder %s13, 0
    %p164 = por %p162, %p163
    %p165 = scmp.ne.s32.totalorder %s157, %s159
    %p166 = scmp.eq.s32.totalorder %s18, 1
    %p167 = por %p165, %p166
    %p168 = scmp.ne.s32.totalorder %s159, %s160
    %p169 = scmp.eq.s32.totalorder %s18, 0
    %p170 = por %p168, %p169
    %p171 = scmp.ne.s32.totalorder %s159, %s160
    %p172 = scmp.eq.s32.totalorder %s19, 1
    %p173 = por %p171, %p172
    %p175 = scmp.ne.s32.totalorder %s160, %s174
    %p176 = scmp.eq.s32.totalorder %s19, 0
    %p177 = por %p175, %p176
    %s178 = ssub.s32 %s13, %s20
    %p179 = scmp.eq.s32.totalorder %s178, 0
    %s181 = sadd.s32 %s180, 1
    %s182 = scalar_select %p179, %s180, %s181
    %p185 = pneg %p179
    %p186 = scmp.eq.s32.totalorder %s13, 1
    %p187 = por %p185, %p186
    %p188 = scmp.ne.s32.totalorder %s180, %s183
    %p189 = scmp.eq.s32.totalorder %s13, 0
    %p190 = por %p188, %p189
    %p191 = scmp.ne.s32.totalorder %s180, %s183
    %p192 = scmp.eq.s32.totalorder %s18, 1
    %p193 = por %p191, %p192
    %p194 = scmp.ne.s32.totalorder %s183, %s184
    %p195 = scmp.eq.s32.totalorder %s18, 0
    %p196 = por %p194, %p195
    %p197 = scmp.ne.s32.totalorder %s183, %s184
    %p198 = scmp.eq.s32.totalorder %s19, 1
    %p199 = por %p197, %p198
    %p201 = scmp.ne.s32.totalorder %s184, %s200
    %p202 = scmp.eq.s32.totalorder %s19, 0
    %p203 = por %p201, %p202
    %p204 = scmp.le.s32.totalorder 1, %s13
    %p205 = scmp.lt.s32.totalorder %s13, 3
    %p206 = pnand %p204, %p205
    %p207 = pneg %p206
    // Predicated region
    $region9: #{decoder_head.1} parent=5 // pred_check
      _
    $region10: #{decoder_head.1} parent=5 // pred_check_branch
      %209 = sbr.rel (%p206) target = $region12
    $region11: #{decoder_head.1} parent=5 // pred_region
      %s210 = ssub.s32 %s13, 1
      // Predicated region
      $region13: #{decoder_head.1} parent=11 // pred_check
        %p211 = pneg %p86
      $region14: #{decoder_head.1} parent=11 // pred_check_branch
        %213 = sbr.rel (%p211) target = $region16
      $region15: #{decoder_head.1} parent=11 // pred_region
        _
      $region16: #{decoder_head.1} parent=11 // pred_fallthru
        _
      // Predicated region
      $region17: #{decoder_head.1} parent=11 // pred_check
        %p214 = pneg %p107
      $region18: #{decoder_head.1} parent=11 // pred_check_branch
        %216 = sbr.rel (%p214) target = $region20
      $region19: #{decoder_head.1} parent=11 // pred_region
        _
      $region20: #{decoder_head.1} parent=11 // pred_fallthru
        _
      // Predicated region
      $region21: #{decoder_head.1} parent=11 // pred_check
        %p217 = pneg %p128
      $region22: #{decoder_head.1} parent=11 // pred_check_branch
        %219 = sbr.rel (%p217) target = $region24
      $region23: #{decoder_head.1} parent=11 // pred_region
        _
      $region24: #{decoder_head.1} parent=11 // pred_fallthru
        _
      // Predicated region
      $region25: #{decoder_head.1} parent=11 // pred_check
        %p220 = pneg %p149
      $region26: #{decoder_head.1} parent=11 // pred_check_branch
        %222 = sbr.rel (%p220) target = $region28
      $region27: #{decoder_head.1} parent=11 // pred_region
        _
      $region28: #{decoder_head.1} parent=11 // pred_fallthru
        _
      // Predicated region
      $region29: #{decoder_head.1} parent=11 // pred_check
        %p223 = pneg %p170
      $region30: #{decoder_head.1} parent=11 // pred_check_branch
        %225 = sbr.rel (%p223) target = $region32
      $region31: #{decoder_head.1} parent=11 // pred_region
        _
      $region32: #{decoder_head.1} parent=11 // pred_fallthru
        _
    $region12: #{decoder_head.1} parent=5 // pred_fallthru
      _
    %p226 = scmp.lt.s32.totalorder %s13, 2
    // Predicated region
    $region33: #{decoder_head.1} parent=5 // pred_check
      %p227 = pneg %p226
    $region34: #{decoder_head.1} parent=5 // pred_check_branch
      %229 = sbr.rel (%p227) target = $region36
    $region35: #{decoder_head.1} parent=5 // pred_region
      // Predicated region
      $region37: #{decoder_head.1} parent=35 // pred_check
        %p230 = pneg %p33
      $region38: #{decoder_head.1} parent=35 // pred_check_branch
        %232 = sbr.rel (%p230) target = $region40
      $region39: #{decoder_head.1} parent=35 // pred_region
        %s233 = smul.u32 128, %s13
        %p234 = scmp.lt.s32.totalorder %s233, 255
        %s235 = scalar_select %p234, %s233, 255
        %s236 = smul.addr %s235, 4
        %s237 = scalar_lea.vmem %s0, %s236
        %s238 = smul.u32 128, %s13
      $region40: #{decoder_head.1} parent=35 // pred_fallthru
        _
      // Predicated region
      $region41: #{decoder_head.1} parent=35 // pred_check
        %p239 = pneg %p59
      $region42: #{decoder_head.1} parent=35 // pred_check_branch
        %241 = sbr.rel (%p239) target = $region44
      $region43: #{decoder_head.1} parent=35 // pred_region
        %s242 = smul.u32 128, %s13
        %p243 = scmp.lt.s32.totalorder %s242, 255
        %s244 = scalar_select %p243, %s242, 255
        %s245 = smul.addr %s244, 4
        %s246 = scalar_lea.vmem %s1, %s245
        %s247 = smul.u32 128, %s13
      $region44: #{decoder_head.1} parent=35 // pred_fallthru
        _
    $region36: #{decoder_head.1} parent=5 // pred_fallthru
      _
    %p248 = scmp.le.s32.totalorder 1, %s13
    %p249 = scmp.lt.s32.totalorder %s13, 3
    %p250 = pnand %p248, %p249
    %p251 = pneg %p250
    // Predicated region
    $region45: #{decoder_head.1} parent=5 // pred_check
      _
    $region46: #{decoder_head.1} parent=5 // pred_check_branch
      %253 = sbr.rel (%p250) target = $region48
    $region47: #{decoder_head.1} parent=5 // pred_region
      %s254 = ssub.s32 %s13, 1
      %s255 = smul.u32 128, %s18
      %p256 = scmp.lt.s32.totalorder %s255, 255
      %s257 = scalar_select %p256, %s255, 255
      %s258 = smul.addr %s257, 4
      %s259 = scalar_lea.vmem %s0, %s258
      %p260 = pneg %p39
      %p261 = pneg %p36
      %s262 = smul.u32 128, %s18
      %p263 = scmp.lt.s32.totalorder %s262, 255
      %s264 = scalar_select %p263, %s262, 255
      %s265 = smul.addr %s264, 4
      %s266 = scalar_lea.vmem %s1, %s265
      %p267 = pneg %p65
      %p268 = pneg %p62
      %p269 = pneg %p86
      %p270 = pneg %p83
      %p271 = pneg %p107
      %p272 = pneg %p104
      %p273 = pneg %p128
      %p274 = pneg %p125
      %p275 = pneg %p149
      %p276 = pneg %p146
      %p277 = pneg %p170
      %p278 = pneg %p167
      %p279 = pneg %p196
      %p280 = pneg %p193
      %p281 = scmp.lt.s32.totalorder %s18, 1
      %s282 = scalar_select %p281, %s18, 1
      %s283 = smul.addr %s282, 8
      %s284 = scalar_lea.vmem %s7, %s283
      %s285 = smul.u32 128, %s18
      %p286 = scmp.lt.s32.totalorder %s285, 255
      %s287 = scalar_select %p286, %s285, 255
      %s288 = smul.addr %s287, 4
      %s289 = scalar_lea.vmem %s0, %s288
      %s290 = smul.u32 128, %s18
      %s291 = smul.u32 128, %s18
      %p292 = scmp.lt.s32.totalorder %s291, 255
      %s293 = scalar_select %p292, %s291, 255
      %s294 = smul.addr %s293, 4
      %s295 = scalar_lea.vmem %s1, %s294
      %s296 = smul.u32 128, %s18
      %p297 = scmp.lt.s32.totalorder %s18, 1
      %s298 = scalar_select %p297, %s18, 1
      %s299 = smul.addr %s298, 8
      %s300 = scalar_lea.vmem %s7, %s299
      %v302 = vld [vmem:[%s6] sm:$0xff]
      %v303 = vld [vmem:[%s6 + $0x8] sm:$0xff]
      %v304 = vld [vmem:[%s289] sm:$0xf]
      %v305 = vld [vmem:[%s289 + $0x4] sm:$0xf]
      %v306 = vld [vmem:[%s289 + $0x8] sm:$0xf]
      %v307 = vld [vmem:[%s289 + $0xc] sm:$0xf]
      %v308 = vld [vmem:[%s289 + $0x10] sm:$0xf]
      %v309 = vld [vmem:[%s289 + $0x14] sm:$0xf]
      %v310 = vld [vmem:[%s289 + $0x18] sm:$0xf]
      %v311 = vld [vmem:[%s289 + $0x1c] sm:$0xf]
      %v312 = vld [vmem:[%s289 + $0x20] sm:$0xf]
      %v313 = vld [vmem:[%s289 + $0x24] sm:$0xf]
      %v314 = vld [vmem:[%s289 + $0x28] sm:$0xf]
      %v315 = vld [vmem:[%s289 + $0x2c] sm:$0xf]
      %v316 = vld [vmem:[%s289 + $0x30] sm:$0xf]
      %v317 = vld [vmem:[%s289 + $0x34] sm:$0xf]
      %v318 = vld [vmem:[%s289 + $0x38] sm:$0xf]
      %v319 = vld [vmem:[%s289 + $0x3c] sm:$0xf]
      %v320 = vld [vmem:[%s289 + $0x40] sm:$0xf]
      %v321 = vld [vmem:[%s289 + $0x44] sm:$0xf]
      %v322 = vld [vmem:[%s289 + $0x48] sm:$0xf]
      %v323 = vld [vmem:[%s289 + $0x4c] sm:$0xf]
      %v324 = vld [vmem:[%s289 + $0x50] sm:$0xf]
      %v325 = vld [vmem:[%s289 + $0x54] sm:$0xf]
      %v326 = vld [vmem:[%s289 + $0x58] sm:$0xf]
      %v327 = vld [vmem:[%s289 + $0x5c] sm:$0xf]
      %v328 = vld [vmem:[%s289 + $0x60] sm:$0xf]
      %v329 = vld [vmem:[%s289 + $0x64] sm:$0xf]
      %v330 = vld [vmem:[%s289 + $0x68] sm:$0xf]
      %v331 = vld [vmem:[%s289 + $0x6c] sm:$0xf]
      %v332 = vld [vmem:[%s289 + $0x70] sm:$0xf]
      %v333 = vld [vmem:[%s289 + $0x74] sm:$0xf]
      %v334 = vld [vmem:[%s289 + $0x78] sm:$0xf]
      %v335 = vld [vmem:[%s289 + $0x7c] sm:$0xf]
      %v336 = vld [vmem:[%s289 + $0x80] sm:$0xf]
      %v337 = vld [vmem:[%s289 + $0x84] sm:$0xf]
      %v338 = vld [vmem:[%s289 + $0x88] sm:$0xf]
      %v339 = vld [vmem:[%s289 + $0x8c] sm:$0xf]
      %v340 = vld [vmem:[%s289 + $0x90] sm:$0xf]
      %v341 = vld [vmem:[%s289 + $0x94] sm:$0xf]
      %v342 = vld [vmem:[%s289 + $0x98] sm:$0xf]
      %v343 = vld [vmem:[%s289 + $0x9c] sm:$0xf]
      %v344 = vld [vmem:[%s289 + $0xa0] sm:$0xf]
      %v345 = vld [vmem:[%s289 + $0xa4] sm:$0xf]
      %v346 = vld [vmem:[%s289 + $0xa8] sm:$0xf]
      %v347 = vld [vmem:[%s289 + $0xac] sm:$0xf]
      %v348 = vld [vmem:[%s289 + $0xb0] sm:$0xf]
      %v349 = vld [vmem:[%s289 + $0xb4] sm:$0xf]
      %v350 = vld [vmem:[%s289 + $0xb8] sm:$0xf]
      %v351 = vld [vmem:[%s289 + $0xbc] sm:$0xf]
      %v352 = vld [vmem:[%s289 + $0xc0] sm:$0xf]
      %v353 = vld [vmem:[%s289 + $0xc4] sm:$0xf]
      %v354 = vld [vmem:[%s289 + $0xc8] sm:$0xf]
      %v355 = vld [vmem:[%s289 + $0xcc] sm:$0xf]
      %v356 = vld [vmem:[%s289 + $0xd0] sm:$0xf]
      %v357 = vld [vmem:[%s289 + $0xd4] sm:$0xf]
      %v358 = vld [vmem:[%s289 + $0xd8] sm:$0xf]
      %v359 = vld [vmem:[%s289 + $0xdc] sm:$0xf]
      %v360 = vld [vmem:[%s289 + $0xe0] sm:$0xf]
      %v361 = vld [vmem:[%s289 + $0xe4] sm:$0xf]
      %v362 = vld [vmem:[%s289 + $0xe8] sm:$0xf]
      %v363 = vld [vmem:[%s289 + $0xec] sm:$0xf]
      %v364 = vld [vmem:[%s289 + $0xf0] sm:$0xf]
      %v365 = vld [vmem:[%s289 + $0xf4] sm:$0xf]
      %v366 = vld [vmem:[%s289 + $0xf8] sm:$0xf]
      %v367 = vld [vmem:[%s289 + $0xfc] sm:$0xf]
      %v368 = vld [vmem:[%s289 + $0x100] sm:$0xf]
      %v369 = vld [vmem:[%s289 + $0x104] sm:$0xf]
      %v370 = vld [vmem:[%s289 + $0x108] sm:$0xf]
      %v371 = vld [vmem:[%s289 + $0x10c] sm:$0xf]
      %v372 = vld [vmem:[%s289 + $0x110] sm:$0xf]
      %v373 = vld [vmem:[%s289 + $0x114] sm:$0xf]
      %v374 = vld [vmem:[%s289 + $0x118] sm:$0xf]
      %v375 = vld [vmem:[%s289 + $0x11c] sm:$0xf]
      %v376 = vld [vmem:[%s289 + $0x120] sm:$0xf]
      %v377 = vld [vmem:[%s289 + $0x124] sm:$0xf]
      %v378 = vld [vmem:[%s289 + $0x128] sm:$0xf]
      %v379 = vld [vmem:[%s289 + $0x12c] sm:$0xf]
      %v380 = vld [vmem:[%s289 + $0x130] sm:$0xf]
      %v381 = vld [vmem:[%s289 + $0x134] sm:$0xf]
      %v382 = vld [vmem:[%s289 + $0x138] sm:$0xf]
      %v383 = vld [vmem:[%s289 + $0x13c] sm:$0xf]
      %v384 = vld [vmem:[%s289 + $0x140] sm:$0xf]
      %v385 = vld [vmem:[%s289 + $0x144] sm:$0xf]
      %v386 = vld [vmem:[%s289 + $0x148] sm:$0xf]
      %v387 = vld [vmem:[%s289 + $0x14c] sm:$0xf]
      %v388 = vld [vmem:[%s289 + $0x150] sm:$0xf]
      %v389 = vld [vmem:[%s289 + $0x154] sm:$0xf]
      %v390 = vld [vmem:[%s289 + $0x158] sm:$0xf]
      %v391 = vld [vmem:[%s289 + $0x15c] sm:$0xf]
      %v392 = vld [vmem:[%s289 + $0x160] sm:$0xf]
      %v393 = vld [vmem:[%s289 + $0x164] sm:$0xf]
      %v394 = vld [vmem:[%s289 + $0x168] sm:$0xf]
      %v395 = vld [vmem:[%s289 + $0x16c] sm:$0xf]
      %v396 = vld [vmem:[%s289 + $0x170] sm:$0xf]
      %v397 = vld [vmem:[%s289 + $0x174] sm:$0xf]
      %v398 = vld [vmem:[%s289 + $0x178] sm:$0xf]
      %v399 = vld [vmem:[%s289 + $0x17c] sm:$0xf]
      %v400 = vld [vmem:[%s289 + $0x180] sm:$0xf]
      %v401 = vld [vmem:[%s289 + $0x184] sm:$0xf]
      %v402 = vld [vmem:[%s289 + $0x188] sm:$0xf]
      %v403 = vld [vmem:[%s289 + $0x18c] sm:$0xf]
      %v404 = vld [vmem:[%s289 + $0x190] sm:$0xf]
      %v405 = vld [vmem:[%s289 + $0x194] sm:$0xf]
      %v406 = vld [vmem:[%s289 + $0x198] sm:$0xf]
      %v407 = vld [vmem:[%s289 + $0x19c] sm:$0xf]
      %v408 = vld [vmem:[%s289 + $0x1a0] sm:$0xf]
      %v409 = vld [vmem:[%s289 + $0x1a4] sm:$0xf]
      %v410 = vld [vmem:[%s289 + $0x1a8] sm:$0xf]
      %v411 = vld [vmem:[%s289 + $0x1ac] sm:$0xf]
      %v412 = vld [vmem:[%s289 + $0x1b0] sm:$0xf]
      %v413 = vld [vmem:[%s289 + $0x1b4] sm:$0xf]
      %v414 = vld [vmem:[%s289 + $0x1b8] sm:$0xf]
      %v415 = vld [vmem:[%s289 + $0x1bc] sm:$0xf]
      %v416 = vld [vmem:[%s289 + $0x1c0] sm:$0xf]
      %v417 = vld [vmem:[%s289 + $0x1c4] sm:$0xf]
      %v418 = vld [vmem:[%s289 + $0x1c8] sm:$0xf]
      %v419 = vld [vmem:[%s289 + $0x1cc] sm:$0xf]
      %v420 = vld [vmem:[%s289 + $0x1d0] sm:$0xf]
      %v421 = vld [vmem:[%s289 + $0x1d4] sm:$0xf]
      %v422 = vld [vmem:[%s289 + $0x1d8] sm:$0xf]
      %v423 = vld [vmem:[%s289 + $0x1dc] sm:$0xf]
      %v424 = vld [vmem:[%s289 + $0x1e0] sm:$0xf]
      %v425 = vld [vmem:[%s289 + $0x1e4] sm:$0xf]
      %v426 = vld [vmem:[%s289 + $0x1e8] sm:$0xf]
      %v427 = vld [vmem:[%s289 + $0x1ec] sm:$0xf]
      %v428 = vld [vmem:[%s289 + $0x1f0] sm:$0xf]
      %v429 = vld [vmem:[%s289 + $0x1f4] sm:$0xf]
      %v430 = vld [vmem:[%s289 + $0x1f8] sm:$0xf]
      %v431 = vld [vmem:[%s289 + $0x1fc] sm:$0xf]
      %v432 = vld [vmem:[%s295] sm:$0xf]
      %v433 = vld [vmem:[%s295 + $0x4] sm:$0xf]
      %v434 = vld [vmem:[%s295 + $0x8] sm:$0xf]
      %v435 = vld [vmem:[%s295 + $0xc] sm:$0xf]
      %v436 = vld [vmem:[%s295 + $0x10] sm:$0xf]
      %v437 = vld [vmem:[%s295 + $0x14] sm:$0xf]
      %v438 = vld [vmem:[%s295 + $0x18] sm:$0xf]
      %v439 = vld [vmem:[%s295 + $0x1c] sm:$0xf]
      %v440 = vld [vmem:[%s295 + $0x20] sm:$0xf]
      %v441 = vld [vmem:[%s295 + $0x24] sm:$0xf]
      %v442 = vld [vmem:[%s295 + $0x28] sm:$0xf]
      %v443 = vld [vmem:[%s295 + $0x2c] sm:$0xf]
      %v444 = vld [vmem:[%s295 + $0x30] sm:$0xf]
      %v445 = vld [vmem:[%s295 + $0x34] sm:$0xf]
      %v446 = vld [vmem:[%s295 + $0x38] sm:$0xf]
      %v447 = vld [vmem:[%s295 + $0x3c] sm:$0xf]
      %v448 = vld [vmem:[%s295 + $0x40] sm:$0xf]
      %v449 = vld [vmem:[%s295 + $0x44] sm:$0xf]
      %v450 = vld [vmem:[%s295 + $0x48] sm:$0xf]
      %v451 = vld [vmem:[%s295 + $0x4c] sm:$0xf]
      %v452 = vld [vmem:[%s295 + $0x50] sm:$0xf]
      %v453 = vld [vmem:[%s295 + $0x54] sm:$0xf]
      %v454 = vld [vmem:[%s295 + $0x58] sm:$0xf]
      %v455 = vld [vmem:[%s295 + $0x5c] sm:$0xf]
      %v456 = vld [vmem:[%s295 + $0x60] sm:$0xf]
      %v457 = vld [vmem:[%s295 + $0x64] sm:$0xf]
      %v458 = vld [vmem:[%s295 + $0x68] sm:$0xf]
      %v459 = vld [vmem:[%s295 + $0x6c] sm:$0xf]
      %v460 = vld [vmem:[%s295 + $0x70] sm:$0xf]
      %v461 = vld [vmem:[%s295 + $0x74] sm:$0xf]
      %v462 = vld [vmem:[%s295 + $0x78] sm:$0xf]
      %v463 = vld [vmem:[%s295 + $0x7c] sm:$0xf]
      %v464 = vld [vmem:[%s295 + $0x80] sm:$0xf]
      %v465 = vld [vmem:[%s295 + $0x84] sm:$0xf]
      %v466 = vld [vmem:[%s295 + $0x88] sm:$0xf]
      %v467 = vld [vmem:[%s295 + $0x8c] sm:$0xf]
      %v468 = vld [vmem:[%s295 + $0x90] sm:$0xf]
      %v469 = vld [vmem:[%s295 + $0x94] sm:$0xf]
      %v470 = vld [vmem:[%s295 + $0x98] sm:$0xf]
      %v471 = vld [vmem:[%s295 + $0x9c] sm:$0xf]
      %v472 = vld [vmem:[%s295 + $0xa0] sm:$0xf]
      %v473 = vld [vmem:[%s295 + $0xa4] sm:$0xf]
      %v474 = vld [vmem:[%s295 + $0xa8] sm:$0xf]
      %v475 = vld [vmem:[%s295 + $0xac] sm:$0xf]
      %v476 = vld [vmem:[%s295 + $0xb0] sm:$0xf]
      %v477 = vld [vmem:[%s295 + $0xb4] sm:$0xf]
      %v478 = vld [vmem:[%s295 + $0xb8] sm:$0xf]
      %v479 = vld [vmem:[%s295 + $0xbc] sm:$0xf]
      %v480 = vld [vmem:[%s295 + $0xc0] sm:$0xf]
      %v481 = vld [vmem:[%s295 + $0xc4] sm:$0xf]
      %v482 = vld [vmem:[%s295 + $0xc8] sm:$0xf]
      %v483 = vld [vmem:[%s295 + $0xcc] sm:$0xf]
      %v484 = vld [vmem:[%s295 + $0xd0] sm:$0xf]
      %v485 = vld [vmem:[%s295 + $0xd4] sm:$0xf]
      %v486 = vld [vmem:[%s295 + $0xd8] sm:$0xf]
      %v487 = vld [vmem:[%s295 + $0xdc] sm:$0xf]
      %v488 = vld [vmem:[%s295 + $0xe0] sm:$0xf]
      %v489 = vld [vmem:[%s295 + $0xe4] sm:$0xf]
      %v490 = vld [vmem:[%s295 + $0xe8] sm:$0xf]
      %v491 = vld [vmem:[%s295 + $0xec] sm:$0xf]
      %v492 = vld [vmem:[%s295 + $0xf0] sm:$0xf]
      %v493 = vld [vmem:[%s295 + $0xf4] sm:$0xf]
      %v494 = vld [vmem:[%s295 + $0xf8] sm:$0xf]
      %v495 = vld [vmem:[%s295 + $0xfc] sm:$0xf]
      %v496 = vld [vmem:[%s295 + $0x100] sm:$0xf]
      %v497 = vld [vmem:[%s295 + $0x104] sm:$0xf]
      %v498 = vld [vmem:[%s295 + $0x108] sm:$0xf]
      %v499 = vld [vmem:[%s295 + $0x10c] sm:$0xf]
      %v500 = vld [vmem:[%s295 + $0x110] sm:$0xf]
      %v501 = vld [vmem:[%s295 + $0x114] sm:$0xf]
      %v502 = vld [vmem:[%s295 + $0x118] sm:$0xf]
      %v503 = vld [vmem:[%s295 + $0x11c] sm:$0xf]
      %v504 = vld [vmem:[%s295 + $0x120] sm:$0xf]
      %v505 = vld [vmem:[%s295 + $0x124] sm:$0xf]
      %v506 = vld [vmem:[%s295 + $0x128] sm:$0xf]
      %v507 = vld [vmem:[%s295 + $0x12c] sm:$0xf]
      %v508 = vld [vmem:[%s295 + $0x130] sm:$0xf]
      %v509 = vld [vmem:[%s295 + $0x134] sm:$0xf]
      %v510 = vld [vmem:[%s295 + $0x138] sm:$0xf]
      %v511 = vld [vmem:[%s295 + $0x13c] sm:$0xf]
      %v512 = vld [vmem:[%s295 + $0x140] sm:$0xf]
      %v513 = vld [vmem:[%s295 + $0x144] sm:$0xf]
      %v514 = vld [vmem:[%s295 + $0x148] sm:$0xf]
      %v515 = vld [vmem:[%s295 + $0x14c] sm:$0xf]
      %v516 = vld [vmem:[%s295 + $0x150] sm:$0xf]
      %v517 = vld [vmem:[%s295 + $0x154] sm:$0xf]
      %v518 = vld [vmem:[%s295 + $0x158] sm:$0xf]
      %v519 = vld [vmem:[%s295 + $0x15c] sm:$0xf]
      %v520 = vld [vmem:[%s295 + $0x160] sm:$0xf]
      %v521 = vld [vmem:[%s295 + $0x164] sm:$0xf]
      %v522 = vld [vmem:[%s295 + $0x168] sm:$0xf]
      %v523 = vld [vmem:[%s295 + $0x16c] sm:$0xf]
      %v524 = vld [vmem:[%s295 + $0x170] sm:$0xf]
      %v525 = vld [vmem:[%s295 + $0x174] sm:$0xf]
      %v526 = vld [vmem:[%s295 + $0x178] sm:$0xf]
      %v527 = vld [vmem:[%s295 + $0x17c] sm:$0xf]
      %v528 = vld [vmem:[%s295 + $0x180] sm:$0xf]
      %v529 = vld [vmem:[%s295 + $0x184] sm:$0xf]
      %v530 = vld [vmem:[%s295 + $0x188] sm:$0xf]
      %v531 = vld [vmem:[%s295 + $0x18c] sm:$0xf]
      %v532 = vld [vmem:[%s295 + $0x190] sm:$0xf]
      %v533 = vld [vmem:[%s295 + $0x194] sm:$0xf]
      %v534 = vld [vmem:[%s295 + $0x198] sm:$0xf]
      %v535 = vld [vmem:[%s295 + $0x19c] sm:$0xf]
      %v536 = vld [vmem:[%s295 + $0x1a0] sm:$0xf]
      %v537 = vld [vmem:[%s295 + $0x1a4] sm:$0xf]
      %v538 = vld [vmem:[%s295 + $0x1a8] sm:$0xf]
      %v539 = vld [vmem:[%s295 + $0x1ac] sm:$0xf]
      %v540 = vld [vmem:[%s295 + $0x1b0] sm:$0xf]
      %v541 = vld [vmem:[%s295 + $0x1b4] sm:$0xf]
      %v542 = vld [vmem:[%s295 + $0x1b8] sm:$0xf]
      %v543 = vld [vmem:[%s295 + $0x1bc] sm:$0xf]
      %v544 = vld [vmem:[%s295 + $0x1c0] sm:$0xf]
      %v545 = vld [vmem:[%s295 + $0x1c4] sm:$0xf]
      %v546 = vld [vmem:[%s295 + $0x1c8] sm:$0xf]
      %v547 = vld [vmem:[%s295 + $0x1cc] sm:$0xf]
      %v548 = vld [vmem:[%s295 + $0x1d0] sm:$0xf]
      %v549 = vld [vmem:[%s295 + $0x1d4] sm:$0xf]
      %v550 = vld [vmem:[%s295 + $0x1d8] sm:$0xf]
      %v551 = vld [vmem:[%s295 + $0x1dc] sm:$0xf]
      %v552 = vld [vmem:[%s295 + $0x1e0] sm:$0xf]
      %v553 = vld [vmem:[%s295 + $0x1e4] sm:$0xf]
      %v554 = vld [vmem:[%s295 + $0x1e8] sm:$0xf]
      %v555 = vld [vmem:[%s295 + $0x1ec] sm:$0xf]
      %v556 = vld [vmem:[%s295 + $0x1f0] sm:$0xf]
      %v557 = vld [vmem:[%s295 + $0x1f4] sm:$0xf]
      %v558 = vld [vmem:[%s295 + $0x1f8] sm:$0xf]
      %v559 = vld [vmem:[%s295 + $0x1fc] sm:$0xf]
      %v560 = vld [vmem:[%s2] sm:$0xf]
      %v561 = vld [vmem:[%s2 + $0x4] sm:$0xf]
      %v562 = vld [vmem:[%s2 + $0x8] sm:$0xf]
      %v563 = vld [vmem:[%s2 + $0xc] sm:$0xf]
      %v564 = vperm.slane %v302, 0
      %v693 = vunpack.c.l.b16 %v304
      %v694 = vunpack.c.l.b16 %v305
      %v695 = vunpack.c.l.b16 %v306
      %v696 = vunpack.c.l.b16 %v307
      %v697 = vunpack.c.l.b16 %v308
      %v698 = vunpack.c.l.b16 %v309
      %v699 = vunpack.c.l.b16 %v310
      %v700 = vunpack.c.l.b16 %v311
      %v701 = vunpack.c.l.b16 %v312
      %v702 = vunpack.c.l.b16 %v313
      %v703 = vunpack.c.l.b16 %v314
      %v704 = vunpack.c.l.b16 %v315
      %v705 = vunpack.c.l.b16 %v316
      %v706 = vunpack.c.l.b16 %v317
      %v707 = vunpack.c.l.b16 %v318
      %v708 = vunpack.c.l.b16 %v319
      %v709 = vunpack.c.l.b16 %v320
      %v710 = vunpack.c.l.b16 %v321
      %v711 = vunpack.c.l.b16 %v322
      %v712 = vunpack.c.l.b16 %v323
      %v713 = vunpack.c.l.b16 %v324
      %v714 = vunpack.c.l.b16 %v325
      %v715 = vunpack.c.l.b16 %v326
      %v716 = vunpack.c.l.b16 %v327
      %v717 = vunpack.c.l.b16 %v328
      %v718 = vunpack.c.l.b16 %v329
      %v719 = vunpack.c.l.b16 %v330
      %v720 = vunpack.c.l.b16 %v331
      %v721 = vunpack.c.l.b16 %v332
      %v722 = vunpack.c.l.b16 %v333
      %v723 = vunpack.c.l.b16 %v334
      %v724 = vunpack.c.l.b16 %v335
      %v725 = vunpack.c.l.b16 %v336
      %v726 = vunpack.c.l.b16 %v337
      %v727 = vunpack.c.l.b16 %v338
      %v728 = vunpack.c.l.b16 %v339
      %v729 = vunpack.c.l.b16 %v340
      %v730 = vunpack.c.l.b16 %v341
      %v731 = vunpack.c.l.b16 %v342
      %v732 = vunpack.c.l.b16 %v343
      %v733 = vunpack.c.l.b16 %v344
      %v734 = vunpack.c.l.b16 %v345
      %v735 = vunpack.c.l.b16 %v346
      %v736 = vunpack.c.l.b16 %v347
      %v737 = vunpack.c.l.b16 %v348
      %v738 = vunpack.c.l.b16 %v349
      %v739 = vunpack.c.l.b16 %v350
      %v740 = vunpack.c.l.b16 %v351
      %v741 = vunpack.c.l.b16 %v352
      %v742 = vunpack.c.l.b16 %v353
      %v743 = vunpack.c.l.b16 %v354
      %v744 = vunpack.c.l.b16 %v355
      %v745 = vunpack.c.l.b16 %v356
      %v746 = vunpack.c.l.b16 %v357
      %v747 = vunpack.c.l.b16 %v358
      %v748 = vunpack.c.l.b16 %v359
      %v749 = vunpack.c.l.b16 %v360
      %v750 = vunpack.c.l.b16 %v361
      %v751 = vunpack.c.l.b16 %v362
      %v752 = vunpack.c.l.b16 %v363
      %v753 = vunpack.c.l.b16 %v364
      %v754 = vunpack.c.l.b16 %v365
      %v755 = vunpack.c.l.b16 %v366
      %v756 = vunpack.c.l.b16 %v367
      %v757 = vunpack.c.l.b16 %v368
      %v758 = vunpack.c.l.b16 %v369
      %v759 = vunpack.c.l.b16 %v370
      %v760 = vunpack.c.l.b16 %v371
      %v761 = vunpack.c.l.b16 %v372
      %v762 = vunpack.c.l.b16 %v373
      %v763 = vunpack.c.l.b16 %v374
      %v764 = vunpack.c.l.b16 %v375
      %v765 = vunpack.c.l.b16 %v376
      %v766 = vunpack.c.l.b16 %v377
      %v767 = vunpack.c.l.b16 %v378
      %v768 = vunpack.c.l.b16 %v379
      %v769 = vunpack.c.l.b16 %v380
      %v770 = vunpack.c.l.b16 %v381
      %v771 = vunpack.c.l.b16 %v382
      %v772 = vunpack.c.l.b16 %v383
      %v773 = vunpack.c.l.b16 %v384
      %v774 = vunpack.c.l.b16 %v385
      %v775 = vunpack.c.l.b16 %v386
      %v776 = vunpack.c.l.b16 %v387
      %v777 = vunpack.c.l.b16 %v388
      %v778 = vunpack.c.l.b16 %v389
      %v779 = vunpack.c.l.b16 %v390
      %v780 = vunpack.c.l.b16 %v391
      %v781 = vunpack.c.l.b16 %v392
      %v782 = vunpack.c.l.b16 %v393
      %v783 = vunpack.c.l.b16 %v394
      %v784 = vunpack.c.l.b16 %v395
      %v785 = vunpack.c.l.b16 %v396
      %v786 = vunpack.c.l.b16 %v397
      %v787 = vunpack.c.l.b16 %v398
      %v788 = vunpack.c.l.b16 %v399
      %v789 = vunpack.c.l.b16 %v400
      %v790 = vunpack.c.l.b16 %v401
      %v791 = vunpack.c.l.b16 %v402
      %v792 = vunpack.c.l.b16 %v403
      %v793 = vunpack.c.l.b16 %v404
      %v794 = vunpack.c.l.b16 %v405
      %v795 = vunpack.c.l.b16 %v406
      %v796 = vunpack.c.l.b16 %v407
      %v797 = vunpack.c.l.b16 %v408
      %v798 = vunpack.c.l.b16 %v409
      %v799 = vunpack.c.l.b16 %v410
      %v800 = vunpack.c.l.b16 %v411
      %v801 = vunpack.c.l.b16 %v412
      %v802 = vunpack.c.l.b16 %v413
      %v803 = vunpack.c.l.b16 %v414
      %v804 = vunpack.c.l.b16 %v415
      %v805 = vunpack.c.l.b16 %v416
      %v806 = vunpack.c.l.b16 %v417
      %v807 = vunpack.c.l.b16 %v418
      %v808 = vunpack.c.l.b16 %v419
      %v809 = vunpack.c.l.b16 %v420
      %v810 = vunpack.c.l.b16 %v421
      %v811 = vunpack.c.l.b16 %v422
      %v812 = vunpack.c.l.b16 %v423
      %v813 = vunpack.c.l.b16 %v424
      %v814 = vunpack.c.l.b16 %v425
      %v815 = vunpack.c.l.b16 %v426
      %v816 = vunpack.c.l.b16 %v427
      %v817 = vunpack.c.l.b16 %v428
      %v818 = vunpack.c.l.b16 %v429
      %v819 = vunpack.c.l.b16 %v430
      %v820 = vunpack.c.l.b16 %v431
      %v821 = vpack.c.b16 %v694, %v693
      %v822 = vpack.c.b16 %v696, %v695
      %v823 = vpack.c.b16 %v698, %v697
      %v824 = vpack.c.b16 %v700, %v699
      %v825 = vpack.c.b16 %v702, %v701
      %v826 = vpack.c.b16 %v704, %v703
      %v827 = vpack.c.b16 %v706, %v705
      %v828 = vpack.c.b16 %v708, %v707
      %v829 = vpack.c.b16 %v710, %v709
      %v830 = vpack.c.b16 %v712, %v711
      %v831 = vpack.c.b16 %v714, %v713
      %v832 = vpack.c.b16 %v716, %v715
      %v833 = vpack.c.b16 %v718, %v717
      %v834 = vpack.c.b16 %v720, %v719
      %v835 = vpack.c.b16 %v722, %v721
      %v836 = vpack.c.b16 %v724, %v723
      %v837 = vpack.c.b16 %v726, %v725
      %v838 = vpack.c.b16 %v728, %v727
      %v839 = vpack.c.b16 %v730, %v729
      %v840 = vpack.c.b16 %v732, %v731
      %v841 = vpack.c.b16 %v734, %v733
      %v842 = vpack.c.b16 %v736, %v735
      %v843 = vpack.c.b16 %v738, %v737
      %v844 = vpack.c.b16 %v740, %v739
      %v845 = vpack.c.b16 %v742, %v741
      %v846 = vpack.c.b16 %v744, %v743
      %v847 = vpack.c.b16 %v746, %v745
      %v848 = vpack.c.b16 %v748, %v747
      %v849 = vpack.c.b16 %v750, %v749
      %v850 = vpack.c.b16 %v752, %v751
      %v851 = vpack.c.b16 %v754, %v753
      %v852 = vpack.c.b16 %v756, %v755
      %v853 = vpack.c.b16 %v758, %v757
      %v854 = vpack.c.b16 %v760, %v759
      %v855 = vpack.c.b16 %v762, %v761
      %v856 = vpack.c.b16 %v764, %v763
      %v857 = vpack.c.b16 %v766, %v765
      %v858 = vpack.c.b16 %v768, %v767
      %v859 = vpack.c.b16 %v770, %v769
      %v860 = vpack.c.b16 %v772, %v771
      %v861 = vpack.c.b16 %v774, %v773
      %v862 = vpack.c.b16 %v776, %v775
      %v863 = vpack.c.b16 %v778, %v777
      %v864 = vpack.c.b16 %v780, %v779
      %v865 = vpack.c.b16 %v782, %v781
      %v866 = vpack.c.b16 %v784, %v783
      %v867 = vpack.c.b16 %v786, %v785
      %v868 = vpack.c.b16 %v788, %v787
      %v869 = vpack.c.b16 %v790, %v789
      %v870 = vpack.c.b16 %v792, %v791
      %v871 = vpack.c.b16 %v794, %v793
      %v872 = vpack.c.b16 %v796, %v795
      %v873 = vpack.c.b16 %v798, %v797
      %v874 = vpack.c.b16 %v800, %v799
      %v875 = vpack.c.b16 %v802, %v801
      %v876 = vpack.c.b16 %v804, %v803
      %v877 = vpack.c.b16 %v806, %v805
      %v878 = vpack.c.b16 %v808, %v807
      %v879 = vpack.c.b16 %v810, %v809
      %v880 = vpack.c.b16 %v812, %v811
      %v881 = vpack.c.b16 %v814, %v813
      %v882 = vpack.c.b16 %v816, %v815
      %v883 = vpack.c.b16 %v818, %v817
      %v884 = vpack.c.b16 %v820, %v819
      %v889 = vunpack.c.l.b16 %v560
      %v890 = vunpack.c.l.b16 %v561
      %v891 = vunpack.c.l.b16 %v562
      %v892 = vunpack.c.l.b16 %v563
      %v893 = vpack.c.b16 %v890, %v889
      %v894 = vpack.c.b16 %v892, %v891
      %vm897 = vcmask 261120
      %v899 = vsel %vm897, %v821, 0
      %v902 = vsel %vm897, %v822, 0
      %v905 = vsel %vm897, %v823, 0
      %v908 = vsel %vm897, %v824, 0
      %v911 = vsel %vm897, %v825, 0
      %v914 = vsel %vm897, %v826, 0
      %v917 = vsel %vm897, %v827, 0
      %v920 = vsel %vm897, %v828, 0
      %v923 = vsel %vm897, %v829, 0
      %v926 = vsel %vm897, %v830, 0
      %v929 = vsel %vm897, %v831, 0
      %v932 = vsel %vm897, %v832, 0
      %v935 = vsel %vm897, %v833, 0
      %v938 = vsel %vm897, %v834, 0
      %v941 = vsel %vm897, %v835, 0
      %v944 = vsel %vm897, %v836, 0
      %v947 = vsel %vm897, %v837, 0
      %v950 = vsel %vm897, %v838, 0
      %v953 = vsel %vm897, %v839, 0
      %v956 = vsel %vm897, %v840, 0
      %v959 = vsel %vm897, %v841, 0
      %v962 = vsel %vm897, %v842, 0
      %v965 = vsel %vm897, %v843, 0
      %v968 = vsel %vm897, %v844, 0
      %v971 = vsel %vm897, %v845, 0
      %v974 = vsel %vm897, %v846, 0
      %v977 = vsel %vm897, %v847, 0
      %v980 = vsel %vm897, %v848, 0
      %v983 = vsel %vm897, %v849, 0
      %v986 = vsel %vm897, %v850, 0
      %v989 = vsel %vm897, %v851, 0
      %v992 = vsel %vm897, %v852, 0
      %v995 = vsel %vm897, %v853, 0
      %v998 = vsel %vm897, %v854, 0
      %v1001 = vsel %vm897, %v855, 0
      %v1004 = vsel %vm897, %v856, 0
      %v1007 = vsel %vm897, %v857, 0
      %v1010 = vsel %vm897, %v858, 0
      %v1013 = vsel %vm897, %v859, 0
      %v1016 = vsel %vm897, %v860, 0
      %v1019 = vsel %vm897, %v861, 0
      %v1022 = vsel %vm897, %v862, 0
      %v1025 = vsel %vm897, %v863, 0
      %v1028 = vsel %vm897, %v864, 0
      %v1031 = vsel %vm897, %v865, 0
      %v1034 = vsel %vm897, %v866, 0
      %v1037 = vsel %vm897, %v867, 0
      %v1040 = vsel %vm897, %v868, 0
      %v1043 = vsel %vm897, %v869, 0
      %v1046 = vsel %vm897, %v870, 0
      %v1049 = vsel %vm897, %v871, 0
      %v1052 = vsel %vm897, %v872, 0
      %v1055 = vsel %vm897, %v873, 0
      %v1058 = vsel %vm897, %v874, 0
      %v1061 = vsel %vm897, %v875, 0
      %v1064 = vsel %vm897, %v876, 0
      %v1067 = vsel %vm897, %v877, 0
      %v1070 = vsel %vm897, %v878, 0
      %v1073 = vsel %vm897, %v879, 0
      %v1076 = vsel %vm897, %v880, 0
      %v1079 = vsel %vm897, %v881, 0
      %v1082 = vsel %vm897, %v882, 0
      %v1085 = vsel %vm897, %v883, 0
      %v1088 = vsel %vm897, %v884, 0
      %1090 = vmatpush.bf16.msra.mxu0 0
      %1091 = vmatpush.bf16.msra.mxu0 0
      %1092 = vmatpush.bf16.msra.mxu0 0
      %1093 = vmatpush.bf16.msra.mxu0 0
      %1094 = vmatpush.bf16.msra.mxu0 0
      %1095 = vmatpush.bf16.msra.mxu0 0
      %1096 = vmatpush.bf16.msra.mxu0 %v894
      %1097 = vmatpush.bf16.msra.mxu0 %v893
      %1098 = vmatmul.bf16.gmra.mxu0 %v899
      %v1099 = vpop.f32.mrf.mxu0
      %v1100 = vadd.f32 %v564, %v1099
      %v1101 = vpop.f32.mrf.mxu0
      %v1102 = vadd.f32 %v564, %v1101
      %1103 = vmatmul.bf16.gmra.mxu0 %v902
      %v1104 = vpop.f32.mrf.mxu0
      %v1105 = vadd.f32 %v564, %v1104
      %v1106 = vpop.f32.mrf.mxu0
      %v1107 = vadd.f32 %v564, %v1106
      %1108 = vmatmul.bf16.gmra.mxu0 %v905
      %v1109 = vpop.f32.mrf.mxu0
      %v1110 = vadd.f32 %v564, %v1109
      %v1111 = vpop.f32.mrf.mxu0
      %v1112 = vadd.f32 %v564, %v1111
      %1113 = vmatmul.bf16.gmra.mxu0 %v908
      %v1114 = vpop.f32.mrf.mxu0
      %v1115 = vadd.f32 %v564, %v1114
      %v1116 = vpop.f32.mrf.mxu0
      %v1117 = vadd.f32 %v564, %v1116
      %1118 = vmatmul.bf16.gmra.mxu0 %v911
      %v1119 = vpop.f32.mrf.mxu0
      %v1120 = vadd.f32 %v564, %v1119
      %v1121 = vpop.f32.mrf.mxu0
      %v1122 = vadd.f32 %v564, %v1121
      %1123 = vmatmul.bf16.gmra.mxu0 %v914
      %v1124 = vpop.f32.mrf.mxu0
      %v1125 = vadd.f32 %v564, %v1124
      %v1126 = vpop.f32.mrf.mxu0
      %v1127 = vadd.f32 %v564, %v1126
      %1128 = vmatmul.bf16.gmra.mxu0 %v917
      %v1129 = vpop.f32.mrf.mxu0
      %v1130 = vadd.f32 %v564, %v1129
      %v1131 = vpop.f32.mrf.mxu0
      %v1132 = vadd.f32 %v564, %v1131
      %1133 = vmatmul.bf16.gmra.mxu0 %v920
      %v1134 = vpop.f32.mrf.mxu0
      %v1135 = vadd.f32 %v564, %v1134
      %v1136 = vpop.f32.mrf.mxu0
      %v1137 = vadd.f32 %v564, %v1136
      %1138 = vmatmul.bf16.gmra.mxu0 %v923
      %v1139 = vpop.f32.mrf.mxu0
      %v1140 = vadd.f32 %v564, %v1139
      %v1141 = vpop.f32.mrf.mxu0
      %v1142 = vadd.f32 %v564, %v1141
      %1143 = vmatmul.bf16.gmra.mxu0 %v926
      %v1144 = vpop.f32.mrf.mxu0
      %v1145 = vadd.f32 %v564, %v1144
      %v1146 = vpop.f32.mrf.mxu0
      %v1147 = vadd.f32 %v564, %v1146
      %1148 = vmatmul.bf16.gmra.mxu0 %v929
      %v1149 = vpop.f32.mrf.mxu0
      %v1150 = vadd.f32 %v564, %v1149
      %v1151 = vpop.f32.mrf.mxu0
      %v1152 = vadd.f32 %v564, %v1151
      %1153 = vmatmul.bf16.gmra.mxu0 %v932
      %v1154 = vpop.f32.mrf.mxu0
      %v1155 = vadd.f32 %v564, %v1154
      %v1156 = vpop.f32.mrf.mxu0
      %v1157 = vadd.f32 %v564, %v1156
      %1158 = vmatmul.bf16.gmra.mxu0 %v935
      %v1159 = vpop.f32.mrf.mxu0
      %v1160 = vadd.f32 %v564, %v1159
      %v1161 = vpop.f32.mrf.mxu0
      %v1162 = vadd.f32 %v564, %v1161
      %1163 = vmatmul.bf16.gmra.mxu0 %v938
      %v1164 = vpop.f32.mrf.mxu0
      %v1165 = vadd.f32 %v564, %v1164
      %v1166 = vpop.f32.mrf.mxu0
      %v1167 = vadd.f32 %v564, %v1166
      %1168 = vmatmul.bf16.gmra.mxu0 %v941
      %v1169 = vpop.f32.mrf.mxu0
      %v1170 = vadd.f32 %v564, %v1169
      %v1171 = vpop.f32.mrf.mxu0
      %v1172 = vadd.f32 %v564, %v1171
      %1173 = vmatmul.bf16.gmra.mxu0 %v944
      %v1174 = vpop.f32.mrf.mxu0
      %v1175 = vadd.f32 %v564, %v1174
      %v1176 = vpop.f32.mrf.mxu0
      %v1177 = vadd.f32 %v564, %v1176
      %1178 = vmatmul.bf16.gmra.mxu0 %v947
      %v1179 = vpop.f32.mrf.mxu0
      %v1180 = vadd.f32 %v564, %v1179
      %v1181 = vpop.f32.mrf.mxu0
      %v1182 = vadd.f32 %v564, %v1181
      %1183 = vmatmul.bf16.gmra.mxu0 %v950
      %v1184 = vpop.f32.mrf.mxu0
      %v1185 = vadd.f32 %v564, %v1184
      %v1186 = vpop.f32.mrf.mxu0
      %v1187 = vadd.f32 %v564, %v1186
      %1188 = vmatmul.bf16.gmra.mxu0 %v953
      %v1189 = vpop.f32.mrf.mxu0
      %v1190 = vadd.f32 %v564, %v1189
      %v1191 = vpop.f32.mrf.mxu0
      %v1192 = vadd.f32 %v564, %v1191
      %1193 = vmatmul.bf16.gmra.mxu0 %v956
      %v1194 = vpop.f32.mrf.mxu0
      %v1195 = vadd.f32 %v564, %v1194
      %v1196 = vpop.f32.mrf.mxu0
      %v1197 = vadd.f32 %v564, %v1196
      %1198 = vmatmul.bf16.gmra.mxu0 %v959
      %v1199 = vpop.f32.mrf.mxu0
      %v1200 = vadd.f32 %v564, %v1199
      %v1201 = vpop.f32.mrf.mxu0
      %v1202 = vadd.f32 %v564, %v1201
      %1203 = vmatmul.bf16.gmra.mxu0 %v962
      %v1204 = vpop.f32.mrf.mxu0
      %v1205 = vadd.f32 %v564, %v1204
      %v1206 = vpop.f32.mrf.mxu0
      %v1207 = vadd.f32 %v564, %v1206
      %1208 = vmatmul.bf16.gmra.mxu0 %v965
      %v1209 = vpop.f32.mrf.mxu0
      %v1210 = vadd.f32 %v564, %v1209
      %v1211 = vpop.f32.mrf.mxu0
      %v1212 = vadd.f32 %v564, %v1211
      %1213 = vmatmul.bf16.gmra.mxu0 %v968
      %v1214 = vpop.f32.mrf.mxu0
      %v1215 = vadd.f32 %v564, %v1214
      %v1216 = vpop.f32.mrf.mxu0
      %v1217 = vadd.f32 %v564, %v1216
      %1218 = vmatmul.bf16.gmra.mxu0 %v971
      %v1219 = vpop.f32.mrf.mxu0
      %v1220 = vadd.f32 %v564, %v1219
      %v1221 = vpop.f32.mrf.mxu0
      %v1222 = vadd.f32 %v564, %v1221
      %1223 = vmatmul.bf16.gmra.mxu0 %v974
      %v1224 = vpop.f32.mrf.mxu0
      %v1225 = vadd.f32 %v564, %v1224
      %v1226 = vpop.f32.mrf.mxu0
      %v1227 = vadd.f32 %v564, %v1226
      %1228 = vmatmul.bf16.gmra.mxu0 %v977
      %v1229 = vpop.f32.mrf.mxu0
      %v1230 = vadd.f32 %v564, %v1229
      %v1231 = vpop.f32.mrf.mxu0
      %v1232 = vadd.f32 %v564, %v1231
      %1233 = vmatmul.bf16.gmra.mxu0 %v980
      %v1234 = vpop.f32.mrf.mxu0
      %v1235 = vadd.f32 %v564, %v1234
      %v1236 = vpop.f32.mrf.mxu0
      %v1237 = vadd.f32 %v564, %v1236
      %1238 = vmatmul.bf16.gmra.mxu0 %v983
      %v1239 = vpop.f32.mrf.mxu0
      %v1240 = vadd.f32 %v564, %v1239
      %v1241 = vpop.f32.mrf.mxu0
      %v1242 = vadd.f32 %v564, %v1241
      %1243 = vmatmul.bf16.gmra.mxu0 %v986
      %v1244 = vpop.f32.mrf.mxu0
      %v1245 = vadd.f32 %v564, %v1244
      %v1246 = vpop.f32.mrf.mxu0
      %v1247 = vadd.f32 %v564, %v1246
      %1248 = vmatmul.bf16.gmra.mxu0 %v989
      %v1249 = vpop.f32.mrf.mxu0
      %v1250 = vadd.f32 %v564, %v1249
      %v1251 = vpop.f32.mrf.mxu0
      %v1252 = vadd.f32 %v564, %v1251
      %1253 = vmatmul.bf16.gmra.mxu0 %v992
      %v1254 = vpop.f32.mrf.mxu0
      %v1255 = vadd.f32 %v564, %v1254
      %v1256 = vpop.f32.mrf.mxu0
      %v1257 = vadd.f32 %v564, %v1256
      %1258 = vmatmul.bf16.gmra.mxu0 %v995
      %v1259 = vpop.f32.mrf.mxu0
      %v1260 = vadd.f32 %v564, %v1259
      %v1261 = vpop.f32.mrf.mxu0
      %v1262 = vadd.f32 %v564, %v1261
      %1263 = vmatmul.bf16.gmra.mxu0 %v998
      %v1264 = vpop.f32.mrf.mxu0
      %v1265 = vadd.f32 %v564, %v1264
      %v1266 = vpop.f32.mrf.mxu0
      %v1267 = vadd.f32 %v564, %v1266
      %1268 = vmatmul.bf16.gmra.mxu0 %v1001
      %v1269 = vpop.f32.mrf.mxu0
      %v1270 = vadd.f32 %v564, %v1269
      %v1271 = vpop.f32.mrf.mxu0
      %v1272 = vadd.f32 %v564, %v1271
      %1273 = vmatmul.bf16.gmra.mxu0 %v1004
      %v1274 = vpop.f32.mrf.mxu0
      %v1275 = vadd.f32 %v564, %v1274
      %v1276 = vpop.f32.mrf.mxu0
      %v1277 = vadd.f32 %v564, %v1276
      %1278 = vmatmul.bf16.gmra.mxu0 %v1007
      %v1279 = vpop.f32.mrf.mxu0
      %v1280 = vadd.f32 %v564, %v1279
      %v1281 = vpop.f32.mrf.mxu0
      %v1282 = vadd.f32 %v564, %v1281
      %1283 = vmatmul.bf16.gmra.mxu0 %v1010
      %v1284 = vpop.f32.mrf.mxu0
      %v1285 = vadd.f32 %v564, %v1284
      %v1286 = vpop.f32.mrf.mxu0
      %v1287 = vadd.f32 %v564, %v1286
      %1288 = vmatmul.bf16.gmra.mxu0 %v1013
      %v1289 = vpop.f32.mrf.mxu0
      %v1290 = vadd.f32 %v564, %v1289
      %v1291 = vpop.f32.mrf.mxu0
      %v1292 = vadd.f32 %v564, %v1291
      %1293 = vmatmul.bf16.gmra.mxu0 %v1016
      %v1294 = vpop.f32.mrf.mxu0
      %v1295 = vadd.f32 %v564, %v1294
      %v1296 = vpop.f32.mrf.mxu0
      %v1297 = vadd.f32 %v564, %v1296
      %1298 = vmatmul.bf16.gmra.mxu0 %v1019
      %v1299 = vpop.f32.mrf.mxu0
      %v1300 = vadd.f32 %v564, %v1299
      %v1301 = vpop.f32.mrf.mxu0
      %v1302 = vadd.f32 %v564, %v1301
      %1303 = vmatmul.bf16.gmra.mxu0 %v1022
      %v1304 = vpop.f32.mrf.mxu0
      %v1305 = vadd.f32 %v564, %v1304
      %v1306 = vpop.f32.mrf.mxu0
      %v1307 = vadd.f32 %v564, %v1306
      %1308 = vmatmul.bf16.gmra.mxu0 %v1025
      %v1309 = vpop.f32.mrf.mxu0
      %v1310 = vadd.f32 %v564, %v1309
      %v1311 = vpop.f32.mrf.mxu0
      %v1312 = vadd.f32 %v564, %v1311
      %1313 = vmatmul.bf16.gmra.mxu0 %v1028
      %v1314 = vpop.f32.mrf.mxu0
      %v1315 = vadd.f32 %v564, %v1314
      %v1316 = vpop.f32.mrf.mxu0
      %v1317 = vadd.f32 %v564, %v1316
      %1318 = vmatmul.bf16.gmra.mxu0 %v1031
      %v1319 = vpop.f32.mrf.mxu0
      %v1320 = vadd.f32 %v564, %v1319
      %v1321 = vpop.f32.mrf.mxu0
      %v1322 = vadd.f32 %v564, %v1321
      %1323 = vmatmul.bf16.gmra.mxu0 %v1034
      %v1324 = vpop.f32.mrf.mxu0
      %v1325 = vadd.f32 %v564, %v1324
      %v1326 = vpop.f32.mrf.mxu0
      %v1327 = vadd.f32 %v564, %v1326
      %1328 = vmatmul.bf16.gmra.mxu0 %v1037
      %v1329 = vpop.f32.mrf.mxu0
      %v1330 = vadd.f32 %v564, %v1329
      %v1331 = vpop.f32.mrf.mxu0
      %v1332 = vadd.f32 %v564, %v1331
      %1333 = vmatmul.bf16.gmra.mxu0 %v1040
      %v1334 = vpop.f32.mrf.mxu0
      %v1335 = vadd.f32 %v564, %v1334
      %v1336 = vpop.f32.mrf.mxu0
      %v1337 = vadd.f32 %v564, %v1336
      %1338 = vmatmul.bf16.gmra.mxu0 %v1043
      %v1339 = vpop.f32.mrf.mxu0
      %v1340 = vadd.f32 %v564, %v1339
      %v1341 = vpop.f32.mrf.mxu0
      %v1342 = vadd.f32 %v564, %v1341
      %1343 = vmatmul.bf16.gmra.mxu0 %v1046
      %v1344 = vpop.f32.mrf.mxu0
      %v1345 = vadd.f32 %v564, %v1344
      %v1346 = vpop.f32.mrf.mxu0
      %v1347 = vadd.f32 %v564, %v1346
      %1348 = vmatmul.bf16.gmra.mxu0 %v1049
      %v1349 = vpop.f32.mrf.mxu0
      %v1350 = vadd.f32 %v564, %v1349
      %v1351 = vpop.f32.mrf.mxu0
      %v1352 = vadd.f32 %v564, %v1351
      %1353 = vmatmul.bf16.gmra.mxu0 %v1052
      %v1354 = vpop.f32.mrf.mxu0
      %v1355 = vadd.f32 %v564, %v1354
      %v1356 = vpop.f32.mrf.mxu0
      %v1357 = vadd.f32 %v564, %v1356
      %1358 = vmatmul.bf16.gmra.mxu0 %v1055
      %v1359 = vpop.f32.mrf.mxu0
      %v1360 = vadd.f32 %v564, %v1359
      %v1361 = vpop.f32.mrf.mxu0
      %v1362 = vadd.f32 %v564, %v1361
      %1363 = vmatmul.bf16.gmra.mxu0 %v1058
      %v1364 = vpop.f32.mrf.mxu0
      %v1365 = vadd.f32 %v564, %v1364
      %v1366 = vpop.f32.mrf.mxu0
      %v1367 = vadd.f32 %v564, %v1366
      %1368 = vmatmul.bf16.gmra.mxu0 %v1061
      %v1369 = vpop.f32.mrf.mxu0
      %v1370 = vadd.f32 %v564, %v1369
      %v1371 = vpop.f32.mrf.mxu0
      %v1372 = vadd.f32 %v564, %v1371
      %1373 = vmatmul.bf16.gmra.mxu0 %v1064
      %v1374 = vpop.f32.mrf.mxu0
      %v1375 = vadd.f32 %v564, %v1374
      %v1376 = vpop.f32.mrf.mxu0
      %v1377 = vadd.f32 %v564, %v1376
      %1378 = vmatmul.bf16.gmra.mxu0 %v1067
      %v1379 = vpop.f32.mrf.mxu0
      %v1380 = vadd.f32 %v564, %v1379
      %v1381 = vpop.f32.mrf.mxu0
      %v1382 = vadd.f32 %v564, %v1381
      %1383 = vmatmul.bf16.gmra.mxu0 %v1070
      %v1384 = vpop.f32.mrf.mxu0
      %v1385 = vadd.f32 %v564, %v1384
      %v1386 = vpop.f32.mrf.mxu0
      %v1387 = vadd.f32 %v564, %v1386
      %1388 = vmatmul.bf16.gmra.mxu0 %v1073
      %v1389 = vpop.f32.mrf.mxu0
      %v1390 = vadd.f32 %v564, %v1389
      %v1391 = vpop.f32.mrf.mxu0
      %v1392 = vadd.f32 %v564, %v1391
      %1393 = vmatmul.bf16.gmra.mxu0 %v1076
      %v1394 = vpop.f32.mrf.mxu0
      %v1395 = vadd.f32 %v564, %v1394
      %v1396 = vpop.f32.mrf.mxu0
      %v1397 = vadd.f32 %v564, %v1396
      %1398 = vmatmul.bf16.gmra.mxu0 %v1079
      %v1399 = vpop.f32.mrf.mxu0
      %v1400 = vadd.f32 %v564, %v1399
      %v1401 = vpop.f32.mrf.mxu0
      %v1402 = vadd.f32 %v564, %v1401
      %1403 = vmatmul.bf16.gmra.mxu0 %v1082
      %v1404 = vpop.f32.mrf.mxu0
      %v1405 = vadd.f32 %v564, %v1404
      %v1406 = vpop.f32.mrf.mxu0
      %v1407 = vadd.f32 %v564, %v1406
      %1408 = vmatmul.bf16.gmra.mxu0 %v1085
      %v1409 = vpop.f32.mrf.mxu0
      %v1410 = vadd.f32 %v564, %v1409
      %v1411 = vpop.f32.mrf.mxu0
      %v1412 = vadd.f32 %v564, %v1411
      %1413 = vmatmul.bf16.gmra.mxu0 %v1088
      %v1414 = vpop.f32.mrf.mxu0
      %v1415 = vadd.f32 %v564, %v1414
      %v1416 = vpop.f32.mrf.mxu0
      %v1417 = vadd.f32 %v564, %v1416
      %1418 = vdwg.mxu0
      %v1419 = vld [vmem:[%s3] sm:$0xff]
      %v1420 = vld [vmem:[%s3 + $0x8] sm:$0xff]
      %v1421 = vld [vmem:[%s3 + $0x10] sm:$0xff]
      %v1422 = vld [vmem:[%s3 + $0x18] sm:$0xff]
      %v1423 = vld [vmem:[%s3 + $0x20] sm:$0xff]
      %v1424 = vld [vmem:[%s3 + $0x28] sm:$0xff]
      %v1425 = vld [vmem:[%s3 + $0x30] sm:$0xff]
      %v1426 = vld [vmem:[%s3 + $0x38] sm:$0xff]
      %v1427 = vld [vmem:[%s3 + $0x40] sm:$0xff]
      %v1428 = vld [vmem:[%s3 + $0x48] sm:$0xff]
      %v1557 = vunpack.c.l.b16 %v432
      %v1558 = vunpack.c.l.b16 %v433
      %v1559 = vunpack.c.l.b16 %v434
      %v1560 = vunpack.c.l.b16 %v435
      %v1561 = vunpack.c.l.b16 %v436
      %v1562 = vunpack.c.l.b16 %v437
      %v1563 = vunpack.c.l.b16 %v438
      %v1564 = vunpack.c.l.b16 %v439
      %v1565 = vunpack.c.l.b16 %v440
      %v1566 = vunpack.c.l.b16 %v441
      %v1567 = vunpack.c.l.b16 %v442
      %v1568 = vunpack.c.l.b16 %v443
      %v1569 = vunpack.c.l.b16 %v444
      %v1570 = vunpack.c.l.b16 %v445
      %v1571 = vunpack.c.l.b16 %v446
      %v1572 = vunpack.c.l.b16 %v447
      %v1573 = vunpack.c.l.b16 %v448
      %v1574 = vunpack.c.l.b16 %v449
      %v1575 = vunpack.c.l.b16 %v450
      %v1576 = vunpack.c.l.b16 %v451
      %v1577 = vunpack.c.l.b16 %v452
      %v1578 = vunpack.c.l.b16 %v453
      %v1579 = vunpack.c.l.b16 %v454
      %v1580 = vunpack.c.l.b16 %v455
      %v1581 = vunpack.c.l.b16 %v456
      %v1582 = vunpack.c.l.b16 %v457
      %v1583 = vunpack.c.l.b16 %v458
      %v1584 = vunpack.c.l.b16 %v459
      %v1585 = vunpack.c.l.b16 %v460
      %v1586 = vunpack.c.l.b16 %v461
      %v1587 = vunpack.c.l.b16 %v462
      %v1588 = vunpack.c.l.b16 %v463
      %v1589 = vunpack.c.l.b16 %v464
      %v1590 = vunpack.c.l.b16 %v465
      %v1591 = vunpack.c.l.b16 %v466
      %v1592 = vunpack.c.l.b16 %v467
      %v1593 = vunpack.c.l.b16 %v468
      %v1594 = vunpack.c.l.b16 %v469
      %v1595 = vunpack.c.l.b16 %v470
      %v1596 = vunpack.c.l.b16 %v471
      %v1597 = vunpack.c.l.b16 %v472
      %v1598 = vunpack.c.l.b16 %v473
      %v1599 = vunpack.c.l.b16 %v474
      %v1600 = vunpack.c.l.b16 %v475
      %v1601 = vunpack.c.l.b16 %v476
      %v1602 = vunpack.c.l.b16 %v477
      %v1603 = vunpack.c.l.b16 %v478
      %v1604 = vunpack.c.l.b16 %v479
      %v1605 = vunpack.c.l.b16 %v480
      %v1606 = vunpack.c.l.b16 %v481
      %v1607 = vunpack.c.l.b16 %v482
      %v1608 = vunpack.c.l.b16 %v483
      %v1609 = vunpack.c.l.b16 %v484
      %v1610 = vunpack.c.l.b16 %v485
      %v1611 = vunpack.c.l.b16 %v486
      %v1612 = vunpack.c.l.b16 %v487
      %v1613 = vunpack.c.l.b16 %v488
      %v1614 = vunpack.c.l.b16 %v489
      %v1615 = vunpack.c.l.b16 %v490
      %v1616 = vunpack.c.l.b16 %v491
      %v1617 = vunpack.c.l.b16 %v492
      %v1618 = vunpack.c.l.b16 %v493
      %v1619 = vunpack.c.l.b16 %v494
      %v1620 = vunpack.c.l.b16 %v495
      %v1621 = vunpack.c.l.b16 %v496
      %v1622 = vunpack.c.l.b16 %v497
      %v1623 = vunpack.c.l.b16 %v498
      %v1624 = vunpack.c.l.b16 %v499
      %v1625 = vunpack.c.l.b16 %v500
      %v1626 = vunpack.c.l.b16 %v501
      %v1627 = vunpack.c.l.b16 %v502
      %v1628 = vunpack.c.l.b16 %v503
      %v1629 = vunpack.c.l.b16 %v504
      %v1630 = vunpack.c.l.b16 %v505
      %v1631 = vunpack.c.l.b16 %v506
      %v1632 = vunpack.c.l.b16 %v507
      %v1633 = vunpack.c.l.b16 %v508
      %v1634 = vunpack.c.l.b16 %v509
      %v1635 = vunpack.c.l.b16 %v510
      %v1636 = vunpack.c.l.b16 %v511
      %v1637 = vunpack.c.l.b16 %v512
      %v1638 = vunpack.c.l.b16 %v513
      %v1639 = vunpack.c.l.b16 %v514
      %v1640 = vunpack.c.l.b16 %v515
      %v1641 = vunpack.c.l.b16 %v516
      %v1642 = vunpack.c.l.b16 %v517
      %v1643 = vunpack.c.l.b16 %v518
      %v1644 = vunpack.c.l.b16 %v519
      %v1645 = vunpack.c.l.b16 %v520
      %v1646 = vunpack.c.l.b16 %v521
      %v1647 = vunpack.c.l.b16 %v522
      %v1648 = vunpack.c.l.b16 %v523
      %v1649 = vunpack.c.l.b16 %v524
      %v1650 = vunpack.c.l.b16 %v525
      %v1651 = vunpack.c.l.b16 %v526
      %v1652 = vunpack.c.l.b16 %v527
      %v1653 = vunpack.c.l.b16 %v528
      %v1654 = vunpack.c.l.b16 %v529
      %v1655 = vunpack.c.l.b16 %v530
      %v1656 = vunpack.c.l.b16 %v531
      %v1657 = vunpack.c.l.b16 %v532
      %v1658 = vunpack.c.l.b16 %v533
      %v1659 = vunpack.c.l.b16 %v534
      %v1660 = vunpack.c.l.b16 %v535
      %v1661 = vunpack.c.l.b16 %v536
      %v1662 = vunpack.c.l.b16 %v537
      %v1663 = vunpack.c.l.b16 %v538
      %v1664 = vunpack.c.l.b16 %v539
      %v1665 = vunpack.c.l.b16 %v540
      %v1666 = vunpack.c.l.b16 %v541
      %v1667 = vunpack.c.l.b16 %v542
      %v1668 = vunpack.c.l.b16 %v543
      %v1669 = vunpack.c.l.b16 %v544
      %v1670 = vunpack.c.l.b16 %v545
      %v1671 = vunpack.c.l.b16 %v546
      %v1672 = vunpack.c.l.b16 %v547
      %v1673 = vunpack.c.l.b16 %v548
      %v1674 = vunpack.c.l.b16 %v549
      %v1675 = vunpack.c.l.b16 %v550
      %v1676 = vunpack.c.l.b16 %v551
      %v1677 = vunpack.c.l.b16 %v552
      %v1678 = vunpack.c.l.b16 %v553
      %v1679 = vunpack.c.l.b16 %v554
      %v1680 = vunpack.c.l.b16 %v555
      %v1681 = vunpack.c.l.b16 %v556
      %v1682 = vunpack.c.l.b16 %v557
      %v1683 = vunpack.c.l.b16 %v558
      %v1684 = vunpack.c.l.b16 %v559
      %v1685 = vpack.c.b16 %v1558, %v1557
      %v1686 = vpack.c.b16 %v1560, %v1559
      %v1687 = vpack.c.b16 %v1562, %v1561
      %v1688 = vpack.c.b16 %v1564, %v1563
      %v1689 = vpack.c.b16 %v1566, %v1565
      %v1690 = vpack.c.b16 %v1568, %v1567
      %v1691 = vpack.c.b16 %v1570, %v1569
      %v1692 = vpack.c.b16 %v1572, %v1571
      %v1693 = vpack.c.b16 %v1574, %v1573
      %v1694 = vpack.c.b16 %v1576, %v1575
      %v1695 = vpack.c.b16 %v1578, %v1577
      %v1696 = vpack.c.b16 %v1580, %v1579
      %v1697 = vpack.c.b16 %v1582, %v1581
      %v1698 = vpack.c.b16 %v1584, %v1583
      %v1699 = vpack.c.b16 %v1586, %v1585
      %v1700 = vpack.c.b16 %v1588, %v1587
      %v1701 = vpack.c.b16 %v1590, %v1589
      %v1702 = vpack.c.b16 %v1592, %v1591
      %v1703 = vpack.c.b16 %v1594, %v1593
      %v1704 = vpack.c.b16 %v1596, %v1595
      %v1705 = vpack.c.b16 %v1598, %v1597
      %v1706 = vpack.c.b16 %v1600, %v1599
      %v1707 = vpack.c.b16 %v1602, %v1601
      %v1708 = vpack.c.b16 %v1604, %v1603
      %v1709 = vpack.c.b16 %v1606, %v1605
      %v1710 = vpack.c.b16 %v1608, %v1607
      %v1711 = vpack.c.b16 %v1610, %v1609
      %v1712 = vpack.c.b16 %v1612, %v1611
      %v1713 = vpack.c.b16 %v1614, %v1613
      %v1714 = vpack.c.b16 %v1616, %v1615
      %v1715 = vpack.c.b16 %v1618, %v1617
      %v1716 = vpack.c.b16 %v1620, %v1619
      %v1717 = vpack.c.b16 %v1622, %v1621
      %v1718 = vpack.c.b16 %v1624, %v1623
      %v1719 = vpack.c.b16 %v1626, %v1625
      %v1720 = vpack.c.b16 %v1628, %v1627
      %v1721 = vpack.c.b16 %v1630, %v1629
      %v1722 = vpack.c.b16 %v1632, %v1631
      %v1723 = vpack.c.b16 %v1634, %v1633
      %v1724 = vpack.c.b16 %v1636, %v1635
      %v1725 = vpack.c.b16 %v1638, %v1637
      %v1726 = vpack.c.b16 %v1640, %v1639
      %v1727 = vpack.c.b16 %v1642, %v1641
      %v1728 = vpack.c.b16 %v1644, %v1643
      %v1729 = vpack.c.b16 %v1646, %v1645
      %v1730 = vpack.c.b16 %v1648, %v1647
      %v1731 = vpack.c.b16 %v1650, %v1649
      %v1732 = vpack.c.b16 %v1652, %v1651
      %v1733 = vpack.c.b16 %v1654, %v1653
      %v1734 = vpack.c.b16 %v1656, %v1655
      %v1735 = vpack.c.b16 %v1658, %v1657
      %v1736 = vpack.c.b16 %v1660, %v1659
      %v1737 = vpack.c.b16 %v1662, %v1661
      %v1738 = vpack.c.b16 %v1664, %v1663
      %v1739 = vpack.c.b16 %v1666, %v1665
      %v1740 = vpack.c.b16 %v1668, %v1667
      %v1741 = vpack.c.b16 %v1670, %v1669
      %v1742 = vpack.c.b16 %v1672, %v1671
      %v1743 = vpack.c.b16 %v1674, %v1673
      %v1744 = vpack.c.b16 %v1676, %v1675
      %v1745 = vpack.c.b16 %v1678, %v1677
      %v1746 = vpack.c.b16 %v1680, %v1679
      %v1747 = vpack.c.b16 %v1682, %v1681
      %v1748 = vpack.c.b16 %v1684, %v1683
      %v1759 = vunpack.c.l.b16 %v1419
      %v1760 = vunpack.c.h.b16 %v1419
      %v1761 = vunpack.c.l.b16 %v1420
      %v1762 = vunpack.c.h.b16 %v1420
      %v1763 = vunpack.c.l.b16 %v1421
      %v1764 = vunpack.c.h.b16 %v1421
      %v1765 = vunpack.c.l.b16 %v1422
      %v1766 = vunpack.c.h.b16 %v1422
      %v1767 = vunpack.c.l.b16 %v1423
      %v1768 = vunpack.c.h.b16 %v1423
      %v1769 = vunpack.c.l.b16 %v1424
      %v1770 = vunpack.c.h.b16 %v1424
      %v1771 = vunpack.c.l.b16 %v1425
      %v1772 = vunpack.c.h.b16 %v1425
      %v1773 = vunpack.c.l.b16 %v1426
      %v1774 = vunpack.c.h.b16 %v1426
      %v1775 = vunpack.c.l.b16 %v1427
      %v1776 = vunpack.c.h.b16 %v1427
      %v1777 = vunpack.c.l.b16 %v1428
      %v1778 = vunpack.c.h.b16 %v1428
      %v1779 = vpack.c.b16 %v1763, %v1759
      %v1780 = vpack.c.b16 %v1764, %v1760
      %v1781 = vpack.c.b16 %v1765, %v1761
      %v1782 = vpack.c.b16 %v1766, %v1762
      %v1783 = vpack.c.b16 %v1771, %v1767
      %v1784 = vpack.c.b16 %v1772, %v1768
      %v1785 = vpack.c.b16 %v1773, %v1769
      %v1786 = vpack.c.b16 %v1774, %v1770
      %v1787 = vpack.c.b16 %v1775, %v1775
      %v1788 = vpack.c.b16 %v1776, %v1776
      %v1789 = vpack.c.b16 %v1777, %v1777
      %v1790 = vpack.c.b16 %v1778, %v1778
      %vm1799 = vcmask 326656
      %v1801 = vsel %vm1799, %v1685, 0
      %v1804 = vsel %vm1799, %v1686, 0
      %v1807 = vsel %vm1799, %v1687, 0
      %v1810 = vsel %vm1799, %v1688, 0
      %v1813 = vsel %vm1799, %v1689, 0
      %v1816 = vsel %vm1799, %v1690, 0
      %v1819 = vsel %vm1799, %v1691, 0
      %v1822 = vsel %vm1799, %v1692, 0
      %v1825 = vsel %vm1799, %v1693, 0
      %v1828 = vsel %vm1799, %v1694, 0
      %v1831 = vsel %vm1799, %v1695, 0
      %v1834 = vsel %vm1799, %v1696, 0
      %v1837 = vsel %vm1799, %v1697, 0
      %v1840 = vsel %vm1799, %v1698, 0
      %v1843 = vsel %vm1799, %v1699, 0
      %v1846 = vsel %vm1799, %v1700, 0
      %v1849 = vsel %vm1799, %v1701, 0
      %v1852 = vsel %vm1799, %v1702, 0
      %v1855 = vsel %vm1799, %v1703, 0
      %v1858 = vsel %vm1799, %v1704, 0
      %v1861 = vsel %vm1799, %v1705, 0
      %v1864 = vsel %vm1799, %v1706, 0
      %v1867 = vsel %vm1799, %v1707, 0
      %v1870 = vsel %vm1799, %v1708, 0
      %v1873 = vsel %vm1799, %v1709, 0
      %v1876 = vsel %vm1799, %v1710, 0
      %v1879 = vsel %vm1799, %v1711, 0
      %v1882 = vsel %vm1799, %v1712, 0
      %v1885 = vsel %vm1799, %v1713, 0
      %v1888 = vsel %vm1799, %v1714, 0
      %v1891 = vsel %vm1799, %v1715, 0
      %v1894 = vsel %vm1799, %v1716, 0
      %v1897 = vsel %vm1799, %v1717, 0
      %v1900 = vsel %vm1799, %v1718, 0
      %v1903 = vsel %vm1799, %v1719, 0
      %v1906 = vsel %vm1799, %v1720, 0
      %v1909 = vsel %vm1799, %v1721, 0
      %v1912 = vsel %vm1799, %v1722, 0
      %v1915 = vsel %vm1799, %v1723, 0
      %v1918 = vsel %vm1799, %v1724, 0
      %v1921 = vsel %vm1799, %v1725, 0
      %v1924 = vsel %vm1799, %v1726, 0
      %v1927 = vsel %vm1799, %v1727, 0
      %v1930 = vsel %vm1799, %v1728, 0
      %v1933 = vsel %vm1799, %v1729, 0
      %v1936 = vsel %vm1799, %v1730, 0
      %v1939 = vsel %vm1799, %v1731, 0
      %v1942 = vsel %vm1799, %v1732, 0
      %v1945 = vsel %vm1799, %v1733, 0
      %v1948 = vsel %vm1799, %v1734, 0
      %v1951 = vsel %vm1799, %v1735, 0
      %v1954 = vsel %vm1799, %v1736, 0
      %v1957 = vsel %vm1799, %v1737, 0
      %v1960 = vsel %vm1799, %v1738, 0
      %v1963 = vsel %vm1799, %v1739, 0
      %v1966 = vsel %vm1799, %v1740, 0
      %v1969 = vsel %vm1799, %v1741, 0
      %v1972 = vsel %vm1799, %v1742, 0
      %v1975 = vsel %vm1799, %v1743, 0
      %v1978 = vsel %vm1799, %v1744, 0
      %v1981 = vsel %vm1799, %v1745, 0
      %v1984 = vsel %vm1799, %v1746, 0
      %v1987 = vsel %vm1799, %v1747, 0
      %v1990 = vsel %vm1799, %v1748, 0
      %vm1992 = vcmask 1043456
      %v1994 = vsel %vm1992, %v1787, 0
      %v1997 = vsel %vm1992, %v1788, 0
      %v2000 = vsel %vm1992, %v1789, 0
      %v2003 = vsel %vm1992, %v1790, 0
      %2005 = vmatpush.bf16.msra.mxu0 0
      %2006 = vmatpush.bf16.msra.mxu0 0
      %2007 = vmatpush.bf16.msra.mxu0 0
      %2008 = vmatpush.bf16.msra.mxu0 0
      %2009 = vmatpush.bf16.msra.mxu0 0
      %2010 = vmatpush.bf16.msra.mxu0 %v1994
      %2011 = vmatpush.bf16.msra.mxu0 %v1783
      %2012 = vmatpush.bf16.msra.mxu0 %v1779
      %2013 = vmatmul.bf16.gmra.mxu0 %v1801
      %v2014 = vpop.f32.mrf.mxu0
      %v2015 = vadd.f32 0.0, %v2014
      %v2016 = vpop.f32.mrf.mxu0
      %v2017 = vadd.f32 0.0, %v2016
      %2018 = vmatmul.bf16.gmra.mxu0 %v1804
      %v2019 = vpop.f32.mrf.mxu0
      %v2020 = vadd.f32 0.0, %v2019
      %v2021 = vpop.f32.mrf.mxu0
      %v2022 = vadd.f32 0.0, %v2021
      %2023 = vmatmul.bf16.gmra.mxu0 %v1807
      %v2024 = vpop.f32.mrf.mxu0
      %v2025 = vadd.f32 0.0, %v2024
      %v2026 = vpop.f32.mrf.mxu0
      %v2027 = vadd.f32 0.0, %v2026
      %2028 = vmatmul.bf16.gmra.mxu0 %v1810
      %v2029 = vpop.f32.mrf.mxu0
      %v2030 = vadd.f32 0.0, %v2029
      %v2031 = vpop.f32.mrf.mxu0
      %v2032 = vadd.f32 0.0, %v2031
      %2033 = vmatmul.bf16.gmra.mxu0 %v1813
      %v2034 = vpop.f32.mrf.mxu0
      %v2035 = vadd.f32 0.0, %v2034
      %v2036 = vpop.f32.mrf.mxu0
      %v2037 = vadd.f32 0.0, %v2036
      %2038 = vmatmul.bf16.gmra.mxu0 %v1816
      %v2039 = vpop.f32.mrf.mxu0
      %v2040 = vadd.f32 0.0, %v2039
      %v2041 = vpop.f32.mrf.mxu0
      %v2042 = vadd.f32 0.0, %v2041
      %2043 = vmatmul.bf16.gmra.mxu0 %v1819
      %v2044 = vpop.f32.mrf.mxu0
      %v2045 = vadd.f32 0.0, %v2044
      %v2046 = vpop.f32.mrf.mxu0
      %v2047 = vadd.f32 0.0, %v2046
      %2048 = vmatmul.bf16.gmra.mxu0 %v1822
      %v2049 = vpop.f32.mrf.mxu0
      %v2050 = vadd.f32 0.0, %v2049
      %v2051 = vpop.f32.mrf.mxu0
      %v2052 = vadd.f32 0.0, %v2051
      %2053 = vmatmul.bf16.gmra.mxu0 %v1825
      %v2054 = vpop.f32.mrf.mxu0
      %v2055 = vadd.f32 0.0, %v2054
      %v2056 = vpop.f32.mrf.mxu0
      %v2057 = vadd.f32 0.0, %v2056
      %2058 = vmatmul.bf16.gmra.mxu0 %v1828
      %v2059 = vpop.f32.mrf.mxu0
      %v2060 = vadd.f32 0.0, %v2059
      %v2061 = vpop.f32.mrf.mxu0
      %v2062 = vadd.f32 0.0, %v2061
      %2063 = vmatmul.bf16.gmra.mxu0 %v1831
      %v2064 = vpop.f32.mrf.mxu0
      %v2065 = vadd.f32 0.0, %v2064
      %v2066 = vpop.f32.mrf.mxu0
      %v2067 = vadd.f32 0.0, %v2066
      %2068 = vmatmul.bf16.gmra.mxu0 %v1834
      %v2069 = vpop.f32.mrf.mxu0
      %v2070 = vadd.f32 0.0, %v2069
      %v2071 = vpop.f32.mrf.mxu0
      %v2072 = vadd.f32 0.0, %v2071
      %2073 = vmatmul.bf16.gmra.mxu0 %v1837
      %v2074 = vpop.f32.mrf.mxu0
      %v2075 = vadd.f32 0.0, %v2074
      %v2076 = vpop.f32.mrf.mxu0
      %v2077 = vadd.f32 0.0, %v2076
      %2078 = vmatmul.bf16.gmra.mxu0 %v1840
      %v2079 = vpop.f32.mrf.mxu0
      %v2080 = vadd.f32 0.0, %v2079
      %v2081 = vpop.f32.mrf.mxu0
      %v2082 = vadd.f32 0.0, %v2081
      %2083 = vmatmul.bf16.gmra.mxu0 %v1843
      %v2084 = vpop.f32.mrf.mxu0
      %v2085 = vadd.f32 0.0, %v2084
      %v2086 = vpop.f32.mrf.mxu0
      %v2087 = vadd.f32 0.0, %v2086
      %2088 = vmatmul.bf16.gmra.mxu0 %v1846
      %v2089 = vpop.f32.mrf.mxu0
      %v2090 = vadd.f32 0.0, %v2089
      %v2091 = vpop.f32.mrf.mxu0
      %v2092 = vadd.f32 0.0, %v2091
      %2093 = vmatmul.bf16.gmra.mxu0 %v1849
      %v2094 = vpop.f32.mrf.mxu0
      %v2095 = vadd.f32 0.0, %v2094
      %v2096 = vpop.f32.mrf.mxu0
      %v2097 = vadd.f32 0.0, %v2096
      %2098 = vmatmul.bf16.gmra.mxu0 %v1852
      %v2099 = vpop.f32.mrf.mxu0
      %v2100 = vadd.f32 0.0, %v2099
      %v2101 = vpop.f32.mrf.mxu0
      %v2102 = vadd.f32 0.0, %v2101
      %2103 = vmatmul.bf16.gmra.mxu0 %v1855
      %v2104 = vpop.f32.mrf.mxu0
      %v2105 = vadd.f32 0.0, %v2104
      %v2106 = vpop.f32.mrf.mxu0
      %v2107 = vadd.f32 0.0, %v2106
      %2108 = vmatmul.bf16.gmra.mxu0 %v1858
      %v2109 = vpop.f32.mrf.mxu0
      %v2110 = vadd.f32 0.0, %v2109
      %v2111 = vpop.f32.mrf.mxu0
      %v2112 = vadd.f32 0.0, %v2111
      %2113 = vmatmul.bf16.gmra.mxu0 %v1861
      %v2114 = vpop.f32.mrf.mxu0
      %v2115 = vadd.f32 0.0, %v2114
      %v2116 = vpop.f32.mrf.mxu0
      %v2117 = vadd.f32 0.0, %v2116
      %2118 = vmatmul.bf16.gmra.mxu0 %v1864
      %v2119 = vpop.f32.mrf.mxu0
      %v2120 = vadd.f32 0.0, %v2119
      %v2121 = vpop.f32.mrf.mxu0
      %v2122 = vadd.f32 0.0, %v2121
      %2123 = vmatmul.bf16.gmra.mxu0 %v1867
      %v2124 = vpop.f32.mrf.mxu0
      %v2125 = vadd.f32 0.0, %v2124
      %v2126 = vpop.f32.mrf.mxu0
      %v2127 = vadd.f32 0.0, %v2126
      %2128 = vmatmul.bf16.gmra.mxu0 %v1870
      %v2129 = vpop.f32.mrf.mxu0
      %v2130 = vadd.f32 0.0, %v2129
      %v2131 = vpop.f32.mrf.mxu0
      %v2132 = vadd.f32 0.0, %v2131
      %2133 = vmatmul.bf16.gmra.mxu0 %v1873
      %v2134 = vpop.f32.mrf.mxu0
      %v2135 = vadd.f32 0.0, %v2134
      %v2136 = vpop.f32.mrf.mxu0
      %v2137 = vadd.f32 0.0, %v2136
      %2138 = vmatmul.bf16.gmra.mxu0 %v1876
      %v2139 = vpop.f32.mrf.mxu0
      %v2140 = vadd.f32 0.0, %v2139
      %v2141 = vpop.f32.mrf.mxu0
      %v2142 = vadd.f32 0.0, %v2141
      %2143 = vmatmul.bf16.gmra.mxu0 %v1879
      %v2144 = vpop.f32.mrf.mxu0
      %v2145 = vadd.f32 0.0, %v2144
      %v2146 = vpop.f32.mrf.mxu0
      %v2147 = vadd.f32 0.0, %v2146
      %2148 = vmatmul.bf16.gmra.mxu0 %v1882
      %v2149 = vpop.f32.mrf.mxu0
      %v2150 = vadd.f32 0.0, %v2149
      %v2151 = vpop.f32.mrf.mxu0
      %v2152 = vadd.f32 0.0, %v2151
      %2153 = vmatmul.bf16.gmra.mxu0 %v1885
      %v2154 = vpop.f32.mrf.mxu0
      %v2155 = vadd.f32 0.0, %v2154
      %v2156 = vpop.f32.mrf.mxu0
      %v2157 = vadd.f32 0.0, %v2156
      %2158 = vmatmul.bf16.gmra.mxu0 %v1888
      %v2159 = vpop.f32.mrf.mxu0
      %v2160 = vadd.f32 0.0, %v2159
      %v2161 = vpop.f32.mrf.mxu0
      %v2162 = vadd.f32 0.0, %v2161
      %2163 = vmatmul.bf16.gmra.mxu0 %v1891
      %v2164 = vpop.f32.mrf.mxu0
      %v2165 = vadd.f32 0.0, %v2164
      %v2166 = vpop.f32.mrf.mxu0
      %v2167 = vadd.f32 0.0, %v2166
      %2168 = vmatmul.bf16.gmra.mxu0 %v1894
      %v2169 = vpop.f32.mrf.mxu0
      %v2170 = vadd.f32 0.0, %v2169
      %v2171 = vpop.f32.mrf.mxu0
      %v2172 = vadd.f32 0.0, %v2171
      %2173 = vmatmul.bf16.gmra.mxu0 %v1897
      %v2174 = vpop.f32.mrf.mxu0
      %v2175 = vadd.f32 0.0, %v2174
      %v2176 = vpop.f32.mrf.mxu0
      %v2177 = vadd.f32 0.0, %v2176
      %2178 = vmatmul.bf16.gmra.mxu0 %v1900
      %v2179 = vpop.f32.mrf.mxu0
      %v2180 = vadd.f32 0.0, %v2179
      %v2181 = vpop.f32.mrf.mxu0
      %v2182 = vadd.f32 0.0, %v2181
      %2183 = vmatmul.bf16.gmra.mxu0 %v1903
      %v2184 = vpop.f32.mrf.mxu0
      %v2185 = vadd.f32 0.0, %v2184
      %v2186 = vpop.f32.mrf.mxu0
      %v2187 = vadd.f32 0.0, %v2186
      %2188 = vmatmul.bf16.gmra.mxu0 %v1906
      %v2189 = vpop.f32.mrf.mxu0
      %v2190 = vadd.f32 0.0, %v2189
      %v2191 = vpop.f32.mrf.mxu0
      %v2192 = vadd.f32 0.0, %v2191
      %2193 = vmatmul.bf16.gmra.mxu0 %v1909
      %v2194 = vpop.f32.mrf.mxu0
      %v2195 = vadd.f32 0.0, %v2194
      %v2196 = vpop.f32.mrf.mxu0
      %v2197 = vadd.f32 0.0, %v2196
      %2198 = vmatmul.bf16.gmra.mxu0 %v1912
      %v2199 = vpop.f32.mrf.mxu0
      %v2200 = vadd.f32 0.0, %v2199
      %v2201 = vpop.f32.mrf.mxu0
      %v2202 = vadd.f32 0.0, %v2201
      %2203 = vmatmul.bf16.gmra.mxu0 %v1915
      %v2204 = vpop.f32.mrf.mxu0
      %v2205 = vadd.f32 0.0, %v2204
      %v2206 = vpop.f32.mrf.mxu0
      %v2207 = vadd.f32 0.0, %v2206
      %2208 = vmatmul.bf16.gmra.mxu0 %v1918
      %v2209 = vpop.f32.mrf.mxu0
      %v2210 = vadd.f32 0.0, %v2209
      %v2211 = vpop.f32.mrf.mxu0
      %v2212 = vadd.f32 0.0, %v2211
      %2213 = vmatmul.bf16.gmra.mxu0 %v1921
      %v2214 = vpop.f32.mrf.mxu0
      %v2215 = vadd.f32 0.0, %v2214
      %v2216 = vpop.f32.mrf.mxu0
      %v2217 = vadd.f32 0.0, %v2216
      %2218 = vmatmul.bf16.gmra.mxu0 %v1924
      %v2219 = vpop.f32.mrf.mxu0
      %v2220 = vadd.f32 0.0, %v2219
      %v2221 = vpop.f32.mrf.mxu0
      %v2222 = vadd.f32 0.0, %v2221
      %2223 = vmatmul.bf16.gmra.mxu0 %v1927
      %v2224 = vpop.f32.mrf.mxu0
      %v2225 = vadd.f32 0.0, %v2224
      %v2226 = vpop.f32.mrf.mxu0
      %v2227 = vadd.f32 0.0, %v2226
      %2228 = vmatmul.bf16.gmra.mxu0 %v1930
      %v2229 = vpop.f32.mrf.mxu0
      %v2230 = vadd.f32 0.0, %v2229
      %v2231 = vpop.f32.mrf.mxu0
      %v2232 = vadd.f32 0.0, %v2231
      %2233 = vmatmul.bf16.gmra.mxu0 %v1933
      %v2234 = vpop.f32.mrf.mxu0
      %v2235 = vadd.f32 0.0, %v2234
      %v2236 = vpop.f32.mrf.mxu0
      %v2237 = vadd.f32 0.0, %v2236
      %2238 = vmatmul.bf16.gmra.mxu0 %v1936
      %v2239 = vpop.f32.mrf.mxu0
      %v2240 = vadd.f32 0.0, %v2239
      %v2241 = vpop.f32.mrf.mxu0
      %v2242 = vadd.f32 0.0, %v2241
      %2243 = vmatmul.bf16.gmra.mxu0 %v1939
      %v2244 = vpop.f32.mrf.mxu0
      %v2245 = vadd.f32 0.0, %v2244
      %v2246 = vpop.f32.mrf.mxu0
      %v2247 = vadd.f32 0.0, %v2246
      %2248 = vmatmul.bf16.gmra.mxu0 %v1942
      %v2249 = vpop.f32.mrf.mxu0
      %v2250 = vadd.f32 0.0, %v2249
      %v2251 = vpop.f32.mrf.mxu0
      %v2252 = vadd.f32 0.0, %v2251
      %2253 = vmatmul.bf16.gmra.mxu0 %v1945
      %v2254 = vpop.f32.mrf.mxu0
      %v2255 = vadd.f32 0.0, %v2254
      %v2256 = vpop.f32.mrf.mxu0
      %v2257 = vadd.f32 0.0, %v2256
      %2258 = vmatmul.bf16.gmra.mxu0 %v1948
      %v2259 = vpop.f32.mrf.mxu0
      %v2260 = vadd.f32 0.0, %v2259
      %v2261 = vpop.f32.mrf.mxu0
      %v2262 = vadd.f32 0.0, %v2261
      %2263 = vmatmul.bf16.gmra.mxu0 %v1951
      %v2264 = vpop.f32.mrf.mxu0
      %v2265 = vadd.f32 0.0, %v2264
      %v2266 = vpop.f32.mrf.mxu0
      %v2267 = vadd.f32 0.0, %v2266
      %2268 = vmatmul.bf16.gmra.mxu0 %v1954
      %v2269 = vpop.f32.mrf.mxu0
      %v2270 = vadd.f32 0.0, %v2269
      %v2271 = vpop.f32.mrf.mxu0
      %v2272 = vadd.f32 0.0, %v2271
      %2273 = vmatmul.bf16.gmra.mxu0 %v1957
      %v2274 = vpop.f32.mrf.mxu0
      %v2275 = vadd.f32 0.0, %v2274
      %v2276 = vpop.f32.mrf.mxu0
      %v2277 = vadd.f32 0.0, %v2276
      %2278 = vmatmul.bf16.gmra.mxu0 %v1960
      %v2279 = vpop.f32.mrf.mxu0
      %v2280 = vadd.f32 0.0, %v2279
      %v2281 = vpop.f32.mrf.mxu0
      %v2282 = vadd.f32 0.0, %v2281
      %2283 = vmatmul.bf16.gmra.mxu0 %v1963
      %v2284 = vpop.f32.mrf.mxu0
      %v2285 = vadd.f32 0.0, %v2284
      %v2286 = vpop.f32.mrf.mxu0
      %v2287 = vadd.f32 0.0, %v2286
      %2288 = vmatmul.bf16.gmra.mxu0 %v1966
      %v2289 = vpop.f32.mrf.mxu0
      %v2290 = vadd.f32 0.0, %v2289
      %v2291 = vpop.f32.mrf.mxu0
      %v2292 = vadd.f32 0.0, %v2291
      %2293 = vmatmul.bf16.gmra.mxu0 %v1969
      %v2294 = vpop.f32.mrf.mxu0
      %v2295 = vadd.f32 0.0, %v2294
      %v2296 = vpop.f32.mrf.mxu0
      %v2297 = vadd.f32 0.0, %v2296
      %2298 = vmatmul.bf16.gmra.mxu0 %v1972
      %v2299 = vpop.f32.mrf.mxu0
      %v2300 = vadd.f32 0.0, %v2299
      %v2301 = vpop.f32.mrf.mxu0
      %v2302 = vadd.f32 0.0, %v2301
      %2303 = vmatmul.bf16.gmra.mxu0 %v1975
      %v2304 = vpop.f32.mrf.mxu0
      %v2305 = vadd.f32 0.0, %v2304
      %v2306 = vpop.f32.mrf.mxu0
      %v2307 = vadd.f32 0.0, %v2306
      %2308 = vmatmul.bf16.gmra.mxu0 %v1978
      %v2309 = vpop.f32.mrf.mxu0
      %v2310 = vadd.f32 0.0, %v2309
      %v2311 = vpop.f32.mrf.mxu0
      %v2312 = vadd.f32 0.0, %v2311
      %2313 = vmatmul.bf16.gmra.mxu0 %v1981
      %v2314 = vpop.f32.mrf.mxu0
      %v2315 = vadd.f32 0.0, %v2314
      %v2316 = vpop.f32.mrf.mxu0
      %v2317 = vadd.f32 0.0, %v2316
      %2318 = vmatmul.bf16.gmra.mxu0 %v1984
      %v2319 = vpop.f32.mrf.mxu0
      %v2320 = vadd.f32 0.0, %v2319
      %v2321 = vpop.f32.mrf.mxu0
      %v2322 = vadd.f32 0.0, %v2321
      %2323 = vmatmul.bf16.gmra.mxu0 %v1987
      %v2324 = vpop.f32.mrf.mxu0
      %v2325 = vadd.f32 0.0, %v2324
      %v2326 = vpop.f32.mrf.mxu0
      %v2327 = vadd.f32 0.0, %v2326
      %2328 = vmatmul.bf16.gmra.mxu0 %v1990
      %v2329 = vpop.f32.mrf.mxu0
      %v2330 = vadd.f32 0.0, %v2329
      %v2331 = vpop.f32.mrf.mxu0
      %v2332 = vadd.f32 0.0, %v2331
      %2333 = vdwg.mxu0
      %2334 = vmatpush.bf16.msra.mxu0 0
      %2335 = vmatpush.bf16.msra.mxu0 0
      %2336 = vmatpush.bf16.msra.mxu0 0
      %2337 = vmatpush.bf16.msra.mxu0 0
      %2338 = vmatpush.bf16.msra.mxu0 0
      %2339 = vmatpush.bf16.msra.mxu0 %v1997
      %2340 = vmatpush.bf16.msra.mxu0 %v1784
      %2341 = vmatpush.bf16.msra.mxu0 %v1780
      %2342 = vmatmul.bf16.gmra.mxu0 %v1801
      %v2343 = vpop.f32.mrf.mxu0
      %v2344 = vadd.f32 0.0, %v2343
      %v2345 = vpop.f32.mrf.mxu0
      %v2346 = vadd.f32 0.0, %v2345
      %2347 = vmatmul.bf16.gmra.mxu0 %v1804
      %v2348 = vpop.f32.mrf.mxu0
      %v2349 = vadd.f32 0.0, %v2348
      %v2350 = vpop.f32.mrf.mxu0
      %v2351 = vadd.f32 0.0, %v2350
      %2352 = vmatmul.bf16.gmra.mxu0 %v1807
      %v2353 = vpop.f32.mrf.mxu0
      %v2354 = vadd.f32 0.0, %v2353
      %v2355 = vpop.f32.mrf.mxu0
      %v2356 = vadd.f32 0.0, %v2355
      %2357 = vmatmul.bf16.gmra.mxu0 %v1810
      %v2358 = vpop.f32.mrf.mxu0
      %v2359 = vadd.f32 0.0, %v2358
      %v2360 = vpop.f32.mrf.mxu0
      %v2361 = vadd.f32 0.0, %v2360
      %2362 = vmatmul.bf16.gmra.mxu0 %v1813
      %v2363 = vpop.f32.mrf.mxu0
      %v2364 = vadd.f32 0.0, %v2363
      %v2365 = vpop.f32.mrf.mxu0
      %v2366 = vadd.f32 0.0, %v2365
      %2367 = vmatmul.bf16.gmra.mxu0 %v1816
      %v2368 = vpop.f32.mrf.mxu0
      %v2369 = vadd.f32 0.0, %v2368
      %v2370 = vpop.f32.mrf.mxu0
      %v2371 = vadd.f32 0.0, %v2370
      %2372 = vmatmul.bf16.gmra.mxu0 %v1819
      %v2373 = vpop.f32.mrf.mxu0
      %v2374 = vadd.f32 0.0, %v2373
      %v2375 = vpop.f32.mrf.mxu0
      %v2376 = vadd.f32 0.0, %v2375
      %2377 = vmatmul.bf16.gmra.mxu0 %v1822
      %v2378 = vpop.f32.mrf.mxu0
      %v2379 = vadd.f32 0.0, %v2378
      %v2380 = vpop.f32.mrf.mxu0
      %v2381 = vadd.f32 0.0, %v2380
      %2382 = vmatmul.bf16.gmra.mxu0 %v1825
      %v2383 = vpop.f32.mrf.mxu0
      %v2384 = vadd.f32 0.0, %v2383
      %v2385 = vpop.f32.mrf.mxu0
      %v2386 = vadd.f32 0.0, %v2385
      %2387 = vmatmul.bf16.gmra.mxu0 %v1828
      %v2388 = vpop.f32.mrf.mxu0
      %v2389 = vadd.f32 0.0, %v2388
      %v2390 = vpop.f32.mrf.mxu0
      %v2391 = vadd.f32 0.0, %v2390
      %2392 = vmatmul.bf16.gmra.mxu0 %v1831
      %v2393 = vpop.f32.mrf.mxu0
      %v2394 = vadd.f32 0.0, %v2393
      %v2395 = vpop.f32.mrf.mxu0
      %v2396 = vadd.f32 0.0, %v2395
      %2397 = vmatmul.bf16.gmra.mxu0 %v1834
      %v2398 = vpop.f32.mrf.mxu0
      %v2399 = vadd.f32 0.0, %v2398
      %v2400 = vpop.f32.mrf.mxu0
      %v2401 = vadd.f32 0.0, %v2400
      %2402 = vmatmul.bf16.gmra.mxu0 %v1837
      %v2403 = vpop.f32.mrf.mxu0
      %v2404 = vadd.f32 0.0, %v2403
      %v2405 = vpop.f32.mrf.mxu0
      %v2406 = vadd.f32 0.0, %v2405
      %2407 = vmatmul.bf16.gmra.mxu0 %v1840
      %v2408 = vpop.f32.mrf.mxu0
      %v2409 = vadd.f32 0.0, %v2408
      %v2410 = vpop.f32.mrf.mxu0
      %v2411 = vadd.f32 0.0, %v2410
      %2412 = vmatmul.bf16.gmra.mxu0 %v1843
      %v2413 = vpop.f32.mrf.mxu0
      %v2414 = vadd.f32 0.0, %v2413
      %v2415 = vpop.f32.mrf.mxu0
      %v2416 = vadd.f32 0.0, %v2415
      %2417 = vmatmul.bf16.gmra.mxu0 %v1846
      %v2418 = vpop.f32.mrf.mxu0
      %v2419 = vadd.f32 0.0, %v2418
      %v2420 = vpop.f32.mrf.mxu0
      %v2421 = vadd.f32 0.0, %v2420
      %2422 = vmatmul.bf16.gmra.mxu0 %v1849
      %v2423 = vpop.f32.mrf.mxu0
      %v2424 = vadd.f32 0.0, %v2423
      %v2425 = vpop.f32.mrf.mxu0
      %v2426 = vadd.f32 0.0, %v2425
      %2427 = vmatmul.bf16.gmra.mxu0 %v1852
      %v2428 = vpop.f32.mrf.mxu0
      %v2429 = vadd.f32 0.0, %v2428
      %v2430 = vpop.f32.mrf.mxu0
      %v2431 = vadd.f32 0.0, %v2430
      %2432 = vmatmul.bf16.gmra.mxu0 %v1855
      %v2433 = vpop.f32.mrf.mxu0
      %v2434 = vadd.f32 0.0, %v2433
      %v2435 = vpop.f32.mrf.mxu0
      %v2436 = vadd.f32 0.0, %v2435
      %2437 = vmatmul.bf16.gmra.mxu0 %v1858
      %v2438 = vpop.f32.mrf.mxu0
      %v2439 = vadd.f32 0.0, %v2438
      %v2440 = vpop.f32.mrf.mxu0
      %v2441 = vadd.f32 0.0, %v2440
      %2442 = vmatmul.bf16.gmra.mxu0 %v1861
      %v2443 = vpop.f32.mrf.mxu0
      %v2444 = vadd.f32 0.0, %v2443
      %v2445 = vpop.f32.mrf.mxu0
      %v2446 = vadd.f32 0.0, %v2445
      %2447 = vmatmul.bf16.gmra.mxu0 %v1864
      %v2448 = vpop.f32.mrf.mxu0
      %v2449 = vadd.f32 0.0, %v2448
      %v2450 = vpop.f32.mrf.mxu0
      %v2451 = vadd.f32 0.0, %v2450
      %2452 = vmatmul.bf16.gmra.mxu0 %v1867
      %v2453 = vpop.f32.mrf.mxu0
      %v2454 = vadd.f32 0.0, %v2453
      %v2455 = vpop.f32.mrf.mxu0
      %v2456 = vadd.f32 0.0, %v2455
      %2457 = vmatmul.bf16.gmra.mxu0 %v1870
      %v2458 = vpop.f32.mrf.mxu0
      %v2459 = vadd.f32 0.0, %v2458
      %v2460 = vpop.f32.mrf.mxu0
      %v2461 = vadd.f32 0.0, %v2460
      %2462 = vmatmul.bf16.gmra.mxu0 %v1873
      %v2463 = vpop.f32.mrf.mxu0
      %v2464 = vadd.f32 0.0, %v2463
      %v2465 = vpop.f32.mrf.mxu0
      %v2466 = vadd.f32 0.0, %v2465
      %2467 = vmatmul.bf16.gmra.mxu0 %v1876
      %v2468 = vpop.f32.mrf.mxu0
      %v2469 = vadd.f32 0.0, %v2468
      %v2470 = vpop.f32.mrf.mxu0
      %v2471 = vadd.f32 0.0, %v2470
      %2472 = vmatmul.bf16.gmra.mxu0 %v1879
      %v2473 = vpop.f32.mrf.mxu0
      %v2474 = vadd.f32 0.0, %v2473
      %v2475 = vpop.f32.mrf.mxu0
      %v2476 = vadd.f32 0.0, %v2475
      %2477 = vmatmul.bf16.gmra.mxu0 %v1882
      %v2478 = vpop.f32.mrf.mxu0
      %v2479 = vadd.f32 0.0, %v2478
      %v2480 = vpop.f32.mrf.mxu0
      %v2481 = vadd.f32 0.0, %v2480
      %2482 = vmatmul.bf16.gmra.mxu0 %v1885
      %v2483 = vpop.f32.mrf.mxu0
      %v2484 = vadd.f32 0.0, %v2483
      %v2485 = vpop.f32.mrf.mxu0
      %v2486 = vadd.f32 0.0, %v2485
      %2487 = vmatmul.bf16.gmra.mxu0 %v1888
      %v2488 = vpop.f32.mrf.mxu0
      %v2489 = vadd.f32 0.0, %v2488
      %v2490 = vpop.f32.mrf.mxu0
      %v2491 = vadd.f32 0.0, %v2490
      %2492 = vmatmul.bf16.gmra.mxu0 %v1891
      %v2493 = vpop.f32.mrf.mxu0
      %v2494 = vadd.f32 0.0, %v2493
      %v2495 = vpop.f32.mrf.mxu0
      %v2496 = vadd.f32 0.0, %v2495
      %2497 = vmatmul.bf16.gmra.mxu0 %v1894
      %v2498 = vpop.f32.mrf.mxu0
      %v2499 = vadd.f32 0.0, %v2498
      %v2500 = vpop.f32.mrf.mxu0
      %v2501 = vadd.f32 0.0, %v2500
      %2502 = vmatmul.bf16.gmra.mxu0 %v1897
      %v2503 = vpop.f32.mrf.mxu0
      %v2504 = vadd.f32 0.0, %v2503
      %v2505 = vpop.f32.mrf.mxu0
      %v2506 = vadd.f32 0.0, %v2505
      %2507 = vmatmul.bf16.gmra.mxu0 %v1900
      %v2508 = vpop.f32.mrf.mxu0
      %v2509 = vadd.f32 0.0, %v2508
      %v2510 = vpop.f32.mrf.mxu0
      %v2511 = vadd.f32 0.0, %v2510
      %2512 = vmatmul.bf16.gmra.mxu0 %v1903
      %v2513 = vpop.f32.mrf.mxu0
      %v2514 = vadd.f32 0.0, %v2513
      %v2515 = vpop.f32.mrf.mxu0
      %v2516 = vadd.f32 0.0, %v2515
      %2517 = vmatmul.bf16.gmra.mxu0 %v1906
      %v2518 = vpop.f32.mrf.mxu0
      %v2519 = vadd.f32 0.0, %v2518
      %v2520 = vpop.f32.mrf.mxu0
      %v2521 = vadd.f32 0.0, %v2520
      %2522 = vmatmul.bf16.gmra.mxu0 %v1909
      %v2523 = vpop.f32.mrf.mxu0
      %v2524 = vadd.f32 0.0, %v2523
      %v2525 = vpop.f32.mrf.mxu0
      %v2526 = vadd.f32 0.0, %v2525
      %2527 = vmatmul.bf16.gmra.mxu0 %v1912
      %v2528 = vpop.f32.mrf.mxu0
      %v2529 = vadd.f32 0.0, %v2528
      %v2530 = vpop.f32.mrf.mxu0
      %v2531 = vadd.f32 0.0, %v2530
      %2532 = vmatmul.bf16.gmra.mxu0 %v1915
      %v2533 = vpop.f32.mrf.mxu0
      %v2534 = vadd.f32 0.0, %v2533
      %v2535 = vpop.f32.mrf.mxu0
      %v2536 = vadd.f32 0.0, %v2535
      %2537 = vmatmul.bf16.gmra.mxu0 %v1918
      %v2538 = vpop.f32.mrf.mxu0
      %v2539 = vadd.f32 0.0, %v2538
      %v2540 = vpop.f32.mrf.mxu0
      %v2541 = vadd.f32 0.0, %v2540
      %2542 = vmatmul.bf16.gmra.mxu0 %v1921
      %v2543 = vpop.f32.mrf.mxu0
      %v2544 = vadd.f32 0.0, %v2543
      %v2545 = vpop.f32.mrf.mxu0
      %v2546 = vadd.f32 0.0, %v2545
      %2547 = vmatmul.bf16.gmra.mxu0 %v1924
      %v2548 = vpop.f32.mrf.mxu0
      %v2549 = vadd.f32 0.0, %v2548
      %v2550 = vpop.f32.mrf.mxu0
      %v2551 = vadd.f32 0.0, %v2550
      %2552 = vmatmul.bf16.gmra.mxu0 %v1927
      %v2553 = vpop.f32.mrf.mxu0
      %v2554 = vadd.f32 0.0, %v2553
      %v2555 = vpop.f32.mrf.mxu0
      %v2556 = vadd.f32 0.0, %v2555
      %2557 = vmatmul.bf16.gmra.mxu0 %v1930
      %v2558 = vpop.f32.mrf.mxu0
      %v2559 = vadd.f32 0.0, %v2558
      %v2560 = vpop.f32.mrf.mxu0
      %v2561 = vadd.f32 0.0, %v2560
      %2562 = vmatmul.bf16.gmra.mxu0 %v1933
      %v2563 = vpop.f32.mrf.mxu0
      %v2564 = vadd.f32 0.0, %v2563
      %v2565 = vpop.f32.mrf.mxu0
      %v2566 = vadd.f32 0.0, %v2565
      %2567 = vmatmul.bf16.gmra.mxu0 %v1936
      %v2568 = vpop.f32.mrf.mxu0
      %v2569 = vadd.f32 0.0, %v2568
      %v2570 = vpop.f32.mrf.mxu0
      %v2571 = vadd.f32 0.0, %v2570
      %2572 = vmatmul.bf16.gmra.mxu0 %v1939
      %v2573 = vpop.f32.mrf.mxu0
      %v2574 = vadd.f32 0.0, %v2573
      %v2575 = vpop.f32.mrf.mxu0
      %v2576 = vadd.f32 0.0, %v2575
      %2577 = vmatmul.bf16.gmra.mxu0 %v1942
      %v2578 = vpop.f32.mrf.mxu0
      %v2579 = vadd.f32 0.0, %v2578
      %v2580 = vpop.f32.mrf.mxu0
      %v2581 = vadd.f32 0.0, %v2580
      %2582 = vmatmul.bf16.gmra.mxu0 %v1945
      %v2583 = vpop.f32.mrf.mxu0
      %v2584 = vadd.f32 0.0, %v2583
      %v2585 = vpop.f32.mrf.mxu0
      %v2586 = vadd.f32 0.0, %v2585
      %2587 = vmatmul.bf16.gmra.mxu0 %v1948
      %v2588 = vpop.f32.mrf.mxu0
      %v2589 = vadd.f32 0.0, %v2588
      %v2590 = vpop.f32.mrf.mxu0
      %v2591 = vadd.f32 0.0, %v2590
      %2592 = vmatmul.bf16.gmra.mxu0 %v1951
      %v2593 = vpop.f32.mrf.mxu0
      %v2594 = vadd.f32 0.0, %v2593
      %v2595 = vpop.f32.mrf.mxu0
      %v2596 = vadd.f32 0.0, %v2595
      %2597 = vmatmul.bf16.gmra.mxu0 %v1954
      %v2598 = vpop.f32.mrf.mxu0
      %v2599 = vadd.f32 0.0, %v2598
      %v2600 = vpop.f32.mrf.mxu0
      %v2601 = vadd.f32 0.0, %v2600
      %2602 = vmatmul.bf16.gmra.mxu0 %v1957
      %v2603 = vpop.f32.mrf.mxu0
      %v2604 = vadd.f32 0.0, %v2603
      %v2605 = vpop.f32.mrf.mxu0
      %v2606 = vadd.f32 0.0, %v2605
      %2607 = vmatmul.bf16.gmra.mxu0 %v1960
      %v2608 = vpop.f32.mrf.mxu0
      %v2609 = vadd.f32 0.0, %v2608
      %v2610 = vpop.f32.mrf.mxu0
      %v2611 = vadd.f32 0.0, %v2610
      %2612 = vmatmul.bf16.gmra.mxu0 %v1963
      %v2613 = vpop.f32.mrf.mxu0
      %v2614 = vadd.f32 0.0, %v2613
      %v2615 = vpop.f32.mrf.mxu0
      %v2616 = vadd.f32 0.0, %v2615
      %2617 = vmatmul.bf16.gmra.mxu0 %v1966
      %v2618 = vpop.f32.mrf.mxu0
      %v2619 = vadd.f32 0.0, %v2618
      %v2620 = vpop.f32.mrf.mxu0
      %v2621 = vadd.f32 0.0, %v2620
      %2622 = vmatmul.bf16.gmra.mxu0 %v1969
      %v2623 = vpop.f32.mrf.mxu0
      %v2624 = vadd.f32 0.0, %v2623
      %v2625 = vpop.f32.mrf.mxu0
      %v2626 = vadd.f32 0.0, %v2625
      %2627 = vmatmul.bf16.gmra.mxu0 %v1972
      %v2628 = vpop.f32.mrf.mxu0
      %v2629 = vadd.f32 0.0, %v2628
      %v2630 = vpop.f32.mrf.mxu0
      %v2631 = vadd.f32 0.0, %v2630
      %2632 = vmatmul.bf16.gmra.mxu0 %v1975
      %v2633 = vpop.f32.mrf.mxu0
      %v2634 = vadd.f32 0.0, %v2633
      %v2635 = vpop.f32.mrf.mxu0
      %v2636 = vadd.f32 0.0, %v2635
      %2637 = vmatmul.bf16.gmra.mxu0 %v1978
      %v2638 = vpop.f32.mrf.mxu0
      %v2639 = vadd.f32 0.0, %v2638
      %v2640 = vpop.f32.mrf.mxu0
      %v2641 = vadd.f32 0.0, %v2640
      %2642 = vmatmul.bf16.gmra.mxu0 %v1981
      %v2643 = vpop.f32.mrf.mxu0
      %v2644 = vadd.f32 0.0, %v2643
      %v2645 = vpop.f32.mrf.mxu0
      %v2646 = vadd.f32 0.0, %v2645
      %2647 = vmatmul.bf16.gmra.mxu0 %v1984
      %v2648 = vpop.f32.mrf.mxu0
      %v2649 = vadd.f32 0.0, %v2648
      %v2650 = vpop.f32.mrf.mxu0
      %v2651 = vadd.f32 0.0, %v2650
      %2652 = vmatmul.bf16.gmra.mxu0 %v1987
      %v2653 = vpop.f32.mrf.mxu0
      %v2654 = vadd.f32 0.0, %v2653
      %v2655 = vpop.f32.mrf.mxu0
      %v2656 = vadd.f32 0.0, %v2655
      %2657 = vmatmul.bf16.gmra.mxu0 %v1990
      %v2658 = vpop.f32.mrf.mxu0
      %v2659 = vadd.f32 0.0, %v2658
      %v2660 = vpop.f32.mrf.mxu0
      %v2661 = vadd.f32 0.0, %v2660
      %2662 = vdwg.mxu0
      %2663 = vmatpush.bf16.msra.mxu0 0
      %2664 = vmatpush.bf16.msra.mxu0 0
      %2665 = vmatpush.bf16.msra.mxu0 0
      %2666 = vmatpush.bf16.msra.mxu0 0
      %2667 = vmatpush.bf16.msra.mxu0 0
      %2668 = vmatpush.bf16.msra.mxu0 %v2000
      %2669 = vmatpush.bf16.msra.mxu0 %v1785
      %2670 = vmatpush.bf16.msra.mxu0 %v1781
      %2671 = vmatmul.bf16.gmra.mxu0 %v1801
      %v2672 = vpop.f32.mrf.mxu0
      %v2673 = vadd.f32 0.0, %v2672
      %v2674 = vpop.f32.mrf.mxu0
      %v2675 = vadd.f32 0.0, %v2674
      %2676 = vmatmul.bf16.gmra.mxu0 %v1804
      %v2677 = vpop.f32.mrf.mxu0
      %v2678 = vadd.f32 0.0, %v2677
      %v2679 = vpop.f32.mrf.mxu0
      %v2680 = vadd.f32 0.0, %v2679
      %2681 = vmatmul.bf16.gmra.mxu0 %v1807
      %v2682 = vpop.f32.mrf.mxu0
      %v2683 = vadd.f32 0.0, %v2682
      %v2684 = vpop.f32.mrf.mxu0
      %v2685 = vadd.f32 0.0, %v2684
      %2686 = vmatmul.bf16.gmra.mxu0 %v1810
      %v2687 = vpop.f32.mrf.mxu0
      %v2688 = vadd.f32 0.0, %v2687
      %v2689 = vpop.f32.mrf.mxu0
      %v2690 = vadd.f32 0.0, %v2689
      %2691 = vmatmul.bf16.gmra.mxu0 %v1813
      %v2692 = vpop.f32.mrf.mxu0
      %v2693 = vadd.f32 0.0, %v2692
      %v2694 = vpop.f32.mrf.mxu0
      %v2695 = vadd.f32 0.0, %v2694
      %2696 = vmatmul.bf16.gmra.mxu0 %v1816
      %v2697 = vpop.f32.mrf.mxu0
      %v2698 = vadd.f32 0.0, %v2697
      %v2699 = vpop.f32.mrf.mxu0
      %v2700 = vadd.f32 0.0, %v2699
      %2701 = vmatmul.bf16.gmra.mxu0 %v1819
      %v2702 = vpop.f32.mrf.mxu0
      %v2703 = vadd.f32 0.0, %v2702
      %v2704 = vpop.f32.mrf.mxu0
      %v2705 = vadd.f32 0.0, %v2704
      %2706 = vmatmul.bf16.gmra.mxu0 %v1822
      %v2707 = vpop.f32.mrf.mxu0
      %v2708 = vadd.f32 0.0, %v2707
      %v2709 = vpop.f32.mrf.mxu0
      %v2710 = vadd.f32 0.0, %v2709
      %2711 = vmatmul.bf16.gmra.mxu0 %v1825
      %v2712 = vpop.f32.mrf.mxu0
      %v2713 = vadd.f32 0.0, %v2712
      %v2714 = vpop.f32.mrf.mxu0
      %v2715 = vadd.f32 0.0, %v2714
      %2716 = vmatmul.bf16.gmra.mxu0 %v1828
      %v2717 = vpop.f32.mrf.mxu0
      %v2718 = vadd.f32 0.0, %v2717
      %v2719 = vpop.f32.mrf.mxu0
      %v2720 = vadd.f32 0.0, %v2719
      %2721 = vmatmul.bf16.gmra.mxu0 %v1831
      %v2722 = vpop.f32.mrf.mxu0
      %v2723 = vadd.f32 0.0, %v2722
      %v2724 = vpop.f32.mrf.mxu0
      %v2725 = vadd.f32 0.0, %v2724
      %2726 = vmatmul.bf16.gmra.mxu0 %v1834
      %v2727 = vpop.f32.mrf.mxu0
      %v2728 = vadd.f32 0.0, %v2727
      %v2729 = vpop.f32.mrf.mxu0
      %v2730 = vadd.f32 0.0, %v2729
      %2731 = vmatmul.bf16.gmra.mxu0 %v1837
      %v2732 = vpop.f32.mrf.mxu0
      %v2733 = vadd.f32 0.0, %v2732
      %v2734 = vpop.f32.mrf.mxu0
      %v2735 = vadd.f32 0.0, %v2734
      %2736 = vmatmul.bf16.gmra.mxu0 %v1840
      %v2737 = vpop.f32.mrf.mxu0
      %v2738 = vadd.f32 0.0, %v2737
      %v2739 = vpop.f32.mrf.mxu0
      %v2740 = vadd.f32 0.0, %v2739
      %2741 = vmatmul.bf16.gmra.mxu0 %v1843
      %v2742 = vpop.f32.mrf.mxu0
      %v2743 = vadd.f32 0.0, %v2742
      %v2744 = vpop.f32.mrf.mxu0
      %v2745 = vadd.f32 0.0, %v2744
      %2746 = vmatmul.bf16.gmra.mxu0 %v1846
      %v2747 = vpop.f32.mrf.mxu0
      %v2748 = vadd.f32 0.0, %v2747
      %v2749 = vpop.f32.mrf.mxu0
      %v2750 = vadd.f32 0.0, %v2749
      %2751 = vmatmul.bf16.gmra.mxu0 %v1849
      %v2752 = vpop.f32.mrf.mxu0
      %v2753 = vadd.f32 0.0, %v2752
      %v2754 = vpop.f32.mrf.mxu0
      %v2755 = vadd.f32 0.0, %v2754
      %2756 = vmatmul.bf16.gmra.mxu0 %v1852
      %v2757 = vpop.f32.mrf.mxu0
      %v2758 = vadd.f32 0.0, %v2757
      %v2759 = vpop.f32.mrf.mxu0
      %v2760 = vadd.f32 0.0, %v2759
      %2761 = vmatmul.bf16.gmra.mxu0 %v1855
      %v2762 = vpop.f32.mrf.mxu0
      %v2763 = vadd.f32 0.0, %v2762
      %v2764 = vpop.f32.mrf.mxu0
      %v2765 = vadd.f32 0.0, %v2764
      %2766 = vmatmul.bf16.gmra.mxu0 %v1858
      %v2767 = vpop.f32.mrf.mxu0
      %v2768 = vadd.f32 0.0, %v2767
      %v2769 = vpop.f32.mrf.mxu0
      %v2770 = vadd.f32 0.0, %v2769
      %2771 = vmatmul.bf16.gmra.mxu0 %v1861
      %v2772 = vpop.f32.mrf.mxu0
      %v2773 = vadd.f32 0.0, %v2772
      %v2774 = vpop.f32.mrf.mxu0
      %v2775 = vadd.f32 0.0, %v2774
      %2776 = vmatmul.bf16.gmra.mxu0 %v1864
      %v2777 = vpop.f32.mrf.mxu0
      %v2778 = vadd.f32 0.0, %v2777
      %v2779 = vpop.f32.mrf.mxu0
      %v2780 = vadd.f32 0.0, %v2779
      %2781 = vmatmul.bf16.gmra.mxu0 %v1867
      %v2782 = vpop.f32.mrf.mxu0
      %v2783 = vadd.f32 0.0, %v2782
      %v2784 = vpop.f32.mrf.mxu0
      %v2785 = vadd.f32 0.0, %v2784
      %2786 = vmatmul.bf16.gmra.mxu0 %v1870
      %v2787 = vpop.f32.mrf.mxu0
      %v2788 = vadd.f32 0.0, %v2787
      %v2789 = vpop.f32.mrf.mxu0
      %v2790 = vadd.f32 0.0, %v2789
      %2791 = vmatmul.bf16.gmra.mxu0 %v1873
      %v2792 = vpop.f32.mrf.mxu0
      %v2793 = vadd.f32 0.0, %v2792
      %v2794 = vpop.f32.mrf.mxu0
      %v2795 = vadd.f32 0.0, %v2794
      %2796 = vmatmul.bf16.gmra.mxu0 %v1876
      %v2797 = vpop.f32.mrf.mxu0
      %v2798 = vadd.f32 0.0, %v2797
      %v2799 = vpop.f32.mrf.mxu0
      %v2800 = vadd.f32 0.0, %v2799
      %2801 = vmatmul.bf16.gmra.mxu0 %v1879
      %v2802 = vpop.f32.mrf.mxu0
      %v2803 = vadd.f32 0.0, %v2802
      %v2804 = vpop.f32.mrf.mxu0
      %v2805 = vadd.f32 0.0, %v2804
      %2806 = vmatmul.bf16.gmra.mxu0 %v1882
      %v2807 = vpop.f32.mrf.mxu0
      %v2808 = vadd.f32 0.0, %v2807
      %v2809 = vpop.f32.mrf.mxu0
      %v2810 = vadd.f32 0.0, %v2809
      %2811 = vmatmul.bf16.gmra.mxu0 %v1885
      %v2812 = vpop.f32.mrf.mxu0
      %v2813 = vadd.f32 0.0, %v2812
      %v2814 = vpop.f32.mrf.mxu0
      %v2815 = vadd.f32 0.0, %v2814
      %2816 = vmatmul.bf16.gmra.mxu0 %v1888
      %v2817 = vpop.f32.mrf.mxu0
      %v2818 = vadd.f32 0.0, %v2817
      %v2819 = vpop.f32.mrf.mxu0
      %v2820 = vadd.f32 0.0, %v2819
      %2821 = vmatmul.bf16.gmra.mxu0 %v1891
      %v2822 = vpop.f32.mrf.mxu0
      %v2823 = vadd.f32 0.0, %v2822
      %v2824 = vpop.f32.mrf.mxu0
      %v2825 = vadd.f32 0.0, %v2824
      %2826 = vmatmul.bf16.gmra.mxu0 %v1894
      %v2827 = vpop.f32.mrf.mxu0
      %v2828 = vadd.f32 0.0, %v2827
      %v2829 = vpop.f32.mrf.mxu0
      %v2830 = vadd.f32 0.0, %v2829
      %2831 = vmatmul.bf16.gmra.mxu0 %v1897
      %v2832 = vpop.f32.mrf.mxu0
      %v2833 = vadd.f32 0.0, %v2832
      %v2834 = vpop.f32.mrf.mxu0
      %v2835 = vadd.f32 0.0, %v2834
      %2836 = vmatmul.bf16.gmra.mxu0 %v1900
      %v2837 = vpop.f32.mrf.mxu0
      %v2838 = vadd.f32 0.0, %v2837
      %v2839 = vpop.f32.mrf.mxu0
      %v2840 = vadd.f32 0.0, %v2839
      %2841 = vmatmul.bf16.gmra.mxu0 %v1903
      %v2842 = vpop.f32.mrf.mxu0
      %v2843 = vadd.f32 0.0, %v2842
      %v2844 = vpop.f32.mrf.mxu0
      %v2845 = vadd.f32 0.0, %v2844
      %2846 = vmatmul.bf16.gmra.mxu0 %v1906
      %v2847 = vpop.f32.mrf.mxu0
      %v2848 = vadd.f32 0.0, %v2847
      %v2849 = vpop.f32.mrf.mxu0
      %v2850 = vadd.f32 0.0, %v2849
      %2851 = vmatmul.bf16.gmra.mxu0 %v1909
      %v2852 = vpop.f32.mrf.mxu0
      %v2853 = vadd.f32 0.0, %v2852
      %v2854 = vpop.f32.mrf.mxu0
      %v2855 = vadd.f32 0.0, %v2854
      %2856 = vmatmul.bf16.gmra.mxu0 %v1912
      %v2857 = vpop.f32.mrf.mxu0
      %v2858 = vadd.f32 0.0, %v2857
      %v2859 = vpop.f32.mrf.mxu0
      %v2860 = vadd.f32 0.0, %v2859
      %2861 = vmatmul.bf16.gmra.mxu0 %v1915
      %v2862 = vpop.f32.mrf.mxu0
      %v2863 = vadd.f32 0.0, %v2862
      %v2864 = vpop.f32.mrf.mxu0
      %v2865 = vadd.f32 0.0, %v2864
      %2866 = vmatmul.bf16.gmra.mxu0 %v1918
      %v2867 = vpop.f32.mrf.mxu0
      %v2868 = vadd.f32 0.0, %v2867
      %v2869 = vpop.f32.mrf.mxu0
      %v2870 = vadd.f32 0.0, %v2869
      %2871 = vmatmul.bf16.gmra.mxu0 %v1921
      %v2872 = vpop.f32.mrf.mxu0
      %v2873 = vadd.f32 0.0, %v2872
      %v2874 = vpop.f32.mrf.mxu0
      %v2875 = vadd.f32 0.0, %v2874
      %2876 = vmatmul.bf16.gmra.mxu0 %v1924
      %v2877 = vpop.f32.mrf.mxu0
      %v2878 = vadd.f32 0.0, %v2877
      %v2879 = vpop.f32.mrf.mxu0
      %v2880 = vadd.f32 0.0, %v2879
      %2881 = vmatmul.bf16.gmra.mxu0 %v1927
      %v2882 = vpop.f32.mrf.mxu0
      %v2883 = vadd.f32 0.0, %v2882
      %v2884 = vpop.f32.mrf.mxu0
      %v2885 = vadd.f32 0.0, %v2884
      %2886 = vmatmul.bf16.gmra.mxu0 %v1930
      %v2887 = vpop.f32.mrf.mxu0
      %v2888 = vadd.f32 0.0, %v2887
      %v2889 = vpop.f32.mrf.mxu0
      %v2890 = vadd.f32 0.0, %v2889
      %2891 = vmatmul.bf16.gmra.mxu0 %v1933
      %v2892 = vpop.f32.mrf.mxu0
      %v2893 = vadd.f32 0.0, %v2892
      %v2894 = vpop.f32.mrf.mxu0
      %v2895 = vadd.f32 0.0, %v2894
      %2896 = vmatmul.bf16.gmra.mxu0 %v1936
      %v2897 = vpop.f32.mrf.mxu0
      %v2898 = vadd.f32 0.0, %v2897
      %v2899 = vpop.f32.mrf.mxu0
      %v2900 = vadd.f32 0.0, %v2899
      %2901 = vmatmul.bf16.gmra.mxu0 %v1939
      %v2902 = vpop.f32.mrf.mxu0
      %v2903 = vadd.f32 0.0, %v2902
      %v2904 = vpop.f32.mrf.mxu0
      %v2905 = vadd.f32 0.0, %v2904
      %2906 = vmatmul.bf16.gmra.mxu0 %v1942
      %v2907 = vpop.f32.mrf.mxu0
      %v2908 = vadd.f32 0.0, %v2907
      %v2909 = vpop.f32.mrf.mxu0
      %v2910 = vadd.f32 0.0, %v2909
      %2911 = vmatmul.bf16.gmra.mxu0 %v1945
      %v2912 = vpop.f32.mrf.mxu0
      %v2913 = vadd.f32 0.0, %v2912
      %v2914 = vpop.f32.mrf.mxu0
      %v2915 = vadd.f32 0.0, %v2914
      %2916 = vmatmul.bf16.gmra.mxu0 %v1948
      %v2917 = vpop.f32.mrf.mxu0
      %v2918 = vadd.f32 0.0, %v2917
      %v2919 = vpop.f32.mrf.mxu0
      %v2920 = vadd.f32 0.0, %v2919
      %2921 = vmatmul.bf16.gmra.mxu0 %v1951
      %v2922 = vpop.f32.mrf.mxu0
      %v2923 = vadd.f32 0.0, %v2922
      %v2924 = vpop.f32.mrf.mxu0
      %v2925 = vadd.f32 0.0, %v2924
      %2926 = vmatmul.bf16.gmra.mxu0 %v1954
      %v2927 = vpop.f32.mrf.mxu0
      %v2928 = vadd.f32 0.0, %v2927
      %v2929 = vpop.f32.mrf.mxu0
      %v2930 = vadd.f32 0.0, %v2929
      %2931 = vmatmul.bf16.gmra.mxu0 %v1957
      %v2932 = vpop.f32.mrf.mxu0
      %v2933 = vadd.f32 0.0, %v2932
      %v2934 = vpop.f32.mrf.mxu0
      %v2935 = vadd.f32 0.0, %v2934
      %2936 = vmatmul.bf16.gmra.mxu0 %v1960
      %v2937 = vpop.f32.mrf.mxu0
      %v2938 = vadd.f32 0.0, %v2937
      %v2939 = vpop.f32.mrf.mxu0
      %v2940 = vadd.f32 0.0, %v2939
      %2941 = vmatmul.bf16.gmra.mxu0 %v1963
      %v2942 = vpop.f32.mrf.mxu0
      %v2943 = vadd.f32 0.0, %v2942
      %v2944 = vpop.f32.mrf.mxu0
      %v2945 = vadd.f32 0.0, %v2944
      %2946 = vmatmul.bf16.gmra.mxu0 %v1966
      %v2947 = vpop.f32.mrf.mxu0
      %v2948 = vadd.f32 0.0, %v2947
      %v2949 = vpop.f32.mrf.mxu0
      %v2950 = vadd.f32 0.0, %v2949
      %2951 = vmatmul.bf16.gmra.mxu0 %v1969
      %v2952 = vpop.f32.mrf.mxu0
      %v2953 = vadd.f32 0.0, %v2952
      %v2954 = vpop.f32.mrf.mxu0
      %v2955 = vadd.f32 0.0, %v2954
      %2956 = vmatmul.bf16.gmra.mxu0 %v1972
      %v2957 = vpop.f32.mrf.mxu0
      %v2958 = vadd.f32 0.0, %v2957
      %v2959 = vpop.f32.mrf.mxu0
      %v2960 = vadd.f32 0.0, %v2959
      %2961 = vmatmul.bf16.gmra.mxu0 %v1975
      %v2962 = vpop.f32.mrf.mxu0
      %v2963 = vadd.f32 0.0, %v2962
      %v2964 = vpop.f32.mrf.mxu0
      %v2965 = vadd.f32 0.0, %v2964
      %2966 = vmatmul.bf16.gmra.mxu0 %v1978
      %v2967 = vpop.f32.mrf.mxu0
      %v2968 = vadd.f32 0.0, %v2967
      %v2969 = vpop.f32.mrf.mxu0
      %v2970 = vadd.f32 0.0, %v2969
      %2971 = vmatmul.bf16.gmra.mxu0 %v1981
      %v2972 = vpop.f32.mrf.mxu0
      %v2973 = vadd.f32 0.0, %v2972
      %v2974 = vpop.f32.mrf.mxu0
      %v2975 = vadd.f32 0.0, %v2974
      %2976 = vmatmul.bf16.gmra.mxu0 %v1984
      %v2977 = vpop.f32.mrf.mxu0
      %v2978 = vadd.f32 0.0, %v2977
      %v2979 = vpop.f32.mrf.mxu0
      %v2980 = vadd.f32 0.0, %v2979
      %2981 = vmatmul.bf16.gmra.mxu0 %v1987
      %v2982 = vpop.f32.mrf.mxu0
      %v2983 = vadd.f32 0.0, %v2982
      %v2984 = vpop.f32.mrf.mxu0
      %v2985 = vadd.f32 0.0, %v2984
      %2986 = vmatmul.bf16.gmra.mxu0 %v1990
      %v2987 = vpop.f32.mrf.mxu0
      %v2988 = vadd.f32 0.0, %v2987
      %v2989 = vpop.f32.mrf.mxu0
      %v2990 = vadd.f32 0.0, %v2989
      %2991 = vdwg.mxu0
      %2992 = vmatpush.bf16.msra.mxu0 0
      %2993 = vmatpush.bf16.msra.mxu0 0
      %2994 = vmatpush.bf16.msra.mxu0 0
      %2995 = vmatpush.bf16.msra.mxu0 0
      %2996 = vmatpush.bf16.msra.mxu0 0
      %2997 = vmatpush.bf16.msra.mxu0 %v2003
      %2998 = vmatpush.bf16.msra.mxu0 %v1786
      %2999 = vmatpush.bf16.msra.mxu0 %v1782
      %3000 = vmatmul.bf16.gmra.mxu0 %v1801
      %v3001 = vpop.f32.mrf.mxu0
      %v3002 = vadd.f32 0.0, %v3001
      %v3003 = vpop.f32.mrf.mxu0
      %v3004 = vadd.f32 0.0, %v3003
      %3005 = vmatmul.bf16.gmra.mxu0 %v1804
      %v3006 = vpop.f32.mrf.mxu0
      %v3007 = vadd.f32 0.0, %v3006
      %v3008 = vpop.f32.mrf.mxu0
      %v3009 = vadd.f32 0.0, %v3008
      %3010 = vmatmul.bf16.gmra.mxu0 %v1807
      %v3011 = vpop.f32.mrf.mxu0
      %v3012 = vadd.f32 0.0, %v3011
      %v3013 = vpop.f32.mrf.mxu0
      %v3014 = vadd.f32 0.0, %v3013
      %3015 = vmatmul.bf16.gmra.mxu0 %v1810
      %v3016 = vpop.f32.mrf.mxu0
      %v3017 = vadd.f32 0.0, %v3016
      %v3018 = vpop.f32.mrf.mxu0
      %v3019 = vadd.f32 0.0, %v3018
      %3020 = vmatmul.bf16.gmra.mxu0 %v1813
      %v3021 = vpop.f32.mrf.mxu0
      %v3022 = vadd.f32 0.0, %v3021
      %v3023 = vpop.f32.mrf.mxu0
      %v3024 = vadd.f32 0.0, %v3023
      %3025 = vmatmul.bf16.gmra.mxu0 %v1816
      %v3026 = vpop.f32.mrf.mxu0
      %v3027 = vadd.f32 0.0, %v3026
      %v3028 = vpop.f32.mrf.mxu0
      %v3029 = vadd.f32 0.0, %v3028
      %3030 = vmatmul.bf16.gmra.mxu0 %v1819
      %v3031 = vpop.f32.mrf.mxu0
      %v3032 = vadd.f32 0.0, %v3031
      %v3033 = vpop.f32.mrf.mxu0
      %v3034 = vadd.f32 0.0, %v3033
      %3035 = vmatmul.bf16.gmra.mxu0 %v1822
      %v3036 = vpop.f32.mrf.mxu0
      %v3037 = vadd.f32 0.0, %v3036
      %v3038 = vpop.f32.mrf.mxu0
      %v3039 = vadd.f32 0.0, %v3038
      %3040 = vmatmul.bf16.gmra.mxu0 %v1825
      %v3041 = vpop.f32.mrf.mxu0
      %v3042 = vadd.f32 0.0, %v3041
      %v3043 = vpop.f32.mrf.mxu0
      %v3044 = vadd.f32 0.0, %v3043
      %3045 = vmatmul.bf16.gmra.mxu0 %v1828
      %v3046 = vpop.f32.mrf.mxu0
      %v3047 = vadd.f32 0.0, %v3046
      %v3048 = vpop.f32.mrf.mxu0
      %v3049 = vadd.f32 0.0, %v3048
      %3050 = vmatmul.bf16.gmra.mxu0 %v1831
      %v3051 = vpop.f32.mrf.mxu0
      %v3052 = vadd.f32 0.0, %v3051
      %v3053 = vpop.f32.mrf.mxu0
      %v3054 = vadd.f32 0.0, %v3053
      %3055 = vmatmul.bf16.gmra.mxu0 %v1834
      %v3056 = vpop.f32.mrf.mxu0
      %v3057 = vadd.f32 0.0, %v3056
      %v3058 = vpop.f32.mrf.mxu0
      %v3059 = vadd.f32 0.0, %v3058
      %3060 = vmatmul.bf16.gmra.mxu0 %v1837
      %v3061 = vpop.f32.mrf.mxu0
      %v3062 = vadd.f32 0.0, %v3061
      %v3063 = vpop.f32.mrf.mxu0
      %v3064 = vadd.f32 0.0, %v3063
      %3065 = vmatmul.bf16.gmra.mxu0 %v1840
      %v3066 = vpop.f32.mrf.mxu0
      %v3067 = vadd.f32 0.0, %v3066
      %v3068 = vpop.f32.mrf.mxu0
      %v3069 = vadd.f32 0.0, %v3068
      %3070 = vmatmul.bf16.gmra.mxu0 %v1843
      %v3071 = vpop.f32.mrf.mxu0
      %v3072 = vadd.f32 0.0, %v3071
      %v3073 = vpop.f32.mrf.mxu0
      %v3074 = vadd.f32 0.0, %v3073
      %3075 = vmatmul.bf16.gmra.mxu0 %v1846
      %v3076 = vpop.f32.mrf.mxu0
      %v3077 = vadd.f32 0.0, %v3076
      %v3078 = vpop.f32.mrf.mxu0
      %v3079 = vadd.f32 0.0, %v3078
      %3080 = vmatmul.bf16.gmra.mxu0 %v1849
      %v3081 = vpop.f32.mrf.mxu0
      %v3082 = vadd.f32 0.0, %v3081
      %v3083 = vpop.f32.mrf.mxu0
      %v3084 = vadd.f32 0.0, %v3083
      %3085 = vmatmul.bf16.gmra.mxu0 %v1852
      %v3086 = vpop.f32.mrf.mxu0
      %v3087 = vadd.f32 0.0, %v3086
      %v3088 = vpop.f32.mrf.mxu0
      %v3089 = vadd.f32 0.0, %v3088
      %3090 = vmatmul.bf16.gmra.mxu0 %v1855
      %v3091 = vpop.f32.mrf.mxu0
      %v3092 = vadd.f32 0.0, %v3091
      %v3093 = vpop.f32.mrf.mxu0
      %v3094 = vadd.f32 0.0, %v3093
      %3095 = vmatmul.bf16.gmra.mxu0 %v1858
      %v3096 = vpop.f32.mrf.mxu0
      %v3097 = vadd.f32 0.0, %v3096
      %v3098 = vpop.f32.mrf.mxu0
      %v3099 = vadd.f32 0.0, %v3098
      %3100 = vmatmul.bf16.gmra.mxu0 %v1861
      %v3101 = vpop.f32.mrf.mxu0
      %v3102 = vadd.f32 0.0, %v3101
      %v3103 = vpop.f32.mrf.mxu0
      %v3104 = vadd.f32 0.0, %v3103
      %3105 = vmatmul.bf16.gmra.mxu0 %v1864
      %v3106 = vpop.f32.mrf.mxu0
      %v3107 = vadd.f32 0.0, %v3106
      %v3108 = vpop.f32.mrf.mxu0
      %v3109 = vadd.f32 0.0, %v3108
      %3110 = vmatmul.bf16.gmra.mxu0 %v1867
      %v3111 = vpop.f32.mrf.mxu0
      %v3112 = vadd.f32 0.0, %v3111
      %v3113 = vpop.f32.mrf.mxu0
      %v3114 = vadd.f32 0.0, %v3113
      %3115 = vmatmul.bf16.gmra.mxu0 %v1870
      %v3116 = vpop.f32.mrf.mxu0
      %v3117 = vadd.f32 0.0, %v3116
      %v3118 = vpop.f32.mrf.mxu0
      %v3119 = vadd.f32 0.0, %v3118
      %3120 = vmatmul.bf16.gmra.mxu0 %v1873
      %v3121 = vpop.f32.mrf.mxu0
      %v3122 = vadd.f32 0.0, %v3121
      %v3123 = vpop.f32.mrf.mxu0
      %v3124 = vadd.f32 0.0, %v3123
      %3125 = vmatmul.bf16.gmra.mxu0 %v1876
      %v3126 = vpop.f32.mrf.mxu0
      %v3127 = vadd.f32 0.0, %v3126
      %v3128 = vpop.f32.mrf.mxu0
      %v3129 = vadd.f32 0.0, %v3128
      %3130 = vmatmul.bf16.gmra.mxu0 %v1879
      %v3131 = vpop.f32.mrf.mxu0
      %v3132 = vadd.f32 0.0, %v3131
      %v3133 = vpop.f32.mrf.mxu0
      %v3134 = vadd.f32 0.0, %v3133
      %3135 = vmatmul.bf16.gmra.mxu0 %v1882
      %v3136 = vpop.f32.mrf.mxu0
      %v3137 = vadd.f32 0.0, %v3136
      %v3138 = vpop.f32.mrf.mxu0
      %v3139 = vadd.f32 0.0, %v3138
      %3140 = vmatmul.bf16.gmra.mxu0 %v1885
      %v3141 = vpop.f32.mrf.mxu0
      %v3142 = vadd.f32 0.0, %v3141
      %v3143 = vpop.f32.mrf.mxu0
      %v3144 = vadd.f32 0.0, %v3143
      %3145 = vmatmul.bf16.gmra.mxu0 %v1888
      %v3146 = vpop.f32.mrf.mxu0
      %v3147 = vadd.f32 0.0, %v3146
      %v3148 = vpop.f32.mrf.mxu0
      %v3149 = vadd.f32 0.0, %v3148
      %3150 = vmatmul.bf16.gmra.mxu0 %v1891
      %v3151 = vpop.f32.mrf.mxu0
      %v3152 = vadd.f32 0.0, %v3151
      %v3153 = vpop.f32.mrf.mxu0
      %v3154 = vadd.f32 0.0, %v3153
      %3155 = vmatmul.bf16.gmra.mxu0 %v1894
      %v3156 = vpop.f32.mrf.mxu0
      %v3157 = vadd.f32 0.0, %v3156
      %v3158 = vpop.f32.mrf.mxu0
      %v3159 = vadd.f32 0.0, %v3158
      %3160 = vmatmul.bf16.gmra.mxu0 %v1897
      %v3161 = vpop.f32.mrf.mxu0
      %v3162 = vadd.f32 0.0, %v3161
      %v3163 = vpop.f32.mrf.mxu0
      %v3164 = vadd.f32 0.0, %v3163
      %3165 = vmatmul.bf16.gmra.mxu0 %v1900
      %v3166 = vpop.f32.mrf.mxu0
      %v3167 = vadd.f32 0.0, %v3166
      %v3168 = vpop.f32.mrf.mxu0
      %v3169 = vadd.f32 0.0, %v3168
      %3170 = vmatmul.bf16.gmra.mxu0 %v1903
      %v3171 = vpop.f32.mrf.mxu0
      %v3172 = vadd.f32 0.0, %v3171
      %v3173 = vpop.f32.mrf.mxu0
      %v3174 = vadd.f32 0.0, %v3173
      %3175 = vmatmul.bf16.gmra.mxu0 %v1906
      %v3176 = vpop.f32.mrf.mxu0
      %v3177 = vadd.f32 0.0, %v3176
      %v3178 = vpop.f32.mrf.mxu0
      %v3179 = vadd.f32 0.0, %v3178
      %3180 = vmatmul.bf16.gmra.mxu0 %v1909
      %v3181 = vpop.f32.mrf.mxu0
      %v3182 = vadd.f32 0.0, %v3181
      %v3183 = vpop.f32.mrf.mxu0
      %v3184 = vadd.f32 0.0, %v3183
      %3185 = vmatmul.bf16.gmra.mxu0 %v1912
      %v3186 = vpop.f32.mrf.mxu0
      %v3187 = vadd.f32 0.0, %v3186
      %v3188 = vpop.f32.mrf.mxu0
      %v3189 = vadd.f32 0.0, %v3188
      %3190 = vmatmul.bf16.gmra.mxu0 %v1915
      %v3191 = vpop.f32.mrf.mxu0
      %v3192 = vadd.f32 0.0, %v3191
      %v3193 = vpop.f32.mrf.mxu0
      %v3194 = vadd.f32 0.0, %v3193
      %3195 = vmatmul.bf16.gmra.mxu0 %v1918
      %v3196 = vpop.f32.mrf.mxu0
      %v3197 = vadd.f32 0.0, %v3196
      %v3198 = vpop.f32.mrf.mxu0
      %v3199 = vadd.f32 0.0, %v3198
      %3200 = vmatmul.bf16.gmra.mxu0 %v1921
      %v3201 = vpop.f32.mrf.mxu0
      %v3202 = vadd.f32 0.0, %v3201
      %v3203 = vpop.f32.mrf.mxu0
      %v3204 = vadd.f32 0.0, %v3203
      %3205 = vmatmul.bf16.gmra.mxu0 %v1924
      %v3206 = vpop.f32.mrf.mxu0
      %v3207 = vadd.f32 0.0, %v3206
      %v3208 = vpop.f32.mrf.mxu0
      %v3209 = vadd.f32 0.0, %v3208
      %3210 = vmatmul.bf16.gmra.mxu0 %v1927
      %v3211 = vpop.f32.mrf.mxu0
      %v3212 = vadd.f32 0.0, %v3211
      %v3213 = vpop.f32.mrf.mxu0
      %v3214 = vadd.f32 0.0, %v3213
      %3215 = vmatmul.bf16.gmra.mxu0 %v1930
      %v3216 = vpop.f32.mrf.mxu0
      %v3217 = vadd.f32 0.0, %v3216
      %v3218 = vpop.f32.mrf.mxu0
      %v3219 = vadd.f32 0.0, %v3218
      %3220 = vmatmul.bf16.gmra.mxu0 %v1933
      %v3221 = vpop.f32.mrf.mxu0
      %v3222 = vadd.f32 0.0, %v3221
      %v3223 = vpop.f32.mrf.mxu0
      %v3224 = vadd.f32 0.0, %v3223
      %3225 = vmatmul.bf16.gmra.mxu0 %v1936
      %v3226 = vpop.f32.mrf.mxu0
      %v3227 = vadd.f32 0.0, %v3226
      %v3228 = vpop.f32.mrf.mxu0
      %v3229 = vadd.f32 0.0, %v3228
      %3230 = vmatmul.bf16.gmra.mxu0 %v1939
      %v3231 = vpop.f32.mrf.mxu0
      %v3232 = vadd.f32 0.0, %v3231
      %v3233 = vpop.f32.mrf.mxu0
      %v3234 = vadd.f32 0.0, %v3233
      %3235 = vmatmul.bf16.gmra.mxu0 %v1942
      %v3236 = vpop.f32.mrf.mxu0
      %v3237 = vadd.f32 0.0, %v3236
      %v3238 = vpop.f32.mrf.mxu0
      %v3239 = vadd.f32 0.0, %v3238
      %3240 = vmatmul.bf16.gmra.mxu0 %v1945
      %v3241 = vpop.f32.mrf.mxu0
      %v3242 = vadd.f32 0.0, %v3241
      %v3243 = vpop.f32.mrf.mxu0
      %v3244 = vadd.f32 0.0, %v3243
      %3245 = vmatmul.bf16.gmra.mxu0 %v1948
      %v3246 = vpop.f32.mrf.mxu0
      %v3247 = vadd.f32 0.0, %v3246
      %v3248 = vpop.f32.mrf.mxu0
      %v3249 = vadd.f32 0.0, %v3248
      %3250 = vmatmul.bf16.gmra.mxu0 %v1951
      %v3251 = vpop.f32.mrf.mxu0
      %v3252 = vadd.f32 0.0, %v3251
      %v3253 = vpop.f32.mrf.mxu0
      %v3254 = vadd.f32 0.0, %v3253
      %3255 = vmatmul.bf16.gmra.mxu0 %v1954
      %v3256 = vpop.f32.mrf.mxu0
      %v3257 = vadd.f32 0.0, %v3256
      %v3258 = vpop.f32.mrf.mxu0
      %v3259 = vadd.f32 0.0, %v3258
      %3260 = vmatmul.bf16.gmra.mxu0 %v1957
      %v3261 = vpop.f32.mrf.mxu0
      %v3262 = vadd.f32 0.0, %v3261
      %v3263 = vpop.f32.mrf.mxu0
      %v3264 = vadd.f32 0.0, %v3263
      %3265 = vmatmul.bf16.gmra.mxu0 %v1960
      %v3266 = vpop.f32.mrf.mxu0
      %v3267 = vadd.f32 0.0, %v3266
      %v3268 = vpop.f32.mrf.mxu0
      %v3269 = vadd.f32 0.0, %v3268
      %3270 = vmatmul.bf16.gmra.mxu0 %v1963
      %v3271 = vpop.f32.mrf.mxu0
      %v3272 = vadd.f32 0.0, %v3271
      %v3273 = vpop.f32.mrf.mxu0
      %v3274 = vadd.f32 0.0, %v3273
      %3275 = vmatmul.bf16.gmra.mxu0 %v1966
      %v3276 = vpop.f32.mrf.mxu0
      %v3277 = vadd.f32 0.0, %v3276
      %v3278 = vpop.f32.mrf.mxu0
      %v3279 = vadd.f32 0.0, %v3278
      %3280 = vmatmul.bf16.gmra.mxu0 %v1969
      %v3281 = vpop.f32.mrf.mxu0
      %v3282 = vadd.f32 0.0, %v3281
      %v3283 = vpop.f32.mrf.mxu0
      %v3284 = vadd.f32 0.0, %v3283
      %3285 = vmatmul.bf16.gmra.mxu0 %v1972
      %v3286 = vpop.f32.mrf.mxu0
      %v3287 = vadd.f32 0.0, %v3286
      %v3288 = vpop.f32.mrf.mxu0
      %v3289 = vadd.f32 0.0, %v3288
      %3290 = vmatmul.bf16.gmra.mxu0 %v1975
      %v3291 = vpop.f32.mrf.mxu0
      %v3292 = vadd.f32 0.0, %v3291
      %v3293 = vpop.f32.mrf.mxu0
      %v3294 = vadd.f32 0.0, %v3293
      %3295 = vmatmul.bf16.gmra.mxu0 %v1978
      %v3296 = vpop.f32.mrf.mxu0
      %v3297 = vadd.f32 0.0, %v3296
      %v3298 = vpop.f32.mrf.mxu0
      %v3299 = vadd.f32 0.0, %v3298
      %3300 = vmatmul.bf16.gmra.mxu0 %v1981
      %v3301 = vpop.f32.mrf.mxu0
      %v3302 = vadd.f32 0.0, %v3301
      %v3303 = vpop.f32.mrf.mxu0
      %v3304 = vadd.f32 0.0, %v3303
      %3305 = vmatmul.bf16.gmra.mxu0 %v1984
      %v3306 = vpop.f32.mrf.mxu0
      %v3307 = vadd.f32 0.0, %v3306
      %v3308 = vpop.f32.mrf.mxu0
      %v3309 = vadd.f32 0.0, %v3308
      %3310 = vmatmul.bf16.gmra.mxu0 %v1987
      %v3311 = vpop.f32.mrf.mxu0
      %v3312 = vadd.f32 0.0, %v3311
      %v3313 = vpop.f32.mrf.mxu0
      %v3314 = vadd.f32 0.0, %v3313
      %3315 = vmatmul.bf16.gmra.mxu0 %v1990
      %v3316 = vpop.f32.mrf.mxu0
      %v3317 = vadd.f32 0.0, %v3316
      %v3318 = vpop.f32.mrf.mxu0
      %v3319 = vadd.f32 0.0, %v3318
      %3320 = vdwg.mxu0
      %v3321 = vadd.f32 %v1100, %v2015
      %v3322 = vadd.f32 %v1102, %v2017
      %v3323 = vadd.f32 %v1105, %v2020
      %v3324 = vadd.f32 %v1107, %v2022
      %v3325 = vadd.f32 %v1110, %v2025
      %v3326 = vadd.f32 %v1112, %v2027
      %v3327 = vadd.f32 %v1115, %v2030
      %v3328 = vadd.f32 %v1117, %v2032
      %v3329 = vadd.f32 %v1120, %v2035
      %v3330 = vadd.f32 %v1122, %v2037
      %v3331 = vadd.f32 %v1125, %v2040
      %v3332 = vadd.f32 %v1127, %v2042
      %v3333 = vadd.f32 %v1130, %v2045
      %v3334 = vadd.f32 %v1132, %v2047
      %v3335 = vadd.f32 %v1135, %v2050
      %v3336 = vadd.f32 %v1137, %v2052
      %v3337 = vadd.f32 %v1140, %v2055
      %v3338 = vadd.f32 %v1142, %v2057
      %v3339 = vadd.f32 %v1145, %v2060
      %v3340 = vadd.f32 %v1147, %v2062
      %v3341 = vadd.f32 %v1150, %v2065
      %v3342 = vadd.f32 %v1152, %v2067
      %v3343 = vadd.f32 %v1155, %v2070
      %v3344 = vadd.f32 %v1157, %v2072
      %v3345 = vadd.f32 %v1160, %v2075
      %v3346 = vadd.f32 %v1162, %v2077
      %v3347 = vadd.f32 %v1165, %v2080
      %v3348 = vadd.f32 %v1167, %v2082
      %v3349 = vadd.f32 %v1170, %v2085
      %v3350 = vadd.f32 %v1172, %v2087
      %v3351 = vadd.f32 %v1175, %v2090
      %v3352 = vadd.f32 %v1177, %v2092
      %v3353 = vadd.f32 %v1180, %v2095
      %v3354 = vadd.f32 %v1182, %v2097
      %v3355 = vadd.f32 %v1185, %v2100
      %v3356 = vadd.f32 %v1187, %v2102
      %v3357 = vadd.f32 %v1190, %v2105
      %v3358 = vadd.f32 %v1192, %v2107
      %v3359 = vadd.f32 %v1195, %v2110
      %v3360 = vadd.f32 %v1197, %v2112
      %v3361 = vadd.f32 %v1200, %v2115
      %v3362 = vadd.f32 %v1202, %v2117
      %v3363 = vadd.f32 %v1205, %v2120
      %v3364 = vadd.f32 %v1207, %v2122
      %v3365 = vadd.f32 %v1210, %v2125
      %v3366 = vadd.f32 %v1212, %v2127
      %v3367 = vadd.f32 %v1215, %v2130
      %v3368 = vadd.f32 %v1217, %v2132
      %v3369 = vadd.f32 %v1220, %v2135
      %v3370 = vadd.f32 %v1222, %v2137
      %v3371 = vadd.f32 %v1225, %v2140
      %v3372 = vadd.f32 %v1227, %v2142
      %v3373 = vadd.f32 %v1230, %v2145
      %v3374 = vadd.f32 %v1232, %v2147
      %v3375 = vadd.f32 %v1235, %v2150
      %v3376 = vadd.f32 %v1237, %v2152
      %v3377 = vadd.f32 %v1240, %v2155
      %v3378 = vadd.f32 %v1242, %v2157
      %v3379 = vadd.f32 %v1245, %v2160
      %v3380 = vadd.f32 %v1247, %v2162
      %v3381 = vadd.f32 %v1250, %v2165
      %v3382 = vadd.f32 %v1252, %v2167
      %v3383 = vadd.f32 %v1255, %v2170
      %v3384 = vadd.f32 %v1257, %v2172
      %v3385 = vadd.f32 %v1260, %v2175
      %v3386 = vadd.f32 %v1262, %v2177
      %v3387 = vadd.f32 %v1265, %v2180
      %v3388 = vadd.f32 %v1267, %v2182
      %v3389 = vadd.f32 %v1270, %v2185
      %v3390 = vadd.f32 %v1272, %v2187
      %v3391 = vadd.f32 %v1275, %v2190
      %v3392 = vadd.f32 %v1277, %v2192
      %v3393 = vadd.f32 %v1280, %v2195
      %v3394 = vadd.f32 %v1282, %v2197
      %v3395 = vadd.f32 %v1285, %v2200
      %v3396 = vadd.f32 %v1287, %v2202
      %v3397 = vadd.f32 %v1290, %v2205
      %v3398 = vadd.f32 %v1292, %v2207
      %v3399 = vadd.f32 %v1295, %v2210
      %v3400 = vadd.f32 %v1297, %v2212
      %v3401 = vadd.f32 %v1300, %v2215
      %v3402 = vadd.f32 %v1302, %v2217
      %v3403 = vadd.f32 %v1305, %v2220
      %v3404 = vadd.f32 %v1307, %v2222
      %v3405 = vadd.f32 %v1310, %v2225
      %v3406 = vadd.f32 %v1312, %v2227
      %v3407 = vadd.f32 %v1315, %v2230
      %v3408 = vadd.f32 %v1317, %v2232
      %v3409 = vadd.f32 %v1320, %v2235
      %v3410 = vadd.f32 %v1322, %v2237
      %v3411 = vadd.f32 %v1325, %v2240
      %v3412 = vadd.f32 %v1327, %v2242
      %v3413 = vadd.f32 %v1330, %v2245
      %v3414 = vadd.f32 %v1332, %v2247
      %v3415 = vadd.f32 %v1335, %v2250
      %v3416 = vadd.f32 %v1337, %v2252
      %v3417 = vadd.f32 %v1340, %v2255
      %v3418 = vadd.f32 %v1342, %v2257
      %v3419 = vadd.f32 %v1345, %v2260
      %v3420 = vadd.f32 %v1347, %v2262
      %v3421 = vadd.f32 %v1350, %v2265
      %v3422 = vadd.f32 %v1352, %v2267
      %v3423 = vadd.f32 %v1355, %v2270
      %v3424 = vadd.f32 %v1357, %v2272
      %v3425 = vadd.f32 %v1360, %v2275
      %v3426 = vadd.f32 %v1362, %v2277
      %v3427 = vadd.f32 %v1365, %v2280
      %v3428 = vadd.f32 %v1367, %v2282
      %v3429 = vadd.f32 %v1370, %v2285
      %v3430 = vadd.f32 %v1372, %v2287
      %v3431 = vadd.f32 %v1375, %v2290
      %v3432 = vadd.f32 %v1377, %v2292
      %v3433 = vadd.f32 %v1380, %v2295
      %v3434 = vadd.f32 %v1382, %v2297
      %v3435 = vadd.f32 %v1385, %v2300
      %v3436 = vadd.f32 %v1387, %v2302
      %v3437 = vadd.f32 %v1390, %v2305
      %v3438 = vadd.f32 %v1392, %v2307
      %v3439 = vadd.f32 %v1395, %v2310
      %v3440 = vadd.f32 %v1397, %v2312
      %v3441 = vadd.f32 %v1400, %v2315
      %v3442 = vadd.f32 %v1402, %v2317
      %v3443 = vadd.f32 %v1405, %v2320
      %v3444 = vadd.f32 %v1407, %v2322
      %v3445 = vadd.f32 %v1410, %v2325
      %v3446 = vadd.f32 %v1412, %v2327
      %v3447 = vadd.f32 %v1415, %v2330
      %v3448 = vadd.f32 %v1417, %v2332
      %v3449 = vperm.slane %v302, 1
      %v3450 = vadd.f32 %v3321, %v3449
      %v3451 = vadd.f32 %v3322, %v3449
      %v3452 = vadd.f32 %v3323, %v3449
      %v3453 = vadd.f32 %v3324, %v3449
      %v3454 = vadd.f32 %v3325, %v3449
      %v3455 = vadd.f32 %v3326, %v3449
      %v3456 = vadd.f32 %v3327, %v3449
      %v3457 = vadd.f32 %v3328, %v3449
      %v3458 = vadd.f32 %v3329, %v3449
      %v3459 = vadd.f32 %v3330, %v3449
      %v3460 = vadd.f32 %v3331, %v3449
      %v3461 = vadd.f32 %v3332, %v3449
      %v3462 = vadd.f32 %v3333, %v3449
      %v3463 = vadd.f32 %v3334, %v3449
      %v3464 = vadd.f32 %v3335, %v3449
      %v3465 = vadd.f32 %v3336, %v3449
      %v3466 = vadd.f32 %v3337, %v3449
      %v3467 = vadd.f32 %v3338, %v3449
      %v3468 = vadd.f32 %v3339, %v3449
      %v3469 = vadd.f32 %v3340, %v3449
      %v3470 = vadd.f32 %v3341, %v3449
      %v3471 = vadd.f32 %v3342, %v3449
      %v3472 = vadd.f32 %v3343, %v3449
      %v3473 = vadd.f32 %v3344, %v3449
      %v3474 = vadd.f32 %v3345, %v3449
      %v3475 = vadd.f32 %v3346, %v3449
      %v3476 = vadd.f32 %v3347, %v3449
      %v3477 = vadd.f32 %v3348, %v3449
      %v3478 = vadd.f32 %v3349, %v3449
      %v3479 = vadd.f32 %v3350, %v3449
      %v3480 = vadd.f32 %v3351, %v3449
      %v3481 = vadd.f32 %v3352, %v3449
      %v3482 = vadd.f32 %v3353, %v3449
      %v3483 = vadd.f32 %v3354, %v3449
      %v3484 = vadd.f32 %v3355, %v3449
      %v3485 = vadd.f32 %v3356, %v3449
      %v3486 = vadd.f32 %v3357, %v3449
      %v3487 = vadd.f32 %v3358, %v3449
      %v3488 = vadd.f32 %v3359, %v3449
      %v3489 = vadd.f32 %v3360, %v3449
      %v3490 = vadd.f32 %v3361, %v3449
      %v3491 = vadd.f32 %v3362, %v3449
      %v3492 = vadd.f32 %v3363, %v3449
      %v3493 = vadd.f32 %v3364, %v3449
      %v3494 = vadd.f32 %v3365, %v3449
      %v3495 = vadd.f32 %v3366, %v3449
      %v3496 = vadd.f32 %v3367, %v3449
      %v3497 = vadd.f32 %v3368, %v3449
      %v3498 = vadd.f32 %v3369, %v3449
      %v3499 = vadd.f32 %v3370, %v3449
      %v3500 = vadd.f32 %v3371, %v3449
      %v3501 = vadd.f32 %v3372, %v3449
      %v3502 = vadd.f32 %v3373, %v3449
      %v3503 = vadd.f32 %v3374, %v3449
      %v3504 = vadd.f32 %v3375, %v3449
      %v3505 = vadd.f32 %v3376, %v3449
      %v3506 = vadd.f32 %v3377, %v3449
      %v3507 = vadd.f32 %v3378, %v3449
      %v3508 = vadd.f32 %v3379, %v3449
      %v3509 = vadd.f32 %v3380, %v3449
      %v3510 = vadd.f32 %v3381, %v3449
      %v3511 = vadd.f32 %v3382, %v3449
      %v3512 = vadd.f32 %v3383, %v3449
      %v3513 = vadd.f32 %v3384, %v3449
      %v3514 = vadd.f32 %v3385, %v3449
      %v3515 = vadd.f32 %v3386, %v3449
      %v3516 = vadd.f32 %v3387, %v3449
      %v3517 = vadd.f32 %v3388, %v3449
      %v3518 = vadd.f32 %v3389, %v3449
      %v3519 = vadd.f32 %v3390, %v3449
      %v3520 = vadd.f32 %v3391, %v3449
      %v3521 = vadd.f32 %v3392, %v3449
      %v3522 = vadd.f32 %v3393, %v3449
      %v3523 = vadd.f32 %v3394, %v3449
      %v3524 = vadd.f32 %v3395, %v3449
      %v3525 = vadd.f32 %v3396, %v3449
      %v3526 = vadd.f32 %v3397, %v3449
      %v3527 = vadd.f32 %v3398, %v3449
      %v3528 = vadd.f32 %v3399, %v3449
      %v3529 = vadd.f32 %v3400, %v3449
      %v3530 = vadd.f32 %v3401, %v3449
      %v3531 = vadd.f32 %v3402, %v3449
      %v3532 = vadd.f32 %v3403, %v3449
      %v3533 = vadd.f32 %v3404, %v3449
      %v3534 = vadd.f32 %v3405, %v3449
      %v3535 = vadd.f32 %v3406, %v3449
      %v3536 = vadd.f32 %v3407, %v3449
      %v3537 = vadd.f32 %v3408, %v3449
      %v3538 = vadd.f32 %v3409, %v3449
      %v3539 = vadd.f32 %v3410, %v3449
      %v3540 = vadd.f32 %v3411, %v3449
      %v3541 = vadd.f32 %v3412, %v3449
      %v3542 = vadd.f32 %v3413, %v3449
      %v3543 = vadd.f32 %v3414, %v3449
      %v3544 = vadd.f32 %v3415, %v3449
      %v3545 = vadd.f32 %v3416, %v3449
      %v3546 = vadd.f32 %v3417, %v3449
      %v3547 = vadd.f32 %v3418, %v3449
      %v3548 = vadd.f32 %v3419, %v3449
      %v3549 = vadd.f32 %v3420, %v3449
      %v3550 = vadd.f32 %v3421, %v3449
      %v3551 = vadd.f32 %v3422, %v3449
      %v3552 = vadd.f32 %v3423, %v3449
      %v3553 = vadd.f32 %v3424, %v3449
      %v3554 = vadd.f32 %v3425, %v3449
      %v3555 = vadd.f32 %v3426, %v3449
      %v3556 = vadd.f32 %v3427, %v3449
      %v3557 = vadd.f32 %v3428, %v3449
      %v3558 = vadd.f32 %v3429, %v3449
      %v3559 = vadd.f32 %v3430, %v3449
      %v3560 = vadd.f32 %v3431, %v3449
      %v3561 = vadd.f32 %v3432, %v3449
      %v3562 = vadd.f32 %v3433, %v3449
      %v3563 = vadd.f32 %v3434, %v3449
      %v3564 = vadd.f32 %v3435, %v3449
      %v3565 = vadd.f32 %v3436, %v3449
      %v3566 = vadd.f32 %v3437, %v3449
      %v3567 = vadd.f32 %v3438, %v3449
      %v3568 = vadd.f32 %v3439, %v3449
      %v3569 = vadd.f32 %v3440, %v3449
      %v3570 = vadd.f32 %v3441, %v3449
      %v3571 = vadd.f32 %v3442, %v3449
      %v3572 = vadd.f32 %v3443, %v3449
      %v3573 = vadd.f32 %v3444, %v3449
      %v3574 = vadd.f32 %v3445, %v3449
      %v3575 = vadd.f32 %v3446, %v3449
      %v3576 = vadd.f32 %v3447, %v3449
      %v3577 = vadd.f32 %v3448, %v3449
      %v3578 = vmax.f32 %v3450, 0.0
      %v3579 = vmax.f32 %v3451, 0.0
      %v3580 = vmax.f32 %v3452, 0.0
      %v3581 = vmax.f32 %v3453, 0.0
      %v3582 = vmax.f32 %v3454, 0.0
      %v3583 = vmax.f32 %v3455, 0.0
      %v3584 = vmax.f32 %v3456, 0.0
      %v3585 = vmax.f32 %v3457, 0.0
      %v3586 = vmax.f32 %v3458, 0.0
      %v3587 = vmax.f32 %v3459, 0.0
      %v3588 = vmax.f32 %v3460, 0.0
      %v3589 = vmax.f32 %v3461, 0.0
      %v3590 = vmax.f32 %v3462, 0.0
      %v3591 = vmax.f32 %v3463, 0.0
      %v3592 = vmax.f32 %v3464, 0.0
      %v3593 = vmax.f32 %v3465, 0.0
      %v3594 = vmax.f32 %v3466, 0.0
      %v3595 = vmax.f32 %v3467, 0.0
      %v3596 = vmax.f32 %v3468, 0.0
      %v3597 = vmax.f32 %v3469, 0.0
      %v3598 = vmax.f32 %v3470, 0.0
      %v3599 = vmax.f32 %v3471, 0.0
      %v3600 = vmax.f32 %v3472, 0.0
      %v3601 = vmax.f32 %v3473, 0.0
      %v3602 = vmax.f32 %v3474, 0.0
      %v3603 = vmax.f32 %v3475, 0.0
      %v3604 = vmax.f32 %v3476, 0.0
      %v3605 = vmax.f32 %v3477, 0.0
      %v3606 = vmax.f32 %v3478, 0.0
      %v3607 = vmax.f32 %v3479, 0.0
      %v3608 = vmax.f32 %v3480, 0.0
      %v3609 = vmax.f32 %v3481, 0.0
      %v3610 = vmax.f32 %v3482, 0.0
      %v3611 = vmax.f32 %v3483, 0.0
      %v3612 = vmax.f32 %v3484, 0.0
      %v3613 = vmax.f32 %v3485, 0.0
      %v3614 = vmax.f32 %v3486, 0.0
      %v3615 = vmax.f32 %v3487, 0.0
      %v3616 = vmax.f32 %v3488, 0.0
      %v3617 = vmax.f32 %v3489, 0.0
      %v3618 = vmax.f32 %v3490, 0.0
      %v3619 = vmax.f32 %v3491, 0.0
      %v3620 = vmax.f32 %v3492, 0.0
      %v3621 = vmax.f32 %v3493, 0.0
      %v3622 = vmax.f32 %v3494, 0.0
      %v3623 = vmax.f32 %v3495, 0.0
      %v3624 = vmax.f32 %v3496, 0.0
      %v3625 = vmax.f32 %v3497, 0.0
      %v3626 = vmax.f32 %v3498, 0.0
      %v3627 = vmax.f32 %v3499, 0.0
      %v3628 = vmax.f32 %v3500, 0.0
      %v3629 = vmax.f32 %v3501, 0.0
      %v3630 = vmax.f32 %v3502, 0.0
      %v3631 = vmax.f32 %v3503, 0.0
      %v3632 = vmax.f32 %v3504, 0.0
      %v3633 = vmax.f32 %v3505, 0.0
      %v3634 = vmax.f32 %v3506, 0.0
      %v3635 = vmax.f32 %v3507, 0.0
      %v3636 = vmax.f32 %v3508, 0.0
      %v3637 = vmax.f32 %v3509, 0.0
      %v3638 = vmax.f32 %v3510, 0.0
      %v3639 = vmax.f32 %v3511, 0.0
      %v3640 = vmax.f32 %v3512, 0.0
      %v3641 = vmax.f32 %v3513, 0.0
      %v3642 = vmax.f32 %v3514, 0.0
      %v3643 = vmax.f32 %v3515, 0.0
      %v3644 = vmax.f32 %v3516, 0.0
      %v3645 = vmax.f32 %v3517, 0.0
      %v3646 = vmax.f32 %v3518, 0.0
      %v3647 = vmax.f32 %v3519, 0.0
      %v3648 = vmax.f32 %v3520, 0.0
      %v3649 = vmax.f32 %v3521, 0.0
      %v3650 = vmax.f32 %v3522, 0.0
      %v3651 = vmax.f32 %v3523, 0.0
      %v3652 = vmax.f32 %v3524, 0.0
      %v3653 = vmax.f32 %v3525, 0.0
      %v3654 = vmax.f32 %v3526, 0.0
      %v3655 = vmax.f32 %v3527, 0.0
      %v3656 = vmax.f32 %v3528, 0.0
      %v3657 = vmax.f32 %v3529, 0.0
      %v3658 = vmax.f32 %v3530, 0.0
      %v3659 = vmax.f32 %v3531, 0.0
      %v3660 = vmax.f32 %v3532, 0.0
      %v3661 = vmax.f32 %v3533, 0.0
      %v3662 = vmax.f32 %v3534, 0.0
      %v3663 = vmax.f32 %v3535, 0.0
      %v3664 = vmax.f32 %v3536, 0.0
      %v3665 = vmax.f32 %v3537, 0.0
      %v3666 = vmax.f32 %v3538, 0.0
      %v3667 = vmax.f32 %v3539, 0.0
      %v3668 = vmax.f32 %v3540, 0.0
      %v3669 = vmax.f32 %v3541, 0.0
      %v3670 = vmax.f32 %v3542, 0.0
      %v3671 = vmax.f32 %v3543, 0.0
      %v3672 = vmax.f32 %v3544, 0.0
      %v3673 = vmax.f32 %v3545, 0.0
      %v3674 = vmax.f32 %v3546, 0.0
      %v3675 = vmax.f32 %v3547, 0.0
      %v3676 = vmax.f32 %v3548, 0.0
      %v3677 = vmax.f32 %v3549, 0.0
      %v3678 = vmax.f32 %v3550, 0.0
      %v3679 = vmax.f32 %v3551, 0.0
      %v3680 = vmax.f32 %v3552, 0.0
      %v3681 = vmax.f32 %v3553, 0.0
      %v3682 = vmax.f32 %v3554, 0.0
      %v3683 = vmax.f32 %v3555, 0.0
      %v3684 = vmax.f32 %v3556, 0.0
      %v3685 = vmax.f32 %v3557, 0.0
      %v3686 = vmax.f32 %v3558, 0.0
      %v3687 = vmax.f32 %v3559, 0.0
      %v3688 = vmax.f32 %v3560, 0.0
      %v3689 = vmax.f32 %v3561, 0.0
      %v3690 = vmax.f32 %v3562, 0.0
      %v3691 = vmax.f32 %v3563, 0.0
      %v3692 = vmax.f32 %v3564, 0.0
      %v3693 = vmax.f32 %v3565, 0.0
      %v3694 = vmax.f32 %v3566, 0.0
      %v3695 = vmax.f32 %v3567, 0.0
      %v3696 = vmax.f32 %v3568, 0.0
      %v3697 = vmax.f32 %v3569, 0.0
      %v3698 = vmax.f32 %v3570, 0.0
      %v3699 = vmax.f32 %v3571, 0.0
      %v3700 = vmax.f32 %v3572, 0.0
      %v3701 = vmax.f32 %v3573, 0.0
      %v3702 = vmax.f32 %v3574, 0.0
      %v3703 = vmax.f32 %v3575, 0.0
      %v3704 = vmax.f32 %v3576, 0.0
      %v3705 = vmax.f32 %v3577, 0.0
      %v3706 = vpack.c.bf16 %v3579, %v3578
      %v3707 = vpack.c.bf16 %v3581, %v3580
      %v3708 = vpack.c.bf16 %v3583, %v3582
      %v3709 = vpack.c.bf16 %v3585, %v3584
      %v3710 = vpack.c.bf16 %v3587, %v3586
      %v3711 = vpack.c.bf16 %v3589, %v3588
      %v3712 = vpack.c.bf16 %v3591, %v3590
      %v3713 = vpack.c.bf16 %v3593, %v3592
      %v3714 = vpack.c.bf16 %v3595, %v3594
      %v3715 = vpack.c.bf16 %v3597, %v3596
      %v3716 = vpack.c.bf16 %v3599, %v3598
      %v3717 = vpack.c.bf16 %v3601, %v3600
      %v3718 = vpack.c.bf16 %v3603, %v3602
      %v3719 = vpack.c.bf16 %v3605, %v3604
      %v3720 = vpack.c.bf16 %v3607, %v3606
      %v3721 = vpack.c.bf16 %v3609, %v3608
      %v3722 = vpack.c.bf16 %v3611, %v3610
      %v3723 = vpack.c.bf16 %v3613, %v3612
      %v3724 = vpack.c.bf16 %v3615, %v3614
      %v3725 = vpack.c.bf16 %v3617, %v3616
      %v3726 = vpack.c.bf16 %v3619, %v3618
      %v3727 = vpack.c.bf16 %v3621, %v3620
      %v3728 = vpack.c.bf16 %v3623, %v3622
      %v3729 = vpack.c.bf16 %v3625, %v3624
      %v3730 = vpack.c.bf16 %v3627, %v3626
      %v3731 = vpack.c.bf16 %v3629, %v3628
      %v3732 = vpack.c.bf16 %v3631, %v3630
      %v3733 = vpack.c.bf16 %v3633, %v3632
      %v3734 = vpack.c.bf16 %v3635, %v3634
      %v3735 = vpack.c.bf16 %v3637, %v3636
      %v3736 = vpack.c.bf16 %v3639, %v3638
      %v3737 = vpack.c.bf16 %v3641, %v3640
      %v3738 = vpack.c.bf16 %v3643, %v3642
      %v3739 = vpack.c.bf16 %v3645, %v3644
      %v3740 = vpack.c.bf16 %v3647, %v3646
      %v3741 = vpack.c.bf16 %v3649, %v3648
      %v3742 = vpack.c.bf16 %v3651, %v3650
      %v3743 = vpack.c.bf16 %v3653, %v3652
      %v3744 = vpack.c.bf16 %v3655, %v3654
      %v3745 = vpack.c.bf16 %v3657, %v3656
      %v3746 = vpack.c.bf16 %v3659, %v3658
      %v3747 = vpack.c.bf16 %v3661, %v3660
      %v3748 = vpack.c.bf16 %v3663, %v3662
      %v3749 = vpack.c.bf16 %v3665, %v3664
      %v3750 = vpack.c.bf16 %v3667, %v3666
      %v3751 = vpack.c.bf16 %v3669, %v3668
      %v3752 = vpack.c.bf16 %v3671, %v3670
      %v3753 = vpack.c.bf16 %v3673, %v3672
      %v3754 = vpack.c.bf16 %v3675, %v3674
      %v3755 = vpack.c.bf16 %v3677, %v3676
      %v3756 = vpack.c.bf16 %v3679, %v3678
      %v3757 = vpack.c.bf16 %v3681, %v3680
      %v3758 = vpack.c.bf16 %v3683, %v3682
      %v3759 = vpack.c.bf16 %v3685, %v3684
      %v3760 = vpack.c.bf16 %v3687, %v3686
      %v3761 = vpack.c.bf16 %v3689, %v3688
      %v3762 = vpack.c.bf16 %v3691, %v3690
      %v3763 = vpack.c.bf16 %v3693, %v3692
      %v3764 = vpack.c.bf16 %v3695, %v3694
      %v3765 = vpack.c.bf16 %v3697, %v3696
      %v3766 = vpack.c.bf16 %v3699, %v3698
      %v3767 = vpack.c.bf16 %v3701, %v3700
      %v3768 = vpack.c.bf16 %v3703, %v3702
      %v3769 = vpack.c.bf16 %v3705, %v3704
      %v3770 = vld [vmem:[%s4] sm:$0xf]
      %v3771 = vld [vmem:[%s4 + $0x4] sm:$0xf]
      %v3772 = vld [vmem:[%s4 + $0x8] sm:$0xf]
      %v3773 = vld [vmem:[%s4 + $0xc] sm:$0xf]
      %v3774 = vld [vmem:[%s4 + $0x10] sm:$0xf]
      %v3775 = vld [vmem:[%s4 + $0x14] sm:$0xf]
      %v3776 = vld [vmem:[%s4 + $0x18] sm:$0xf]
      %v3777 = vld [vmem:[%s4 + $0x1c] sm:$0xf]
      %v3778 = vld [vmem:[%s4 + $0x20] sm:$0xf]
      %v3779 = vld [vmem:[%s4 + $0x24] sm:$0xf]
      %v3780 = vld [vmem:[%s4 + $0x28] sm:$0xf]
      %v3781 = vld [vmem:[%s4 + $0x2c] sm:$0xf]
      %v3782 = vld [vmem:[%s4 + $0x30] sm:$0xf]
      %v3783 = vld [vmem:[%s4 + $0x34] sm:$0xf]
      %v3784 = vld [vmem:[%s4 + $0x38] sm:$0xf]
      %v3785 = vld [vmem:[%s4 + $0x3c] sm:$0xf]
      %v3786 = vperm.slane %v302, 5
      %v3803 = vunpack.c.l.b16 %v3770
      %v3804 = vunpack.c.l.b16 %v3771
      %v3805 = vunpack.c.l.b16 %v3772
      %v3806 = vunpack.c.l.b16 %v3773
      %v3807 = vunpack.c.l.b16 %v3774
      %v3808 = vunpack.c.l.b16 %v3775
      %v3809 = vunpack.c.l.b16 %v3776
      %v3810 = vunpack.c.l.b16 %v3777
      %v3811 = vunpack.c.l.b16 %v3778
      %v3812 = vunpack.c.l.b16 %v3779
      %v3813 = vunpack.c.l.b16 %v3780
      %v3814 = vunpack.c.l.b16 %v3781
      %v3815 = vunpack.c.l.b16 %v3782
      %v3816 = vunpack.c.l.b16 %v3783
      %v3817 = vunpack.c.l.b16 %v3784
      %v3818 = vunpack.c.l.b16 %v3785
      %v3819 = vpack.c.b16 %v3804, %v3803
      %v3820 = vpack.c.b16 %v3806, %v3805
      %v3821 = vpack.c.b16 %v3808, %v3807
      %v3822 = vpack.c.b16 %v3810, %v3809
      %v3823 = vpack.c.b16 %v3812, %v3811
      %v3824 = vpack.c.b16 %v3814, %v3813
      %v3825 = vpack.c.b16 %v3816, %v3815
      %v3826 = vpack.c.b16 %v3818, %v3817
      %3835 = vmatpush.bf16.msra.mxu0 %v3826
      %3836 = vmatpush.bf16.msra.mxu0 %v3825
      %3837 = vmatpush.bf16.msra.mxu0 %v3824
      %3838 = vmatpush.bf16.msra.mxu0 %v3823
      %3839 = vmatpush.bf16.msra.mxu0 %v3822
      %3840 = vmatpush.bf16.msra.mxu0 %v3821
      %3841 = vmatpush.bf16.msra.mxu0 %v3820
      %3842 = vmatpush.bf16.msra.mxu0 %v3819
      %3843 = vmatmul.bf16.gmra.mxu0 %v3706
      %v3844 = vpop.f32.mrf.mxu0
      %v3845 = vadd.f32 %v3786, %v3844
      %v3846 = vpop.f32.mrf.mxu0
      %v3847 = vadd.f32 %v3786, %v3846
      %3848 = vmatmul.bf16.gmra.mxu0 %v3707
      %v3849 = vpop.f32.mrf.mxu0
      %v3850 = vadd.f32 %v3786, %v3849
      %v3851 = vpop.f32.mrf.mxu0
      %v3852 = vadd.f32 %v3786, %v3851
      %3853 = vmatmul.bf16.gmra.mxu0 %v3708
      %v3854 = vpop.f32.mrf.mxu0
      %v3855 = vadd.f32 %v3786, %v3854
      %v3856 = vpop.f32.mrf.mxu0
      %v3857 = vadd.f32 %v3786, %v3856
      %3858 = vmatmul.bf16.gmra.mxu0 %v3709
      %v3859 = vpop.f32.mrf.mxu0
      %v3860 = vadd.f32 %v3786, %v3859
      %v3861 = vpop.f32.mrf.mxu0
      %v3862 = vadd.f32 %v3786, %v3861
      %3863 = vmatmul.bf16.gmra.mxu0 %v3710
      %v3864 = vpop.f32.mrf.mxu0
      %v3865 = vadd.f32 %v3786, %v3864
      %v3866 = vpop.f32.mrf.mxu0
      %v3867 = vadd.f32 %v3786, %v3866
      %3868 = vmatmul.bf16.gmra.mxu0 %v3711
      %v3869 = vpop.f32.mrf.mxu0
      %v3870 = vadd.f32 %v3786, %v3869
      %v3871 = vpop.f32.mrf.mxu0
      %v3872 = vadd.f32 %v3786, %v3871
      %3873 = vmatmul.bf16.gmra.mxu0 %v3712
      %v3874 = vpop.f32.mrf.mxu0
      %v3875 = vadd.f32 %v3786, %v3874
      %v3876 = vpop.f32.mrf.mxu0
      %v3877 = vadd.f32 %v3786, %v3876
      %3878 = vmatmul.bf16.gmra.mxu0 %v3713
      %v3879 = vpop.f32.mrf.mxu0
      %v3880 = vadd.f32 %v3786, %v3879
      %v3881 = vpop.f32.mrf.mxu0
      %v3882 = vadd.f32 %v3786, %v3881
      %3883 = vmatmul.bf16.gmra.mxu0 %v3714
      %v3884 = vpop.f32.mrf.mxu0
      %v3885 = vadd.f32 %v3786, %v3884
      %v3886 = vpop.f32.mrf.mxu0
      %v3887 = vadd.f32 %v3786, %v3886
      %3888 = vmatmul.bf16.gmra.mxu0 %v3715
      %v3889 = vpop.f32.mrf.mxu0
      %v3890 = vadd.f32 %v3786, %v3889
      %v3891 = vpop.f32.mrf.mxu0
      %v3892 = vadd.f32 %v3786, %v3891
      %3893 = vmatmul.bf16.gmra.mxu0 %v3716
      %v3894 = vpop.f32.mrf.mxu0
      %v3895 = vadd.f32 %v3786, %v3894
      %v3896 = vpop.f32.mrf.mxu0
      %v3897 = vadd.f32 %v3786, %v3896
      %3898 = vmatmul.bf16.gmra.mxu0 %v3717
      %v3899 = vpop.f32.mrf.mxu0
      %v3900 = vadd.f32 %v3786, %v3899
      %v3901 = vpop.f32.mrf.mxu0
      %v3902 = vadd.f32 %v3786, %v3901
      %3903 = vmatmul.bf16.gmra.mxu0 %v3718
      %v3904 = vpop.f32.mrf.mxu0
      %v3905 = vadd.f32 %v3786, %v3904
      %v3906 = vpop.f32.mrf.mxu0
      %v3907 = vadd.f32 %v3786, %v3906
      %3908 = vmatmul.bf16.gmra.mxu0 %v3719
      %v3909 = vpop.f32.mrf.mxu0
      %v3910 = vadd.f32 %v3786, %v3909
      %v3911 = vpop.f32.mrf.mxu0
      %v3912 = vadd.f32 %v3786, %v3911
      %3913 = vmatmul.bf16.gmra.mxu0 %v3720
      %v3914 = vpop.f32.mrf.mxu0
      %v3915 = vadd.f32 %v3786, %v3914
      %v3916 = vpop.f32.mrf.mxu0
      %v3917 = vadd.f32 %v3786, %v3916
      %3918 = vmatmul.bf16.gmra.mxu0 %v3721
      %v3919 = vpop.f32.mrf.mxu0
      %v3920 = vadd.f32 %v3786, %v3919
      %v3921 = vpop.f32.mrf.mxu0
      %v3922 = vadd.f32 %v3786, %v3921
      %3923 = vmatmul.bf16.gmra.mxu0 %v3722
      %v3924 = vpop.f32.mrf.mxu0
      %v3925 = vadd.f32 %v3786, %v3924
      %v3926 = vpop.f32.mrf.mxu0
      %v3927 = vadd.f32 %v3786, %v3926
      %3928 = vmatmul.bf16.gmra.mxu0 %v3723
      %v3929 = vpop.f32.mrf.mxu0
      %v3930 = vadd.f32 %v3786, %v3929
      %v3931 = vpop.f32.mrf.mxu0
      %v3932 = vadd.f32 %v3786, %v3931
      %3933 = vmatmul.bf16.gmra.mxu0 %v3724
      %v3934 = vpop.f32.mrf.mxu0
      %v3935 = vadd.f32 %v3786, %v3934
      %v3936 = vpop.f32.mrf.mxu0
      %v3937 = vadd.f32 %v3786, %v3936
      %3938 = vmatmul.bf16.gmra.mxu0 %v3725
      %v3939 = vpop.f32.mrf.mxu0
      %v3940 = vadd.f32 %v3786, %v3939
      %v3941 = vpop.f32.mrf.mxu0
      %v3942 = vadd.f32 %v3786, %v3941
      %3943 = vmatmul.bf16.gmra.mxu0 %v3726
      %v3944 = vpop.f32.mrf.mxu0
      %v3945 = vadd.f32 %v3786, %v3944
      %v3946 = vpop.f32.mrf.mxu0
      %v3947 = vadd.f32 %v3786, %v3946
      %3948 = vmatmul.bf16.gmra.mxu0 %v3727
      %v3949 = vpop.f32.mrf.mxu0
      %v3950 = vadd.f32 %v3786, %v3949
      %v3951 = vpop.f32.mrf.mxu0
      %v3952 = vadd.f32 %v3786, %v3951
      %3953 = vmatmul.bf16.gmra.mxu0 %v3728
      %v3954 = vpop.f32.mrf.mxu0
      %v3955 = vadd.f32 %v3786, %v3954
      %v3956 = vpop.f32.mrf.mxu0
      %v3957 = vadd.f32 %v3786, %v3956
      %3958 = vmatmul.bf16.gmra.mxu0 %v3729
      %v3959 = vpop.f32.mrf.mxu0
      %v3960 = vadd.f32 %v3786, %v3959
      %v3961 = vpop.f32.mrf.mxu0
      %v3962 = vadd.f32 %v3786, %v3961
      %3963 = vmatmul.bf16.gmra.mxu0 %v3730
      %v3964 = vpop.f32.mrf.mxu0
      %v3965 = vadd.f32 %v3786, %v3964
      %v3966 = vpop.f32.mrf.mxu0
      %v3967 = vadd.f32 %v3786, %v3966
      %3968 = vmatmul.bf16.gmra.mxu0 %v3731
      %v3969 = vpop.f32.mrf.mxu0
      %v3970 = vadd.f32 %v3786, %v3969
      %v3971 = vpop.f32.mrf.mxu0
      %v3972 = vadd.f32 %v3786, %v3971
      %3973 = vmatmul.bf16.gmra.mxu0 %v3732
      %v3974 = vpop.f32.mrf.mxu0
      %v3975 = vadd.f32 %v3786, %v3974
      %v3976 = vpop.f32.mrf.mxu0
      %v3977 = vadd.f32 %v3786, %v3976
      %3978 = vmatmul.bf16.gmra.mxu0 %v3733
      %v3979 = vpop.f32.mrf.mxu0
      %v3980 = vadd.f32 %v3786, %v3979
      %v3981 = vpop.f32.mrf.mxu0
      %v3982 = vadd.f32 %v3786, %v3981
      %3983 = vmatmul.bf16.gmra.mxu0 %v3734
      %v3984 = vpop.f32.mrf.mxu0
      %v3985 = vadd.f32 %v3786, %v3984
      %v3986 = vpop.f32.mrf.mxu0
      %v3987 = vadd.f32 %v3786, %v3986
      %3988 = vmatmul.bf16.gmra.mxu0 %v3735
      %v3989 = vpop.f32.mrf.mxu0
      %v3990 = vadd.f32 %v3786, %v3989
      %v3991 = vpop.f32.mrf.mxu0
      %v3992 = vadd.f32 %v3786, %v3991
      %3993 = vmatmul.bf16.gmra.mxu0 %v3736
      %v3994 = vpop.f32.mrf.mxu0
      %v3995 = vadd.f32 %v3786, %v3994
      %v3996 = vpop.f32.mrf.mxu0
      %v3997 = vadd.f32 %v3786, %v3996
      %3998 = vmatmul.bf16.gmra.mxu0 %v3737
      %v3999 = vpop.f32.mrf.mxu0
      %v4000 = vadd.f32 %v3786, %v3999
      %v4001 = vpop.f32.mrf.mxu0
      %v4002 = vadd.f32 %v3786, %v4001
      %4003 = vmatmul.bf16.gmra.mxu0 %v3738
      %v4004 = vpop.f32.mrf.mxu0
      %v4005 = vadd.f32 %v3786, %v4004
      %v4006 = vpop.f32.mrf.mxu0
      %v4007 = vadd.f32 %v3786, %v4006
      %4008 = vmatmul.bf16.gmra.mxu0 %v3739
      %v4009 = vpop.f32.mrf.mxu0
      %v4010 = vadd.f32 %v3786, %v4009
      %v4011 = vpop.f32.mrf.mxu0
      %v4012 = vadd.f32 %v3786, %v4011
      %4013 = vmatmul.bf16.gmra.mxu0 %v3740
      %v4014 = vpop.f32.mrf.mxu0
      %v4015 = vadd.f32 %v3786, %v4014
      %v4016 = vpop.f32.mrf.mxu0
      %v4017 = vadd.f32 %v3786, %v4016
      %4018 = vmatmul.bf16.gmra.mxu0 %v3741
      %v4019 = vpop.f32.mrf.mxu0
      %v4020 = vadd.f32 %v3786, %v4019
      %v4021 = vpop.f32.mrf.mxu0
      %v4022 = vadd.f32 %v3786, %v4021
      %4023 = vmatmul.bf16.gmra.mxu0 %v3742
      %v4024 = vpop.f32.mrf.mxu0
      %v4025 = vadd.f32 %v3786, %v4024
      %v4026 = vpop.f32.mrf.mxu0
      %v4027 = vadd.f32 %v3786, %v4026
      %4028 = vmatmul.bf16.gmra.mxu0 %v3743
      %v4029 = vpop.f32.mrf.mxu0
      %v4030 = vadd.f32 %v3786, %v4029
      %v4031 = vpop.f32.mrf.mxu0
      %v4032 = vadd.f32 %v3786, %v4031
      %4033 = vmatmul.bf16.gmra.mxu0 %v3744
      %v4034 = vpop.f32.mrf.mxu0
      %v4035 = vadd.f32 %v3786, %v4034
      %v4036 = vpop.f32.mrf.mxu0
      %v4037 = vadd.f32 %v3786, %v4036
      %4038 = vmatmul.bf16.gmra.mxu0 %v3745
      %v4039 = vpop.f32.mrf.mxu0
      %v4040 = vadd.f32 %v3786, %v4039
      %v4041 = vpop.f32.mrf.mxu0
      %v4042 = vadd.f32 %v3786, %v4041
      %4043 = vmatmul.bf16.gmra.mxu0 %v3746
      %v4044 = vpop.f32.mrf.mxu0
      %v4045 = vadd.f32 %v3786, %v4044
      %v4046 = vpop.f32.mrf.mxu0
      %v4047 = vadd.f32 %v3786, %v4046
      %4048 = vmatmul.bf16.gmra.mxu0 %v3747
      %v4049 = vpop.f32.mrf.mxu0
      %v4050 = vadd.f32 %v3786, %v4049
      %v4051 = vpop.f32.mrf.mxu0
      %v4052 = vadd.f32 %v3786, %v4051
      %4053 = vmatmul.bf16.gmra.mxu0 %v3748
      %v4054 = vpop.f32.mrf.mxu0
      %v4055 = vadd.f32 %v3786, %v4054
      %v4056 = vpop.f32.mrf.mxu0
      %v4057 = vadd.f32 %v3786, %v4056
      %4058 = vmatmul.bf16.gmra.mxu0 %v3749
      %v4059 = vpop.f32.mrf.mxu0
      %v4060 = vadd.f32 %v3786, %v4059
      %v4061 = vpop.f32.mrf.mxu0
      %v4062 = vadd.f32 %v3786, %v4061
      %4063 = vmatmul.bf16.gmra.mxu0 %v3750
      %v4064 = vpop.f32.mrf.mxu0
      %v4065 = vadd.f32 %v3786, %v4064
      %v4066 = vpop.f32.mrf.mxu0
      %v4067 = vadd.f32 %v3786, %v4066
      %4068 = vmatmul.bf16.gmra.mxu0 %v3751
      %v4069 = vpop.f32.mrf.mxu0
      %v4070 = vadd.f32 %v3786, %v4069
      %v4071 = vpop.f32.mrf.mxu0
      %v4072 = vadd.f32 %v3786, %v4071
      %4073 = vmatmul.bf16.gmra.mxu0 %v3752
      %v4074 = vpop.f32.mrf.mxu0
      %v4075 = vadd.f32 %v3786, %v4074
      %v4076 = vpop.f32.mrf.mxu0
      %v4077 = vadd.f32 %v3786, %v4076
      %4078 = vmatmul.bf16.gmra.mxu0 %v3753
      %v4079 = vpop.f32.mrf.mxu0
      %v4080 = vadd.f32 %v3786, %v4079
      %v4081 = vpop.f32.mrf.mxu0
      %v4082 = vadd.f32 %v3786, %v4081
      %4083 = vmatmul.bf16.gmra.mxu0 %v3754
      %v4084 = vpop.f32.mrf.mxu0
      %v4085 = vadd.f32 %v3786, %v4084
      %v4086 = vpop.f32.mrf.mxu0
      %v4087 = vadd.f32 %v3786, %v4086
      %4088 = vmatmul.bf16.gmra.mxu0 %v3755
      %v4089 = vpop.f32.mrf.mxu0
      %v4090 = vadd.f32 %v3786, %v4089
      %v4091 = vpop.f32.mrf.mxu0
      %v4092 = vadd.f32 %v3786, %v4091
      %4093 = vmatmul.bf16.gmra.mxu0 %v3756
      %v4094 = vpop.f32.mrf.mxu0
      %v4095 = vadd.f32 %v3786, %v4094
      %v4096 = vpop.f32.mrf.mxu0
      %v4097 = vadd.f32 %v3786, %v4096
      %4098 = vmatmul.bf16.gmra.mxu0 %v3757
      %v4099 = vpop.f32.mrf.mxu0
      %v4100 = vadd.f32 %v3786, %v4099
      %v4101 = vpop.f32.mrf.mxu0
      %v4102 = vadd.f32 %v3786, %v4101
      %4103 = vmatmul.bf16.gmra.mxu0 %v3758
      %v4104 = vpop.f32.mrf.mxu0
      %v4105 = vadd.f32 %v3786, %v4104
      %v4106 = vpop.f32.mrf.mxu0
      %v4107 = vadd.f32 %v3786, %v4106
      %4108 = vmatmul.bf16.gmra.mxu0 %v3759
      %v4109 = vpop.f32.mrf.mxu0
      %v4110 = vadd.f32 %v3786, %v4109
      %v4111 = vpop.f32.mrf.mxu0
      %v4112 = vadd.f32 %v3786, %v4111
      %4113 = vmatmul.bf16.gmra.mxu0 %v3760
      %v4114 = vpop.f32.mrf.mxu0
      %v4115 = vadd.f32 %v3786, %v4114
      %v4116 = vpop.f32.mrf.mxu0
      %v4117 = vadd.f32 %v3786, %v4116
      %4118 = vmatmul.bf16.gmra.mxu0 %v3761
      %v4119 = vpop.f32.mrf.mxu0
      %v4120 = vadd.f32 %v3786, %v4119
      %v4121 = vpop.f32.mrf.mxu0
      %v4122 = vadd.f32 %v3786, %v4121
      %4123 = vmatmul.bf16.gmra.mxu0 %v3762
      %v4124 = vpop.f32.mrf.mxu0
      %v4125 = vadd.f32 %v3786, %v4124
      %v4126 = vpop.f32.mrf.mxu0
      %v4127 = vadd.f32 %v3786, %v4126
      %4128 = vmatmul.bf16.gmra.mxu0 %v3763
      %v4129 = vpop.f32.mrf.mxu0
      %v4130 = vadd.f32 %v3786, %v4129
      %v4131 = vpop.f32.mrf.mxu0
      %v4132 = vadd.f32 %v3786, %v4131
      %4133 = vmatmul.bf16.gmra.mxu0 %v3764
      %v4134 = vpop.f32.mrf.mxu0
      %v4135 = vadd.f32 %v3786, %v4134
      %v4136 = vpop.f32.mrf.mxu0
      %v4137 = vadd.f32 %v3786, %v4136
      %4138 = vmatmul.bf16.gmra.mxu0 %v3765
      %v4139 = vpop.f32.mrf.mxu0
      %v4140 = vadd.f32 %v3786, %v4139
      %v4141 = vpop.f32.mrf.mxu0
      %v4142 = vadd.f32 %v3786, %v4141
      %4143 = vmatmul.bf16.gmra.mxu0 %v3766
      %v4144 = vpop.f32.mrf.mxu0
      %v4145 = vadd.f32 %v3786, %v4144
      %v4146 = vpop.f32.mrf.mxu0
      %v4147 = vadd.f32 %v3786, %v4146
      %4148 = vmatmul.bf16.gmra.mxu0 %v3767
      %v4149 = vpop.f32.mrf.mxu0
      %v4150 = vadd.f32 %v3786, %v4149
      %v4151 = vpop.f32.mrf.mxu0
      %v4152 = vadd.f32 %v3786, %v4151
      %4153 = vmatmul.bf16.gmra.mxu0 %v3768
      %v4154 = vpop.f32.mrf.mxu0
      %v4155 = vadd.f32 %v3786, %v4154
      %v4156 = vpop.f32.mrf.mxu0
      %v4157 = vadd.f32 %v3786, %v4156
      %4158 = vmatmul.bf16.gmra.mxu0 %v3769
      %v4159 = vpop.f32.mrf.mxu0
      %v4160 = vadd.f32 %v3786, %v4159
      %v4161 = vpop.f32.mrf.mxu0
      %v4162 = vadd.f32 %v3786, %v4161
      %4163 = vdwg.mxu0
      %v4164 = vmax.f32 %v3845, 0.0
      %v4165 = vmax.f32 %v3847, 0.0
      %v4166 = vmax.f32 %v3850, 0.0
      %v4167 = vmax.f32 %v3852, 0.0
      %v4168 = vmax.f32 %v3855, 0.0
      %v4169 = vmax.f32 %v3857, 0.0
      %v4170 = vmax.f32 %v3860, 0.0
      %v4171 = vmax.f32 %v3862, 0.0
      %v4172 = vmax.f32 %v3865, 0.0
      %v4173 = vmax.f32 %v3867, 0.0
      %v4174 = vmax.f32 %v3870, 0.0
      %v4175 = vmax.f32 %v3872, 0.0
      %v4176 = vmax.f32 %v3875, 0.0
      %v4177 = vmax.f32 %v3877, 0.0
      %v4178 = vmax.f32 %v3880, 0.0
      %v4179 = vmax.f32 %v3882, 0.0
      %v4180 = vmax.f32 %v3885, 0.0
      %v4181 = vmax.f32 %v3887, 0.0
      %v4182 = vmax.f32 %v3890, 0.0
      %v4183 = vmax.f32 %v3892, 0.0
      %v4184 = vmax.f32 %v3895, 0.0
      %v4185 = vmax.f32 %v3897, 0.0
      %v4186 = vmax.f32 %v3900, 0.0
      %v4187 = vmax.f32 %v3902, 0.0
      %v4188 = vmax.f32 %v3905, 0.0
      %v4189 = vmax.f32 %v3907, 0.0
      %v4190 = vmax.f32 %v3910, 0.0
      %v4191 = vmax.f32 %v3912, 0.0
      %v4192 = vmax.f32 %v3915, 0.0
      %v4193 = vmax.f32 %v3917, 0.0
      %v4194 = vmax.f32 %v3920, 0.0
      %v4195 = vmax.f32 %v3922, 0.0
      %v4196 = vmax.f32 %v3925, 0.0
      %v4197 = vmax.f32 %v3927, 0.0
      %v4198 = vmax.f32 %v3930, 0.0
      %v4199 = vmax.f32 %v3932, 0.0
      %v4200 = vmax.f32 %v3935, 0.0
      %v4201 = vmax.f32 %v3937, 0.0
      %v4202 = vmax.f32 %v3940, 0.0
      %v4203 = vmax.f32 %v3942, 0.0
      %v4204 = vmax.f32 %v3945, 0.0
      %v4205 = vmax.f32 %v3947, 0.0
      %v4206 = vmax.f32 %v3950, 0.0
      %v4207 = vmax.f32 %v3952, 0.0
      %v4208 = vmax.f32 %v3955, 0.0
      %v4209 = vmax.f32 %v3957, 0.0
      %v4210 = vmax.f32 %v3960, 0.0
      %v4211 = vmax.f32 %v3962, 0.0
      %v4212 = vmax.f32 %v3965, 0.0
      %v4213 = vmax.f32 %v3967, 0.0
      %v4214 = vmax.f32 %v3970, 0.0
      %v4215 = vmax.f32 %v3972, 0.0
      %v4216 = vmax.f32 %v3975, 0.0
      %v4217 = vmax.f32 %v3977, 0.0
      %v4218 = vmax.f32 %v3980, 0.0
      %v4219 = vmax.f32 %v3982, 0.0
      %v4220 = vmax.f32 %v3985, 0.0
      %v4221 = vmax.f32 %v3987, 0.0
      %v4222 = vmax.f32 %v3990, 0.0
      %v4223 = vmax.f32 %v3992, 0.0
      %v4224 = vmax.f32 %v3995, 0.0
      %v4225 = vmax.f32 %v3997, 0.0
      %v4226 = vmax.f32 %v4000, 0.0
      %v4227 = vmax.f32 %v4002, 0.0
      %v4228 = vmax.f32 %v4005, 0.0
      %v4229 = vmax.f32 %v4007, 0.0
      %v4230 = vmax.f32 %v4010, 0.0
      %v4231 = vmax.f32 %v4012, 0.0
      %v4232 = vmax.f32 %v4015, 0.0
      %v4233 = vmax.f32 %v4017, 0.0
      %v4234 = vmax.f32 %v4020, 0.0
      %v4235 = vmax.f32 %v4022, 0.0
      %v4236 = vmax.f32 %v4025, 0.0
      %v4237 = vmax.f32 %v4027, 0.0
      %v4238 = vmax.f32 %v4030, 0.0
      %v4239 = vmax.f32 %v4032, 0.0
      %v4240 = vmax.f32 %v4035, 0.0
      %v4241 = vmax.f32 %v4037, 0.0
      %v4242 = vmax.f32 %v4040, 0.0
      %v4243 = vmax.f32 %v4042, 0.0
      %v4244 = vmax.f32 %v4045, 0.0
      %v4245 = vmax.f32 %v4047, 0.0
      %v4246 = vmax.f32 %v4050, 0.0
      %v4247 = vmax.f32 %v4052, 0.0
      %v4248 = vmax.f32 %v4055, 0.0
      %v4249 = vmax.f32 %v4057, 0.0
      %v4250 = vmax.f32 %v4060, 0.0
      %v4251 = vmax.f32 %v4062, 0.0
      %v4252 = vmax.f32 %v4065, 0.0
      %v4253 = vmax.f32 %v4067, 0.0
      %v4254 = vmax.f32 %v4070, 0.0
      %v4255 = vmax.f32 %v4072, 0.0
      %v4256 = vmax.f32 %v4075, 0.0
      %v4257 = vmax.f32 %v4077, 0.0
      %v4258 = vmax.f32 %v4080, 0.0
      %v4259 = vmax.f32 %v4082, 0.0
      %v4260 = vmax.f32 %v4085, 0.0
      %v4261 = vmax.f32 %v4087, 0.0
      %v4262 = vmax.f32 %v4090, 0.0
      %v4263 = vmax.f32 %v4092, 0.0
      %v4264 = vmax.f32 %v4095, 0.0
      %v4265 = vmax.f32 %v4097, 0.0
      %v4266 = vmax.f32 %v4100, 0.0
      %v4267 = vmax.f32 %v4102, 0.0
      %v4268 = vmax.f32 %v4105, 0.0
      %v4269 = vmax.f32 %v4107, 0.0
      %v4270 = vmax.f32 %v4110, 0.0
      %v4271 = vmax.f32 %v4112, 0.0
      %v4272 = vmax.f32 %v4115, 0.0
      %v4273 = vmax.f32 %v4117, 0.0
      %v4274 = vmax.f32 %v4120, 0.0
      %v4275 = vmax.f32 %v4122, 0.0
      %v4276 = vmax.f32 %v4125, 0.0
      %v4277 = vmax.f32 %v4127, 0.0
      %v4278 = vmax.f32 %v4130, 0.0
      %v4279 = vmax.f32 %v4132, 0.0
      %v4280 = vmax.f32 %v4135, 0.0
      %v4281 = vmax.f32 %v4137, 0.0
      %v4282 = vmax.f32 %v4140, 0.0
      %v4283 = vmax.f32 %v4142, 0.0
      %v4284 = vmax.f32 %v4145, 0.0
      %v4285 = vmax.f32 %v4147, 0.0
      %v4286 = vmax.f32 %v4150, 0.0
      %v4287 = vmax.f32 %v4152, 0.0
      %v4288 = vmax.f32 %v4155, 0.0
      %v4289 = vmax.f32 %v4157, 0.0
      %v4290 = vmax.f32 %v4160, 0.0
      %v4291 = vmax.f32 %v4162, 0.0
      %v4292 = vpack.c.bf16 %v4165, %v4164
      %v4293 = vpack.c.bf16 %v4167, %v4166
      %v4294 = vpack.c.bf16 %v4169, %v4168
      %v4295 = vpack.c.bf16 %v4171, %v4170
      %v4296 = vpack.c.bf16 %v4173, %v4172
      %v4297 = vpack.c.bf16 %v4175, %v4174
      %v4298 = vpack.c.bf16 %v4177, %v4176
      %v4299 = vpack.c.bf16 %v4179, %v4178
      %v4300 = vpack.c.bf16 %v4181, %v4180
      %v4301 = vpack.c.bf16 %v4183, %v4182
      %v4302 = vpack.c.bf16 %v4185, %v4184
      %v4303 = vpack.c.bf16 %v4187, %v4186
      %v4304 = vpack.c.bf16 %v4189, %v4188
      %v4305 = vpack.c.bf16 %v4191, %v4190
      %v4306 = vpack.c.bf16 %v4193, %v4192
      %v4307 = vpack.c.bf16 %v4195, %v4194
      %v4308 = vpack.c.bf16 %v4197, %v4196
      %v4309 = vpack.c.bf16 %v4199, %v4198
      %v4310 = vpack.c.bf16 %v4201, %v4200
      %v4311 = vpack.c.bf16 %v4203, %v4202
      %v4312 = vpack.c.bf16 %v4205, %v4204
      %v4313 = vpack.c.bf16 %v4207, %v4206
      %v4314 = vpack.c.bf16 %v4209, %v4208
      %v4315 = vpack.c.bf16 %v4211, %v4210
      %v4316 = vpack.c.bf16 %v4213, %v4212
      %v4317 = vpack.c.bf16 %v4215, %v4214
      %v4318 = vpack.c.bf16 %v4217, %v4216
      %v4319 = vpack.c.bf16 %v4219, %v4218
      %v4320 = vpack.c.bf16 %v4221, %v4220
      %v4321 = vpack.c.bf16 %v4223, %v4222
      %v4322 = vpack.c.bf16 %v4225, %v4224
      %v4323 = vpack.c.bf16 %v4227, %v4226
      %v4324 = vpack.c.bf16 %v4229, %v4228
      %v4325 = vpack.c.bf16 %v4231, %v4230
      %v4326 = vpack.c.bf16 %v4233, %v4232
      %v4327 = vpack.c.bf16 %v4235, %v4234
      %v4328 = vpack.c.bf16 %v4237, %v4236
      %v4329 = vpack.c.bf16 %v4239, %v4238
      %v4330 = vpack.c.bf16 %v4241, %v4240
      %v4331 = vpack.c.bf16 %v4243, %v4242
      %v4332 = vpack.c.bf16 %v4245, %v4244
      %v4333 = vpack.c.bf16 %v4247, %v4246
      %v4334 = vpack.c.bf16 %v4249, %v4248
      %v4335 = vpack.c.bf16 %v4251, %v4250
      %v4336 = vpack.c.bf16 %v4253, %v4252
      %v4337 = vpack.c.bf16 %v4255, %v4254
      %v4338 = vpack.c.bf16 %v4257, %v4256
      %v4339 = vpack.c.bf16 %v4259, %v4258
      %v4340 = vpack.c.bf16 %v4261, %v4260
      %v4341 = vpack.c.bf16 %v4263, %v4262
      %v4342 = vpack.c.bf16 %v4265, %v4264
      %v4343 = vpack.c.bf16 %v4267, %v4266
      %v4344 = vpack.c.bf16 %v4269, %v4268
      %v4345 = vpack.c.bf16 %v4271, %v4270
      %v4346 = vpack.c.bf16 %v4273, %v4272
      %v4347 = vpack.c.bf16 %v4275, %v4274
      %v4348 = vpack.c.bf16 %v4277, %v4276
      %v4349 = vpack.c.bf16 %v4279, %v4278
      %v4350 = vpack.c.bf16 %v4281, %v4280
      %v4351 = vpack.c.bf16 %v4283, %v4282
      %v4352 = vpack.c.bf16 %v4285, %v4284
      %v4353 = vpack.c.bf16 %v4287, %v4286
      %v4354 = vpack.c.bf16 %v4289, %v4288
      %v4355 = vpack.c.bf16 %v4291, %v4290
      %v4356 = vld [vmem:[%s5] sm:$0xf]
      %v4357 = vld [vmem:[%s5 + $0x4] sm:$0xf]
      %v4358 = vld [vmem:[%s5 + $0x8] sm:$0xf]
      %v4359 = vld [vmem:[%s5 + $0xc] sm:$0xf]
      %v4360 = vld [vmem:[%s5 + $0x10] sm:$0xf]
      %v4361 = vld [vmem:[%s5 + $0x14] sm:$0xf]
      %v4362 = vld [vmem:[%s5 + $0x18] sm:$0xf]
      %v4363 = vld [vmem:[%s5 + $0x1c] sm:$0xf]
      %v4364 = vld [vmem:[%s5 + $0x20] sm:$0xf]
      %v4365 = vld [vmem:[%s5 + $0x24] sm:$0xf]
      %v4366 = vld [vmem:[%s5 + $0x28] sm:$0xf]
      %v4367 = vld [vmem:[%s5 + $0x2c] sm:$0xf]
      %v4368 = vld [vmem:[%s5 + $0x30] sm:$0xf]
      %v4369 = vld [vmem:[%s5 + $0x34] sm:$0xf]
      %v4370 = vld [vmem:[%s5 + $0x38] sm:$0xf]
      %v4371 = vld [vmem:[%s5 + $0x3c] sm:$0xf]
      %v4372 = vperm.slane %v303, 1
      %v4389 = vunpack.c.l.b16 %v4356
      %v4390 = vunpack.c.l.b16 %v4357
      %v4391 = vunpack.c.l.b16 %v4358
      %v4392 = vunpack.c.l.b16 %v4359
      %v4393 = vunpack.c.l.b16 %v4360
      %v4394 = vunpack.c.l.b16 %v4361
      %v4395 = vunpack.c.l.b16 %v4362
      %v4396 = vunpack.c.l.b16 %v4363
      %v4397 = vunpack.c.l.b16 %v4364
      %v4398 = vunpack.c.l.b16 %v4365
      %v4399 = vunpack.c.l.b16 %v4366
      %v4400 = vunpack.c.l.b16 %v4367
      %v4401 = vunpack.c.l.b16 %v4368
      %v4402 = vunpack.c.l.b16 %v4369
      %v4403 = vunpack.c.l.b16 %v4370
      %v4404 = vunpack.c.l.b16 %v4371
      %v4405 = vpack.c.b16 %v4390, %v4389
      %v4406 = vpack.c.b16 %v4392, %v4391
      %v4407 = vpack.c.b16 %v4394, %v4393
      %v4408 = vpack.c.b16 %v4396, %v4395
      %v4409 = vpack.c.b16 %v4398, %v4397
      %v4410 = vpack.c.b16 %v4400, %v4399
      %v4411 = vpack.c.b16 %v4402, %v4401
      %v4412 = vpack.c.b16 %v4404, %v4403
      %4421 = vmatpush.bf16.msra.mxu0 %v4412
      %4422 = vmatpush.bf16.msra.mxu0 %v4411
      %4423 = vmatpush.bf16.msra.mxu0 %v4410
      %4424 = vmatpush.bf16.msra.mxu0 %v4409
      %4425 = vmatpush.bf16.msra.mxu0 %v4408
      %4426 = vmatpush.bf16.msra.mxu0 %v4407
      %4427 = vmatpush.bf16.msra.mxu0 %v4406
      %4428 = vmatpush.bf16.msra.mxu0 %v4405
      %4429 = vmatmul.bf16.gmra.mxu0 %v4292
      %v4430 = vpop.f32.mrf.mxu0
      %v4431 = vadd.f32 %v4372, %v4430
      %v4432 = vpop.f32.mrf.mxu0
      %v4433 = vadd.f32 %v4372, %v4432
      %4434 = vmatmul.bf16.gmra.mxu0 %v4293
      %v4435 = vpop.f32.mrf.mxu0
      %v4436 = vadd.f32 %v4372, %v4435
      %v4437 = vpop.f32.mrf.mxu0
      %v4438 = vadd.f32 %v4372, %v4437
      %4439 = vmatmul.bf16.gmra.mxu0 %v4294
      %v4440 = vpop.f32.mrf.mxu0
      %v4441 = vadd.f32 %v4372, %v4440
      %v4442 = vpop.f32.mrf.mxu0
      %v4443 = vadd.f32 %v4372, %v4442
      %4444 = vmatmul.bf16.gmra.mxu0 %v4295
      %v4445 = vpop.f32.mrf.mxu0
      %v4446 = vadd.f32 %v4372, %v4445
      %v4447 = vpop.f32.mrf.mxu0
      %v4448 = vadd.f32 %v4372, %v4447
      %4449 = vmatmul.bf16.gmra.mxu0 %v4296
      %v4450 = vpop.f32.mrf.mxu0
      %v4451 = vadd.f32 %v4372, %v4450
      %v4452 = vpop.f32.mrf.mxu0
      %v4453 = vadd.f32 %v4372, %v4452
      %4454 = vmatmul.bf16.gmra.mxu0 %v4297
      %v4455 = vpop.f32.mrf.mxu0
      %v4456 = vadd.f32 %v4372, %v4455
      %v4457 = vpop.f32.mrf.mxu0
      %v4458 = vadd.f32 %v4372, %v4457
      %4459 = vmatmul.bf16.gmra.mxu0 %v4298
      %v4460 = vpop.f32.mrf.mxu0
      %v4461 = vadd.f32 %v4372, %v4460
      %v4462 = vpop.f32.mrf.mxu0
      %v4463 = vadd.f32 %v4372, %v4462
      %4464 = vmatmul.bf16.gmra.mxu0 %v4299
      %v4465 = vpop.f32.mrf.mxu0
      %v4466 = vadd.f32 %v4372, %v4465
      %v4467 = vpop.f32.mrf.mxu0
      %v4468 = vadd.f32 %v4372, %v4467
      %4469 = vmatmul.bf16.gmra.mxu0 %v4300
      %v4470 = vpop.f32.mrf.mxu0
      %v4471 = vadd.f32 %v4372, %v4470
      %v4472 = vpop.f32.mrf.mxu0
      %v4473 = vadd.f32 %v4372, %v4472
      %4474 = vmatmul.bf16.gmra.mxu0 %v4301
      %v4475 = vpop.f32.mrf.mxu0
      %v4476 = vadd.f32 %v4372, %v4475
      %v4477 = vpop.f32.mrf.mxu0
      %v4478 = vadd.f32 %v4372, %v4477
      %4479 = vmatmul.bf16.gmra.mxu0 %v4302
      %v4480 = vpop.f32.mrf.mxu0
      %v4481 = vadd.f32 %v4372, %v4480
      %v4482 = vpop.f32.mrf.mxu0
      %v4483 = vadd.f32 %v4372, %v4482
      %4484 = vmatmul.bf16.gmra.mxu0 %v4303
      %v4485 = vpop.f32.mrf.mxu0
      %v4486 = vadd.f32 %v4372, %v4485
      %v4487 = vpop.f32.mrf.mxu0
      %v4488 = vadd.f32 %v4372, %v4487
      %4489 = vmatmul.bf16.gmra.mxu0 %v4304
      %v4490 = vpop.f32.mrf.mxu0
      %v4491 = vadd.f32 %v4372, %v4490
      %v4492 = vpop.f32.mrf.mxu0
      %v4493 = vadd.f32 %v4372, %v4492
      %4494 = vmatmul.bf16.gmra.mxu0 %v4305
      %v4495 = vpop.f32.mrf.mxu0
      %v4496 = vadd.f32 %v4372, %v4495
      %v4497 = vpop.f32.mrf.mxu0
      %v4498 = vadd.f32 %v4372, %v4497
      %4499 = vmatmul.bf16.gmra.mxu0 %v4306
      %v4500 = vpop.f32.mrf.mxu0
      %v4501 = vadd.f32 %v4372, %v4500
      %v4502 = vpop.f32.mrf.mxu0
      %v4503 = vadd.f32 %v4372, %v4502
      %4504 = vmatmul.bf16.gmra.mxu0 %v4307
      %v4505 = vpop.f32.mrf.mxu0
      %v4506 = vadd.f32 %v4372, %v4505
      %v4507 = vpop.f32.mrf.mxu0
      %v4508 = vadd.f32 %v4372, %v4507
      %4509 = vmatmul.bf16.gmra.mxu0 %v4308
      %v4510 = vpop.f32.mrf.mxu0
      %v4511 = vadd.f32 %v4372, %v4510
      %v4512 = vpop.f32.mrf.mxu0
      %v4513 = vadd.f32 %v4372, %v4512
      %4514 = vmatmul.bf16.gmra.mxu0 %v4309
      %v4515 = vpop.f32.mrf.mxu0
      %v4516 = vadd.f32 %v4372, %v4515
      %v4517 = vpop.f32.mrf.mxu0
      %v4518 = vadd.f32 %v4372, %v4517
      %4519 = vmatmul.bf16.gmra.mxu0 %v4310
      %v4520 = vpop.f32.mrf.mxu0
      %v4521 = vadd.f32 %v4372, %v4520
      %v4522 = vpop.f32.mrf.mxu0
      %v4523 = vadd.f32 %v4372, %v4522
      %4524 = vmatmul.bf16.gmra.mxu0 %v4311
      %v4525 = vpop.f32.mrf.mxu0
      %v4526 = vadd.f32 %v4372, %v4525
      %v4527 = vpop.f32.mrf.mxu0
      %v4528 = vadd.f32 %v4372, %v4527
      %4529 = vmatmul.bf16.gmra.mxu0 %v4312
      %v4530 = vpop.f32.mrf.mxu0
      %v4531 = vadd.f32 %v4372, %v4530
      %v4532 = vpop.f32.mrf.mxu0
      %v4533 = vadd.f32 %v4372, %v4532
      %4534 = vmatmul.bf16.gmra.mxu0 %v4313
      %v4535 = vpop.f32.mrf.mxu0
      %v4536 = vadd.f32 %v4372, %v4535
      %v4537 = vpop.f32.mrf.mxu0
      %v4538 = vadd.f32 %v4372, %v4537
      %4539 = vmatmul.bf16.gmra.mxu0 %v4314
      %v4540 = vpop.f32.mrf.mxu0
      %v4541 = vadd.f32 %v4372, %v4540
      %v4542 = vpop.f32.mrf.mxu0
      %v4543 = vadd.f32 %v4372, %v4542
      %4544 = vmatmul.bf16.gmra.mxu0 %v4315
      %v4545 = vpop.f32.mrf.mxu0
      %v4546 = vadd.f32 %v4372, %v4545
      %v4547 = vpop.f32.mrf.mxu0
      %v4548 = vadd.f32 %v4372, %v4547
      %4549 = vmatmul.bf16.gmra.mxu0 %v4316
      %v4550 = vpop.f32.mrf.mxu0
      %v4551 = vadd.f32 %v4372, %v4550
      %v4552 = vpop.f32.mrf.mxu0
      %v4553 = vadd.f32 %v4372, %v4552
      %4554 = vmatmul.bf16.gmra.mxu0 %v4317
      %v4555 = vpop.f32.mrf.mxu0
      %v4556 = vadd.f32 %v4372, %v4555
      %v4557 = vpop.f32.mrf.mxu0
      %v4558 = vadd.f32 %v4372, %v4557
      %4559 = vmatmul.bf16.gmra.mxu0 %v4318
      %v4560 = vpop.f32.mrf.mxu0
      %v4561 = vadd.f32 %v4372, %v4560
      %v4562 = vpop.f32.mrf.mxu0
      %v4563 = vadd.f32 %v4372, %v4562
      %4564 = vmatmul.bf16.gmra.mxu0 %v4319
      %v4565 = vpop.f32.mrf.mxu0
      %v4566 = vadd.f32 %v4372, %v4565
      %v4567 = vpop.f32.mrf.mxu0
      %v4568 = vadd.f32 %v4372, %v4567
      %4569 = vmatmul.bf16.gmra.mxu0 %v4320
      %v4570 = vpop.f32.mrf.mxu0
      %v4571 = vadd.f32 %v4372, %v4570
      %v4572 = vpop.f32.mrf.mxu0
      %v4573 = vadd.f32 %v4372, %v4572
      %4574 = vmatmul.bf16.gmra.mxu0 %v4321
      %v4575 = vpop.f32.mrf.mxu0
      %v4576 = vadd.f32 %v4372, %v4575
      %v4577 = vpop.f32.mrf.mxu0
      %v4578 = vadd.f32 %v4372, %v4577
      %4579 = vmatmul.bf16.gmra.mxu0 %v4322
      %v4580 = vpop.f32.mrf.mxu0
      %v4581 = vadd.f32 %v4372, %v4580
      %v4582 = vpop.f32.mrf.mxu0
      %v4583 = vadd.f32 %v4372, %v4582
      %4584 = vmatmul.bf16.gmra.mxu0 %v4323
      %v4585 = vpop.f32.mrf.mxu0
      %v4586 = vadd.f32 %v4372, %v4585
      %v4587 = vpop.f32.mrf.mxu0
      %v4588 = vadd.f32 %v4372, %v4587
      %4589 = vmatmul.bf16.gmra.mxu0 %v4324
      %v4590 = vpop.f32.mrf.mxu0
      %v4591 = vadd.f32 %v4372, %v4590
      %v4592 = vpop.f32.mrf.mxu0
      %v4593 = vadd.f32 %v4372, %v4592
      %4594 = vmatmul.bf16.gmra.mxu0 %v4325
      %v4595 = vpop.f32.mrf.mxu0
      %v4596 = vadd.f32 %v4372, %v4595
      %v4597 = vpop.f32.mrf.mxu0
      %v4598 = vadd.f32 %v4372, %v4597
      %4599 = vmatmul.bf16.gmra.mxu0 %v4326
      %v4600 = vpop.f32.mrf.mxu0
      %v4601 = vadd.f32 %v4372, %v4600
      %v4602 = vpop.f32.mrf.mxu0
      %v4603 = vadd.f32 %v4372, %v4602
      %4604 = vmatmul.bf16.gmra.mxu0 %v4327
      %v4605 = vpop.f32.mrf.mxu0
      %v4606 = vadd.f32 %v4372, %v4605
      %v4607 = vpop.f32.mrf.mxu0
      %v4608 = vadd.f32 %v4372, %v4607
      %4609 = vmatmul.bf16.gmra.mxu0 %v4328
      %v4610 = vpop.f32.mrf.mxu0
      %v4611 = vadd.f32 %v4372, %v4610
      %v4612 = vpop.f32.mrf.mxu0
      %v4613 = vadd.f32 %v4372, %v4612
      %4614 = vmatmul.bf16.gmra.mxu0 %v4329
      %v4615 = vpop.f32.mrf.mxu0
      %v4616 = vadd.f32 %v4372, %v4615
      %v4617 = vpop.f32.mrf.mxu0
      %v4618 = vadd.f32 %v4372, %v4617
      %4619 = vmatmul.bf16.gmra.mxu0 %v4330
      %v4620 = vpop.f32.mrf.mxu0
      %v4621 = vadd.f32 %v4372, %v4620
      %v4622 = vpop.f32.mrf.mxu0
      %v4623 = vadd.f32 %v4372, %v4622
      %4624 = vmatmul.bf16.gmra.mxu0 %v4331
      %v4625 = vpop.f32.mrf.mxu0
      %v4626 = vadd.f32 %v4372, %v4625
      %v4627 = vpop.f32.mrf.mxu0
      %v4628 = vadd.f32 %v4372, %v4627
      %4629 = vmatmul.bf16.gmra.mxu0 %v4332
      %v4630 = vpop.f32.mrf.mxu0
      %v4631 = vadd.f32 %v4372, %v4630
      %v4632 = vpop.f32.mrf.mxu0
      %v4633 = vadd.f32 %v4372, %v4632
      %4634 = vmatmul.bf16.gmra.mxu0 %v4333
      %v4635 = vpop.f32.mrf.mxu0
      %v4636 = vadd.f32 %v4372, %v4635
      %v4637 = vpop.f32.mrf.mxu0
      %v4638 = vadd.f32 %v4372, %v4637
      %4639 = vmatmul.bf16.gmra.mxu0 %v4334
      %v4640 = vpop.f32.mrf.mxu0
      %v4641 = vadd.f32 %v4372, %v4640
      %v4642 = vpop.f32.mrf.mxu0
      %v4643 = vadd.f32 %v4372, %v4642
      %4644 = vmatmul.bf16.gmra.mxu0 %v4335
      %v4645 = vpop.f32.mrf.mxu0
      %v4646 = vadd.f32 %v4372, %v4645
      %v4647 = vpop.f32.mrf.mxu0
      %v4648 = vadd.f32 %v4372, %v4647
      %4649 = vmatmul.bf16.gmra.mxu0 %v4336
      %v4650 = vpop.f32.mrf.mxu0
      %v4651 = vadd.f32 %v4372, %v4650
      %v4652 = vpop.f32.mrf.mxu0
      %v4653 = vadd.f32 %v4372, %v4652
      %4654 = vmatmul.bf16.gmra.mxu0 %v4337
      %v4655 = vpop.f32.mrf.mxu0
      %v4656 = vadd.f32 %v4372, %v4655
      %v4657 = vpop.f32.mrf.mxu0
      %v4658 = vadd.f32 %v4372, %v4657
      %4659 = vmatmul.bf16.gmra.mxu0 %v4338
      %v4660 = vpop.f32.mrf.mxu0
      %v4661 = vadd.f32 %v4372, %v4660
      %v4662 = vpop.f32.mrf.mxu0
      %v4663 = vadd.f32 %v4372, %v4662
      %4664 = vmatmul.bf16.gmra.mxu0 %v4339
      %v4665 = vpop.f32.mrf.mxu0
      %v4666 = vadd.f32 %v4372, %v4665
      %v4667 = vpop.f32.mrf.mxu0
      %v4668 = vadd.f32 %v4372, %v4667
      %4669 = vmatmul.bf16.gmra.mxu0 %v4340
      %v4670 = vpop.f32.mrf.mxu0
      %v4671 = vadd.f32 %v4372, %v4670
      %v4672 = vpop.f32.mrf.mxu0
      %v4673 = vadd.f32 %v4372, %v4672
      %4674 = vmatmul.bf16.gmra.mxu0 %v4341
      %v4675 = vpop.f32.mrf.mxu0
      %v4676 = vadd.f32 %v4372, %v4675
      %v4677 = vpop.f32.mrf.mxu0
      %v4678 = vadd.f32 %v4372, %v4677
      %4679 = vmatmul.bf16.gmra.mxu0 %v4342
      %v4680 = vpop.f32.mrf.mxu0
      %v4681 = vadd.f32 %v4372, %v4680
      %v4682 = vpop.f32.mrf.mxu0
      %v4683 = vadd.f32 %v4372, %v4682
      %4684 = vmatmul.bf16.gmra.mxu0 %v4343
      %v4685 = vpop.f32.mrf.mxu0
      %v4686 = vadd.f32 %v4372, %v4685
      %v4687 = vpop.f32.mrf.mxu0
      %v4688 = vadd.f32 %v4372, %v4687
      %4689 = vmatmul.bf16.gmra.mxu0 %v4344
      %v4690 = vpop.f32.mrf.mxu0
      %v4691 = vadd.f32 %v4372, %v4690
      %v4692 = vpop.f32.mrf.mxu0
      %v4693 = vadd.f32 %v4372, %v4692
      %4694 = vmatmul.bf16.gmra.mxu0 %v4345
      %v4695 = vpop.f32.mrf.mxu0
      %v4696 = vadd.f32 %v4372, %v4695
      %v4697 = vpop.f32.mrf.mxu0
      %v4698 = vadd.f32 %v4372, %v4697
      %4699 = vmatmul.bf16.gmra.mxu0 %v4346
      %v4700 = vpop.f32.mrf.mxu0
      %v4701 = vadd.f32 %v4372, %v4700
      %v4702 = vpop.f32.mrf.mxu0
      %v4703 = vadd.f32 %v4372, %v4702
      %4704 = vmatmul.bf16.gmra.mxu0 %v4347
      %v4705 = vpop.f32.mrf.mxu0
      %v4706 = vadd.f32 %v4372, %v4705
      %v4707 = vpop.f32.mrf.mxu0
      %v4708 = vadd.f32 %v4372, %v4707
      %4709 = vmatmul.bf16.gmra.mxu0 %v4348
      %v4710 = vpop.f32.mrf.mxu0
      %v4711 = vadd.f32 %v4372, %v4710
      %v4712 = vpop.f32.mrf.mxu0
      %v4713 = vadd.f32 %v4372, %v4712
      %4714 = vmatmul.bf16.gmra.mxu0 %v4349
      %v4715 = vpop.f32.mrf.mxu0
      %v4716 = vadd.f32 %v4372, %v4715
      %v4717 = vpop.f32.mrf.mxu0
      %v4718 = vadd.f32 %v4372, %v4717
      %4719 = vmatmul.bf16.gmra.mxu0 %v4350
      %v4720 = vpop.f32.mrf.mxu0
      %v4721 = vadd.f32 %v4372, %v4720
      %v4722 = vpop.f32.mrf.mxu0
      %v4723 = vadd.f32 %v4372, %v4722
      %4724 = vmatmul.bf16.gmra.mxu0 %v4351
      %v4725 = vpop.f32.mrf.mxu0
      %v4726 = vadd.f32 %v4372, %v4725
      %v4727 = vpop.f32.mrf.mxu0
      %v4728 = vadd.f32 %v4372, %v4727
      %4729 = vmatmul.bf16.gmra.mxu0 %v4352
      %v4730 = vpop.f32.mrf.mxu0
      %v4731 = vadd.f32 %v4372, %v4730
      %v4732 = vpop.f32.mrf.mxu0
      %v4733 = vadd.f32 %v4372, %v4732
      %4734 = vmatmul.bf16.gmra.mxu0 %v4353
      %v4735 = vpop.f32.mrf.mxu0
      %v4736 = vadd.f32 %v4372, %v4735
      %v4737 = vpop.f32.mrf.mxu0
      %v4738 = vadd.f32 %v4372, %v4737
      %4739 = vmatmul.bf16.gmra.mxu0 %v4354
      %v4740 = vpop.f32.mrf.mxu0
      %v4741 = vadd.f32 %v4372, %v4740
      %v4742 = vpop.f32.mrf.mxu0
      %v4743 = vadd.f32 %v4372, %v4742
      %4744 = vmatmul.bf16.gmra.mxu0 %v4355
      %v4745 = vpop.f32.mrf.mxu0
      %v4746 = vadd.f32 %v4372, %v4745
      %v4747 = vpop.f32.mrf.mxu0
      %v4748 = vadd.f32 %v4372, %v4747
      %4749 = vdwg.mxu0
      %v4750 = vadd.f32 %v3450, %v4431
      %v4751 = vadd.f32 %v3451, %v4433
      %v4752 = vadd.f32 %v3452, %v4436
      %v4753 = vadd.f32 %v3453, %v4438
      %v4754 = vadd.f32 %v3454, %v4441
      %v4755 = vadd.f32 %v3455, %v4443
      %v4756 = vadd.f32 %v3456, %v4446
      %v4757 = vadd.f32 %v3457, %v4448
      %v4758 = vadd.f32 %v3458, %v4451
      %v4759 = vadd.f32 %v3459, %v4453
      %v4760 = vadd.f32 %v3460, %v4456
      %v4761 = vadd.f32 %v3461, %v4458
      %v4762 = vadd.f32 %v3462, %v4461
      %v4763 = vadd.f32 %v3463, %v4463
      %v4764 = vadd.f32 %v3464, %v4466
      %v4765 = vadd.f32 %v3465, %v4468
      %v4766 = vadd.f32 %v3466, %v4471
      %v4767 = vadd.f32 %v3467, %v4473
      %v4768 = vadd.f32 %v3468, %v4476
      %v4769 = vadd.f32 %v3469, %v4478
      %v4770 = vadd.f32 %v3470, %v4481
      %v4771 = vadd.f32 %v3471, %v4483
      %v4772 = vadd.f32 %v3472, %v4486
      %v4773 = vadd.f32 %v3473, %v4488
      %v4774 = vadd.f32 %v3474, %v4491
      %v4775 = vadd.f32 %v3475, %v4493
      %v4776 = vadd.f32 %v3476, %v4496
      %v4777 = vadd.f32 %v3477, %v4498
      %v4778 = vadd.f32 %v3478, %v4501
      %v4779 = vadd.f32 %v3479, %v4503
      %v4780 = vadd.f32 %v3480, %v4506
      %v4781 = vadd.f32 %v3481, %v4508
      %v4782 = vadd.f32 %v3482, %v4511
      %v4783 = vadd.f32 %v3483, %v4513
      %v4784 = vadd.f32 %v3484, %v4516
      %v4785 = vadd.f32 %v3485, %v4518
      %v4786 = vadd.f32 %v3486, %v4521
      %v4787 = vadd.f32 %v3487, %v4523
      %v4788 = vadd.f32 %v3488, %v4526
      %v4789 = vadd.f32 %v3489, %v4528
      %v4790 = vadd.f32 %v3490, %v4531
      %v4791 = vadd.f32 %v3491, %v4533
      %v4792 = vadd.f32 %v3492, %v4536
      %v4793 = vadd.f32 %v3493, %v4538
      %v4794 = vadd.f32 %v3494, %v4541
      %v4795 = vadd.f32 %v3495, %v4543
      %v4796 = vadd.f32 %v3496, %v4546
      %v4797 = vadd.f32 %v3497, %v4548
      %v4798 = vadd.f32 %v3498, %v4551
      %v4799 = vadd.f32 %v3499, %v4553
      %v4800 = vadd.f32 %v3500, %v4556
      %v4801 = vadd.f32 %v3501, %v4558
      %v4802 = vadd.f32 %v3502, %v4561
      %v4803 = vadd.f32 %v3503, %v4563
      %v4804 = vadd.f32 %v3504, %v4566
      %v4805 = vadd.f32 %v3505, %v4568
      %v4806 = vadd.f32 %v3506, %v4571
      %v4807 = vadd.f32 %v3507, %v4573
      %v4808 = vadd.f32 %v3508, %v4576
      %v4809 = vadd.f32 %v3509, %v4578
      %v4810 = vadd.f32 %v3510, %v4581
      %v4811 = vadd.f32 %v3511, %v4583
      %v4812 = vadd.f32 %v3512, %v4586
      %v4813 = vadd.f32 %v3513, %v4588
      %v4814 = vadd.f32 %v3514, %v4591
      %v4815 = vadd.f32 %v3515, %v4593
      %v4816 = vadd.f32 %v3516, %v4596
      %v4817 = vadd.f32 %v3517, %v4598
      %v4818 = vadd.f32 %v3518, %v4601
      %v4819 = vadd.f32 %v3519, %v4603
      %v4820 = vadd.f32 %v3520, %v4606
      %v4821 = vadd.f32 %v3521, %v4608
      %v4822 = vadd.f32 %v3522, %v4611
      %v4823 = vadd.f32 %v3523, %v4613
      %v4824 = vadd.f32 %v3524, %v4616
      %v4825 = vadd.f32 %v3525, %v4618
      %v4826 = vadd.f32 %v3526, %v4621
      %v4827 = vadd.f32 %v3527, %v4623
      %v4828 = vadd.f32 %v3528, %v4626
      %v4829 = vadd.f32 %v3529, %v4628
      %v4830 = vadd.f32 %v3530, %v4631
      %v4831 = vadd.f32 %v3531, %v4633
      %v4832 = vadd.f32 %v3532, %v4636
      %v4833 = vadd.f32 %v3533, %v4638
      %v4834 = vadd.f32 %v3534, %v4641
      %v4835 = vadd.f32 %v3535, %v4643
      %v4836 = vadd.f32 %v3536, %v4646
      %v4837 = vadd.f32 %v3537, %v4648
      %v4838 = vadd.f32 %v3538, %v4651
      %v4839 = vadd.f32 %v3539, %v4653
      %v4840 = vadd.f32 %v3540, %v4656
      %v4841 = vadd.f32 %v3541, %v4658
      %v4842 = vadd.f32 %v3542, %v4661
      %v4843 = vadd.f32 %v3543, %v4663
      %v4844 = vadd.f32 %v3544, %v4666
      %v4845 = vadd.f32 %v3545, %v4668
      %v4846 = vadd.f32 %v3546, %v4671
      %v4847 = vadd.f32 %v3547, %v4673
      %v4848 = vadd.f32 %v3548, %v4676
      %v4849 = vadd.f32 %v3549, %v4678
      %v4850 = vadd.f32 %v3550, %v4681
      %v4851 = vadd.f32 %v3551, %v4683
      %v4852 = vadd.f32 %v3552, %v4686
      %v4853 = vadd.f32 %v3553, %v4688
      %v4854 = vadd.f32 %v3554, %v4691
      %v4855 = vadd.f32 %v3555, %v4693
      %v4856 = vadd.f32 %v3556, %v4696
      %v4857 = vadd.f32 %v3557, %v4698
      %v4858 = vadd.f32 %v3558, %v4701
      %v4859 = vadd.f32 %v3559, %v4703
      %v4860 = vadd.f32 %v3560, %v4706
      %v4861 = vadd.f32 %v3561, %v4708
      %v4862 = vadd.f32 %v3562, %v4711
      %v4863 = vadd.f32 %v3563, %v4713
      %v4864 = vadd.f32 %v3564, %v4716
      %v4865 = vadd.f32 %v3565, %v4718
      %v4866 = vadd.f32 %v3566, %v4721
      %v4867 = vadd.f32 %v3567, %v4723
      %v4868 = vadd.f32 %v3568, %v4726
      %v4869 = vadd.f32 %v3569, %v4728
      %v4870 = vadd.f32 %v3570, %v4731
      %v4871 = vadd.f32 %v3571, %v4733
      %v4872 = vadd.f32 %v3572, %v4736
      %v4873 = vadd.f32 %v3573, %v4738
      %v4874 = vadd.f32 %v3574, %v4741
      %v4875 = vadd.f32 %v3575, %v4743
      %v4876 = vadd.f32 %v3576, %v4746
      %v4877 = vadd.f32 %v3577, %v4748
      %v4878 = vadd.f32 %v4750, %v2344
      %v4879 = vadd.f32 %v4751, %v2346
      %v4880 = vadd.f32 %v4752, %v2349
      %v4881 = vadd.f32 %v4753, %v2351
      %v4882 = vadd.f32 %v4754, %v2354
      %v4883 = vadd.f32 %v4755, %v2356
      %v4884 = vadd.f32 %v4756, %v2359
      %v4885 = vadd.f32 %v4757, %v2361
      %v4886 = vadd.f32 %v4758, %v2364
      %v4887 = vadd.f32 %v4759, %v2366
      %v4888 = vadd.f32 %v4760, %v2369
      %v4889 = vadd.f32 %v4761, %v2371
      %v4890 = vadd.f32 %v4762, %v2374
      %v4891 = vadd.f32 %v4763, %v2376
      %v4892 = vadd.f32 %v4764, %v2379
      %v4893 = vadd.f32 %v4765, %v2381
      %v4894 = vadd.f32 %v4766, %v2384
      %v4895 = vadd.f32 %v4767, %v2386
      %v4896 = vadd.f32 %v4768, %v2389
      %v4897 = vadd.f32 %v4769, %v2391
      %v4898 = vadd.f32 %v4770, %v2394
      %v4899 = vadd.f32 %v4771, %v2396
      %v4900 = vadd.f32 %v4772, %v2399
      %v4901 = vadd.f32 %v4773, %v2401
      %v4902 = vadd.f32 %v4774, %v2404
      %v4903 = vadd.f32 %v4775, %v2406
      %v4904 = vadd.f32 %v4776, %v2409
      %v4905 = vadd.f32 %v4777, %v2411
      %v4906 = vadd.f32 %v4778, %v2414
      %v4907 = vadd.f32 %v4779, %v2416
      %v4908 = vadd.f32 %v4780, %v2419
      %v4909 = vadd.f32 %v4781, %v2421
      %v4910 = vadd.f32 %v4782, %v2424
      %v4911 = vadd.f32 %v4783, %v2426
      %v4912 = vadd.f32 %v4784, %v2429
      %v4913 = vadd.f32 %v4785, %v2431
      %v4914 = vadd.f32 %v4786, %v2434
      %v4915 = vadd.f32 %v4787, %v2436
      %v4916 = vadd.f32 %v4788, %v2439
      %v4917 = vadd.f32 %v4789, %v2441
      %v4918 = vadd.f32 %v4790, %v2444
      %v4919 = vadd.f32 %v4791, %v2446
      %v4920 = vadd.f32 %v4792, %v2449
      %v4921 = vadd.f32 %v4793, %v2451
      %v4922 = vadd.f32 %v4794, %v2454
      %v4923 = vadd.f32 %v4795, %v2456
      %v4924 = vadd.f32 %v4796, %v2459
      %v4925 = vadd.f32 %v4797, %v2461
      %v4926 = vadd.f32 %v4798, %v2464
      %v4927 = vadd.f32 %v4799, %v2466
      %v4928 = vadd.f32 %v4800, %v2469
      %v4929 = vadd.f32 %v4801, %v2471
      %v4930 = vadd.f32 %v4802, %v2474
      %v4931 = vadd.f32 %v4803, %v2476
      %v4932 = vadd.f32 %v4804, %v2479
      %v4933 = vadd.f32 %v4805, %v2481
      %v4934 = vadd.f32 %v4806, %v2484
      %v4935 = vadd.f32 %v4807, %v2486
      %v4936 = vadd.f32 %v4808, %v2489
      %v4937 = vadd.f32 %v4809, %v2491
      %v4938 = vadd.f32 %v4810, %v2494
      %v4939 = vadd.f32 %v4811, %v2496
      %v4940 = vadd.f32 %v4812, %v2499
      %v4941 = vadd.f32 %v4813, %v2501
      %v4942 = vadd.f32 %v4814, %v2504
      %v4943 = vadd.f32 %v4815, %v2506
      %v4944 = vadd.f32 %v4816, %v2509
      %v4945 = vadd.f32 %v4817, %v2511
      %v4946 = vadd.f32 %v4818, %v2514
      %v4947 = vadd.f32 %v4819, %v2516
      %v4948 = vadd.f32 %v4820, %v2519
      %v4949 = vadd.f32 %v4821, %v2521
      %v4950 = vadd.f32 %v4822, %v2524
      %v4951 = vadd.f32 %v4823, %v2526
      %v4952 = vadd.f32 %v4824, %v2529
      %v4953 = vadd.f32 %v4825, %v2531
      %v4954 = vadd.f32 %v4826, %v2534
      %v4955 = vadd.f32 %v4827, %v2536
      %v4956 = vadd.f32 %v4828, %v2539
      %v4957 = vadd.f32 %v4829, %v2541
      %v4958 = vadd.f32 %v4830, %v2544
      %v4959 = vadd.f32 %v4831, %v2546
      %v4960 = vadd.f32 %v4832, %v2549
      %v4961 = vadd.f32 %v4833, %v2551
      %v4962 = vadd.f32 %v4834, %v2554
      %v4963 = vadd.f32 %v4835, %v2556
      %v4964 = vadd.f32 %v4836, %v2559
      %v4965 = vadd.f32 %v4837, %v2561
      %v4966 = vadd.f32 %v4838, %v2564
      %v4967 = vadd.f32 %v4839, %v2566
      %v4968 = vadd.f32 %v4840, %v2569
      %v4969 = vadd.f32 %v4841, %v2571
      %v4970 = vadd.f32 %v4842, %v2574
      %v4971 = vadd.f32 %v4843, %v2576
      %v4972 = vadd.f32 %v4844, %v2579
      %v4973 = vadd.f32 %v4845, %v2581
      %v4974 = vadd.f32 %v4846, %v2584
      %v4975 = vadd.f32 %v4847, %v2586
      %v4976 = vadd.f32 %v4848, %v2589
      %v4977 = vadd.f32 %v4849, %v2591
      %v4978 = vadd.f32 %v4850, %v2594
      %v4979 = vadd.f32 %v4851, %v2596
      %v4980 = vadd.f32 %v4852, %v2599
      %v4981 = vadd.f32 %v4853, %v2601
      %v4982 = vadd.f32 %v4854, %v2604
      %v4983 = vadd.f32 %v4855, %v2606
      %v4984 = vadd.f32 %v4856, %v2609
      %v4985 = vadd.f32 %v4857, %v2611
      %v4986 = vadd.f32 %v4858, %v2614
      %v4987 = vadd.f32 %v4859, %v2616
      %v4988 = vadd.f32 %v4860, %v2619
      %v4989 = vadd.f32 %v4861, %v2621
      %v4990 = vadd.f32 %v4862, %v2624
      %v4991 = vadd.f32 %v4863, %v2626
      %v4992 = vadd.f32 %v4864, %v2629
      %v4993 = vadd.f32 %v4865, %v2631
      %v4994 = vadd.f32 %v4866, %v2634
      %v4995 = vadd.f32 %v4867, %v2636
      %v4996 = vadd.f32 %v4868, %v2639
      %v4997 = vadd.f32 %v4869, %v2641
      %v4998 = vadd.f32 %v4870, %v2644
      %v4999 = vadd.f32 %v4871, %v2646
      %v5000 = vadd.f32 %v4872, %v2649
      %v5001 = vadd.f32 %v4873, %v2651
      %v5002 = vadd.f32 %v4874, %v2654
      %v5003 = vadd.f32 %v4875, %v2656
      %v5004 = vadd.f32 %v4876, %v2659
      %v5005 = vadd.f32 %v4877, %v2661
      %v5006 = vperm.slane %v302, 2
      %v5007 = vadd.f32 %v4878, %v5006
      %v5008 = vadd.f32 %v4879, %v5006
      %v5009 = vadd.f32 %v4880, %v5006
      %v5010 = vadd.f32 %v4881, %v5006
      %v5011 = vadd.f32 %v4882, %v5006
      %v5012 = vadd.f32 %v4883, %v5006
      %v5013 = vadd.f32 %v4884, %v5006
      %v5014 = vadd.f32 %v4885, %v5006
      %v5015 = vadd.f32 %v4886, %v5006
      %v5016 = vadd.f32 %v4887, %v5006
      %v5017 = vadd.f32 %v4888, %v5006
      %v5018 = vadd.f32 %v4889, %v5006
      %v5019 = vadd.f32 %v4890, %v5006
      %v5020 = vadd.f32 %v4891, %v5006
      %v5021 = vadd.f32 %v4892, %v5006
      %v5022 = vadd.f32 %v4893, %v5006
      %v5023 = vadd.f32 %v4894, %v5006
      %v5024 = vadd.f32 %v4895, %v5006
      %v5025 = vadd.f32 %v4896, %v5006
      %v5026 = vadd.f32 %v4897, %v5006
      %v5027 = vadd.f32 %v4898, %v5006
      %v5028 = vadd.f32 %v4899, %v5006
      %v5029 = vadd.f32 %v4900, %v5006
      %v5030 = vadd.f32 %v4901, %v5006
      %v5031 = vadd.f32 %v4902, %v5006
      %v5032 = vadd.f32 %v4903, %v5006
      %v5033 = vadd.f32 %v4904, %v5006
      %v5034 = vadd.f32 %v4905, %v5006
      %v5035 = vadd.f32 %v4906, %v5006
      %v5036 = vadd.f32 %v4907, %v5006
      %v5037 = vadd.f32 %v4908, %v5006
      %v5038 = vadd.f32 %v4909, %v5006
      %v5039 = vadd.f32 %v4910, %v5006
      %v5040 = vadd.f32 %v4911, %v5006
      %v5041 = vadd.f32 %v4912, %v5006
      %v5042 = vadd.f32 %v4913, %v5006
      %v5043 = vadd.f32 %v4914, %v5006
      %v5044 = vadd.f32 %v4915, %v5006
      %v5045 = vadd.f32 %v4916, %v5006
      %v5046 = vadd.f32 %v4917, %v5006
      %v5047 = vadd.f32 %v4918, %v5006
      %v5048 = vadd.f32 %v4919, %v5006
      %v5049 = vadd.f32 %v4920, %v5006
      %v5050 = vadd.f32 %v4921, %v5006
      %v5051 = vadd.f32 %v4922, %v5006
      %v5052 = vadd.f32 %v4923, %v5006
      %v5053 = vadd.f32 %v4924, %v5006
      %v5054 = vadd.f32 %v4925, %v5006
      %v5055 = vadd.f32 %v4926, %v5006
      %v5056 = vadd.f32 %v4927, %v5006
      %v5057 = vadd.f32 %v4928, %v5006
      %v5058 = vadd.f32 %v4929, %v5006
      %v5059 = vadd.f32 %v4930, %v5006
      %v5060 = vadd.f32 %v4931, %v5006
      %v5061 = vadd.f32 %v4932, %v5006
      %v5062 = vadd.f32 %v4933, %v5006
      %v5063 = vadd.f32 %v4934, %v5006
      %v5064 = vadd.f32 %v4935, %v5006
      %v5065 = vadd.f32 %v4936, %v5006
      %v5066 = vadd.f32 %v4937, %v5006
      %v5067 = vadd.f32 %v4938, %v5006
      %v5068 = vadd.f32 %v4939, %v5006
      %v5069 = vadd.f32 %v4940, %v5006
      %v5070 = vadd.f32 %v4941, %v5006
      %v5071 = vadd.f32 %v4942, %v5006
      %v5072 = vadd.f32 %v4943, %v5006
      %v5073 = vadd.f32 %v4944, %v5006
      %v5074 = vadd.f32 %v4945, %v5006
      %v5075 = vadd.f32 %v4946, %v5006
      %v5076 = vadd.f32 %v4947, %v5006
      %v5077 = vadd.f32 %v4948, %v5006
      %v5078 = vadd.f32 %v4949, %v5006
      %v5079 = vadd.f32 %v4950, %v5006
      %v5080 = vadd.f32 %v4951, %v5006
      %v5081 = vadd.f32 %v4952, %v5006
      %v5082 = vadd.f32 %v4953, %v5006
      %v5083 = vadd.f32 %v4954, %v5006
      %v5084 = vadd.f32 %v4955, %v5006
      %v5085 = vadd.f32 %v4956, %v5006
      %v5086 = vadd.f32 %v4957, %v5006
      %v5087 = vadd.f32 %v4958, %v5006
      %v5088 = vadd.f32 %v4959, %v5006
      %v5089 = vadd.f32 %v4960, %v5006
      %v5090 = vadd.f32 %v4961, %v5006
      %v5091 = vadd.f32 %v4962, %v5006
      %v5092 = vadd.f32 %v4963, %v5006
      %v5093 = vadd.f32 %v4964, %v5006
      %v5094 = vadd.f32 %v4965, %v5006
      %v5095 = vadd.f32 %v4966, %v5006
      %v5096 = vadd.f32 %v4967, %v5006
      %v5097 = vadd.f32 %v4968, %v5006
      %v5098 = vadd.f32 %v4969, %v5006
      %v5099 = vadd.f32 %v4970, %v5006
      %v5100 = vadd.f32 %v4971, %v5006
      %v5101 = vadd.f32 %v4972, %v5006
      %v5102 = vadd.f32 %v4973, %v5006
      %v5103 = vadd.f32 %v4974, %v5006
      %v5104 = vadd.f32 %v4975, %v5006
      %v5105 = vadd.f32 %v4976, %v5006
      %v5106 = vadd.f32 %v4977, %v5006
      %v5107 = vadd.f32 %v4978, %v5006
      %v5108 = vadd.f32 %v4979, %v5006
      %v5109 = vadd.f32 %v4980, %v5006
      %v5110 = vadd.f32 %v4981, %v5006
      %v5111 = vadd.f32 %v4982, %v5006
      %v5112 = vadd.f32 %v4983, %v5006
      %v5113 = vadd.f32 %v4984, %v5006
      %v5114 = vadd.f32 %v4985, %v5006
      %v5115 = vadd.f32 %v4986, %v5006
      %v5116 = vadd.f32 %v4987, %v5006
      %v5117 = vadd.f32 %v4988, %v5006
      %v5118 = vadd.f32 %v4989, %v5006
      %v5119 = vadd.f32 %v4990, %v5006
      %v5120 = vadd.f32 %v4991, %v5006
      %v5121 = vadd.f32 %v4992, %v5006
      %v5122 = vadd.f32 %v4993, %v5006
      %v5123 = vadd.f32 %v4994, %v5006
      %v5124 = vadd.f32 %v4995, %v5006
      %v5125 = vadd.f32 %v4996, %v5006
      %v5126 = vadd.f32 %v4997, %v5006
      %v5127 = vadd.f32 %v4998, %v5006
      %v5128 = vadd.f32 %v4999, %v5006
      %v5129 = vadd.f32 %v5000, %v5006
      %v5130 = vadd.f32 %v5001, %v5006
      %v5131 = vadd.f32 %v5002, %v5006
      %v5132 = vadd.f32 %v5003, %v5006
      %v5133 = vadd.f32 %v5004, %v5006
      %v5134 = vadd.f32 %v5005, %v5006
      %v5135 = vmax.f32 %v5007, 0.0
      %v5136 = vmax.f32 %v5008, 0.0
      %v5137 = vmax.f32 %v5009, 0.0
      %v5138 = vmax.f32 %v5010, 0.0
      %v5139 = vmax.f32 %v5011, 0.0
      %v5140 = vmax.f32 %v5012, 0.0
      %v5141 = vmax.f32 %v5013, 0.0
      %v5142 = vmax.f32 %v5014, 0.0
      %v5143 = vmax.f32 %v5015, 0.0
      %v5144 = vmax.f32 %v5016, 0.0
      %v5145 = vmax.f32 %v5017, 0.0
      %v5146 = vmax.f32 %v5018, 0.0
      %v5147 = vmax.f32 %v5019, 0.0
      %v5148 = vmax.f32 %v5020, 0.0
      %v5149 = vmax.f32 %v5021, 0.0
      %v5150 = vmax.f32 %v5022, 0.0
      %v5151 = vmax.f32 %v5023, 0.0
      %v5152 = vmax.f32 %v5024, 0.0
      %v5153 = vmax.f32 %v5025, 0.0
      %v5154 = vmax.f32 %v5026, 0.0
      %v5155 = vmax.f32 %v5027, 0.0
      %v5156 = vmax.f32 %v5028, 0.0
      %v5157 = vmax.f32 %v5029, 0.0
      %v5158 = vmax.f32 %v5030, 0.0
      %v5159 = vmax.f32 %v5031, 0.0
      %v5160 = vmax.f32 %v5032, 0.0
      %v5161 = vmax.f32 %v5033, 0.0
      %v5162 = vmax.f32 %v5034, 0.0
      %v5163 = vmax.f32 %v5035, 0.0
      %v5164 = vmax.f32 %v5036, 0.0
      %v5165 = vmax.f32 %v5037, 0.0
      %v5166 = vmax.f32 %v5038, 0.0
      %v5167 = vmax.f32 %v5039, 0.0
      %v5168 = vmax.f32 %v5040, 0.0
      %v5169 = vmax.f32 %v5041, 0.0
      %v5170 = vmax.f32 %v5042, 0.0
      %v5171 = vmax.f32 %v5043, 0.0
      %v5172 = vmax.f32 %v5044, 0.0
      %v5173 = vmax.f32 %v5045, 0.0
      %v5174 = vmax.f32 %v5046, 0.0
      %v5175 = vmax.f32 %v5047, 0.0
      %v5176 = vmax.f32 %v5048, 0.0
      %v5177 = vmax.f32 %v5049, 0.0
      %v5178 = vmax.f32 %v5050, 0.0
      %v5179 = vmax.f32 %v5051, 0.0
      %v5180 = vmax.f32 %v5052, 0.0
      %v5181 = vmax.f32 %v5053, 0.0
      %v5182 = vmax.f32 %v5054, 0.0
      %v5183 = vmax.f32 %v5055, 0.0
      %v5184 = vmax.f32 %v5056, 0.0
      %v5185 = vmax.f32 %v5057, 0.0
      %v5186 = vmax.f32 %v5058, 0.0
      %v5187 = vmax.f32 %v5059, 0.0
      %v5188 = vmax.f32 %v5060, 0.0
      %v5189 = vmax.f32 %v5061, 0.0
      %v5190 = vmax.f32 %v5062, 0.0
      %v5191 = vmax.f32 %v5063, 0.0
      %v5192 = vmax.f32 %v5064, 0.0
      %v5193 = vmax.f32 %v5065, 0.0
      %v5194 = vmax.f32 %v5066, 0.0
      %v5195 = vmax.f32 %v5067, 0.0
      %v5196 = vmax.f32 %v5068, 0.0
      %v5197 = vmax.f32 %v5069, 0.0
      %v5198 = vmax.f32 %v5070, 0.0
      %v5199 = vmax.f32 %v5071, 0.0
      %v5200 = vmax.f32 %v5072, 0.0
      %v5201 = vmax.f32 %v5073, 0.0
      %v5202 = vmax.f32 %v5074, 0.0
      %v5203 = vmax.f32 %v5075, 0.0
      %v5204 = vmax.f32 %v5076, 0.0
      %v5205 = vmax.f32 %v5077, 0.0
      %v5206 = vmax.f32 %v5078, 0.0
      %v5207 = vmax.f32 %v5079, 0.0
      %v5208 = vmax.f32 %v5080, 0.0
      %v5209 = vmax.f32 %v5081, 0.0
      %v5210 = vmax.f32 %v5082, 0.0
      %v5211 = vmax.f32 %v5083, 0.0
      %v5212 = vmax.f32 %v5084, 0.0
      %v5213 = vmax.f32 %v5085, 0.0
      %v5214 = vmax.f32 %v5086, 0.0
      %v5215 = vmax.f32 %v5087, 0.0
      %v5216 = vmax.f32 %v5088, 0.0
      %v5217 = vmax.f32 %v5089, 0.0
      %v5218 = vmax.f32 %v5090, 0.0
      %v5219 = vmax.f32 %v5091, 0.0
      %v5220 = vmax.f32 %v5092, 0.0
      %v5221 = vmax.f32 %v5093, 0.0
      %v5222 = vmax.f32 %v5094, 0.0
      %v5223 = vmax.f32 %v5095, 0.0
      %v5224 = vmax.f32 %v5096, 0.0
      %v5225 = vmax.f32 %v5097, 0.0
      %v5226 = vmax.f32 %v5098, 0.0
      %v5227 = vmax.f32 %v5099, 0.0
      %v5228 = vmax.f32 %v5100, 0.0
      %v5229 = vmax.f32 %v5101, 0.0
      %v5230 = vmax.f32 %v5102, 0.0
      %v5231 = vmax.f32 %v5103, 0.0
      %v5232 = vmax.f32 %v5104, 0.0
      %v5233 = vmax.f32 %v5105, 0.0
      %v5234 = vmax.f32 %v5106, 0.0
      %v5235 = vmax.f32 %v5107, 0.0
      %v5236 = vmax.f32 %v5108, 0.0
      %v5237 = vmax.f32 %v5109, 0.0
      %v5238 = vmax.f32 %v5110, 0.0
      %v5239 = vmax.f32 %v5111, 0.0
      %v5240 = vmax.f32 %v5112, 0.0
      %v5241 = vmax.f32 %v5113, 0.0
      %v5242 = vmax.f32 %v5114, 0.0
      %v5243 = vmax.f32 %v5115, 0.0
      %v5244 = vmax.f32 %v5116, 0.0
      %v5245 = vmax.f32 %v5117, 0.0
      %v5246 = vmax.f32 %v5118, 0.0
      %v5247 = vmax.f32 %v5119, 0.0
      %v5248 = vmax.f32 %v5120, 0.0
      %v5249 = vmax.f32 %v5121, 0.0
      %v5250 = vmax.f32 %v5122, 0.0
      %v5251 = vmax.f32 %v5123, 0.0
      %v5252 = vmax.f32 %v5124, 0.0
      %v5253 = vmax.f32 %v5125, 0.0
      %v5254 = vmax.f32 %v5126, 0.0
      %v5255 = vmax.f32 %v5127, 0.0
      %v5256 = vmax.f32 %v5128, 0.0
      %v5257 = vmax.f32 %v5129, 0.0
      %v5258 = vmax.f32 %v5130, 0.0
      %v5259 = vmax.f32 %v5131, 0.0
      %v5260 = vmax.f32 %v5132, 0.0
      %v5261 = vmax.f32 %v5133, 0.0
      %v5262 = vmax.f32 %v5134, 0.0
      %v5263 = vpack.c.bf16 %v5136, %v5135
      %v5264 = vpack.c.bf16 %v5138, %v5137
      %v5265 = vpack.c.bf16 %v5140, %v5139
      %v5266 = vpack.c.bf16 %v5142, %v5141
      %v5267 = vpack.c.bf16 %v5144, %v5143
      %v5268 = vpack.c.bf16 %v5146, %v5145
      %v5269 = vpack.c.bf16 %v5148, %v5147
      %v5270 = vpack.c.bf16 %v5150, %v5149
      %v5271 = vpack.c.bf16 %v5152, %v5151
      %v5272 = vpack.c.bf16 %v5154, %v5153
      %v5273 = vpack.c.bf16 %v5156, %v5155
      %v5274 = vpack.c.bf16 %v5158, %v5157
      %v5275 = vpack.c.bf16 %v5160, %v5159
      %v5276 = vpack.c.bf16 %v5162, %v5161
      %v5277 = vpack.c.bf16 %v5164, %v5163
      %v5278 = vpack.c.bf16 %v5166, %v5165
      %v5279 = vpack.c.bf16 %v5168, %v5167
      %v5280 = vpack.c.bf16 %v5170, %v5169
      %v5281 = vpack.c.bf16 %v5172, %v5171
      %v5282 = vpack.c.bf16 %v5174, %v5173
      %v5283 = vpack.c.bf16 %v5176, %v5175
      %v5284 = vpack.c.bf16 %v5178, %v5177
      %v5285 = vpack.c.bf16 %v5180, %v5179
      %v5286 = vpack.c.bf16 %v5182, %v5181
      %v5287 = vpack.c.bf16 %v5184, %v5183
      %v5288 = vpack.c.bf16 %v5186, %v5185
      %v5289 = vpack.c.bf16 %v5188, %v5187
      %v5290 = vpack.c.bf16 %v5190, %v5189
      %v5291 = vpack.c.bf16 %v5192, %v5191
      %v5292 = vpack.c.bf16 %v5194, %v5193
      %v5293 = vpack.c.bf16 %v5196, %v5195
      %v5294 = vpack.c.bf16 %v5198, %v5197
      %v5295 = vpack.c.bf16 %v5200, %v5199
      %v5296 = vpack.c.bf16 %v5202, %v5201
      %v5297 = vpack.c.bf16 %v5204, %v5203
      %v5298 = vpack.c.bf16 %v5206, %v5205
      %v5299 = vpack.c.bf16 %v5208, %v5207
      %v5300 = vpack.c.bf16 %v5210, %v5209
      %v5301 = vpack.c.bf16 %v5212, %v5211
      %v5302 = vpack.c.bf16 %v5214, %v5213
      %v5303 = vpack.c.bf16 %v5216, %v5215
      %v5304 = vpack.c.bf16 %v5218, %v5217
      %v5305 = vpack.c.bf16 %v5220, %v5219
      %v5306 = vpack.c.bf16 %v5222, %v5221
      %v5307 = vpack.c.bf16 %v5224, %v5223
      %v5308 = vpack.c.bf16 %v5226, %v5225
      %v5309 = vpack.c.bf16 %v5228, %v5227
      %v5310 = vpack.c.bf16 %v5230, %v5229
      %v5311 = vpack.c.bf16 %v5232, %v5231
      %v5312 = vpack.c.bf16 %v5234, %v5233
      %v5313 = vpack.c.bf16 %v5236, %v5235
      %v5314 = vpack.c.bf16 %v5238, %v5237
      %v5315 = vpack.c.bf16 %v5240, %v5239
      %v5316 = vpack.c.bf16 %v5242, %v5241
      %v5317 = vpack.c.bf16 %v5244, %v5243
      %v5318 = vpack.c.bf16 %v5246, %v5245
      %v5319 = vpack.c.bf16 %v5248, %v5247
      %v5320 = vpack.c.bf16 %v5250, %v5249
      %v5321 = vpack.c.bf16 %v5252, %v5251
      %v5322 = vpack.c.bf16 %v5254, %v5253
      %v5323 = vpack.c.bf16 %v5256, %v5255
      %v5324 = vpack.c.bf16 %v5258, %v5257
      %v5325 = vpack.c.bf16 %v5260, %v5259
      %v5326 = vpack.c.bf16 %v5262, %v5261
      %s5327 = scalar_lea.vmem %s4, 64
      %v5328 = vld [vmem:[%s5327] sm:$0xf]
      %v5329 = vld [vmem:[%s5327 + $0x4] sm:$0xf]
      %v5330 = vld [vmem:[%s5327 + $0x8] sm:$0xf]
      %v5331 = vld [vmem:[%s5327 + $0xc] sm:$0xf]
      %v5332 = vld [vmem:[%s5327 + $0x10] sm:$0xf]
      %v5333 = vld [vmem:[%s5327 + $0x14] sm:$0xf]
      %v5334 = vld [vmem:[%s5327 + $0x18] sm:$0xf]
      %v5335 = vld [vmem:[%s5327 + $0x1c] sm:$0xf]
      %v5336 = vld [vmem:[%s5327 + $0x20] sm:$0xf]
      %v5337 = vld [vmem:[%s5327 + $0x24] sm:$0xf]
      %v5338 = vld [vmem:[%s5327 + $0x28] sm:$0xf]
      %v5339 = vld [vmem:[%s5327 + $0x2c] sm:$0xf]
      %v5340 = vld [vmem:[%s5327 + $0x30] sm:$0xf]
      %v5341 = vld [vmem:[%s5327 + $0x34] sm:$0xf]
      %v5342 = vld [vmem:[%s5327 + $0x38] sm:$0xf]
      %v5343 = vld [vmem:[%s5327 + $0x3c] sm:$0xf]
      %v5344 = vperm.slane %v302, 6
      %v5361 = vunpack.c.l.b16 %v5328
      %v5362 = vunpack.c.l.b16 %v5329
      %v5363 = vunpack.c.l.b16 %v5330
      %v5364 = vunpack.c.l.b16 %v5331
      %v5365 = vunpack.c.l.b16 %v5332
      %v5366 = vunpack.c.l.b16 %v5333
      %v5367 = vunpack.c.l.b16 %v5334
      %v5368 = vunpack.c.l.b16 %v5335
      %v5369 = vunpack.c.l.b16 %v5336
      %v5370 = vunpack.c.l.b16 %v5337
      %v5371 = vunpack.c.l.b16 %v5338
      %v5372 = vunpack.c.l.b16 %v5339
      %v5373 = vunpack.c.l.b16 %v5340
      %v5374 = vunpack.c.l.b16 %v5341
      %v5375 = vunpack.c.l.b16 %v5342
      %v5376 = vunpack.c.l.b16 %v5343
      %v5377 = vpack.c.b16 %v5362, %v5361
      %v5378 = vpack.c.b16 %v5364, %v5363
      %v5379 = vpack.c.b16 %v5366, %v5365
      %v5380 = vpack.c.b16 %v5368, %v5367
      %v5381 = vpack.c.b16 %v5370, %v5369
      %v5382 = vpack.c.b16 %v5372, %v5371
      %v5383 = vpack.c.b16 %v5374, %v5373
      %v5384 = vpack.c.b16 %v5376, %v5375
      %5393 = vmatpush.bf16.msra.mxu0 %v5384
      %5394 = vmatpush.bf16.msra.mxu0 %v5383
      %5395 = vmatpush.bf16.msra.mxu0 %v5382
      %5396 = vmatpush.bf16.msra.mxu0 %v5381
      %5397 = vmatpush.bf16.msra.mxu0 %v5380
      %5398 = vmatpush.bf16.msra.mxu0 %v5379
      %5399 = vmatpush.bf16.msra.mxu0 %v5378
      %5400 = vmatpush.bf16.msra.mxu0 %v5377
      %5401 = vmatmul.bf16.gmra.mxu0 %v5263
      %v5402 = vpop.f32.mrf.mxu0
      %v5403 = vadd.f32 %v5344, %v5402
      %v5404 = vpop.f32.mrf.mxu0
      %v5405 = vadd.f32 %v5344, %v5404
      %5406 = vmatmul.bf16.gmra.mxu0 %v5264
      %v5407 = vpop.f32.mrf.mxu0
      %v5408 = vadd.f32 %v5344, %v5407
      %v5409 = vpop.f32.mrf.mxu0
      %v5410 = vadd.f32 %v5344, %v5409
      %5411 = vmatmul.bf16.gmra.mxu0 %v5265
      %v5412 = vpop.f32.mrf.mxu0
      %v5413 = vadd.f32 %v5344, %v5412
      %v5414 = vpop.f32.mrf.mxu0
      %v5415 = vadd.f32 %v5344, %v5414
      %5416 = vmatmul.bf16.gmra.mxu0 %v5266
      %v5417 = vpop.f32.mrf.mxu0
      %v5418 = vadd.f32 %v5344, %v5417
      %v5419 = vpop.f32.mrf.mxu0
      %v5420 = vadd.f32 %v5344, %v5419
      %5421 = vmatmul.bf16.gmra.mxu0 %v5267
      %v5422 = vpop.f32.mrf.mxu0
      %v5423 = vadd.f32 %v5344, %v5422
      %v5424 = vpop.f32.mrf.mxu0
      %v5425 = vadd.f32 %v5344, %v5424
      %5426 = vmatmul.bf16.gmra.mxu0 %v5268
      %v5427 = vpop.f32.mrf.mxu0
      %v5428 = vadd.f32 %v5344, %v5427
      %v5429 = vpop.f32.mrf.mxu0
      %v5430 = vadd.f32 %v5344, %v5429
      %5431 = vmatmul.bf16.gmra.mxu0 %v5269
      %v5432 = vpop.f32.mrf.mxu0
      %v5433 = vadd.f32 %v5344, %v5432
      %v5434 = vpop.f32.mrf.mxu0
      %v5435 = vadd.f32 %v5344, %v5434
      %5436 = vmatmul.bf16.gmra.mxu0 %v5270
      %v5437 = vpop.f32.mrf.mxu0
      %v5438 = vadd.f32 %v5344, %v5437
      %v5439 = vpop.f32.mrf.mxu0
      %v5440 = vadd.f32 %v5344, %v5439
      %5441 = vmatmul.bf16.gmra.mxu0 %v5271
      %v5442 = vpop.f32.mrf.mxu0
      %v5443 = vadd.f32 %v5344, %v5442
      %v5444 = vpop.f32.mrf.mxu0
      %v5445 = vadd.f32 %v5344, %v5444
      %5446 = vmatmul.bf16.gmra.mxu0 %v5272
      %v5447 = vpop.f32.mrf.mxu0
      %v5448 = vadd.f32 %v5344, %v5447
      %v5449 = vpop.f32.mrf.mxu0
      %v5450 = vadd.f32 %v5344, %v5449
      %5451 = vmatmul.bf16.gmra.mxu0 %v5273
      %v5452 = vpop.f32.mrf.mxu0
      %v5453 = vadd.f32 %v5344, %v5452
      %v5454 = vpop.f32.mrf.mxu0
      %v5455 = vadd.f32 %v5344, %v5454
      %5456 = vmatmul.bf16.gmra.mxu0 %v5274
      %v5457 = vpop.f32.mrf.mxu0
      %v5458 = vadd.f32 %v5344, %v5457
      %v5459 = vpop.f32.mrf.mxu0
      %v5460 = vadd.f32 %v5344, %v5459
      %5461 = vmatmul.bf16.gmra.mxu0 %v5275
      %v5462 = vpop.f32.mrf.mxu0
      %v5463 = vadd.f32 %v5344, %v5462
      %v5464 = vpop.f32.mrf.mxu0
      %v5465 = vadd.f32 %v5344, %v5464
      %5466 = vmatmul.bf16.gmra.mxu0 %v5276
      %v5467 = vpop.f32.mrf.mxu0
      %v5468 = vadd.f32 %v5344, %v5467
      %v5469 = vpop.f32.mrf.mxu0
      %v5470 = vadd.f32 %v5344, %v5469
      %5471 = vmatmul.bf16.gmra.mxu0 %v5277
      %v5472 = vpop.f32.mrf.mxu0
      %v5473 = vadd.f32 %v5344, %v5472
      %v5474 = vpop.f32.mrf.mxu0
      %v5475 = vadd.f32 %v5344, %v5474
      %5476 = vmatmul.bf16.gmra.mxu0 %v5278
      %v5477 = vpop.f32.mrf.mxu0
      %v5478 = vadd.f32 %v5344, %v5477
      %v5479 = vpop.f32.mrf.mxu0
      %v5480 = vadd.f32 %v5344, %v5479
      %5481 = vmatmul.bf16.gmra.mxu0 %v5279
      %v5482 = vpop.f32.mrf.mxu0
      %v5483 = vadd.f32 %v5344, %v5482
      %v5484 = vpop.f32.mrf.mxu0
      %v5485 = vadd.f32 %v5344, %v5484
      %5486 = vmatmul.bf16.gmra.mxu0 %v5280
      %v5487 = vpop.f32.mrf.mxu0
      %v5488 = vadd.f32 %v5344, %v5487
      %v5489 = vpop.f32.mrf.mxu0
      %v5490 = vadd.f32 %v5344, %v5489
      %5491 = vmatmul.bf16.gmra.mxu0 %v5281
      %v5492 = vpop.f32.mrf.mxu0
      %v5493 = vadd.f32 %v5344, %v5492
      %v5494 = vpop.f32.mrf.mxu0
      %v5495 = vadd.f32 %v5344, %v5494
      %5496 = vmatmul.bf16.gmra.mxu0 %v5282
      %v5497 = vpop.f32.mrf.mxu0
      %v5498 = vadd.f32 %v5344, %v5497
      %v5499 = vpop.f32.mrf.mxu0
      %v5500 = vadd.f32 %v5344, %v5499
      %5501 = vmatmul.bf16.gmra.mxu0 %v5283
      %v5502 = vpop.f32.mrf.mxu0
      %v5503 = vadd.f32 %v5344, %v5502
      %v5504 = vpop.f32.mrf.mxu0
      %v5505 = vadd.f32 %v5344, %v5504
      %5506 = vmatmul.bf16.gmra.mxu0 %v5284
      %v5507 = vpop.f32.mrf.mxu0
      %v5508 = vadd.f32 %v5344, %v5507
      %v5509 = vpop.f32.mrf.mxu0
      %v5510 = vadd.f32 %v5344, %v5509
      %5511 = vmatmul.bf16.gmra.mxu0 %v5285
      %v5512 = vpop.f32.mrf.mxu0
      %v5513 = vadd.f32 %v5344, %v5512
      %v5514 = vpop.f32.mrf.mxu0
      %v5515 = vadd.f32 %v5344, %v5514
      %5516 = vmatmul.bf16.gmra.mxu0 %v5286
      %v5517 = vpop.f32.mrf.mxu0
      %v5518 = vadd.f32 %v5344, %v5517
      %v5519 = vpop.f32.mrf.mxu0
      %v5520 = vadd.f32 %v5344, %v5519
      %5521 = vmatmul.bf16.gmra.mxu0 %v5287
      %v5522 = vpop.f32.mrf.mxu0
      %v5523 = vadd.f32 %v5344, %v5522
      %v5524 = vpop.f32.mrf.mxu0
      %v5525 = vadd.f32 %v5344, %v5524
      %5526 = vmatmul.bf16.gmra.mxu0 %v5288
      %v5527 = vpop.f32.mrf.mxu0
      %v5528 = vadd.f32 %v5344, %v5527
      %v5529 = vpop.f32.mrf.mxu0
      %v5530 = vadd.f32 %v5344, %v5529
      %5531 = vmatmul.bf16.gmra.mxu0 %v5289
      %v5532 = vpop.f32.mrf.mxu0
      %v5533 = vadd.f32 %v5344, %v5532
      %v5534 = vpop.f32.mrf.mxu0
      %v5535 = vadd.f32 %v5344, %v5534
      %5536 = vmatmul.bf16.gmra.mxu0 %v5290
      %v5537 = vpop.f32.mrf.mxu0
      %v5538 = vadd.f32 %v5344, %v5537
      %v5539 = vpop.f32.mrf.mxu0
      %v5540 = vadd.f32 %v5344, %v5539
      %5541 = vmatmul.bf16.gmra.mxu0 %v5291
      %v5542 = vpop.f32.mrf.mxu0
      %v5543 = vadd.f32 %v5344, %v5542
      %v5544 = vpop.f32.mrf.mxu0
      %v5545 = vadd.f32 %v5344, %v5544
      %5546 = vmatmul.bf16.gmra.mxu0 %v5292
      %v5547 = vpop.f32.mrf.mxu0
      %v5548 = vadd.f32 %v5344, %v5547
      %v5549 = vpop.f32.mrf.mxu0
      %v5550 = vadd.f32 %v5344, %v5549
      %5551 = vmatmul.bf16.gmra.mxu0 %v5293
      %v5552 = vpop.f32.mrf.mxu0
      %v5553 = vadd.f32 %v5344, %v5552
      %v5554 = vpop.f32.mrf.mxu0
      %v5555 = vadd.f32 %v5344, %v5554
      %5556 = vmatmul.bf16.gmra.mxu0 %v5294
      %v5557 = vpop.f32.mrf.mxu0
      %v5558 = vadd.f32 %v5344, %v5557
      %v5559 = vpop.f32.mrf.mxu0
      %v5560 = vadd.f32 %v5344, %v5559
      %5561 = vmatmul.bf16.gmra.mxu0 %v5295
      %v5562 = vpop.f32.mrf.mxu0
      %v5563 = vadd.f32 %v5344, %v5562
      %v5564 = vpop.f32.mrf.mxu0
      %v5565 = vadd.f32 %v5344, %v5564
      %5566 = vmatmul.bf16.gmra.mxu0 %v5296
      %v5567 = vpop.f32.mrf.mxu0
      %v5568 = vadd.f32 %v5344, %v5567
      %v5569 = vpop.f32.mrf.mxu0
      %v5570 = vadd.f32 %v5344, %v5569
      %5571 = vmatmul.bf16.gmra.mxu0 %v5297
      %v5572 = vpop.f32.mrf.mxu0
      %v5573 = vadd.f32 %v5344, %v5572
      %v5574 = vpop.f32.mrf.mxu0
      %v5575 = vadd.f32 %v5344, %v5574
      %5576 = vmatmul.bf16.gmra.mxu0 %v5298
      %v5577 = vpop.f32.mrf.mxu0
      %v5578 = vadd.f32 %v5344, %v5577
      %v5579 = vpop.f32.mrf.mxu0
      %v5580 = vadd.f32 %v5344, %v5579
      %5581 = vmatmul.bf16.gmra.mxu0 %v5299
      %v5582 = vpop.f32.mrf.mxu0
      %v5583 = vadd.f32 %v5344, %v5582
      %v5584 = vpop.f32.mrf.mxu0
      %v5585 = vadd.f32 %v5344, %v5584
      %5586 = vmatmul.bf16.gmra.mxu0 %v5300
      %v5587 = vpop.f32.mrf.mxu0
      %v5588 = vadd.f32 %v5344, %v5587
      %v5589 = vpop.f32.mrf.mxu0
      %v5590 = vadd.f32 %v5344, %v5589
      %5591 = vmatmul.bf16.gmra.mxu0 %v5301
      %v5592 = vpop.f32.mrf.mxu0
      %v5593 = vadd.f32 %v5344, %v5592
      %v5594 = vpop.f32.mrf.mxu0
      %v5595 = vadd.f32 %v5344, %v5594
      %5596 = vmatmul.bf16.gmra.mxu0 %v5302
      %v5597 = vpop.f32.mrf.mxu0
      %v5598 = vadd.f32 %v5344, %v5597
      %v5599 = vpop.f32.mrf.mxu0
      %v5600 = vadd.f32 %v5344, %v5599
      %5601 = vmatmul.bf16.gmra.mxu0 %v5303
      %v5602 = vpop.f32.mrf.mxu0
      %v5603 = vadd.f32 %v5344, %v5602
      %v5604 = vpop.f32.mrf.mxu0
      %v5605 = vadd.f32 %v5344, %v5604
      %5606 = vmatmul.bf16.gmra.mxu0 %v5304
      %v5607 = vpop.f32.mrf.mxu0
      %v5608 = vadd.f32 %v5344, %v5607
      %v5609 = vpop.f32.mrf.mxu0
      %v5610 = vadd.f32 %v5344, %v5609
      %5611 = vmatmul.bf16.gmra.mxu0 %v5305
      %v5612 = vpop.f32.mrf.mxu0
      %v5613 = vadd.f32 %v5344, %v5612
      %v5614 = vpop.f32.mrf.mxu0
      %v5615 = vadd.f32 %v5344, %v5614
      %5616 = vmatmul.bf16.gmra.mxu0 %v5306
      %v5617 = vpop.f32.mrf.mxu0
      %v5618 = vadd.f32 %v5344, %v5617
      %v5619 = vpop.f32.mrf.mxu0
      %v5620 = vadd.f32 %v5344, %v5619
      %5621 = vmatmul.bf16.gmra.mxu0 %v5307
      %v5622 = vpop.f32.mrf.mxu0
      %v5623 = vadd.f32 %v5344, %v5622
      %v5624 = vpop.f32.mrf.mxu0
      %v5625 = vadd.f32 %v5344, %v5624
      %5626 = vmatmul.bf16.gmra.mxu0 %v5308
      %v5627 = vpop.f32.mrf.mxu0
      %v5628 = vadd.f32 %v5344, %v5627
      %v5629 = vpop.f32.mrf.mxu0
      %v5630 = vadd.f32 %v5344, %v5629
      %5631 = vmatmul.bf16.gmra.mxu0 %v5309
      %v5632 = vpop.f32.mrf.mxu0
      %v5633 = vadd.f32 %v5344, %v5632
      %v5634 = vpop.f32.mrf.mxu0
      %v5635 = vadd.f32 %v5344, %v5634
      %5636 = vmatmul.bf16.gmra.mxu0 %v5310
      %v5637 = vpop.f32.mrf.mxu0
      %v5638 = vadd.f32 %v5344, %v5637
      %v5639 = vpop.f32.mrf.mxu0
      %v5640 = vadd.f32 %v5344, %v5639
      %5641 = vmatmul.bf16.gmra.mxu0 %v5311
      %v5642 = vpop.f32.mrf.mxu0
      %v5643 = vadd.f32 %v5344, %v5642
      %v5644 = vpop.f32.mrf.mxu0
      %v5645 = vadd.f32 %v5344, %v5644
      %5646 = vmatmul.bf16.gmra.mxu0 %v5312
      %v5647 = vpop.f32.mrf.mxu0
      %v5648 = vadd.f32 %v5344, %v5647
      %v5649 = vpop.f32.mrf.mxu0
      %v5650 = vadd.f32 %v5344, %v5649
      %5651 = vmatmul.bf16.gmra.mxu0 %v5313
      %v5652 = vpop.f32.mrf.mxu0
      %v5653 = vadd.f32 %v5344, %v5652
      %v5654 = vpop.f32.mrf.mxu0
      %v5655 = vadd.f32 %v5344, %v5654
      %5656 = vmatmul.bf16.gmra.mxu0 %v5314
      %v5657 = vpop.f32.mrf.mxu0
      %v5658 = vadd.f32 %v5344, %v5657
      %v5659 = vpop.f32.mrf.mxu0
      %v5660 = vadd.f32 %v5344, %v5659
      %5661 = vmatmul.bf16.gmra.mxu0 %v5315
      %v5662 = vpop.f32.mrf.mxu0
      %v5663 = vadd.f32 %v5344, %v5662
      %v5664 = vpop.f32.mrf.mxu0
      %v5665 = vadd.f32 %v5344, %v5664
      %5666 = vmatmul.bf16.gmra.mxu0 %v5316
      %v5667 = vpop.f32.mrf.mxu0
      %v5668 = vadd.f32 %v5344, %v5667
      %v5669 = vpop.f32.mrf.mxu0
      %v5670 = vadd.f32 %v5344, %v5669
      %5671 = vmatmul.bf16.gmra.mxu0 %v5317
      %v5672 = vpop.f32.mrf.mxu0
      %v5673 = vadd.f32 %v5344, %v5672
      %v5674 = vpop.f32.mrf.mxu0
      %v5675 = vadd.f32 %v5344, %v5674
      %5676 = vmatmul.bf16.gmra.mxu0 %v5318
      %v5677 = vpop.f32.mrf.mxu0
      %v5678 = vadd.f32 %v5344, %v5677
      %v5679 = vpop.f32.mrf.mxu0
      %v5680 = vadd.f32 %v5344, %v5679
      %5681 = vmatmul.bf16.gmra.mxu0 %v5319
      %v5682 = vpop.f32.mrf.mxu0
      %v5683 = vadd.f32 %v5344, %v5682
      %v5684 = vpop.f32.mrf.mxu0
      %v5685 = vadd.f32 %v5344, %v5684
      %5686 = vmatmul.bf16.gmra.mxu0 %v5320
      %v5687 = vpop.f32.mrf.mxu0
      %v5688 = vadd.f32 %v5344, %v5687
      %v5689 = vpop.f32.mrf.mxu0
      %v5690 = vadd.f32 %v5344, %v5689
      %5691 = vmatmul.bf16.gmra.mxu0 %v5321
      %v5692 = vpop.f32.mrf.mxu0
      %v5693 = vadd.f32 %v5344, %v5692
      %v5694 = vpop.f32.mrf.mxu0
      %v5695 = vadd.f32 %v5344, %v5694
      %5696 = vmatmul.bf16.gmra.mxu0 %v5322
      %v5697 = vpop.f32.mrf.mxu0
      %v5698 = vadd.f32 %v5344, %v5697
      %v5699 = vpop.f32.mrf.mxu0
      %v5700 = vadd.f32 %v5344, %v5699
      %5701 = vmatmul.bf16.gmra.mxu0 %v5323
      %v5702 = vpop.f32.mrf.mxu0
      %v5703 = vadd.f32 %v5344, %v5702
      %v5704 = vpop.f32.mrf.mxu0
      %v5705 = vadd.f32 %v5344, %v5704
      %5706 = vmatmul.bf16.gmra.mxu0 %v5324
      %v5707 = vpop.f32.mrf.mxu0
      %v5708 = vadd.f32 %v5344, %v5707
      %v5709 = vpop.f32.mrf.mxu0
      %v5710 = vadd.f32 %v5344, %v5709
      %5711 = vmatmul.bf16.gmra.mxu0 %v5325
      %v5712 = vpop.f32.mrf.mxu0
      %v5713 = vadd.f32 %v5344, %v5712
      %v5714 = vpop.f32.mrf.mxu0
      %v5715 = vadd.f32 %v5344, %v5714
      %5716 = vmatmul.bf16.gmra.mxu0 %v5326
      %v5717 = vpop.f32.mrf.mxu0
      %v5718 = vadd.f32 %v5344, %v5717
      %v5719 = vpop.f32.mrf.mxu0
      %v5720 = vadd.f32 %v5344, %v5719
      %5721 = vdwg.mxu0
      %v5722 = vmax.f32 %v5403, 0.0
      %v5723 = vmax.f32 %v5405, 0.0
      %v5724 = vmax.f32 %v5408, 0.0
      %v5725 = vmax.f32 %v5410, 0.0
      %v5726 = vmax.f32 %v5413, 0.0
      %v5727 = vmax.f32 %v5415, 0.0
      %v5728 = vmax.f32 %v5418, 0.0
      %v5729 = vmax.f32 %v5420, 0.0
      %v5730 = vmax.f32 %v5423, 0.0
      %v5731 = vmax.f32 %v5425, 0.0
      %v5732 = vmax.f32 %v5428, 0.0
      %v5733 = vmax.f32 %v5430, 0.0
      %v5734 = vmax.f32 %v5433, 0.0
      %v5735 = vmax.f32 %v5435, 0.0
      %v5736 = vmax.f32 %v5438, 0.0
      %v5737 = vmax.f32 %v5440, 0.0
      %v5738 = vmax.f32 %v5443, 0.0
      %v5739 = vmax.f32 %v5445, 0.0
      %v5740 = vmax.f32 %v5448, 0.0
      %v5741 = vmax.f32 %v5450, 0.0
      %v5742 = vmax.f32 %v5453, 0.0
      %v5743 = vmax.f32 %v5455, 0.0
      %v5744 = vmax.f32 %v5458, 0.0
      %v5745 = vmax.f32 %v5460, 0.0
      %v5746 = vmax.f32 %v5463, 0.0
      %v5747 = vmax.f32 %v5465, 0.0
      %v5748 = vmax.f32 %v5468, 0.0
      %v5749 = vmax.f32 %v5470, 0.0
      %v5750 = vmax.f32 %v5473, 0.0
      %v5751 = vmax.f32 %v5475, 0.0
      %v5752 = vmax.f32 %v5478, 0.0
      %v5753 = vmax.f32 %v5480, 0.0
      %v5754 = vmax.f32 %v5483, 0.0
      %v5755 = vmax.f32 %v5485, 0.0
      %v5756 = vmax.f32 %v5488, 0.0
      %v5757 = vmax.f32 %v5490, 0.0
      %v5758 = vmax.f32 %v5493, 0.0
      %v5759 = vmax.f32 %v5495, 0.0
      %v5760 = vmax.f32 %v5498, 0.0
      %v5761 = vmax.f32 %v5500, 0.0
      %v5762 = vmax.f32 %v5503, 0.0
      %v5763 = vmax.f32 %v5505, 0.0
      %v5764 = vmax.f32 %v5508, 0.0
      %v5765 = vmax.f32 %v5510, 0.0
      %v5766 = vmax.f32 %v5513, 0.0
      %v5767 = vmax.f32 %v5515, 0.0
      %v5768 = vmax.f32 %v5518, 0.0
      %v5769 = vmax.f32 %v5520, 0.0
      %v5770 = vmax.f32 %v5523, 0.0
      %v5771 = vmax.f32 %v5525, 0.0
      %v5772 = vmax.f32 %v5528, 0.0
      %v5773 = vmax.f32 %v5530, 0.0
      %v5774 = vmax.f32 %v5533, 0.0
      %v5775 = vmax.f32 %v5535, 0.0
      %v5776 = vmax.f32 %v5538, 0.0
      %v5777 = vmax.f32 %v5540, 0.0
      %v5778 = vmax.f32 %v5543, 0.0
      %v5779 = vmax.f32 %v5545, 0.0
      %v5780 = vmax.f32 %v5548, 0.0
      %v5781 = vmax.f32 %v5550, 0.0
      %v5782 = vmax.f32 %v5553, 0.0
      %v5783 = vmax.f32 %v5555, 0.0
      %v5784 = vmax.f32 %v5558, 0.0
      %v5785 = vmax.f32 %v5560, 0.0
      %v5786 = vmax.f32 %v5563, 0.0
      %v5787 = vmax.f32 %v5565, 0.0
      %v5788 = vmax.f32 %v5568, 0.0
      %v5789 = vmax.f32 %v5570, 0.0
      %v5790 = vmax.f32 %v5573, 0.0
      %v5791 = vmax.f32 %v5575, 0.0
      %v5792 = vmax.f32 %v5578, 0.0
      %v5793 = vmax.f32 %v5580, 0.0
      %v5794 = vmax.f32 %v5583, 0.0
      %v5795 = vmax.f32 %v5585, 0.0
      %v5796 = vmax.f32 %v5588, 0.0
      %v5797 = vmax.f32 %v5590, 0.0
      %v5798 = vmax.f32 %v5593, 0.0
      %v5799 = vmax.f32 %v5595, 0.0
      %v5800 = vmax.f32 %v5598, 0.0
      %v5801 = vmax.f32 %v5600, 0.0
      %v5802 = vmax.f32 %v5603, 0.0
      %v5803 = vmax.f32 %v5605, 0.0
      %v5804 = vmax.f32 %v5608, 0.0
      %v5805 = vmax.f32 %v5610, 0.0
      %v5806 = vmax.f32 %v5613, 0.0
      %v5807 = vmax.f32 %v5615, 0.0
      %v5808 = vmax.f32 %v5618, 0.0
      %v5809 = vmax.f32 %v5620, 0.0
      %v5810 = vmax.f32 %v5623, 0.0
      %v5811 = vmax.f32 %v5625, 0.0
      %v5812 = vmax.f32 %v5628, 0.0
      %v5813 = vmax.f32 %v5630, 0.0
      %v5814 = vmax.f32 %v5633, 0.0
      %v5815 = vmax.f32 %v5635, 0.0
      %v5816 = vmax.f32 %v5638, 0.0
      %v5817 = vmax.f32 %v5640, 0.0
      %v5818 = vmax.f32 %v5643, 0.0
      %v5819 = vmax.f32 %v5645, 0.0
      %v5820 = vmax.f32 %v5648, 0.0
      %v5821 = vmax.f32 %v5650, 0.0
      %v5822 = vmax.f32 %v5653, 0.0
      %v5823 = vmax.f32 %v5655, 0.0
      %v5824 = vmax.f32 %v5658, 0.0
      %v5825 = vmax.f32 %v5660, 0.0
      %v5826 = vmax.f32 %v5663, 0.0
      %v5827 = vmax.f32 %v5665, 0.0
      %v5828 = vmax.f32 %v5668, 0.0
      %v5829 = vmax.f32 %v5670, 0.0
      %v5830 = vmax.f32 %v5673, 0.0
      %v5831 = vmax.f32 %v5675, 0.0
      %v5832 = vmax.f32 %v5678, 0.0
      %v5833 = vmax.f32 %v5680, 0.0
      %v5834 = vmax.f32 %v5683, 0.0
      %v5835 = vmax.f32 %v5685, 0.0
      %v5836 = vmax.f32 %v5688, 0.0
      %v5837 = vmax.f32 %v5690, 0.0
      %v5838 = vmax.f32 %v5693, 0.0
      %v5839 = vmax.f32 %v5695, 0.0
      %v5840 = vmax.f32 %v5698, 0.0
      %v5841 = vmax.f32 %v5700, 0.0
      %v5842 = vmax.f32 %v5703, 0.0
      %v5843 = vmax.f32 %v5705, 0.0
      %v5844 = vmax.f32 %v5708, 0.0
      %v5845 = vmax.f32 %v5710, 0.0
      %v5846 = vmax.f32 %v5713, 0.0
      %v5847 = vmax.f32 %v5715, 0.0
      %v5848 = vmax.f32 %v5718, 0.0
      %v5849 = vmax.f32 %v5720, 0.0
      %v5850 = vpack.c.bf16 %v5723, %v5722
      %v5851 = vpack.c.bf16 %v5725, %v5724
      %v5852 = vpack.c.bf16 %v5727, %v5726
      %v5853 = vpack.c.bf16 %v5729, %v5728
      %v5854 = vpack.c.bf16 %v5731, %v5730
      %v5855 = vpack.c.bf16 %v5733, %v5732
      %v5856 = vpack.c.bf16 %v5735, %v5734
      %v5857 = vpack.c.bf16 %v5737, %v5736
      %v5858 = vpack.c.bf16 %v5739, %v5738
      %v5859 = vpack.c.bf16 %v5741, %v5740
      %v5860 = vpack.c.bf16 %v5743, %v5742
      %v5861 = vpack.c.bf16 %v5745, %v5744
      %v5862 = vpack.c.bf16 %v5747, %v5746
      %v5863 = vpack.c.bf16 %v5749, %v5748
      %v5864 = vpack.c.bf16 %v5751, %v5750
      %v5865 = vpack.c.bf16 %v5753, %v5752
      %v5866 = vpack.c.bf16 %v5755, %v5754
      %v5867 = vpack.c.bf16 %v5757, %v5756
      %v5868 = vpack.c.bf16 %v5759, %v5758
      %v5869 = vpack.c.bf16 %v5761, %v5760
      %v5870 = vpack.c.bf16 %v5763, %v5762
      %v5871 = vpack.c.bf16 %v5765, %v5764
      %v5872 = vpack.c.bf16 %v5767, %v5766
      %v5873 = vpack.c.bf16 %v5769, %v5768
      %v5874 = vpack.c.bf16 %v5771, %v5770
      %v5875 = vpack.c.bf16 %v5773, %v5772
      %v5876 = vpack.c.bf16 %v5775, %v5774
      %v5877 = vpack.c.bf16 %v5777, %v5776
      %v5878 = vpack.c.bf16 %v5779, %v5778
      %v5879 = vpack.c.bf16 %v5781, %v5780
      %v5880 = vpack.c.bf16 %v5783, %v5782
      %v5881 = vpack.c.bf16 %v5785, %v5784
      %v5882 = vpack.c.bf16 %v5787, %v5786
      %v5883 = vpack.c.bf16 %v5789, %v5788
      %v5884 = vpack.c.bf16 %v5791, %v5790
      %v5885 = vpack.c.bf16 %v5793, %v5792
      %v5886 = vpack.c.bf16 %v5795, %v5794
      %v5887 = vpack.c.bf16 %v5797, %v5796
      %v5888 = vpack.c.bf16 %v5799, %v5798
      %v5889 = vpack.c.bf16 %v5801, %v5800
      %v5890 = vpack.c.bf16 %v5803, %v5802
      %v5891 = vpack.c.bf16 %v5805, %v5804
      %v5892 = vpack.c.bf16 %v5807, %v5806
      %v5893 = vpack.c.bf16 %v5809, %v5808
      %v5894 = vpack.c.bf16 %v5811, %v5810
      %v5895 = vpack.c.bf16 %v5813, %v5812
      %v5896 = vpack.c.bf16 %v5815, %v5814
      %v5897 = vpack.c.bf16 %v5817, %v5816
      %v5898 = vpack.c.bf16 %v5819, %v5818
      %v5899 = vpack.c.bf16 %v5821, %v5820
      %v5900 = vpack.c.bf16 %v5823, %v5822
      %v5901 = vpack.c.bf16 %v5825, %v5824
      %v5902 = vpack.c.bf16 %v5827, %v5826
      %v5903 = vpack.c.bf16 %v5829, %v5828
      %v5904 = vpack.c.bf16 %v5831, %v5830
      %v5905 = vpack.c.bf16 %v5833, %v5832
      %v5906 = vpack.c.bf16 %v5835, %v5834
      %v5907 = vpack.c.bf16 %v5837, %v5836
      %v5908 = vpack.c.bf16 %v5839, %v5838
      %v5909 = vpack.c.bf16 %v5841, %v5840
      %v5910 = vpack.c.bf16 %v5843, %v5842
      %v5911 = vpack.c.bf16 %v5845, %v5844
      %v5912 = vpack.c.bf16 %v5847, %v5846
      %v5913 = vpack.c.bf16 %v5849, %v5848
      %s5914 = scalar_lea.vmem %s5, 64
      %v5915 = vld [vmem:[%s5914] sm:$0xf]
      %v5916 = vld [vmem:[%s5914 + $0x4] sm:$0xf]
      %v5917 = vld [vmem:[%s5914 + $0x8] sm:$0xf]
      %v5918 = vld [vmem:[%s5914 + $0xc] sm:$0xf]
      %v5919 = vld [vmem:[%s5914 + $0x10] sm:$0xf]
      %v5920 = vld [vmem:[%s5914 + $0x14] sm:$0xf]
      %v5921 = vld [vmem:[%s5914 + $0x18] sm:$0xf]
      %v5922 = vld [vmem:[%s5914 + $0x1c] sm:$0xf]
      %v5923 = vld [vmem:[%s5914 + $0x20] sm:$0xf]
      %v5924 = vld [vmem:[%s5914 + $0x24] sm:$0xf]
      %v5925 = vld [vmem:[%s5914 + $0x28] sm:$0xf]
      %v5926 = vld [vmem:[%s5914 + $0x2c] sm:$0xf]
      %v5927 = vld [vmem:[%s5914 + $0x30] sm:$0xf]
      %v5928 = vld [vmem:[%s5914 + $0x34] sm:$0xf]
      %v5929 = vld [vmem:[%s5914 + $0x38] sm:$0xf]
      %v5930 = vld [vmem:[%s5914 + $0x3c] sm:$0xf]
      %v5931 = vperm.slane %v303, 2
      %v5948 = vunpack.c.l.b16 %v5915
      %v5949 = vunpack.c.l.b16 %v5916
      %v5950 = vunpack.c.l.b16 %v5917
      %v5951 = vunpack.c.l.b16 %v5918
      %v5952 = vunpack.c.l.b16 %v5919
      %v5953 = vunpack.c.l.b16 %v5920
      %v5954 = vunpack.c.l.b16 %v5921
      %v5955 = vunpack.c.l.b16 %v5922
      %v5956 = vunpack.c.l.b16 %v5923
      %v5957 = vunpack.c.l.b16 %v5924
      %v5958 = vunpack.c.l.b16 %v5925
      %v5959 = vunpack.c.l.b16 %v5926
      %v5960 = vunpack.c.l.b16 %v5927
      %v5961 = vunpack.c.l.b16 %v5928
      %v5962 = vunpack.c.l.b16 %v5929
      %v5963 = vunpack.c.l.b16 %v5930
      %v5964 = vpack.c.b16 %v5949, %v5948
      %v5965 = vpack.c.b16 %v5951, %v5950
      %v5966 = vpack.c.b16 %v5953, %v5952
      %v5967 = vpack.c.b16 %v5955, %v5954
      %v5968 = vpack.c.b16 %v5957, %v5956
      %v5969 = vpack.c.b16 %v5959, %v5958
      %v5970 = vpack.c.b16 %v5961, %v5960
      %v5971 = vpack.c.b16 %v5963, %v5962
      %5980 = vmatpush.bf16.msra.mxu0 %v5971
      %5981 = vmatpush.bf16.msra.mxu0 %v5970
      %5982 = vmatpush.bf16.msra.mxu0 %v5969
      %5983 = vmatpush.bf16.msra.mxu0 %v5968
      %5984 = vmatpush.bf16.msra.mxu0 %v5967
      %5985 = vmatpush.bf16.msra.mxu0 %v5966
      %5986 = vmatpush.bf16.msra.mxu0 %v5965
      %5987 = vmatpush.bf16.msra.mxu0 %v5964
      %5988 = vmatmul.bf16.gmra.mxu0 %v5850
      %v5989 = vpop.f32.mrf.mxu0
      %v5990 = vadd.f32 %v5931, %v5989
      %v5991 = vpop.f32.mrf.mxu0
      %v5992 = vadd.f32 %v5931, %v5991
      %5993 = vmatmul.bf16.gmra.mxu0 %v5851
      %v5994 = vpop.f32.mrf.mxu0
      %v5995 = vadd.f32 %v5931, %v5994
      %v5996 = vpop.f32.mrf.mxu0
      %v5997 = vadd.f32 %v5931, %v5996
      %5998 = vmatmul.bf16.gmra.mxu0 %v5852
      %v5999 = vpop.f32.mrf.mxu0
      %v6000 = vadd.f32 %v5931, %v5999
      %v6001 = vpop.f32.mrf.mxu0
      %v6002 = vadd.f32 %v5931, %v6001
      %6003 = vmatmul.bf16.gmra.mxu0 %v5853
      %v6004 = vpop.f32.mrf.mxu0
      %v6005 = vadd.f32 %v5931, %v6004
      %v6006 = vpop.f32.mrf.mxu0
      %v6007 = vadd.f32 %v5931, %v6006
      %6008 = vmatmul.bf16.gmra.mxu0 %v5854
      %v6009 = vpop.f32.mrf.mxu0
      %v6010 = vadd.f32 %v5931, %v6009
      %v6011 = vpop.f32.mrf.mxu0
      %v6012 = vadd.f32 %v5931, %v6011
      %6013 = vmatmul.bf16.gmra.mxu0 %v5855
      %v6014 = vpop.f32.mrf.mxu0
      %v6015 = vadd.f32 %v5931, %v6014
      %v6016 = vpop.f32.mrf.mxu0
      %v6017 = vadd.f32 %v5931, %v6016
      %6018 = vmatmul.bf16.gmra.mxu0 %v5856
      %v6019 = vpop.f32.mrf.mxu0
      %v6020 = vadd.f32 %v5931, %v6019
      %v6021 = vpop.f32.mrf.mxu0
      %v6022 = vadd.f32 %v5931, %v6021
      %6023 = vmatmul.bf16.gmra.mxu0 %v5857
      %v6024 = vpop.f32.mrf.mxu0
      %v6025 = vadd.f32 %v5931, %v6024
      %v6026 = vpop.f32.mrf.mxu0
      %v6027 = vadd.f32 %v5931, %v6026
      %6028 = vmatmul.bf16.gmra.mxu0 %v5858
      %v6029 = vpop.f32.mrf.mxu0
      %v6030 = vadd.f32 %v5931, %v6029
      %v6031 = vpop.f32.mrf.mxu0
      %v6032 = vadd.f32 %v5931, %v6031
      %6033 = vmatmul.bf16.gmra.mxu0 %v5859
      %v6034 = vpop.f32.mrf.mxu0
      %v6035 = vadd.f32 %v5931, %v6034
      %v6036 = vpop.f32.mrf.mxu0
      %v6037 = vadd.f32 %v5931, %v6036
      %6038 = vmatmul.bf16.gmra.mxu0 %v5860
      %v6039 = vpop.f32.mrf.mxu0
      %v6040 = vadd.f32 %v5931, %v6039
      %v6041 = vpop.f32.mrf.mxu0
      %v6042 = vadd.f32 %v5931, %v6041
      %6043 = vmatmul.bf16.gmra.mxu0 %v5861
      %v6044 = vpop.f32.mrf.mxu0
      %v6045 = vadd.f32 %v5931, %v6044
      %v6046 = vpop.f32.mrf.mxu0
      %v6047 = vadd.f32 %v5931, %v6046
      %6048 = vmatmul.bf16.gmra.mxu0 %v5862
      %v6049 = vpop.f32.mrf.mxu0
      %v6050 = vadd.f32 %v5931, %v6049
      %v6051 = vpop.f32.mrf.mxu0
      %v6052 = vadd.f32 %v5931, %v6051
      %6053 = vmatmul.bf16.gmra.mxu0 %v5863
      %v6054 = vpop.f32.mrf.mxu0
      %v6055 = vadd.f32 %v5931, %v6054
      %v6056 = vpop.f32.mrf.mxu0
      %v6057 = vadd.f32 %v5931, %v6056
      %6058 = vmatmul.bf16.gmra.mxu0 %v5864
      %v6059 = vpop.f32.mrf.mxu0
      %v6060 = vadd.f32 %v5931, %v6059
      %v6061 = vpop.f32.mrf.mxu0
      %v6062 = vadd.f32 %v5931, %v6061
      %6063 = vmatmul.bf16.gmra.mxu0 %v5865
      %v6064 = vpop.f32.mrf.mxu0
      %v6065 = vadd.f32 %v5931, %v6064
      %v6066 = vpop.f32.mrf.mxu0
      %v6067 = vadd.f32 %v5931, %v6066
      %6068 = vmatmul.bf16.gmra.mxu0 %v5866
      %v6069 = vpop.f32.mrf.mxu0
      %v6070 = vadd.f32 %v5931, %v6069
      %v6071 = vpop.f32.mrf.mxu0
      %v6072 = vadd.f32 %v5931, %v6071
      %6073 = vmatmul.bf16.gmra.mxu0 %v5867
      %v6074 = vpop.f32.mrf.mxu0
      %v6075 = vadd.f32 %v5931, %v6074
      %v6076 = vpop.f32.mrf.mxu0
      %v6077 = vadd.f32 %v5931, %v6076
      %6078 = vmatmul.bf16.gmra.mxu0 %v5868
      %v6079 = vpop.f32.mrf.mxu0
      %v6080 = vadd.f32 %v5931, %v6079
      %v6081 = vpop.f32.mrf.mxu0
      %v6082 = vadd.f32 %v5931, %v6081
      %6083 = vmatmul.bf16.gmra.mxu0 %v5869
      %v6084 = vpop.f32.mrf.mxu0
      %v6085 = vadd.f32 %v5931, %v6084
      %v6086 = vpop.f32.mrf.mxu0
      %v6087 = vadd.f32 %v5931, %v6086
      %6088 = vmatmul.bf16.gmra.mxu0 %v5870
      %v6089 = vpop.f32.mrf.mxu0
      %v6090 = vadd.f32 %v5931, %v6089
      %v6091 = vpop.f32.mrf.mxu0
      %v6092 = vadd.f32 %v5931, %v6091
      %6093 = vmatmul.bf16.gmra.mxu0 %v5871
      %v6094 = vpop.f32.mrf.mxu0
      %v6095 = vadd.f32 %v5931, %v6094
      %v6096 = vpop.f32.mrf.mxu0
      %v6097 = vadd.f32 %v5931, %v6096
      %6098 = vmatmul.bf16.gmra.mxu0 %v5872
      %v6099 = vpop.f32.mrf.mxu0
      %v6100 = vadd.f32 %v5931, %v6099
      %v6101 = vpop.f32.mrf.mxu0
      %v6102 = vadd.f32 %v5931, %v6101
      %6103 = vmatmul.bf16.gmra.mxu0 %v5873
      %v6104 = vpop.f32.mrf.mxu0
      %v6105 = vadd.f32 %v5931, %v6104
      %v6106 = vpop.f32.mrf.mxu0
      %v6107 = vadd.f32 %v5931, %v6106
      %6108 = vmatmul.bf16.gmra.mxu0 %v5874
      %v6109 = vpop.f32.mrf.mxu0
      %v6110 = vadd.f32 %v5931, %v6109
      %v6111 = vpop.f32.mrf.mxu0
      %v6112 = vadd.f32 %v5931, %v6111
      %6113 = vmatmul.bf16.gmra.mxu0 %v5875
      %v6114 = vpop.f32.mrf.mxu0
      %v6115 = vadd.f32 %v5931, %v6114
      %v6116 = vpop.f32.mrf.mxu0
      %v6117 = vadd.f32 %v5931, %v6116
      %6118 = vmatmul.bf16.gmra.mxu0 %v5876
      %v6119 = vpop.f32.mrf.mxu0
      %v6120 = vadd.f32 %v5931, %v6119
      %v6121 = vpop.f32.mrf.mxu0
      %v6122 = vadd.f32 %v5931, %v6121
      %6123 = vmatmul.bf16.gmra.mxu0 %v5877
      %v6124 = vpop.f32.mrf.mxu0
      %v6125 = vadd.f32 %v5931, %v6124
      %v6126 = vpop.f32.mrf.mxu0
      %v6127 = vadd.f32 %v5931, %v6126
      %6128 = vmatmul.bf16.gmra.mxu0 %v5878
      %v6129 = vpop.f32.mrf.mxu0
      %v6130 = vadd.f32 %v5931, %v6129
      %v6131 = vpop.f32.mrf.mxu0
      %v6132 = vadd.f32 %v5931, %v6131
      %6133 = vmatmul.bf16.gmra.mxu0 %v5879
      %v6134 = vpop.f32.mrf.mxu0
      %v6135 = vadd.f32 %v5931, %v6134
      %v6136 = vpop.f32.mrf.mxu0
      %v6137 = vadd.f32 %v5931, %v6136
      %6138 = vmatmul.bf16.gmra.mxu0 %v5880
      %v6139 = vpop.f32.mrf.mxu0
      %v6140 = vadd.f32 %v5931, %v6139
      %v6141 = vpop.f32.mrf.mxu0
      %v6142 = vadd.f32 %v5931, %v6141
      %6143 = vmatmul.bf16.gmra.mxu0 %v5881
      %v6144 = vpop.f32.mrf.mxu0
      %v6145 = vadd.f32 %v5931, %v6144
      %v6146 = vpop.f32.mrf.mxu0
      %v6147 = vadd.f32 %v5931, %v6146
      %6148 = vmatmul.bf16.gmra.mxu0 %v5882
      %v6149 = vpop.f32.mrf.mxu0
      %v6150 = vadd.f32 %v5931, %v6149
      %v6151 = vpop.f32.mrf.mxu0
      %v6152 = vadd.f32 %v5931, %v6151
      %6153 = vmatmul.bf16.gmra.mxu0 %v5883
      %v6154 = vpop.f32.mrf.mxu0
      %v6155 = vadd.f32 %v5931, %v6154
      %v6156 = vpop.f32.mrf.mxu0
      %v6157 = vadd.f32 %v5931, %v6156
      %6158 = vmatmul.bf16.gmra.mxu0 %v5884
      %v6159 = vpop.f32.mrf.mxu0
      %v6160 = vadd.f32 %v5931, %v6159
      %v6161 = vpop.f32.mrf.mxu0
      %v6162 = vadd.f32 %v5931, %v6161
      %6163 = vmatmul.bf16.gmra.mxu0 %v5885
      %v6164 = vpop.f32.mrf.mxu0
      %v6165 = vadd.f32 %v5931, %v6164
      %v6166 = vpop.f32.mrf.mxu0
      %v6167 = vadd.f32 %v5931, %v6166
      %6168 = vmatmul.bf16.gmra.mxu0 %v5886
      %v6169 = vpop.f32.mrf.mxu0
      %v6170 = vadd.f32 %v5931, %v6169
      %v6171 = vpop.f32.mrf.mxu0
      %v6172 = vadd.f32 %v5931, %v6171
      %6173 = vmatmul.bf16.gmra.mxu0 %v5887
      %v6174 = vpop.f32.mrf.mxu0
      %v6175 = vadd.f32 %v5931, %v6174
      %v6176 = vpop.f32.mrf.mxu0
      %v6177 = vadd.f32 %v5931, %v6176
      %6178 = vmatmul.bf16.gmra.mxu0 %v5888
      %v6179 = vpop.f32.mrf.mxu0
      %v6180 = vadd.f32 %v5931, %v6179
      %v6181 = vpop.f32.mrf.mxu0
      %v6182 = vadd.f32 %v5931, %v6181
      %6183 = vmatmul.bf16.gmra.mxu0 %v5889
      %v6184 = vpop.f32.mrf.mxu0
      %v6185 = vadd.f32 %v5931, %v6184
      %v6186 = vpop.f32.mrf.mxu0
      %v6187 = vadd.f32 %v5931, %v6186
      %6188 = vmatmul.bf16.gmra.mxu0 %v5890
      %v6189 = vpop.f32.mrf.mxu0
      %v6190 = vadd.f32 %v5931, %v6189
      %v6191 = vpop.f32.mrf.mxu0
      %v6192 = vadd.f32 %v5931, %v6191
      %6193 = vmatmul.bf16.gmra.mxu0 %v5891
      %v6194 = vpop.f32.mrf.mxu0
      %v6195 = vadd.f32 %v5931, %v6194
      %v6196 = vpop.f32.mrf.mxu0
      %v6197 = vadd.f32 %v5931, %v6196
      %6198 = vmatmul.bf16.gmra.mxu0 %v5892
      %v6199 = vpop.f32.mrf.mxu0
      %v6200 = vadd.f32 %v5931, %v6199
      %v6201 = vpop.f32.mrf.mxu0
      %v6202 = vadd.f32 %v5931, %v6201
      %6203 = vmatmul.bf16.gmra.mxu0 %v5893
      %v6204 = vpop.f32.mrf.mxu0
      %v6205 = vadd.f32 %v5931, %v6204
      %v6206 = vpop.f32.mrf.mxu0
      %v6207 = vadd.f32 %v5931, %v6206
      %6208 = vmatmul.bf16.gmra.mxu0 %v5894
      %v6209 = vpop.f32.mrf.mxu0
      %v6210 = vadd.f32 %v5931, %v6209
      %v6211 = vpop.f32.mrf.mxu0
      %v6212 = vadd.f32 %v5931, %v6211
      %6213 = vmatmul.bf16.gmra.mxu0 %v5895
      %v6214 = vpop.f32.mrf.mxu0
      %v6215 = vadd.f32 %v5931, %v6214
      %v6216 = vpop.f32.mrf.mxu0
      %v6217 = vadd.f32 %v5931, %v6216
      %6218 = vmatmul.bf16.gmra.mxu0 %v5896
      %v6219 = vpop.f32.mrf.mxu0
      %v6220 = vadd.f32 %v5931, %v6219
      %v6221 = vpop.f32.mrf.mxu0
      %v6222 = vadd.f32 %v5931, %v6221
      %6223 = vmatmul.bf16.gmra.mxu0 %v5897
      %v6224 = vpop.f32.mrf.mxu0
      %v6225 = vadd.f32 %v5931, %v6224
      %v6226 = vpop.f32.mrf.mxu0
      %v6227 = vadd.f32 %v5931, %v6226
      %6228 = vmatmul.bf16.gmra.mxu0 %v5898
      %v6229 = vpop.f32.mrf.mxu0
      %v6230 = vadd.f32 %v5931, %v6229
      %v6231 = vpop.f32.mrf.mxu0
      %v6232 = vadd.f32 %v5931, %v6231
      %6233 = vmatmul.bf16.gmra.mxu0 %v5899
      %v6234 = vpop.f32.mrf.mxu0
      %v6235 = vadd.f32 %v5931, %v6234
      %v6236 = vpop.f32.mrf.mxu0
      %v6237 = vadd.f32 %v5931, %v6236
      %6238 = vmatmul.bf16.gmra.mxu0 %v5900
      %v6239 = vpop.f32.mrf.mxu0
      %v6240 = vadd.f32 %v5931, %v6239
      %v6241 = vpop.f32.mrf.mxu0
      %v6242 = vadd.f32 %v5931, %v6241
      %6243 = vmatmul.bf16.gmra.mxu0 %v5901
      %v6244 = vpop.f32.mrf.mxu0
      %v6245 = vadd.f32 %v5931, %v6244
      %v6246 = vpop.f32.mrf.mxu0
      %v6247 = vadd.f32 %v5931, %v6246
      %6248 = vmatmul.bf16.gmra.mxu0 %v5902
      %v6249 = vpop.f32.mrf.mxu0
      %v6250 = vadd.f32 %v5931, %v6249
      %v6251 = vpop.f32.mrf.mxu0
      %v6252 = vadd.f32 %v5931, %v6251
      %6253 = vmatmul.bf16.gmra.mxu0 %v5903
      %v6254 = vpop.f32.mrf.mxu0
      %v6255 = vadd.f32 %v5931, %v6254
      %v6256 = vpop.f32.mrf.mxu0
      %v6257 = vadd.f32 %v5931, %v6256
      %6258 = vmatmul.bf16.gmra.mxu0 %v5904
      %v6259 = vpop.f32.mrf.mxu0
      %v6260 = vadd.f32 %v5931, %v6259
      %v6261 = vpop.f32.mrf.mxu0
      %v6262 = vadd.f32 %v5931, %v6261
      %6263 = vmatmul.bf16.gmra.mxu0 %v5905
      %v6264 = vpop.f32.mrf.mxu0
      %v6265 = vadd.f32 %v5931, %v6264
      %v6266 = vpop.f32.mrf.mxu0
      %v6267 = vadd.f32 %v5931, %v6266
      %6268 = vmatmul.bf16.gmra.mxu0 %v5906
      %v6269 = vpop.f32.mrf.mxu0
      %v6270 = vadd.f32 %v5931, %v6269
      %v6271 = vpop.f32.mrf.mxu0
      %v6272 = vadd.f32 %v5931, %v6271
      %6273 = vmatmul.bf16.gmra.mxu0 %v5907
      %v6274 = vpop.f32.mrf.mxu0
      %v6275 = vadd.f32 %v5931, %v6274
      %v6276 = vpop.f32.mrf.mxu0
      %v6277 = vadd.f32 %v5931, %v6276
      %6278 = vmatmul.bf16.gmra.mxu0 %v5908
      %v6279 = vpop.f32.mrf.mxu0
      %v6280 = vadd.f32 %v5931, %v6279
      %v6281 = vpop.f32.mrf.mxu0
      %v6282 = vadd.f32 %v5931, %v6281
      %6283 = vmatmul.bf16.gmra.mxu0 %v5909
      %v6284 = vpop.f32.mrf.mxu0
      %v6285 = vadd.f32 %v5931, %v6284
      %v6286 = vpop.f32.mrf.mxu0
      %v6287 = vadd.f32 %v5931, %v6286
      %6288 = vmatmul.bf16.gmra.mxu0 %v5910
      %v6289 = vpop.f32.mrf.mxu0
      %v6290 = vadd.f32 %v5931, %v6289
      %v6291 = vpop.f32.mrf.mxu0
      %v6292 = vadd.f32 %v5931, %v6291
      %6293 = vmatmul.bf16.gmra.mxu0 %v5911
      %v6294 = vpop.f32.mrf.mxu0
      %v6295 = vadd.f32 %v5931, %v6294
      %v6296 = vpop.f32.mrf.mxu0
      %v6297 = vadd.f32 %v5931, %v6296
      %6298 = vmatmul.bf16.gmra.mxu0 %v5912
      %v6299 = vpop.f32.mrf.mxu0
      %v6300 = vadd.f32 %v5931, %v6299
      %v6301 = vpop.f32.mrf.mxu0
      %v6302 = vadd.f32 %v5931, %v6301
      %6303 = vmatmul.bf16.gmra.mxu0 %v5913
      %v6304 = vpop.f32.mrf.mxu0
      %v6305 = vadd.f32 %v5931, %v6304
      %v6306 = vpop.f32.mrf.mxu0
      %v6307 = vadd.f32 %v5931, %v6306
      %6308 = vdwg.mxu0
      %v6309 = vadd.f32 %v5007, %v5990
      %v6310 = vadd.f32 %v5008, %v5992
      %v6311 = vadd.f32 %v5009, %v5995
      %v6312 = vadd.f32 %v5010, %v5997
      %v6313 = vadd.f32 %v5011, %v6000
      %v6314 = vadd.f32 %v5012, %v6002
      %v6315 = vadd.f32 %v5013, %v6005
      %v6316 = vadd.f32 %v5014, %v6007
      %v6317 = vadd.f32 %v5015, %v6010
      %v6318 = vadd.f32 %v5016, %v6012
      %v6319 = vadd.f32 %v5017, %v6015
      %v6320 = vadd.f32 %v5018, %v6017
      %v6321 = vadd.f32 %v5019, %v6020
      %v6322 = vadd.f32 %v5020, %v6022
      %v6323 = vadd.f32 %v5021, %v6025
      %v6324 = vadd.f32 %v5022, %v6027
      %v6325 = vadd.f32 %v5023, %v6030
      %v6326 = vadd.f32 %v5024, %v6032
      %v6327 = vadd.f32 %v5025, %v6035
      %v6328 = vadd.f32 %v5026, %v6037
      %v6329 = vadd.f32 %v5027, %v6040
      %v6330 = vadd.f32 %v5028, %v6042
      %v6331 = vadd.f32 %v5029, %v6045
      %v6332 = vadd.f32 %v5030, %v6047
      %v6333 = vadd.f32 %v5031, %v6050
      %v6334 = vadd.f32 %v5032, %v6052
      %v6335 = vadd.f32 %v5033, %v6055
      %v6336 = vadd.f32 %v5034, %v6057
      %v6337 = vadd.f32 %v5035, %v6060
      %v6338 = vadd.f32 %v5036, %v6062
      %v6339 = vadd.f32 %v5037, %v6065
      %v6340 = vadd.f32 %v5038, %v6067
      %v6341 = vadd.f32 %v5039, %v6070
      %v6342 = vadd.f32 %v5040, %v6072
      %v6343 = vadd.f32 %v5041, %v6075
      %v6344 = vadd.f32 %v5042, %v6077
      %v6345 = vadd.f32 %v5043, %v6080
      %v6346 = vadd.f32 %v5044, %v6082
      %v6347 = vadd.f32 %v5045, %v6085
      %v6348 = vadd.f32 %v5046, %v6087
      %v6349 = vadd.f32 %v5047, %v6090
      %v6350 = vadd.f32 %v5048, %v6092
      %v6351 = vadd.f32 %v5049, %v6095
      %v6352 = vadd.f32 %v5050, %v6097
      %v6353 = vadd.f32 %v5051, %v6100
      %v6354 = vadd.f32 %v5052, %v6102
      %v6355 = vadd.f32 %v5053, %v6105
      %v6356 = vadd.f32 %v5054, %v6107
      %v6357 = vadd.f32 %v5055, %v6110
      %v6358 = vadd.f32 %v5056, %v6112
      %v6359 = vadd.f32 %v5057, %v6115
      %v6360 = vadd.f32 %v5058, %v6117
      %v6361 = vadd.f32 %v5059, %v6120
      %v6362 = vadd.f32 %v5060, %v6122
      %v6363 = vadd.f32 %v5061, %v6125
      %v6364 = vadd.f32 %v5062, %v6127
      %v6365 = vadd.f32 %v5063, %v6130
      %v6366 = vadd.f32 %v5064, %v6132
      %v6367 = vadd.f32 %v5065, %v6135
      %v6368 = vadd.f32 %v5066, %v6137
      %v6369 = vadd.f32 %v5067, %v6140
      %v6370 = vadd.f32 %v5068, %v6142
      %v6371 = vadd.f32 %v5069, %v6145
      %v6372 = vadd.f32 %v5070, %v6147
      %v6373 = vadd.f32 %v5071, %v6150
      %v6374 = vadd.f32 %v5072, %v6152
      %v6375 = vadd.f32 %v5073, %v6155
      %v6376 = vadd.f32 %v5074, %v6157
      %v6377 = vadd.f32 %v5075, %v6160
      %v6378 = vadd.f32 %v5076, %v6162
      %v6379 = vadd.f32 %v5077, %v6165
      %v6380 = vadd.f32 %v5078, %v6167
      %v6381 = vadd.f32 %v5079, %v6170
      %v6382 = vadd.f32 %v5080, %v6172
      %v6383 = vadd.f32 %v5081, %v6175
      %v6384 = vadd.f32 %v5082, %v6177
      %v6385 = vadd.f32 %v5083, %v6180
      %v6386 = vadd.f32 %v5084, %v6182
      %v6387 = vadd.f32 %v5085, %v6185
      %v6388 = vadd.f32 %v5086, %v6187
      %v6389 = vadd.f32 %v5087, %v6190
      %v6390 = vadd.f32 %v5088, %v6192
      %v6391 = vadd.f32 %v5089, %v6195
      %v6392 = vadd.f32 %v5090, %v6197
      %v6393 = vadd.f32 %v5091, %v6200
      %v6394 = vadd.f32 %v5092, %v6202
      %v6395 = vadd.f32 %v5093, %v6205
      %v6396 = vadd.f32 %v5094, %v6207
      %v6397 = vadd.f32 %v5095, %v6210
      %v6398 = vadd.f32 %v5096, %v6212
      %v6399 = vadd.f32 %v5097, %v6215
      %v6400 = vadd.f32 %v5098, %v6217
      %v6401 = vadd.f32 %v5099, %v6220
      %v6402 = vadd.f32 %v5100, %v6222
      %v6403 = vadd.f32 %v5101, %v6225
      %v6404 = vadd.f32 %v5102, %v6227
      %v6405 = vadd.f32 %v5103, %v6230
      %v6406 = vadd.f32 %v5104, %v6232
      %v6407 = vadd.f32 %v5105, %v6235
      %v6408 = vadd.f32 %v5106, %v6237
      %v6409 = vadd.f32 %v5107, %v6240
      %v6410 = vadd.f32 %v5108, %v6242
      %v6411 = vadd.f32 %v5109, %v6245
      %v6412 = vadd.f32 %v5110, %v6247
      %v6413 = vadd.f32 %v5111, %v6250
      %v6414 = vadd.f32 %v5112, %v6252
      %v6415 = vadd.f32 %v5113, %v6255
      %v6416 = vadd.f32 %v5114, %v6257
      %v6417 = vadd.f32 %v5115, %v6260
      %v6418 = vadd.f32 %v5116, %v6262
      %v6419 = vadd.f32 %v5117, %v6265
      %v6420 = vadd.f32 %v5118, %v6267
      %v6421 = vadd.f32 %v5119, %v6270
      %v6422 = vadd.f32 %v5120, %v6272
      %v6423 = vadd.f32 %v5121, %v6275
      %v6424 = vadd.f32 %v5122, %v6277
      %v6425 = vadd.f32 %v5123, %v6280
      %v6426 = vadd.f32 %v5124, %v6282
      %v6427 = vadd.f32 %v5125, %v6285
      %v6428 = vadd.f32 %v5126, %v6287
      %v6429 = vadd.f32 %v5127, %v6290
      %v6430 = vadd.f32 %v5128, %v6292
      %v6431 = vadd.f32 %v5129, %v6295
      %v6432 = vadd.f32 %v5130, %v6297
      %v6433 = vadd.f32 %v5131, %v6300
      %v6434 = vadd.f32 %v5132, %v6302
      %v6435 = vadd.f32 %v5133, %v6305
      %v6436 = vadd.f32 %v5134, %v6307
      %v6437 = vadd.f32 %v6309, %v2673
      %v6438 = vadd.f32 %v6310, %v2675
      %v6439 = vadd.f32 %v6311, %v2678
      %v6440 = vadd.f32 %v6312, %v2680
      %v6441 = vadd.f32 %v6313, %v2683
      %v6442 = vadd.f32 %v6314, %v2685
      %v6443 = vadd.f32 %v6315, %v2688
      %v6444 = vadd.f32 %v6316, %v2690
      %v6445 = vadd.f32 %v6317, %v2693
      %v6446 = vadd.f32 %v6318, %v2695
      %v6447 = vadd.f32 %v6319, %v2698
      %v6448 = vadd.f32 %v6320, %v2700
      %v6449 = vadd.f32 %v6321, %v2703
      %v6450 = vadd.f32 %v6322, %v2705
      %v6451 = vadd.f32 %v6323, %v2708
      %v6452 = vadd.f32 %v6324, %v2710
      %v6453 = vadd.f32 %v6325, %v2713
      %v6454 = vadd.f32 %v6326, %v2715
      %v6455 = vadd.f32 %v6327, %v2718
      %v6456 = vadd.f32 %v6328, %v2720
      %v6457 = vadd.f32 %v6329, %v2723
      %v6458 = vadd.f32 %v6330, %v2725
      %v6459 = vadd.f32 %v6331, %v2728
      %v6460 = vadd.f32 %v6332, %v2730
      %v6461 = vadd.f32 %v6333, %v2733
      %v6462 = vadd.f32 %v6334, %v2735
      %v6463 = vadd.f32 %v6335, %v2738
      %v6464 = vadd.f32 %v6336, %v2740
      %v6465 = vadd.f32 %v6337, %v2743
      %v6466 = vadd.f32 %v6338, %v2745
      %v6467 = vadd.f32 %v6339, %v2748
      %v6468 = vadd.f32 %v6340, %v2750
      %v6469 = vadd.f32 %v6341, %v2753
      %v6470 = vadd.f32 %v6342, %v2755
      %v6471 = vadd.f32 %v6343, %v2758
      %v6472 = vadd.f32 %v6344, %v2760
      %v6473 = vadd.f32 %v6345, %v2763
      %v6474 = vadd.f32 %v6346, %v2765
      %v6475 = vadd.f32 %v6347, %v2768
      %v6476 = vadd.f32 %v6348, %v2770
      %v6477 = vadd.f32 %v6349, %v2773
      %v6478 = vadd.f32 %v6350, %v2775
      %v6479 = vadd.f32 %v6351, %v2778
      %v6480 = vadd.f32 %v6352, %v2780
      %v6481 = vadd.f32 %v6353, %v2783
      %v6482 = vadd.f32 %v6354, %v2785
      %v6483 = vadd.f32 %v6355, %v2788
      %v6484 = vadd.f32 %v6356, %v2790
      %v6485 = vadd.f32 %v6357, %v2793
      %v6486 = vadd.f32 %v6358, %v2795
      %v6487 = vadd.f32 %v6359, %v2798
      %v6488 = vadd.f32 %v6360, %v2800
      %v6489 = vadd.f32 %v6361, %v2803
      %v6490 = vadd.f32 %v6362, %v2805
      %v6491 = vadd.f32 %v6363, %v2808
      %v6492 = vadd.f32 %v6364, %v2810
      %v6493 = vadd.f32 %v6365, %v2813
      %v6494 = vadd.f32 %v6366, %v2815
      %v6495 = vadd.f32 %v6367, %v2818
      %v6496 = vadd.f32 %v6368, %v2820
      %v6497 = vadd.f32 %v6369, %v2823
      %v6498 = vadd.f32 %v6370, %v2825
      %v6499 = vadd.f32 %v6371, %v2828
      %v6500 = vadd.f32 %v6372, %v2830
      %v6501 = vadd.f32 %v6373, %v2833
      %v6502 = vadd.f32 %v6374, %v2835
      %v6503 = vadd.f32 %v6375, %v2838
      %v6504 = vadd.f32 %v6376, %v2840
      %v6505 = vadd.f32 %v6377, %v2843
      %v6506 = vadd.f32 %v6378, %v2845
      %v6507 = vadd.f32 %v6379, %v2848
      %v6508 = vadd.f32 %v6380, %v2850
      %v6509 = vadd.f32 %v6381, %v2853
      %v6510 = vadd.f32 %v6382, %v2855
      %v6511 = vadd.f32 %v6383, %v2858
      %v6512 = vadd.f32 %v6384, %v2860
      %v6513 = vadd.f32 %v6385, %v2863
      %v6514 = vadd.f32 %v6386, %v2865
      %v6515 = vadd.f32 %v6387, %v2868
      %v6516 = vadd.f32 %v6388, %v2870
      %v6517 = vadd.f32 %v6389, %v2873
      %v6518 = vadd.f32 %v6390, %v2875
      %v6519 = vadd.f32 %v6391, %v2878
      %v6520 = vadd.f32 %v6392, %v2880
      %v6521 = vadd.f32 %v6393, %v2883
      %v6522 = vadd.f32 %v6394, %v2885
      %v6523 = vadd.f32 %v6395, %v2888
      %v6524 = vadd.f32 %v6396, %v2890
      %v6525 = vadd.f32 %v6397, %v2893
      %v6526 = vadd.f32 %v6398, %v2895
      %v6527 = vadd.f32 %v6399, %v2898
      %v6528 = vadd.f32 %v6400, %v2900
      %v6529 = vadd.f32 %v6401, %v2903
      %v6530 = vadd.f32 %v6402, %v2905
      %v6531 = vadd.f32 %v6403, %v2908
      %v6532 = vadd.f32 %v6404, %v2910
      %v6533 = vadd.f32 %v6405, %v2913
      %v6534 = vadd.f32 %v6406, %v2915
      %v6535 = vadd.f32 %v6407, %v2918
      %v6536 = vadd.f32 %v6408, %v2920
      %v6537 = vadd.f32 %v6409, %v2923
      %v6538 = vadd.f32 %v6410, %v2925
      %v6539 = vadd.f32 %v6411, %v2928
      %v6540 = vadd.f32 %v6412, %v2930
      %v6541 = vadd.f32 %v6413, %v2933
      %v6542 = vadd.f32 %v6414, %v2935
      %v6543 = vadd.f32 %v6415, %v2938
      %v6544 = vadd.f32 %v6416, %v2940
      %v6545 = vadd.f32 %v6417, %v2943
      %v6546 = vadd.f32 %v6418, %v2945
      %v6547 = vadd.f32 %v6419, %v2948
      %v6548 = vadd.f32 %v6420, %v2950
      %v6549 = vadd.f32 %v6421, %v2953
      %v6550 = vadd.f32 %v6422, %v2955
      %v6551 = vadd.f32 %v6423, %v2958
      %v6552 = vadd.f32 %v6424, %v2960
      %v6553 = vadd.f32 %v6425, %v2963
      %v6554 = vadd.f32 %v6426, %v2965
      %v6555 = vadd.f32 %v6427, %v2968
      %v6556 = vadd.f32 %v6428, %v2970
      %v6557 = vadd.f32 %v6429, %v2973
      %v6558 = vadd.f32 %v6430, %v2975
      %v6559 = vadd.f32 %v6431, %v2978
      %v6560 = vadd.f32 %v6432, %v2980
      %v6561 = vadd.f32 %v6433, %v2983
      %v6562 = vadd.f32 %v6434, %v2985
      %v6563 = vadd.f32 %v6435, %v2988
      %v6564 = vadd.f32 %v6436, %v2990
      %v6565 = vperm.slane %v302, 3
      %v6566 = vadd.f32 %v6437, %v6565
      %v6567 = vadd.f32 %v6438, %v6565
      %v6568 = vadd.f32 %v6439, %v6565
      %v6569 = vadd.f32 %v6440, %v6565
      %v6570 = vadd.f32 %v6441, %v6565
      %v6571 = vadd.f32 %v6442, %v6565
      %v6572 = vadd.f32 %v6443, %v6565
      %v6573 = vadd.f32 %v6444, %v6565
      %v6574 = vadd.f32 %v6445, %v6565
      %v6575 = vadd.f32 %v6446, %v6565
      %v6576 = vadd.f32 %v6447, %v6565
      %v6577 = vadd.f32 %v6448, %v6565
      %v6578 = vadd.f32 %v6449, %v6565
      %v6579 = vadd.f32 %v6450, %v6565
      %v6580 = vadd.f32 %v6451, %v6565
      %v6581 = vadd.f32 %v6452, %v6565
      %v6582 = vadd.f32 %v6453, %v6565
      %v6583 = vadd.f32 %v6454, %v6565
      %v6584 = vadd.f32 %v6455, %v6565
      %v6585 = vadd.f32 %v6456, %v6565
      %v6586 = vadd.f32 %v6457, %v6565
      %v6587 = vadd.f32 %v6458, %v6565
      %v6588 = vadd.f32 %v6459, %v6565
      %v6589 = vadd.f32 %v6460, %v6565
      %v6590 = vadd.f32 %v6461, %v6565
      %v6591 = vadd.f32 %v6462, %v6565
      %v6592 = vadd.f32 %v6463, %v6565
      %v6593 = vadd.f32 %v6464, %v6565
      %v6594 = vadd.f32 %v6465, %v6565
      %v6595 = vadd.f32 %v6466, %v6565
      %v6596 = vadd.f32 %v6467, %v6565
      %v6597 = vadd.f32 %v6468, %v6565
      %v6598 = vadd.f32 %v6469, %v6565
      %v6599 = vadd.f32 %v6470, %v6565
      %v6600 = vadd.f32 %v6471, %v6565
      %v6601 = vadd.f32 %v6472, %v6565
      %v6602 = vadd.f32 %v6473, %v6565
      %v6603 = vadd.f32 %v6474, %v6565
      %v6604 = vadd.f32 %v6475, %v6565
      %v6605 = vadd.f32 %v6476, %v6565
      %v6606 = vadd.f32 %v6477, %v6565
      %v6607 = vadd.f32 %v6478, %v6565
      %v6608 = vadd.f32 %v6479, %v6565
      %v6609 = vadd.f32 %v6480, %v6565
      %v6610 = vadd.f32 %v6481, %v6565
      %v6611 = vadd.f32 %v6482, %v6565
      %v6612 = vadd.f32 %v6483, %v6565
      %v6613 = vadd.f32 %v6484, %v6565
      %v6614 = vadd.f32 %v6485, %v6565
      %v6615 = vadd.f32 %v6486, %v6565
      %v6616 = vadd.f32 %v6487, %v6565
      %v6617 = vadd.f32 %v6488, %v6565
      %v6618 = vadd.f32 %v6489, %v6565
      %v6619 = vadd.f32 %v6490, %v6565
      %v6620 = vadd.f32 %v6491, %v6565
      %v6621 = vadd.f32 %v6492, %v6565
      %v6622 = vadd.f32 %v6493, %v6565
      %v6623 = vadd.f32 %v6494, %v6565
      %v6624 = vadd.f32 %v6495, %v6565
      %v6625 = vadd.f32 %v6496, %v6565
      %v6626 = vadd.f32 %v6497, %v6565
      %v6627 = vadd.f32 %v6498, %v6565
      %v6628 = vadd.f32 %v6499, %v6565
      %v6629 = vadd.f32 %v6500, %v6565
      %v6630 = vadd.f32 %v6501, %v6565
      %v6631 = vadd.f32 %v6502, %v6565
      %v6632 = vadd.f32 %v6503, %v6565
      %v6633 = vadd.f32 %v6504, %v6565
      %v6634 = vadd.f32 %v6505, %v6565
      %v6635 = vadd.f32 %v6506, %v6565
      %v6636 = vadd.f32 %v6507, %v6565
      %v6637 = vadd.f32 %v6508, %v6565
      %v6638 = vadd.f32 %v6509, %v6565
      %v6639 = vadd.f32 %v6510, %v6565
      %v6640 = vadd.f32 %v6511, %v6565
      %v6641 = vadd.f32 %v6512, %v6565
      %v6642 = vadd.f32 %v6513, %v6565
      %v6643 = vadd.f32 %v6514, %v6565
      %v6644 = vadd.f32 %v6515, %v6565
      %v6645 = vadd.f32 %v6516, %v6565
      %v6646 = vadd.f32 %v6517, %v6565
      %v6647 = vadd.f32 %v6518, %v6565
      %v6648 = vadd.f32 %v6519, %v6565
      %v6649 = vadd.f32 %v6520, %v6565
      %v6650 = vadd.f32 %v6521, %v6565
      %v6651 = vadd.f32 %v6522, %v6565
      %v6652 = vadd.f32 %v6523, %v6565
      %v6653 = vadd.f32 %v6524, %v6565
      %v6654 = vadd.f32 %v6525, %v6565
      %v6655 = vadd.f32 %v6526, %v6565
      %v6656 = vadd.f32 %v6527, %v6565
      %v6657 = vadd.f32 %v6528, %v6565
      %v6658 = vadd.f32 %v6529, %v6565
      %v6659 = vadd.f32 %v6530, %v6565
      %v6660 = vadd.f32 %v6531, %v6565
      %v6661 = vadd.f32 %v6532, %v6565
      %v6662 = vadd.f32 %v6533, %v6565
      %v6663 = vadd.f32 %v6534, %v6565
      %v6664 = vadd.f32 %v6535, %v6565
      %v6665 = vadd.f32 %v6536, %v6565
      %v6666 = vadd.f32 %v6537, %v6565
      %v6667 = vadd.f32 %v6538, %v6565
      %v6668 = vadd.f32 %v6539, %v6565
      %v6669 = vadd.f32 %v6540, %v6565
      %v6670 = vadd.f32 %v6541, %v6565
      %v6671 = vadd.f32 %v6542, %v6565
      %v6672 = vadd.f32 %v6543, %v6565
      %v6673 = vadd.f32 %v6544, %v6565
      %v6674 = vadd.f32 %v6545, %v6565
      %v6675 = vadd.f32 %v6546, %v6565
      %v6676 = vadd.f32 %v6547, %v6565
      %v6677 = vadd.f32 %v6548, %v6565
      %v6678 = vadd.f32 %v6549, %v6565
      %v6679 = vadd.f32 %v6550, %v6565
      %v6680 = vadd.f32 %v6551, %v6565
      %v6681 = vadd.f32 %v6552, %v6565
      %v6682 = vadd.f32 %v6553, %v6565
      %v6683 = vadd.f32 %v6554, %v6565
      %v6684 = vadd.f32 %v6555, %v6565
      %v6685 = vadd.f32 %v6556, %v6565
      %v6686 = vadd.f32 %v6557, %v6565
      %v6687 = vadd.f32 %v6558, %v6565
      %v6688 = vadd.f32 %v6559, %v6565
      %v6689 = vadd.f32 %v6560, %v6565
      %v6690 = vadd.f32 %v6561, %v6565
      %v6691 = vadd.f32 %v6562, %v6565
      %v6692 = vadd.f32 %v6563, %v6565
      %v6693 = vadd.f32 %v6564, %v6565
      %v6694 = vmax.f32 %v6566, 0.0
      %v6695 = vmax.f32 %v6567, 0.0
      %v6696 = vmax.f32 %v6568, 0.0
      %v6697 = vmax.f32 %v6569, 0.0
      %v6698 = vmax.f32 %v6570, 0.0
      %v6699 = vmax.f32 %v6571, 0.0
      %v6700 = vmax.f32 %v6572, 0.0
      %v6701 = vmax.f32 %v6573, 0.0
      %v6702 = vmax.f32 %v6574, 0.0
      %v6703 = vmax.f32 %v6575, 0.0
      %v6704 = vmax.f32 %v6576, 0.0
      %v6705 = vmax.f32 %v6577, 0.0
      %v6706 = vmax.f32 %v6578, 0.0
      %v6707 = vmax.f32 %v6579, 0.0
      %v6708 = vmax.f32 %v6580, 0.0
      %v6709 = vmax.f32 %v6581, 0.0
      %v6710 = vmax.f32 %v6582, 0.0
      %v6711 = vmax.f32 %v6583, 0.0
      %v6712 = vmax.f32 %v6584, 0.0
      %v6713 = vmax.f32 %v6585, 0.0
      %v6714 = vmax.f32 %v6586, 0.0
      %v6715 = vmax.f32 %v6587, 0.0
      %v6716 = vmax.f32 %v6588, 0.0
      %v6717 = vmax.f32 %v6589, 0.0
      %v6718 = vmax.f32 %v6590, 0.0
      %v6719 = vmax.f32 %v6591, 0.0
      %v6720 = vmax.f32 %v6592, 0.0
      %v6721 = vmax.f32 %v6593, 0.0
      %v6722 = vmax.f32 %v6594, 0.0
      %v6723 = vmax.f32 %v6595, 0.0
      %v6724 = vmax.f32 %v6596, 0.0
      %v6725 = vmax.f32 %v6597, 0.0
      %v6726 = vmax.f32 %v6598, 0.0
      %v6727 = vmax.f32 %v6599, 0.0
      %v6728 = vmax.f32 %v6600, 0.0
      %v6729 = vmax.f32 %v6601, 0.0
      %v6730 = vmax.f32 %v6602, 0.0
      %v6731 = vmax.f32 %v6603, 0.0
      %v6732 = vmax.f32 %v6604, 0.0
      %v6733 = vmax.f32 %v6605, 0.0
      %v6734 = vmax.f32 %v6606, 0.0
      %v6735 = vmax.f32 %v6607, 0.0
      %v6736 = vmax.f32 %v6608, 0.0
      %v6737 = vmax.f32 %v6609, 0.0
      %v6738 = vmax.f32 %v6610, 0.0
      %v6739 = vmax.f32 %v6611, 0.0
      %v6740 = vmax.f32 %v6612, 0.0
      %v6741 = vmax.f32 %v6613, 0.0
      %v6742 = vmax.f32 %v6614, 0.0
      %v6743 = vmax.f32 %v6615, 0.0
      %v6744 = vmax.f32 %v6616, 0.0
      %v6745 = vmax.f32 %v6617, 0.0
      %v6746 = vmax.f32 %v6618, 0.0
      %v6747 = vmax.f32 %v6619, 0.0
      %v6748 = vmax.f32 %v6620, 0.0
      %v6749 = vmax.f32 %v6621, 0.0
      %v6750 = vmax.f32 %v6622, 0.0
      %v6751 = vmax.f32 %v6623, 0.0
      %v6752 = vmax.f32 %v6624, 0.0
      %v6753 = vmax.f32 %v6625, 0.0
      %v6754 = vmax.f32 %v6626, 0.0
      %v6755 = vmax.f32 %v6627, 0.0
      %v6756 = vmax.f32 %v6628, 0.0
      %v6757 = vmax.f32 %v6629, 0.0
      %v6758 = vmax.f32 %v6630, 0.0
      %v6759 = vmax.f32 %v6631, 0.0
      %v6760 = vmax.f32 %v6632, 0.0
      %v6761 = vmax.f32 %v6633, 0.0
      %v6762 = vmax.f32 %v6634, 0.0
      %v6763 = vmax.f32 %v6635, 0.0
      %v6764 = vmax.f32 %v6636, 0.0
      %v6765 = vmax.f32 %v6637, 0.0
      %v6766 = vmax.f32 %v6638, 0.0
      %v6767 = vmax.f32 %v6639, 0.0
      %v6768 = vmax.f32 %v6640, 0.0
      %v6769 = vmax.f32 %v6641, 0.0
      %v6770 = vmax.f32 %v6642, 0.0
      %v6771 = vmax.f32 %v6643, 0.0
      %v6772 = vmax.f32 %v6644, 0.0
      %v6773 = vmax.f32 %v6645, 0.0
      %v6774 = vmax.f32 %v6646, 0.0
      %v6775 = vmax.f32 %v6647, 0.0
      %v6776 = vmax.f32 %v6648, 0.0
      %v6777 = vmax.f32 %v6649, 0.0
      %v6778 = vmax.f32 %v6650, 0.0
      %v6779 = vmax.f32 %v6651, 0.0
      %v6780 = vmax.f32 %v6652, 0.0
      %v6781 = vmax.f32 %v6653, 0.0
      %v6782 = vmax.f32 %v6654, 0.0
      %v6783 = vmax.f32 %v6655, 0.0
      %v6784 = vmax.f32 %v6656, 0.0
      %v6785 = vmax.f32 %v6657, 0.0
      %v6786 = vmax.f32 %v6658, 0.0
      %v6787 = vmax.f32 %v6659, 0.0
      %v6788 = vmax.f32 %v6660, 0.0
      %v6789 = vmax.f32 %v6661, 0.0
      %v6790 = vmax.f32 %v6662, 0.0
      %v6791 = vmax.f32 %v6663, 0.0
      %v6792 = vmax.f32 %v6664, 0.0
      %v6793 = vmax.f32 %v6665, 0.0
      %v6794 = vmax.f32 %v6666, 0.0
      %v6795 = vmax.f32 %v6667, 0.0
      %v6796 = vmax.f32 %v6668, 0.0
      %v6797 = vmax.f32 %v6669, 0.0
      %v6798 = vmax.f32 %v6670, 0.0
      %v6799 = vmax.f32 %v6671, 0.0
      %v6800 = vmax.f32 %v6672, 0.0
      %v6801 = vmax.f32 %v6673, 0.0
      %v6802 = vmax.f32 %v6674, 0.0
      %v6803 = vmax.f32 %v6675, 0.0
      %v6804 = vmax.f32 %v6676, 0.0
      %v6805 = vmax.f32 %v6677, 0.0
      %v6806 = vmax.f32 %v6678, 0.0
      %v6807 = vmax.f32 %v6679, 0.0
      %v6808 = vmax.f32 %v6680, 0.0
      %v6809 = vmax.f32 %v6681, 0.0
      %v6810 = vmax.f32 %v6682, 0.0
      %v6811 = vmax.f32 %v6683, 0.0
      %v6812 = vmax.f32 %v6684, 0.0
      %v6813 = vmax.f32 %v6685, 0.0
      %v6814 = vmax.f32 %v6686, 0.0
      %v6815 = vmax.f32 %v6687, 0.0
      %v6816 = vmax.f32 %v6688, 0.0
      %v6817 = vmax.f32 %v6689, 0.0
      %v6818 = vmax.f32 %v6690, 0.0
      %v6819 = vmax.f32 %v6691, 0.0
      %v6820 = vmax.f32 %v6692, 0.0
      %v6821 = vmax.f32 %v6693, 0.0
      %v6822 = vpack.c.bf16 %v6695, %v6694
      %v6823 = vpack.c.bf16 %v6697, %v6696
      %v6824 = vpack.c.bf16 %v6699, %v6698
      %v6825 = vpack.c.bf16 %v6701, %v6700
      %v6826 = vpack.c.bf16 %v6703, %v6702
      %v6827 = vpack.c.bf16 %v6705, %v6704
      %v6828 = vpack.c.bf16 %v6707, %v6706
      %v6829 = vpack.c.bf16 %v6709, %v6708
      %v6830 = vpack.c.bf16 %v6711, %v6710
      %v6831 = vpack.c.bf16 %v6713, %v6712
      %v6832 = vpack.c.bf16 %v6715, %v6714
      %v6833 = vpack.c.bf16 %v6717, %v6716
      %v6834 = vpack.c.bf16 %v6719, %v6718
      %v6835 = vpack.c.bf16 %v6721, %v6720
      %v6836 = vpack.c.bf16 %v6723, %v6722
      %v6837 = vpack.c.bf16 %v6725, %v6724
      %v6838 = vpack.c.bf16 %v6727, %v6726
      %v6839 = vpack.c.bf16 %v6729, %v6728
      %v6840 = vpack.c.bf16 %v6731, %v6730
      %v6841 = vpack.c.bf16 %v6733, %v6732
      %v6842 = vpack.c.bf16 %v6735, %v6734
      %v6843 = vpack.c.bf16 %v6737, %v6736
      %v6844 = vpack.c.bf16 %v6739, %v6738
      %v6845 = vpack.c.bf16 %v6741, %v6740
      %v6846 = vpack.c.bf16 %v6743, %v6742
      %v6847 = vpack.c.bf16 %v6745, %v6744
      %v6848 = vpack.c.bf16 %v6747, %v6746
      %v6849 = vpack.c.bf16 %v6749, %v6748
      %v6850 = vpack.c.bf16 %v6751, %v6750
      %v6851 = vpack.c.bf16 %v6753, %v6752
      %v6852 = vpack.c.bf16 %v6755, %v6754
      %v6853 = vpack.c.bf16 %v6757, %v6756
      %v6854 = vpack.c.bf16 %v6759, %v6758
      %v6855 = vpack.c.bf16 %v6761, %v6760
      %v6856 = vpack.c.bf16 %v6763, %v6762
      %v6857 = vpack.c.bf16 %v6765, %v6764
      %v6858 = vpack.c.bf16 %v6767, %v6766
      %v6859 = vpack.c.bf16 %v6769, %v6768
      %v6860 = vpack.c.bf16 %v6771, %v6770
      %v6861 = vpack.c.bf16 %v6773, %v6772
      %v6862 = vpack.c.bf16 %v6775, %v6774
      %v6863 = vpack.c.bf16 %v6777, %v6776
      %v6864 = vpack.c.bf16 %v6779, %v6778
      %v6865 = vpack.c.bf16 %v6781, %v6780
      %v6866 = vpack.c.bf16 %v6783, %v6782
      %v6867 = vpack.c.bf16 %v6785, %v6784
      %v6868 = vpack.c.bf16 %v6787, %v6786
      %v6869 = vpack.c.bf16 %v6789, %v6788
      %v6870 = vpack.c.bf16 %v6791, %v6790
      %v6871 = vpack.c.bf16 %v6793, %v6792
      %v6872 = vpack.c.bf16 %v6795, %v6794
      %v6873 = vpack.c.bf16 %v6797, %v6796
      %v6874 = vpack.c.bf16 %v6799, %v6798
      %v6875 = vpack.c.bf16 %v6801, %v6800
      %v6876 = vpack.c.bf16 %v6803, %v6802
      %v6877 = vpack.c.bf16 %v6805, %v6804
      %v6878 = vpack.c.bf16 %v6807, %v6806
      %v6879 = vpack.c.bf16 %v6809, %v6808
      %v6880 = vpack.c.bf16 %v6811, %v6810
      %v6881 = vpack.c.bf16 %v6813, %v6812
      %v6882 = vpack.c.bf16 %v6815, %v6814
      %v6883 = vpack.c.bf16 %v6817, %v6816
      %v6884 = vpack.c.bf16 %v6819, %v6818
      %v6885 = vpack.c.bf16 %v6821, %v6820
      %s6886 = scalar_lea.vmem %s4, 128
      %v6887 = vld [vmem:[%s6886] sm:$0xf]
      %v6888 = vld [vmem:[%s6886 + $0x4] sm:$0xf]
      %v6889 = vld [vmem:[%s6886 + $0x8] sm:$0xf]
      %v6890 = vld [vmem:[%s6886 + $0xc] sm:$0xf]
      %v6891 = vld [vmem:[%s6886 + $0x10] sm:$0xf]
      %v6892 = vld [vmem:[%s6886 + $0x14] sm:$0xf]
      %v6893 = vld [vmem:[%s6886 + $0x18] sm:$0xf]
      %v6894 = vld [vmem:[%s6886 + $0x1c] sm:$0xf]
      %v6895 = vld [vmem:[%s6886 + $0x20] sm:$0xf]
      %v6896 = vld [vmem:[%s6886 + $0x24] sm:$0xf]
      %v6897 = vld [vmem:[%s6886 + $0x28] sm:$0xf]
      %v6898 = vld [vmem:[%s6886 + $0x2c] sm:$0xf]
      %v6899 = vld [vmem:[%s6886 + $0x30] sm:$0xf]
      %v6900 = vld [vmem:[%s6886 + $0x34] sm:$0xf]
      %v6901 = vld [vmem:[%s6886 + $0x38] sm:$0xf]
      %v6902 = vld [vmem:[%s6886 + $0x3c] sm:$0xf]
      %v6903 = vperm.slane %v302, 7
      %v6920 = vunpack.c.l.b16 %v6887
      %v6921 = vunpack.c.l.b16 %v6888
      %v6922 = vunpack.c.l.b16 %v6889
      %v6923 = vunpack.c.l.b16 %v6890
      %v6924 = vunpack.c.l.b16 %v6891
      %v6925 = vunpack.c.l.b16 %v6892
      %v6926 = vunpack.c.l.b16 %v6893
      %v6927 = vunpack.c.l.b16 %v6894
      %v6928 = vunpack.c.l.b16 %v6895
      %v6929 = vunpack.c.l.b16 %v6896
      %v6930 = vunpack.c.l.b16 %v6897
      %v6931 = vunpack.c.l.b16 %v6898
      %v6932 = vunpack.c.l.b16 %v6899
      %v6933 = vunpack.c.l.b16 %v6900
      %v6934 = vunpack.c.l.b16 %v6901
      %v6935 = vunpack.c.l.b16 %v6902
      %v6936 = vpack.c.b16 %v6921, %v6920
      %v6937 = vpack.c.b16 %v6923, %v6922
      %v6938 = vpack.c.b16 %v6925, %v6924
      %v6939 = vpack.c.b16 %v6927, %v6926
      %v6940 = vpack.c.b16 %v6929, %v6928
      %v6941 = vpack.c.b16 %v6931, %v6930
      %v6942 = vpack.c.b16 %v6933, %v6932
      %v6943 = vpack.c.b16 %v6935, %v6934
      %6952 = vmatpush.bf16.msra.mxu0 %v6943
      %6953 = vmatpush.bf16.msra.mxu0 %v6942
      %6954 = vmatpush.bf16.msra.mxu0 %v6941
      %6955 = vmatpush.bf16.msra.mxu0 %v6940
      %6956 = vmatpush.bf16.msra.mxu0 %v6939
      %6957 = vmatpush.bf16.msra.mxu0 %v6938
      %6958 = vmatpush.bf16.msra.mxu0 %v6937
      %6959 = vmatpush.bf16.msra.mxu0 %v6936
      %6960 = vmatmul.bf16.gmra.mxu0 %v6822
      %v6961 = vpop.f32.mrf.mxu0
      %v6962 = vadd.f32 %v6903, %v6961
      %v6963 = vpop.f32.mrf.mxu0
      %v6964 = vadd.f32 %v6903, %v6963
      %6965 = vmatmul.bf16.gmra.mxu0 %v6823
      %v6966 = vpop.f32.mrf.mxu0
      %v6967 = vadd.f32 %v6903, %v6966
      %v6968 = vpop.f32.mrf.mxu0
      %v6969 = vadd.f32 %v6903, %v6968
      %6970 = vmatmul.bf16.gmra.mxu0 %v6824
      %v6971 = vpop.f32.mrf.mxu0
      %v6972 = vadd.f32 %v6903, %v6971
      %v6973 = vpop.f32.mrf.mxu0
      %v6974 = vadd.f32 %v6903, %v6973
      %6975 = vmatmul.bf16.gmra.mxu0 %v6825
      %v6976 = vpop.f32.mrf.mxu0
      %v6977 = vadd.f32 %v6903, %v6976
      %v6978 = vpop.f32.mrf.mxu0
      %v6979 = vadd.f32 %v6903, %v6978
      %6980 = vmatmul.bf16.gmra.mxu0 %v6826
      %v6981 = vpop.f32.mrf.mxu0
      %v6982 = vadd.f32 %v6903, %v6981
      %v6983 = vpop.f32.mrf.mxu0
      %v6984 = vadd.f32 %v6903, %v6983
      %6985 = vmatmul.bf16.gmra.mxu0 %v6827
      %v6986 = vpop.f32.mrf.mxu0
      %v6987 = vadd.f32 %v6903, %v6986
      %v6988 = vpop.f32.mrf.mxu0
      %v6989 = vadd.f32 %v6903, %v6988
      %6990 = vmatmul.bf16.gmra.mxu0 %v6828
      %v6991 = vpop.f32.mrf.mxu0
      %v6992 = vadd.f32 %v6903, %v6991
      %v6993 = vpop.f32.mrf.mxu0
      %v6994 = vadd.f32 %v6903, %v6993
      %6995 = vmatmul.bf16.gmra.mxu0 %v6829
      %v6996 = vpop.f32.mrf.mxu0
      %v6997 = vadd.f32 %v6903, %v6996
      %v6998 = vpop.f32.mrf.mxu0
      %v6999 = vadd.f32 %v6903, %v6998
      %7000 = vmatmul.bf16.gmra.mxu0 %v6830
      %v7001 = vpop.f32.mrf.mxu0
      %v7002 = vadd.f32 %v6903, %v7001
      %v7003 = vpop.f32.mrf.mxu0
      %v7004 = vadd.f32 %v6903, %v7003
      %7005 = vmatmul.bf16.gmra.mxu0 %v6831
      %v7006 = vpop.f32.mrf.mxu0
      %v7007 = vadd.f32 %v6903, %v7006
      %v7008 = vpop.f32.mrf.mxu0
      %v7009 = vadd.f32 %v6903, %v7008
      %7010 = vmatmul.bf16.gmra.mxu0 %v6832
      %v7011 = vpop.f32.mrf.mxu0
      %v7012 = vadd.f32 %v6903, %v7011
      %v7013 = vpop.f32.mrf.mxu0
      %v7014 = vadd.f32 %v6903, %v7013
      %7015 = vmatmul.bf16.gmra.mxu0 %v6833
      %v7016 = vpop.f32.mrf.mxu0
      %v7017 = vadd.f32 %v6903, %v7016
      %v7018 = vpop.f32.mrf.mxu0
      %v7019 = vadd.f32 %v6903, %v7018
      %7020 = vmatmul.bf16.gmra.mxu0 %v6834
      %v7021 = vpop.f32.mrf.mxu0
      %v7022 = vadd.f32 %v6903, %v7021
      %v7023 = vpop.f32.mrf.mxu0
      %v7024 = vadd.f32 %v6903, %v7023
      %7025 = vmatmul.bf16.gmra.mxu0 %v6835
      %v7026 = vpop.f32.mrf.mxu0
      %v7027 = vadd.f32 %v6903, %v7026
      %v7028 = vpop.f32.mrf.mxu0
      %v7029 = vadd.f32 %v6903, %v7028
      %7030 = vmatmul.bf16.gmra.mxu0 %v6836
      %v7031 = vpop.f32.mrf.mxu0
      %v7032 = vadd.f32 %v6903, %v7031
      %v7033 = vpop.f32.mrf.mxu0
      %v7034 = vadd.f32 %v6903, %v7033
      %7035 = vmatmul.bf16.gmra.mxu0 %v6837
      %v7036 = vpop.f32.mrf.mxu0
      %v7037 = vadd.f32 %v6903, %v7036
      %v7038 = vpop.f32.mrf.mxu0
      %v7039 = vadd.f32 %v6903, %v7038
      %7040 = vmatmul.bf16.gmra.mxu0 %v6838
      %v7041 = vpop.f32.mrf.mxu0
      %v7042 = vadd.f32 %v6903, %v7041
      %v7043 = vpop.f32.mrf.mxu0
      %v7044 = vadd.f32 %v6903, %v7043
      %7045 = vmatmul.bf16.gmra.mxu0 %v6839
      %v7046 = vpop.f32.mrf.mxu0
      %v7047 = vadd.f32 %v6903, %v7046
      %v7048 = vpop.f32.mrf.mxu0
      %v7049 = vadd.f32 %v6903, %v7048
      %7050 = vmatmul.bf16.gmra.mxu0 %v6840
      %v7051 = vpop.f32.mrf.mxu0
      %v7052 = vadd.f32 %v6903, %v7051
      %v7053 = vpop.f32.mrf.mxu0
      %v7054 = vadd.f32 %v6903, %v7053
      %7055 = vmatmul.bf16.gmra.mxu0 %v6841
      %v7056 = vpop.f32.mrf.mxu0
      %v7057 = vadd.f32 %v6903, %v7056
      %v7058 = vpop.f32.mrf.mxu0
      %v7059 = vadd.f32 %v6903, %v7058
      %7060 = vmatmul.bf16.gmra.mxu0 %v6842
      %v7061 = vpop.f32.mrf.mxu0
      %v7062 = vadd.f32 %v6903, %v7061
      %v7063 = vpop.f32.mrf.mxu0
      %v7064 = vadd.f32 %v6903, %v7063
      %7065 = vmatmul.bf16.gmra.mxu0 %v6843
      %v7066 = vpop.f32.mrf.mxu0
      %v7067 = vadd.f32 %v6903, %v7066
      %v7068 = vpop.f32.mrf.mxu0
      %v7069 = vadd.f32 %v6903, %v7068
      %7070 = vmatmul.bf16.gmra.mxu0 %v6844
      %v7071 = vpop.f32.mrf.mxu0
      %v7072 = vadd.f32 %v6903, %v7071
      %v7073 = vpop.f32.mrf.mxu0
      %v7074 = vadd.f32 %v6903, %v7073
      %7075 = vmatmul.bf16.gmra.mxu0 %v6845
      %v7076 = vpop.f32.mrf.mxu0
      %v7077 = vadd.f32 %v6903, %v7076
      %v7078 = vpop.f32.mrf.mxu0
      %v7079 = vadd.f32 %v6903, %v7078
      %7080 = vmatmul.bf16.gmra.mxu0 %v6846
      %v7081 = vpop.f32.mrf.mxu0
      %v7082 = vadd.f32 %v6903, %v7081
      %v7083 = vpop.f32.mrf.mxu0
      %v7084 = vadd.f32 %v6903, %v7083
      %7085 = vmatmul.bf16.gmra.mxu0 %v6847
      %v7086 = vpop.f32.mrf.mxu0
      %v7087 = vadd.f32 %v6903, %v7086
      %v7088 = vpop.f32.mrf.mxu0
      %v7089 = vadd.f32 %v6903, %v7088
      %7090 = vmatmul.bf16.gmra.mxu0 %v6848
      %v7091 = vpop.f32.mrf.mxu0
      %v7092 = vadd.f32 %v6903, %v7091
      %v7093 = vpop.f32.mrf.mxu0
      %v7094 = vadd.f32 %v6903, %v7093
      %7095 = vmatmul.bf16.gmra.mxu0 %v6849
      %v7096 = vpop.f32.mrf.mxu0
      %v7097 = vadd.f32 %v6903, %v7096
      %v7098 = vpop.f32.mrf.mxu0
      %v7099 = vadd.f32 %v6903, %v7098
      %7100 = vmatmul.bf16.gmra.mxu0 %v6850
      %v7101 = vpop.f32.mrf.mxu0
      %v7102 = vadd.f32 %v6903, %v7101
      %v7103 = vpop.f32.mrf.mxu0
      %v7104 = vadd.f32 %v6903, %v7103
      %7105 = vmatmul.bf16.gmra.mxu0 %v6851
      %v7106 = vpop.f32.mrf.mxu0
      %v7107 = vadd.f32 %v6903, %v7106
      %v7108 = vpop.f32.mrf.mxu0
      %v7109 = vadd.f32 %v6903, %v7108
      %7110 = vmatmul.bf16.gmra.mxu0 %v6852
      %v7111 = vpop.f32.mrf.mxu0
      %v7112 = vadd.f32 %v6903, %v7111
      %v7113 = vpop.f32.mrf.mxu0
      %v7114 = vadd.f32 %v6903, %v7113
      %7115 = vmatmul.bf16.gmra.mxu0 %v6853
      %v7116 = vpop.f32.mrf.mxu0
      %v7117 = vadd.f32 %v6903, %v7116
      %v7118 = vpop.f32.mrf.mxu0
      %v7119 = vadd.f32 %v6903, %v7118
      %7120 = vmatmul.bf16.gmra.mxu0 %v6854
      %v7121 = vpop.f32.mrf.mxu0
      %v7122 = vadd.f32 %v6903, %v7121
      %v7123 = vpop.f32.mrf.mxu0
      %v7124 = vadd.f32 %v6903, %v7123
      %7125 = vmatmul.bf16.gmra.mxu0 %v6855
      %v7126 = vpop.f32.mrf.mxu0
      %v7127 = vadd.f32 %v6903, %v7126
      %v7128 = vpop.f32.mrf.mxu0
      %v7129 = vadd.f32 %v6903, %v7128
      %7130 = vmatmul.bf16.gmra.mxu0 %v6856
      %v7131 = vpop.f32.mrf.mxu0
      %v7132 = vadd.f32 %v6903, %v7131
      %v7133 = vpop.f32.mrf.mxu0
      %v7134 = vadd.f32 %v6903, %v7133
      %7135 = vmatmul.bf16.gmra.mxu0 %v6857
      %v7136 = vpop.f32.mrf.mxu0
      %v7137 = vadd.f32 %v6903, %v7136
      %v7138 = vpop.f32.mrf.mxu0
      %v7139 = vadd.f32 %v6903, %v7138
      %7140 = vmatmul.bf16.gmra.mxu0 %v6858
      %v7141 = vpop.f32.mrf.mxu0
      %v7142 = vadd.f32 %v6903, %v7141
      %v7143 = vpop.f32.mrf.mxu0
      %v7144 = vadd.f32 %v6903, %v7143
      %7145 = vmatmul.bf16.gmra.mxu0 %v6859
      %v7146 = vpop.f32.mrf.mxu0
      %v7147 = vadd.f32 %v6903, %v7146
      %v7148 = vpop.f32.mrf.mxu0
      %v7149 = vadd.f32 %v6903, %v7148
      %7150 = vmatmul.bf16.gmra.mxu0 %v6860
      %v7151 = vpop.f32.mrf.mxu0
      %v7152 = vadd.f32 %v6903, %v7151
      %v7153 = vpop.f32.mrf.mxu0
      %v7154 = vadd.f32 %v6903, %v7153
      %7155 = vmatmul.bf16.gmra.mxu0 %v6861
      %v7156 = vpop.f32.mrf.mxu0
      %v7157 = vadd.f32 %v6903, %v7156
      %v7158 = vpop.f32.mrf.mxu0
      %v7159 = vadd.f32 %v6903, %v7158
      %7160 = vmatmul.bf16.gmra.mxu0 %v6862
      %v7161 = vpop.f32.mrf.mxu0
      %v7162 = vadd.f32 %v6903, %v7161
      %v7163 = vpop.f32.mrf.mxu0
      %v7164 = vadd.f32 %v6903, %v7163
      %7165 = vmatmul.bf16.gmra.mxu0 %v6863
      %v7166 = vpop.f32.mrf.mxu0
      %v7167 = vadd.f32 %v6903, %v7166
      %v7168 = vpop.f32.mrf.mxu0
      %v7169 = vadd.f32 %v6903, %v7168
      %7170 = vmatmul.bf16.gmra.mxu0 %v6864
      %v7171 = vpop.f32.mrf.mxu0
      %v7172 = vadd.f32 %v6903, %v7171
      %v7173 = vpop.f32.mrf.mxu0
      %v7174 = vadd.f32 %v6903, %v7173
      %7175 = vmatmul.bf16.gmra.mxu0 %v6865
      %v7176 = vpop.f32.mrf.mxu0
      %v7177 = vadd.f32 %v6903, %v7176
      %v7178 = vpop.f32.mrf.mxu0
      %v7179 = vadd.f32 %v6903, %v7178
      %7180 = vmatmul.bf16.gmra.mxu0 %v6866
      %v7181 = vpop.f32.mrf.mxu0
      %v7182 = vadd.f32 %v6903, %v7181
      %v7183 = vpop.f32.mrf.mxu0
      %v7184 = vadd.f32 %v6903, %v7183
      %7185 = vmatmul.bf16.gmra.mxu0 %v6867
      %v7186 = vpop.f32.mrf.mxu0
      %v7187 = vadd.f32 %v6903, %v7186
      %v7188 = vpop.f32.mrf.mxu0
      %v7189 = vadd.f32 %v6903, %v7188
      %7190 = vmatmul.bf16.gmra.mxu0 %v6868
      %v7191 = vpop.f32.mrf.mxu0
      %v7192 = vadd.f32 %v6903, %v7191
      %v7193 = vpop.f32.mrf.mxu0
      %v7194 = vadd.f32 %v6903, %v7193
      %7195 = vmatmul.bf16.gmra.mxu0 %v6869
      %v7196 = vpop.f32.mrf.mxu0
      %v7197 = vadd.f32 %v6903, %v7196
      %v7198 = vpop.f32.mrf.mxu0
      %v7199 = vadd.f32 %v6903, %v7198
      %7200 = vmatmul.bf16.gmra.mxu0 %v6870
      %v7201 = vpop.f32.mrf.mxu0
      %v7202 = vadd.f32 %v6903, %v7201
      %v7203 = vpop.f32.mrf.mxu0
      %v7204 = vadd.f32 %v6903, %v7203
      %7205 = vmatmul.bf16.gmra.mxu0 %v6871
      %v7206 = vpop.f32.mrf.mxu0
      %v7207 = vadd.f32 %v6903, %v7206
      %v7208 = vpop.f32.mrf.mxu0
      %v7209 = vadd.f32 %v6903, %v7208
      %7210 = vmatmul.bf16.gmra.mxu0 %v6872
      %v7211 = vpop.f32.mrf.mxu0
      %v7212 = vadd.f32 %v6903, %v7211
      %v7213 = vpop.f32.mrf.mxu0
      %v7214 = vadd.f32 %v6903, %v7213
      %7215 = vmatmul.bf16.gmra.mxu0 %v6873
      %v7216 = vpop.f32.mrf.mxu0
      %v7217 = vadd.f32 %v6903, %v7216
      %v7218 = vpop.f32.mrf.mxu0
      %v7219 = vadd.f32 %v6903, %v7218
      %7220 = vmatmul.bf16.gmra.mxu0 %v6874
      %v7221 = vpop.f32.mrf.mxu0
      %v7222 = vadd.f32 %v6903, %v7221
      %v7223 = vpop.f32.mrf.mxu0
      %v7224 = vadd.f32 %v6903, %v7223
      %7225 = vmatmul.bf16.gmra.mxu0 %v6875
      %v7226 = vpop.f32.mrf.mxu0
      %v7227 = vadd.f32 %v6903, %v7226
      %v7228 = vpop.f32.mrf.mxu0
      %v7229 = vadd.f32 %v6903, %v7228
      %7230 = vmatmul.bf16.gmra.mxu0 %v6876
      %v7231 = vpop.f32.mrf.mxu0
      %v7232 = vadd.f32 %v6903, %v7231
      %v7233 = vpop.f32.mrf.mxu0
      %v7234 = vadd.f32 %v6903, %v7233
      %7235 = vmatmul.bf16.gmra.mxu0 %v6877
      %v7236 = vpop.f32.mrf.mxu0
      %v7237 = vadd.f32 %v6903, %v7236
      %v7238 = vpop.f32.mrf.mxu0
      %v7239 = vadd.f32 %v6903, %v7238
      %7240 = vmatmul.bf16.gmra.mxu0 %v6878
      %v7241 = vpop.f32.mrf.mxu0
      %v7242 = vadd.f32 %v6903, %v7241
      %v7243 = vpop.f32.mrf.mxu0
      %v7244 = vadd.f32 %v6903, %v7243
      %7245 = vmatmul.bf16.gmra.mxu0 %v6879
      %v7246 = vpop.f32.mrf.mxu0
      %v7247 = vadd.f32 %v6903, %v7246
      %v7248 = vpop.f32.mrf.mxu0
      %v7249 = vadd.f32 %v6903, %v7248
      %7250 = vmatmul.bf16.gmra.mxu0 %v6880
      %v7251 = vpop.f32.mrf.mxu0
      %v7252 = vadd.f32 %v6903, %v7251
      %v7253 = vpop.f32.mrf.mxu0
      %v7254 = vadd.f32 %v6903, %v7253
      %7255 = vmatmul.bf16.gmra.mxu0 %v6881
      %v7256 = vpop.f32.mrf.mxu0
      %v7257 = vadd.f32 %v6903, %v7256
      %v7258 = vpop.f32.mrf.mxu0
      %v7259 = vadd.f32 %v6903, %v7258
      %7260 = vmatmul.bf16.gmra.mxu0 %v6882
      %v7261 = vpop.f32.mrf.mxu0
      %v7262 = vadd.f32 %v6903, %v7261
      %v7263 = vpop.f32.mrf.mxu0
      %v7264 = vadd.f32 %v6903, %v7263
      %7265 = vmatmul.bf16.gmra.mxu0 %v6883
      %v7266 = vpop.f32.mrf.mxu0
      %v7267 = vadd.f32 %v6903, %v7266
      %v7268 = vpop.f32.mrf.mxu0
      %v7269 = vadd.f32 %v6903, %v7268
      %7270 = vmatmul.bf16.gmra.mxu0 %v6884
      %v7271 = vpop.f32.mrf.mxu0
      %v7272 = vadd.f32 %v6903, %v7271
      %v7273 = vpop.f32.mrf.mxu0
      %v7274 = vadd.f32 %v6903, %v7273
      %7275 = vmatmul.bf16.gmra.mxu0 %v6885
      %v7276 = vpop.f32.mrf.mxu0
      %v7277 = vadd.f32 %v6903, %v7276
      %v7278 = vpop.f32.mrf.mxu0
      %v7279 = vadd.f32 %v6903, %v7278
      %7280 = vdwg.mxu0
      %v7281 = vmax.f32 %v6962, 0.0
      %v7282 = vmax.f32 %v6964, 0.0
      %v7283 = vmax.f32 %v6967, 0.0
      %v7284 = vmax.f32 %v6969, 0.0
      %v7285 = vmax.f32 %v6972, 0.0
      %v7286 = vmax.f32 %v6974, 0.0
      %v7287 = vmax.f32 %v6977, 0.0
      %v7288 = vmax.f32 %v6979, 0.0
      %v7289 = vmax.f32 %v6982, 0.0
      %v7290 = vmax.f32 %v6984, 0.0
      %v7291 = vmax.f32 %v6987, 0.0
      %v7292 = vmax.f32 %v6989, 0.0
      %v7293 = vmax.f32 %v6992, 0.0
      %v7294 = vmax.f32 %v6994, 0.0
      %v7295 = vmax.f32 %v6997, 0.0
      %v7296 = vmax.f32 %v6999, 0.0
      %v7297 = vmax.f32 %v7002, 0.0
      %v7298 = vmax.f32 %v7004, 0.0
      %v7299 = vmax.f32 %v7007, 0.0
      %v7300 = vmax.f32 %v7009, 0.0
      %v7301 = vmax.f32 %v7012, 0.0
      %v7302 = vmax.f32 %v7014, 0.0
      %v7303 = vmax.f32 %v7017, 0.0
      %v7304 = vmax.f32 %v7019, 0.0
      %v7305 = vmax.f32 %v7022, 0.0
      %v7306 = vmax.f32 %v7024, 0.0
      %v7307 = vmax.f32 %v7027, 0.0
      %v7308 = vmax.f32 %v7029, 0.0
      %v7309 = vmax.f32 %v7032, 0.0
      %v7310 = vmax.f32 %v7034, 0.0
      %v7311 = vmax.f32 %v7037, 0.0
      %v7312 = vmax.f32 %v7039, 0.0
      %v7313 = vmax.f32 %v7042, 0.0
      %v7314 = vmax.f32 %v7044, 0.0
      %v7315 = vmax.f32 %v7047, 0.0
      %v7316 = vmax.f32 %v7049, 0.0
      %v7317 = vmax.f32 %v7052, 0.0
      %v7318 = vmax.f32 %v7054, 0.0
      %v7319 = vmax.f32 %v7057, 0.0
      %v7320 = vmax.f32 %v7059, 0.0
      %v7321 = vmax.f32 %v7062, 0.0
      %v7322 = vmax.f32 %v7064, 0.0
      %v7323 = vmax.f32 %v7067, 0.0
      %v7324 = vmax.f32 %v7069, 0.0
      %v7325 = vmax.f32 %v7072, 0.0
      %v7326 = vmax.f32 %v7074, 0.0
      %v7327 = vmax.f32 %v7077, 0.0
      %v7328 = vmax.f32 %v7079, 0.0
      %v7329 = vmax.f32 %v7082, 0.0
      %v7330 = vmax.f32 %v7084, 0.0
      %v7331 = vmax.f32 %v7087, 0.0
      %v7332 = vmax.f32 %v7089, 0.0
      %v7333 = vmax.f32 %v7092, 0.0
      %v7334 = vmax.f32 %v7094, 0.0
      %v7335 = vmax.f32 %v7097, 0.0
      %v7336 = vmax.f32 %v7099, 0.0
      %v7337 = vmax.f32 %v7102, 0.0
      %v7338 = vmax.f32 %v7104, 0.0
      %v7339 = vmax.f32 %v7107, 0.0
      %v7340 = vmax.f32 %v7109, 0.0
      %v7341 = vmax.f32 %v7112, 0.0
      %v7342 = vmax.f32 %v7114, 0.0
      %v7343 = vmax.f32 %v7117, 0.0
      %v7344 = vmax.f32 %v7119, 0.0
      %v7345 = vmax.f32 %v7122, 0.0
      %v7346 = vmax.f32 %v7124, 0.0
      %v7347 = vmax.f32 %v7127, 0.0
      %v7348 = vmax.f32 %v7129, 0.0
      %v7349 = vmax.f32 %v7132, 0.0
      %v7350 = vmax.f32 %v7134, 0.0
      %v7351 = vmax.f32 %v7137, 0.0
      %v7352 = vmax.f32 %v7139, 0.0
      %v7353 = vmax.f32 %v7142, 0.0
      %v7354 = vmax.f32 %v7144, 0.0
      %v7355 = vmax.f32 %v7147, 0.0
      %v7356 = vmax.f32 %v7149, 0.0
      %v7357 = vmax.f32 %v7152, 0.0
      %v7358 = vmax.f32 %v7154, 0.0
      %v7359 = vmax.f32 %v7157, 0.0
      %v7360 = vmax.f32 %v7159, 0.0
      %v7361 = vmax.f32 %v7162, 0.0
      %v7362 = vmax.f32 %v7164, 0.0
      %v7363 = vmax.f32 %v7167, 0.0
      %v7364 = vmax.f32 %v7169, 0.0
      %v7365 = vmax.f32 %v7172, 0.0
      %v7366 = vmax.f32 %v7174, 0.0
      %v7367 = vmax.f32 %v7177, 0.0
      %v7368 = vmax.f32 %v7179, 0.0
      %v7369 = vmax.f32 %v7182, 0.0
      %v7370 = vmax.f32 %v7184, 0.0
      %v7371 = vmax.f32 %v7187, 0.0
      %v7372 = vmax.f32 %v7189, 0.0
      %v7373 = vmax.f32 %v7192, 0.0
      %v7374 = vmax.f32 %v7194, 0.0
      %v7375 = vmax.f32 %v7197, 0.0
      %v7376 = vmax.f32 %v7199, 0.0
      %v7377 = vmax.f32 %v7202, 0.0
      %v7378 = vmax.f32 %v7204, 0.0
      %v7379 = vmax.f32 %v7207, 0.0
      %v7380 = vmax.f32 %v7209, 0.0
      %v7381 = vmax.f32 %v7212, 0.0
      %v7382 = vmax.f32 %v7214, 0.0
      %v7383 = vmax.f32 %v7217, 0.0
      %v7384 = vmax.f32 %v7219, 0.0
      %v7385 = vmax.f32 %v7222, 0.0
      %v7386 = vmax.f32 %v7224, 0.0
      %v7387 = vmax.f32 %v7227, 0.0
      %v7388 = vmax.f32 %v7229, 0.0
      %v7389 = vmax.f32 %v7232, 0.0
      %v7390 = vmax.f32 %v7234, 0.0
      %v7391 = vmax.f32 %v7237, 0.0
      %v7392 = vmax.f32 %v7239, 0.0
      %v7393 = vmax.f32 %v7242, 0.0
      %v7394 = vmax.f32 %v7244, 0.0
      %v7395 = vmax.f32 %v7247, 0.0
      %v7396 = vmax.f32 %v7249, 0.0
      %v7397 = vmax.f32 %v7252, 0.0
      %v7398 = vmax.f32 %v7254, 0.0
      %v7399 = vmax.f32 %v7257, 0.0
      %v7400 = vmax.f32 %v7259, 0.0
      %v7401 = vmax.f32 %v7262, 0.0
      %v7402 = vmax.f32 %v7264, 0.0
      %v7403 = vmax.f32 %v7267, 0.0
      %v7404 = vmax.f32 %v7269, 0.0
      %v7405 = vmax.f32 %v7272, 0.0
      %v7406 = vmax.f32 %v7274, 0.0
      %v7407 = vmax.f32 %v7277, 0.0
      %v7408 = vmax.f32 %v7279, 0.0
      %v7409 = vpack.c.bf16 %v7282, %v7281
      %v7410 = vpack.c.bf16 %v7284, %v7283
      %v7411 = vpack.c.bf16 %v7286, %v7285
      %v7412 = vpack.c.bf16 %v7288, %v7287
      %v7413 = vpack.c.bf16 %v7290, %v7289
      %v7414 = vpack.c.bf16 %v7292, %v7291
      %v7415 = vpack.c.bf16 %v7294, %v7293
      %v7416 = vpack.c.bf16 %v7296, %v7295
      %v7417 = vpack.c.bf16 %v7298, %v7297
      %v7418 = vpack.c.bf16 %v7300, %v7299
      %v7419 = vpack.c.bf16 %v7302, %v7301
      %v7420 = vpack.c.bf16 %v7304, %v7303
      %v7421 = vpack.c.bf16 %v7306, %v7305
      %v7422 = vpack.c.bf16 %v7308, %v7307
      %v7423 = vpack.c.bf16 %v7310, %v7309
      %v7424 = vpack.c.bf16 %v7312, %v7311
      %v7425 = vpack.c.bf16 %v7314, %v7313
      %v7426 = vpack.c.bf16 %v7316, %v7315
      %v7427 = vpack.c.bf16 %v7318, %v7317
      %v7428 = vpack.c.bf16 %v7320, %v7319
      %v7429 = vpack.c.bf16 %v7322, %v7321
      %v7430 = vpack.c.bf16 %v7324, %v7323
      %v7431 = vpack.c.bf16 %v7326, %v7325
      %v7432 = vpack.c.bf16 %v7328, %v7327
      %v7433 = vpack.c.bf16 %v7330, %v7329
      %v7434 = vpack.c.bf16 %v7332, %v7331
      %v7435 = vpack.c.bf16 %v7334, %v7333
      %v7436 = vpack.c.bf16 %v7336, %v7335
      %v7437 = vpack.c.bf16 %v7338, %v7337
      %v7438 = vpack.c.bf16 %v7340, %v7339
      %v7439 = vpack.c.bf16 %v7342, %v7341
      %v7440 = vpack.c.bf16 %v7344, %v7343
      %v7441 = vpack.c.bf16 %v7346, %v7345
      %v7442 = vpack.c.bf16 %v7348, %v7347
      %v7443 = vpack.c.bf16 %v7350, %v7349
      %v7444 = vpack.c.bf16 %v7352, %v7351
      %v7445 = vpack.c.bf16 %v7354, %v7353
      %v7446 = vpack.c.bf16 %v7356, %v7355
      %v7447 = vpack.c.bf16 %v7358, %v7357
      %v7448 = vpack.c.bf16 %v7360, %v7359
      %v7449 = vpack.c.bf16 %v7362, %v7361
      %v7450 = vpack.c.bf16 %v7364, %v7363
      %v7451 = vpack.c.bf16 %v7366, %v7365
      %v7452 = vpack.c.bf16 %v7368, %v7367
      %v7453 = vpack.c.bf16 %v7370, %v7369
      %v7454 = vpack.c.bf16 %v7372, %v7371
      %v7455 = vpack.c.bf16 %v7374, %v7373
      %v7456 = vpack.c.bf16 %v7376, %v7375
      %v7457 = vpack.c.bf16 %v7378, %v7377
      %v7458 = vpack.c.bf16 %v7380, %v7379
      %v7459 = vpack.c.bf16 %v7382, %v7381
      %v7460 = vpack.c.bf16 %v7384, %v7383
      %v7461 = vpack.c.bf16 %v7386, %v7385
      %v7462 = vpack.c.bf16 %v7388, %v7387
      %v7463 = vpack.c.bf16 %v7390, %v7389
      %v7464 = vpack.c.bf16 %v7392, %v7391
      %v7465 = vpack.c.bf16 %v7394, %v7393
      %v7466 = vpack.c.bf16 %v7396, %v7395
      %v7467 = vpack.c.bf16 %v7398, %v7397
      %v7468 = vpack.c.bf16 %v7400, %v7399
      %v7469 = vpack.c.bf16 %v7402, %v7401
      %v7470 = vpack.c.bf16 %v7404, %v7403
      %v7471 = vpack.c.bf16 %v7406, %v7405
      %v7472 = vpack.c.bf16 %v7408, %v7407
      %s7473 = scalar_lea.vmem %s5, 128
      %v7474 = vld [vmem:[%s7473] sm:$0xf]
      %v7475 = vld [vmem:[%s7473 + $0x4] sm:$0xf]
      %v7476 = vld [vmem:[%s7473 + $0x8] sm:$0xf]
      %v7477 = vld [vmem:[%s7473 + $0xc] sm:$0xf]
      %v7478 = vld [vmem:[%s7473 + $0x10] sm:$0xf]
      %v7479 = vld [vmem:[%s7473 + $0x14] sm:$0xf]
      %v7480 = vld [vmem:[%s7473 + $0x18] sm:$0xf]
      %v7481 = vld [vmem:[%s7473 + $0x1c] sm:$0xf]
      %v7482 = vld [vmem:[%s7473 + $0x20] sm:$0xf]
      %v7483 = vld [vmem:[%s7473 + $0x24] sm:$0xf]
      %v7484 = vld [vmem:[%s7473 + $0x28] sm:$0xf]
      %v7485 = vld [vmem:[%s7473 + $0x2c] sm:$0xf]
      %v7486 = vld [vmem:[%s7473 + $0x30] sm:$0xf]
      %v7487 = vld [vmem:[%s7473 + $0x34] sm:$0xf]
      %v7488 = vld [vmem:[%s7473 + $0x38] sm:$0xf]
      %v7489 = vld [vmem:[%s7473 + $0x3c] sm:$0xf]
      %v7490 = vperm.slane %v303, 3
      %v7507 = vunpack.c.l.b16 %v7474
      %v7508 = vunpack.c.l.b16 %v7475
      %v7509 = vunpack.c.l.b16 %v7476
      %v7510 = vunpack.c.l.b16 %v7477
      %v7511 = vunpack.c.l.b16 %v7478
      %v7512 = vunpack.c.l.b16 %v7479
      %v7513 = vunpack.c.l.b16 %v7480
      %v7514 = vunpack.c.l.b16 %v7481
      %v7515 = vunpack.c.l.b16 %v7482
      %v7516 = vunpack.c.l.b16 %v7483
      %v7517 = vunpack.c.l.b16 %v7484
      %v7518 = vunpack.c.l.b16 %v7485
      %v7519 = vunpack.c.l.b16 %v7486
      %v7520 = vunpack.c.l.b16 %v7487
      %v7521 = vunpack.c.l.b16 %v7488
      %v7522 = vunpack.c.l.b16 %v7489
      %v7523 = vpack.c.b16 %v7508, %v7507
      %v7524 = vpack.c.b16 %v7510, %v7509
      %v7525 = vpack.c.b16 %v7512, %v7511
      %v7526 = vpack.c.b16 %v7514, %v7513
      %v7527 = vpack.c.b16 %v7516, %v7515
      %v7528 = vpack.c.b16 %v7518, %v7517
      %v7529 = vpack.c.b16 %v7520, %v7519
      %v7530 = vpack.c.b16 %v7522, %v7521
      %7539 = vmatpush.bf16.msra.mxu0 %v7530
      %7540 = vmatpush.bf16.msra.mxu0 %v7529
      %7541 = vmatpush.bf16.msra.mxu0 %v7528
      %7542 = vmatpush.bf16.msra.mxu0 %v7527
      %7543 = vmatpush.bf16.msra.mxu0 %v7526
      %7544 = vmatpush.bf16.msra.mxu0 %v7525
      %7545 = vmatpush.bf16.msra.mxu0 %v7524
      %7546 = vmatpush.bf16.msra.mxu0 %v7523
      %7547 = vmatmul.bf16.gmra.mxu0 %v7409
      %v7548 = vpop.f32.mrf.mxu0
      %v7549 = vadd.f32 %v7490, %v7548
      %v7550 = vpop.f32.mrf.mxu0
      %v7551 = vadd.f32 %v7490, %v7550
      %7552 = vmatmul.bf16.gmra.mxu0 %v7410
      %v7553 = vpop.f32.mrf.mxu0
      %v7554 = vadd.f32 %v7490, %v7553
      %v7555 = vpop.f32.mrf.mxu0
      %v7556 = vadd.f32 %v7490, %v7555
      %7557 = vmatmul.bf16.gmra.mxu0 %v7411
      %v7558 = vpop.f32.mrf.mxu0
      %v7559 = vadd.f32 %v7490, %v7558
      %v7560 = vpop.f32.mrf.mxu0
      %v7561 = vadd.f32 %v7490, %v7560
      %7562 = vmatmul.bf16.gmra.mxu0 %v7412
      %v7563 = vpop.f32.mrf.mxu0
      %v7564 = vadd.f32 %v7490, %v7563
      %v7565 = vpop.f32.mrf.mxu0
      %v7566 = vadd.f32 %v7490, %v7565
      %7567 = vmatmul.bf16.gmra.mxu0 %v7413
      %v7568 = vpop.f32.mrf.mxu0
      %v7569 = vadd.f32 %v7490, %v7568
      %v7570 = vpop.f32.mrf.mxu0
      %v7571 = vadd.f32 %v7490, %v7570
      %7572 = vmatmul.bf16.gmra.mxu0 %v7414
      %v7573 = vpop.f32.mrf.mxu0
      %v7574 = vadd.f32 %v7490, %v7573
      %v7575 = vpop.f32.mrf.mxu0
      %v7576 = vadd.f32 %v7490, %v7575
      %7577 = vmatmul.bf16.gmra.mxu0 %v7415
      %v7578 = vpop.f32.mrf.mxu0
      %v7579 = vadd.f32 %v7490, %v7578
      %v7580 = vpop.f32.mrf.mxu0
      %v7581 = vadd.f32 %v7490, %v7580
      %7582 = vmatmul.bf16.gmra.mxu0 %v7416
      %v7583 = vpop.f32.mrf.mxu0
      %v7584 = vadd.f32 %v7490, %v7583
      %v7585 = vpop.f32.mrf.mxu0
      %v7586 = vadd.f32 %v7490, %v7585
      %7587 = vmatmul.bf16.gmra.mxu0 %v7417
      %v7588 = vpop.f32.mrf.mxu0
      %v7589 = vadd.f32 %v7490, %v7588
      %v7590 = vpop.f32.mrf.mxu0
      %v7591 = vadd.f32 %v7490, %v7590
      %7592 = vmatmul.bf16.gmra.mxu0 %v7418
      %v7593 = vpop.f32.mrf.mxu0
      %v7594 = vadd.f32 %v7490, %v7593
      %v7595 = vpop.f32.mrf.mxu0
      %v7596 = vadd.f32 %v7490, %v7595
      %7597 = vmatmul.bf16.gmra.mxu0 %v7419
      %v7598 = vpop.f32.mrf.mxu0
      %v7599 = vadd.f32 %v7490, %v7598
      %v7600 = vpop.f32.mrf.mxu0
      %v7601 = vadd.f32 %v7490, %v7600
      %7602 = vmatmul.bf16.gmra.mxu0 %v7420
      %v7603 = vpop.f32.mrf.mxu0
      %v7604 = vadd.f32 %v7490, %v7603
      %v7605 = vpop.f32.mrf.mxu0
      %v7606 = vadd.f32 %v7490, %v7605
      %7607 = vmatmul.bf16.gmra.mxu0 %v7421
      %v7608 = vpop.f32.mrf.mxu0
      %v7609 = vadd.f32 %v7490, %v7608
      %v7610 = vpop.f32.mrf.mxu0
      %v7611 = vadd.f32 %v7490, %v7610
      %7612 = vmatmul.bf16.gmra.mxu0 %v7422
      %v7613 = vpop.f32.mrf.mxu0
      %v7614 = vadd.f32 %v7490, %v7613
      %v7615 = vpop.f32.mrf.mxu0
      %v7616 = vadd.f32 %v7490, %v7615
      %7617 = vmatmul.bf16.gmra.mxu0 %v7423
      %v7618 = vpop.f32.mrf.mxu0
      %v7619 = vadd.f32 %v7490, %v7618
      %v7620 = vpop.f32.mrf.mxu0
      %v7621 = vadd.f32 %v7490, %v7620
      %7622 = vmatmul.bf16.gmra.mxu0 %v7424
      %v7623 = vpop.f32.mrf.mxu0
      %v7624 = vadd.f32 %v7490, %v7623
      %v7625 = vpop.f32.mrf.mxu0
      %v7626 = vadd.f32 %v7490, %v7625
      %7627 = vmatmul.bf16.gmra.mxu0 %v7425
      %v7628 = vpop.f32.mrf.mxu0
      %v7629 = vadd.f32 %v7490, %v7628
      %v7630 = vpop.f32.mrf.mxu0
      %v7631 = vadd.f32 %v7490, %v7630
      %7632 = vmatmul.bf16.gmra.mxu0 %v7426
      %v7633 = vpop.f32.mrf.mxu0
      %v7634 = vadd.f32 %v7490, %v7633
      %v7635 = vpop.f32.mrf.mxu0
      %v7636 = vadd.f32 %v7490, %v7635
      %7637 = vmatmul.bf16.gmra.mxu0 %v7427
      %v7638 = vpop.f32.mrf.mxu0
      %v7639 = vadd.f32 %v7490, %v7638
      %v7640 = vpop.f32.mrf.mxu0
      %v7641 = vadd.f32 %v7490, %v7640
      %7642 = vmatmul.bf16.gmra.mxu0 %v7428
      %v7643 = vpop.f32.mrf.mxu0
      %v7644 = vadd.f32 %v7490, %v7643
      %v7645 = vpop.f32.mrf.mxu0
      %v7646 = vadd.f32 %v7490, %v7645
      %7647 = vmatmul.bf16.gmra.mxu0 %v7429
      %v7648 = vpop.f32.mrf.mxu0
      %v7649 = vadd.f32 %v7490, %v7648
      %v7650 = vpop.f32.mrf.mxu0
      %v7651 = vadd.f32 %v7490, %v7650
      %7652 = vmatmul.bf16.gmra.mxu0 %v7430
      %v7653 = vpop.f32.mrf.mxu0
      %v7654 = vadd.f32 %v7490, %v7653
      %v7655 = vpop.f32.mrf.mxu0
      %v7656 = vadd.f32 %v7490, %v7655
      %7657 = vmatmul.bf16.gmra.mxu0 %v7431
      %v7658 = vpop.f32.mrf.mxu0
      %v7659 = vadd.f32 %v7490, %v7658
      %v7660 = vpop.f32.mrf.mxu0
      %v7661 = vadd.f32 %v7490, %v7660
      %7662 = vmatmul.bf16.gmra.mxu0 %v7432
      %v7663 = vpop.f32.mrf.mxu0
      %v7664 = vadd.f32 %v7490, %v7663
      %v7665 = vpop.f32.mrf.mxu0
      %v7666 = vadd.f32 %v7490, %v7665
      %7667 = vmatmul.bf16.gmra.mxu0 %v7433
      %v7668 = vpop.f32.mrf.mxu0
      %v7669 = vadd.f32 %v7490, %v7668
      %v7670 = vpop.f32.mrf.mxu0
      %v7671 = vadd.f32 %v7490, %v7670
      %7672 = vmatmul.bf16.gmra.mxu0 %v7434
      %v7673 = vpop.f32.mrf.mxu0
      %v7674 = vadd.f32 %v7490, %v7673
      %v7675 = vpop.f32.mrf.mxu0
      %v7676 = vadd.f32 %v7490, %v7675
      %7677 = vmatmul.bf16.gmra.mxu0 %v7435
      %v7678 = vpop.f32.mrf.mxu0
      %v7679 = vadd.f32 %v7490, %v7678
      %v7680 = vpop.f32.mrf.mxu0
      %v7681 = vadd.f32 %v7490, %v7680
      %7682 = vmatmul.bf16.gmra.mxu0 %v7436
      %v7683 = vpop.f32.mrf.mxu0
      %v7684 = vadd.f32 %v7490, %v7683
      %v7685 = vpop.f32.mrf.mxu0
      %v7686 = vadd.f32 %v7490, %v7685
      %7687 = vmatmul.bf16.gmra.mxu0 %v7437
      %v7688 = vpop.f32.mrf.mxu0
      %v7689 = vadd.f32 %v7490, %v7688
      %v7690 = vpop.f32.mrf.mxu0
      %v7691 = vadd.f32 %v7490, %v7690
      %7692 = vmatmul.bf16.gmra.mxu0 %v7438
      %v7693 = vpop.f32.mrf.mxu0
      %v7694 = vadd.f32 %v7490, %v7693
      %v7695 = vpop.f32.mrf.mxu0
      %v7696 = vadd.f32 %v7490, %v7695
      %7697 = vmatmul.bf16.gmra.mxu0 %v7439
      %v7698 = vpop.f32.mrf.mxu0
      %v7699 = vadd.f32 %v7490, %v7698
      %v7700 = vpop.f32.mrf.mxu0
      %v7701 = vadd.f32 %v7490, %v7700
      %7702 = vmatmul.bf16.gmra.mxu0 %v7440
      %v7703 = vpop.f32.mrf.mxu0
      %v7704 = vadd.f32 %v7490, %v7703
      %v7705 = vpop.f32.mrf.mxu0
      %v7706 = vadd.f32 %v7490, %v7705
      %7707 = vmatmul.bf16.gmra.mxu0 %v7441
      %v7708 = vpop.f32.mrf.mxu0
      %v7709 = vadd.f32 %v7490, %v7708
      %v7710 = vpop.f32.mrf.mxu0
      %v7711 = vadd.f32 %v7490, %v7710
      %7712 = vmatmul.bf16.gmra.mxu0 %v7442
      %v7713 = vpop.f32.mrf.mxu0
      %v7714 = vadd.f32 %v7490, %v7713
      %v7715 = vpop.f32.mrf.mxu0
      %v7716 = vadd.f32 %v7490, %v7715
      %7717 = vmatmul.bf16.gmra.mxu0 %v7443
      %v7718 = vpop.f32.mrf.mxu0
      %v7719 = vadd.f32 %v7490, %v7718
      %v7720 = vpop.f32.mrf.mxu0
      %v7721 = vadd.f32 %v7490, %v7720
      %7722 = vmatmul.bf16.gmra.mxu0 %v7444
      %v7723 = vpop.f32.mrf.mxu0
      %v7724 = vadd.f32 %v7490, %v7723
      %v7725 = vpop.f32.mrf.mxu0
      %v7726 = vadd.f32 %v7490, %v7725
      %7727 = vmatmul.bf16.gmra.mxu0 %v7445
      %v7728 = vpop.f32.mrf.mxu0
      %v7729 = vadd.f32 %v7490, %v7728
      %v7730 = vpop.f32.mrf.mxu0
      %v7731 = vadd.f32 %v7490, %v7730
      %7732 = vmatmul.bf16.gmra.mxu0 %v7446
      %v7733 = vpop.f32.mrf.mxu0
      %v7734 = vadd.f32 %v7490, %v7733
      %v7735 = vpop.f32.mrf.mxu0
      %v7736 = vadd.f32 %v7490, %v7735
      %7737 = vmatmul.bf16.gmra.mxu0 %v7447
      %v7738 = vpop.f32.mrf.mxu0
      %v7739 = vadd.f32 %v7490, %v7738
      %v7740 = vpop.f32.mrf.mxu0
      %v7741 = vadd.f32 %v7490, %v7740
      %7742 = vmatmul.bf16.gmra.mxu0 %v7448
      %v7743 = vpop.f32.mrf.mxu0
      %v7744 = vadd.f32 %v7490, %v7743
      %v7745 = vpop.f32.mrf.mxu0
      %v7746 = vadd.f32 %v7490, %v7745
      %7747 = vmatmul.bf16.gmra.mxu0 %v7449
      %v7748 = vpop.f32.mrf.mxu0
      %v7749 = vadd.f32 %v7490, %v7748
      %v7750 = vpop.f32.mrf.mxu0
      %v7751 = vadd.f32 %v7490, %v7750
      %7752 = vmatmul.bf16.gmra.mxu0 %v7450
      %v7753 = vpop.f32.mrf.mxu0
      %v7754 = vadd.f32 %v7490, %v7753
      %v7755 = vpop.f32.mrf.mxu0
      %v7756 = vadd.f32 %v7490, %v7755
      %7757 = vmatmul.bf16.gmra.mxu0 %v7451
      %v7758 = vpop.f32.mrf.mxu0
      %v7759 = vadd.f32 %v7490, %v7758
      %v7760 = vpop.f32.mrf.mxu0
      %v7761 = vadd.f32 %v7490, %v7760
      %7762 = vmatmul.bf16.gmra.mxu0 %v7452
      %v7763 = vpop.f32.mrf.mxu0
      %v7764 = vadd.f32 %v7490, %v7763
      %v7765 = vpop.f32.mrf.mxu0
      %v7766 = vadd.f32 %v7490, %v7765
      %7767 = vmatmul.bf16.gmra.mxu0 %v7453
      %v7768 = vpop.f32.mrf.mxu0
      %v7769 = vadd.f32 %v7490, %v7768
      %v7770 = vpop.f32.mrf.mxu0
      %v7771 = vadd.f32 %v7490, %v7770
      %7772 = vmatmul.bf16.gmra.mxu0 %v7454
      %v7773 = vpop.f32.mrf.mxu0
      %v7774 = vadd.f32 %v7490, %v7773
      %v7775 = vpop.f32.mrf.mxu0
      %v7776 = vadd.f32 %v7490, %v7775
      %7777 = vmatmul.bf16.gmra.mxu0 %v7455
      %v7778 = vpop.f32.mrf.mxu0
      %v7779 = vadd.f32 %v7490, %v7778
      %v7780 = vpop.f32.mrf.mxu0
      %v7781 = vadd.f32 %v7490, %v7780
      %7782 = vmatmul.bf16.gmra.mxu0 %v7456
      %v7783 = vpop.f32.mrf.mxu0
      %v7784 = vadd.f32 %v7490, %v7783
      %v7785 = vpop.f32.mrf.mxu0
      %v7786 = vadd.f32 %v7490, %v7785
      %7787 = vmatmul.bf16.gmra.mxu0 %v7457
      %v7788 = vpop.f32.mrf.mxu0
      %v7789 = vadd.f32 %v7490, %v7788
      %v7790 = vpop.f32.mrf.mxu0
      %v7791 = vadd.f32 %v7490, %v7790
      %7792 = vmatmul.bf16.gmra.mxu0 %v7458
      %v7793 = vpop.f32.mrf.mxu0
      %v7794 = vadd.f32 %v7490, %v7793
      %v7795 = vpop.f32.mrf.mxu0
      %v7796 = vadd.f32 %v7490, %v7795
      %7797 = vmatmul.bf16.gmra.mxu0 %v7459
      %v7798 = vpop.f32.mrf.mxu0
      %v7799 = vadd.f32 %v7490, %v7798
      %v7800 = vpop.f32.mrf.mxu0
      %v7801 = vadd.f32 %v7490, %v7800
      %7802 = vmatmul.bf16.gmra.mxu0 %v7460
      %v7803 = vpop.f32.mrf.mxu0
      %v7804 = vadd.f32 %v7490, %v7803
      %v7805 = vpop.f32.mrf.mxu0
      %v7806 = vadd.f32 %v7490, %v7805
      %7807 = vmatmul.bf16.gmra.mxu0 %v7461
      %v7808 = vpop.f32.mrf.mxu0
      %v7809 = vadd.f32 %v7490, %v7808
      %v7810 = vpop.f32.mrf.mxu0
      %v7811 = vadd.f32 %v7490, %v7810
      %7812 = vmatmul.bf16.gmra.mxu0 %v7462
      %v7813 = vpop.f32.mrf.mxu0
      %v7814 = vadd.f32 %v7490, %v7813
      %v7815 = vpop.f32.mrf.mxu0
      %v7816 = vadd.f32 %v7490, %v7815
      %7817 = vmatmul.bf16.gmra.mxu0 %v7463
      %v7818 = vpop.f32.mrf.mxu0
      %v7819 = vadd.f32 %v7490, %v7818
      %v7820 = vpop.f32.mrf.mxu0
      %v7821 = vadd.f32 %v7490, %v7820
      %7822 = vmatmul.bf16.gmra.mxu0 %v7464
      %v7823 = vpop.f32.mrf.mxu0
      %v7824 = vadd.f32 %v7490, %v7823
      %v7825 = vpop.f32.mrf.mxu0
      %v7826 = vadd.f32 %v7490, %v7825
      %7827 = vmatmul.bf16.gmra.mxu0 %v7465
      %v7828 = vpop.f32.mrf.mxu0
      %v7829 = vadd.f32 %v7490, %v7828
      %v7830 = vpop.f32.mrf.mxu0
      %v7831 = vadd.f32 %v7490, %v7830
      %7832 = vmatmul.bf16.gmra.mxu0 %v7466
      %v7833 = vpop.f32.mrf.mxu0
      %v7834 = vadd.f32 %v7490, %v7833
      %v7835 = vpop.f32.mrf.mxu0
      %v7836 = vadd.f32 %v7490, %v7835
      %7837 = vmatmul.bf16.gmra.mxu0 %v7467
      %v7838 = vpop.f32.mrf.mxu0
      %v7839 = vadd.f32 %v7490, %v7838
      %v7840 = vpop.f32.mrf.mxu0
      %v7841 = vadd.f32 %v7490, %v7840
      %7842 = vmatmul.bf16.gmra.mxu0 %v7468
      %v7843 = vpop.f32.mrf.mxu0
      %v7844 = vadd.f32 %v7490, %v7843
      %v7845 = vpop.f32.mrf.mxu0
      %v7846 = vadd.f32 %v7490, %v7845
      %7847 = vmatmul.bf16.gmra.mxu0 %v7469
      %v7848 = vpop.f32.mrf.mxu0
      %v7849 = vadd.f32 %v7490, %v7848
      %v7850 = vpop.f32.mrf.mxu0
      %v7851 = vadd.f32 %v7490, %v7850
      %7852 = vmatmul.bf16.gmra.mxu0 %v7470
      %v7853 = vpop.f32.mrf.mxu0
      %v7854 = vadd.f32 %v7490, %v7853
      %v7855 = vpop.f32.mrf.mxu0
      %v7856 = vadd.f32 %v7490, %v7855
      %7857 = vmatmul.bf16.gmra.mxu0 %v7471
      %v7858 = vpop.f32.mrf.mxu0
      %v7859 = vadd.f32 %v7490, %v7858
      %v7860 = vpop.f32.mrf.mxu0
      %v7861 = vadd.f32 %v7490, %v7860
      %7862 = vmatmul.bf16.gmra.mxu0 %v7472
      %v7863 = vpop.f32.mrf.mxu0
      %v7864 = vadd.f32 %v7490, %v7863
      %v7865 = vpop.f32.mrf.mxu0
      %v7866 = vadd.f32 %v7490, %v7865
      %7867 = vdwg.mxu0
      %v7868 = vadd.f32 %v6566, %v7549
      %v7869 = vadd.f32 %v6567, %v7551
      %v7870 = vadd.f32 %v6568, %v7554
      %v7871 = vadd.f32 %v6569, %v7556
      %v7872 = vadd.f32 %v6570, %v7559
      %v7873 = vadd.f32 %v6571, %v7561
      %v7874 = vadd.f32 %v6572, %v7564
      %v7875 = vadd.f32 %v6573, %v7566
      %v7876 = vadd.f32 %v6574, %v7569
      %v7877 = vadd.f32 %v6575, %v7571
      %v7878 = vadd.f32 %v6576, %v7574
      %v7879 = vadd.f32 %v6577, %v7576
      %v7880 = vadd.f32 %v6578, %v7579
      %v7881 = vadd.f32 %v6579, %v7581
      %v7882 = vadd.f32 %v6580, %v7584
      %v7883 = vadd.f32 %v6581, %v7586
      %v7884 = vadd.f32 %v6582, %v7589
      %v7885 = vadd.f32 %v6583, %v7591
      %v7886 = vadd.f32 %v6584, %v7594
      %v7887 = vadd.f32 %v6585, %v7596
      %v7888 = vadd.f32 %v6586, %v7599
      %v7889 = vadd.f32 %v6587, %v7601
      %v7890 = vadd.f32 %v6588, %v7604
      %v7891 = vadd.f32 %v6589, %v7606
      %v7892 = vadd.f32 %v6590, %v7609
      %v7893 = vadd.f32 %v6591, %v7611
      %v7894 = vadd.f32 %v6592, %v7614
      %v7895 = vadd.f32 %v6593, %v7616
      %v7896 = vadd.f32 %v6594, %v7619
      %v7897 = vadd.f32 %v6595, %v7621
      %v7898 = vadd.f32 %v6596, %v7624
      %v7899 = vadd.f32 %v6597, %v7626
      %v7900 = vadd.f32 %v6598, %v7629
      %v7901 = vadd.f32 %v6599, %v7631
      %v7902 = vadd.f32 %v6600, %v7634
      %v7903 = vadd.f32 %v6601, %v7636
      %v7904 = vadd.f32 %v6602, %v7639
      %v7905 = vadd.f32 %v6603, %v7641
      %v7906 = vadd.f32 %v6604, %v7644
      %v7907 = vadd.f32 %v6605, %v7646
      %v7908 = vadd.f32 %v6606, %v7649
      %v7909 = vadd.f32 %v6607, %v7651
      %v7910 = vadd.f32 %v6608, %v7654
      %v7911 = vadd.f32 %v6609, %v7656
      %v7912 = vadd.f32 %v6610, %v7659
      %v7913 = vadd.f32 %v6611, %v7661
      %v7914 = vadd.f32 %v6612, %v7664
      %v7915 = vadd.f32 %v6613, %v7666
      %v7916 = vadd.f32 %v6614, %v7669
      %v7917 = vadd.f32 %v6615, %v7671
      %v7918 = vadd.f32 %v6616, %v7674
      %v7919 = vadd.f32 %v6617, %v7676
      %v7920 = vadd.f32 %v6618, %v7679
      %v7921 = vadd.f32 %v6619, %v7681
      %v7922 = vadd.f32 %v6620, %v7684
      %v7923 = vadd.f32 %v6621, %v7686
      %v7924 = vadd.f32 %v6622, %v7689
      %v7925 = vadd.f32 %v6623, %v7691
      %v7926 = vadd.f32 %v6624, %v7694
      %v7927 = vadd.f32 %v6625, %v7696
      %v7928 = vadd.f32 %v6626, %v7699
      %v7929 = vadd.f32 %v6627, %v7701
      %v7930 = vadd.f32 %v6628, %v7704
      %v7931 = vadd.f32 %v6629, %v7706
      %v7932 = vadd.f32 %v6630, %v7709
      %v7933 = vadd.f32 %v6631, %v7711
      %v7934 = vadd.f32 %v6632, %v7714
      %v7935 = vadd.f32 %v6633, %v7716
      %v7936 = vadd.f32 %v6634, %v7719
      %v7937 = vadd.f32 %v6635, %v7721
      %v7938 = vadd.f32 %v6636, %v7724
      %v7939 = vadd.f32 %v6637, %v7726
      %v7940 = vadd.f32 %v6638, %v7729
      %v7941 = vadd.f32 %v6639, %v7731
      %v7942 = vadd.f32 %v6640, %v7734
      %v7943 = vadd.f32 %v6641, %v7736
      %v7944 = vadd.f32 %v6642, %v7739
      %v7945 = vadd.f32 %v6643, %v7741
      %v7946 = vadd.f32 %v6644, %v7744
      %v7947 = vadd.f32 %v6645, %v7746
      %v7948 = vadd.f32 %v6646, %v7749
      %v7949 = vadd.f32 %v6647, %v7751
      %v7950 = vadd.f32 %v6648, %v7754
      %v7951 = vadd.f32 %v6649, %v7756
      %v7952 = vadd.f32 %v6650, %v7759
      %v7953 = vadd.f32 %v6651, %v7761
      %v7954 = vadd.f32 %v6652, %v7764
      %v7955 = vadd.f32 %v6653, %v7766
      %v7956 = vadd.f32 %v6654, %v7769
      %v7957 = vadd.f32 %v6655, %v7771
      %v7958 = vadd.f32 %v6656, %v7774
      %v7959 = vadd.f32 %v6657, %v7776
      %v7960 = vadd.f32 %v6658, %v7779
      %v7961 = vadd.f32 %v6659, %v7781
      %v7962 = vadd.f32 %v6660, %v7784
      %v7963 = vadd.f32 %v6661, %v7786
      %v7964 = vadd.f32 %v6662, %v7789
      %v7965 = vadd.f32 %v6663, %v7791
      %v7966 = vadd.f32 %v6664, %v7794
      %v7967 = vadd.f32 %v6665, %v7796
      %v7968 = vadd.f32 %v6666, %v7799
      %v7969 = vadd.f32 %v6667, %v7801
      %v7970 = vadd.f32 %v6668, %v7804
      %v7971 = vadd.f32 %v6669, %v7806
      %v7972 = vadd.f32 %v6670, %v7809
      %v7973 = vadd.f32 %v6671, %v7811
      %v7974 = vadd.f32 %v6672, %v7814
      %v7975 = vadd.f32 %v6673, %v7816
      %v7976 = vadd.f32 %v6674, %v7819
      %v7977 = vadd.f32 %v6675, %v7821
      %v7978 = vadd.f32 %v6676, %v7824
      %v7979 = vadd.f32 %v6677, %v7826
      %v7980 = vadd.f32 %v6678, %v7829
      %v7981 = vadd.f32 %v6679, %v7831
      %v7982 = vadd.f32 %v6680, %v7834
      %v7983 = vadd.f32 %v6681, %v7836
      %v7984 = vadd.f32 %v6682, %v7839
      %v7985 = vadd.f32 %v6683, %v7841
      %v7986 = vadd.f32 %v6684, %v7844
      %v7987 = vadd.f32 %v6685, %v7846
      %v7988 = vadd.f32 %v6686, %v7849
      %v7989 = vadd.f32 %v6687, %v7851
      %v7990 = vadd.f32 %v6688, %v7854
      %v7991 = vadd.f32 %v6689, %v7856
      %v7992 = vadd.f32 %v6690, %v7859
      %v7993 = vadd.f32 %v6691, %v7861
      %v7994 = vadd.f32 %v6692, %v7864
      %v7995 = vadd.f32 %v6693, %v7866
      %v7996 = vadd.f32 %v7868, %v3002
      %v7997 = vadd.f32 %v7869, %v3004
      %v7998 = vadd.f32 %v7870, %v3007
      %v7999 = vadd.f32 %v7871, %v3009
      %v8000 = vadd.f32 %v7872, %v3012
      %v8001 = vadd.f32 %v7873, %v3014
      %v8002 = vadd.f32 %v7874, %v3017
      %v8003 = vadd.f32 %v7875, %v3019
      %v8004 = vadd.f32 %v7876, %v3022
      %v8005 = vadd.f32 %v7877, %v3024
      %v8006 = vadd.f32 %v7878, %v3027
      %v8007 = vadd.f32 %v7879, %v3029
      %v8008 = vadd.f32 %v7880, %v3032
      %v8009 = vadd.f32 %v7881, %v3034
      %v8010 = vadd.f32 %v7882, %v3037
      %v8011 = vadd.f32 %v7883, %v3039
      %v8012 = vadd.f32 %v7884, %v3042
      %v8013 = vadd.f32 %v7885, %v3044
      %v8014 = vadd.f32 %v7886, %v3047
      %v8015 = vadd.f32 %v7887, %v3049
      %v8016 = vadd.f32 %v7888, %v3052
      %v8017 = vadd.f32 %v7889, %v3054
      %v8018 = vadd.f32 %v7890, %v3057
      %v8019 = vadd.f32 %v7891, %v3059
      %v8020 = vadd.f32 %v7892, %v3062
      %v8021 = vadd.f32 %v7893, %v3064
      %v8022 = vadd.f32 %v7894, %v3067
      %v8023 = vadd.f32 %v7895, %v3069
      %v8024 = vadd.f32 %v7896, %v3072
      %v8025 = vadd.f32 %v7897, %v3074
      %v8026 = vadd.f32 %v7898, %v3077
      %v8027 = vadd.f32 %v7899, %v3079
      %v8028 = vadd.f32 %v7900, %v3082
      %v8029 = vadd.f32 %v7901, %v3084
      %v8030 = vadd.f32 %v7902, %v3087
      %v8031 = vadd.f32 %v7903, %v3089
      %v8032 = vadd.f32 %v7904, %v3092
      %v8033 = vadd.f32 %v7905, %v3094
      %v8034 = vadd.f32 %v7906, %v3097
      %v8035 = vadd.f32 %v7907, %v3099
      %v8036 = vadd.f32 %v7908, %v3102
      %v8037 = vadd.f32 %v7909, %v3104
      %v8038 = vadd.f32 %v7910, %v3107
      %v8039 = vadd.f32 %v7911, %v3109
      %v8040 = vadd.f32 %v7912, %v3112
      %v8041 = vadd.f32 %v7913, %v3114
      %v8042 = vadd.f32 %v7914, %v3117
      %v8043 = vadd.f32 %v7915, %v3119
      %v8044 = vadd.f32 %v7916, %v3122
      %v8045 = vadd.f32 %v7917, %v3124
      %v8046 = vadd.f32 %v7918, %v3127
      %v8047 = vadd.f32 %v7919, %v3129
      %v8048 = vadd.f32 %v7920, %v3132
      %v8049 = vadd.f32 %v7921, %v3134
      %v8050 = vadd.f32 %v7922, %v3137
      %v8051 = vadd.f32 %v7923, %v3139
      %v8052 = vadd.f32 %v7924, %v3142
      %v8053 = vadd.f32 %v7925, %v3144
      %v8054 = vadd.f32 %v7926, %v3147
      %v8055 = vadd.f32 %v7927, %v3149
      %v8056 = vadd.f32 %v7928, %v3152
      %v8057 = vadd.f32 %v7929, %v3154
      %v8058 = vadd.f32 %v7930, %v3157
      %v8059 = vadd.f32 %v7931, %v3159
      %v8060 = vadd.f32 %v7932, %v3162
      %v8061 = vadd.f32 %v7933, %v3164
      %v8062 = vadd.f32 %v7934, %v3167
      %v8063 = vadd.f32 %v7935, %v3169
      %v8064 = vadd.f32 %v7936, %v3172
      %v8065 = vadd.f32 %v7937, %v3174
      %v8066 = vadd.f32 %v7938, %v3177
      %v8067 = vadd.f32 %v7939, %v3179
      %v8068 = vadd.f32 %v7940, %v3182
      %v8069 = vadd.f32 %v7941, %v3184
      %v8070 = vadd.f32 %v7942, %v3187
      %v8071 = vadd.f32 %v7943, %v3189
      %v8072 = vadd.f32 %v7944, %v3192
      %v8073 = vadd.f32 %v7945, %v3194
      %v8074 = vadd.f32 %v7946, %v3197
      %v8075 = vadd.f32 %v7947, %v3199
      %v8076 = vadd.f32 %v7948, %v3202
      %v8077 = vadd.f32 %v7949, %v3204
      %v8078 = vadd.f32 %v7950, %v3207
      %v8079 = vadd.f32 %v7951, %v3209
      %v8080 = vadd.f32 %v7952, %v3212
      %v8081 = vadd.f32 %v7953, %v3214
      %v8082 = vadd.f32 %v7954, %v3217
      %v8083 = vadd.f32 %v7955, %v3219
      %v8084 = vadd.f32 %v7956, %v3222
      %v8085 = vadd.f32 %v7957, %v3224
      %v8086 = vadd.f32 %v7958, %v3227
      %v8087 = vadd.f32 %v7959, %v3229
      %v8088 = vadd.f32 %v7960, %v3232
      %v8089 = vadd.f32 %v7961, %v3234
      %v8090 = vadd.f32 %v7962, %v3237
      %v8091 = vadd.f32 %v7963, %v3239
      %v8092 = vadd.f32 %v7964, %v3242
      %v8093 = vadd.f32 %v7965, %v3244
      %v8094 = vadd.f32 %v7966, %v3247
      %v8095 = vadd.f32 %v7967, %v3249
      %v8096 = vadd.f32 %v7968, %v3252
      %v8097 = vadd.f32 %v7969, %v3254
      %v8098 = vadd.f32 %v7970, %v3257
      %v8099 = vadd.f32 %v7971, %v3259
      %v8100 = vadd.f32 %v7972, %v3262
      %v8101 = vadd.f32 %v7973, %v3264
      %v8102 = vadd.f32 %v7974, %v3267
      %v8103 = vadd.f32 %v7975, %v3269
      %v8104 = vadd.f32 %v7976, %v3272
      %v8105 = vadd.f32 %v7977, %v3274
      %v8106 = vadd.f32 %v7978, %v3277
      %v8107 = vadd.f32 %v7979, %v3279
      %v8108 = vadd.f32 %v7980, %v3282
      %v8109 = vadd.f32 %v7981, %v3284
      %v8110 = vadd.f32 %v7982, %v3287
      %v8111 = vadd.f32 %v7983, %v3289
      %v8112 = vadd.f32 %v7984, %v3292
      %v8113 = vadd.f32 %v7985, %v3294
      %v8114 = vadd.f32 %v7986, %v3297
      %v8115 = vadd.f32 %v7987, %v3299
      %v8116 = vadd.f32 %v7988, %v3302
      %v8117 = vadd.f32 %v7989, %v3304
      %v8118 = vadd.f32 %v7990, %v3307
      %v8119 = vadd.f32 %v7991, %v3309
      %v8120 = vadd.f32 %v7992, %v3312
      %v8121 = vadd.f32 %v7993, %v3314
      %v8122 = vadd.f32 %v7994, %v3317
      %v8123 = vadd.f32 %v7995, %v3319
      %v8124 = vperm.slane %v302, 4
      %v8125 = vadd.f32 %v7996, %v8124
      %v8126 = vadd.f32 %v7997, %v8124
      %v8127 = vadd.f32 %v7998, %v8124
      %v8128 = vadd.f32 %v7999, %v8124
      %v8129 = vadd.f32 %v8000, %v8124
      %v8130 = vadd.f32 %v8001, %v8124
      %v8131 = vadd.f32 %v8002, %v8124
      %v8132 = vadd.f32 %v8003, %v8124
      %v8133 = vadd.f32 %v8004, %v8124
      %v8134 = vadd.f32 %v8005, %v8124
      %v8135 = vadd.f32 %v8006, %v8124
      %v8136 = vadd.f32 %v8007, %v8124
      %v8137 = vadd.f32 %v8008, %v8124
      %v8138 = vadd.f32 %v8009, %v8124
      %v8139 = vadd.f32 %v8010, %v8124
      %v8140 = vadd.f32 %v8011, %v8124
      %v8141 = vadd.f32 %v8012, %v8124
      %v8142 = vadd.f32 %v8013, %v8124
      %v8143 = vadd.f32 %v8014, %v8124
      %v8144 = vadd.f32 %v8015, %v8124
      %v8145 = vadd.f32 %v8016, %v8124
      %v8146 = vadd.f32 %v8017, %v8124
      %v8147 = vadd.f32 %v8018, %v8124
      %v8148 = vadd.f32 %v8019, %v8124
      %v8149 = vadd.f32 %v8020, %v8124
      %v8150 = vadd.f32 %v8021, %v8124
      %v8151 = vadd.f32 %v8022, %v8124
      %v8152 = vadd.f32 %v8023, %v8124
      %v8153 = vadd.f32 %v8024, %v8124
      %v8154 = vadd.f32 %v8025, %v8124
      %v8155 = vadd.f32 %v8026, %v8124
      %v8156 = vadd.f32 %v8027, %v8124
      %v8157 = vadd.f32 %v8028, %v8124
      %v8158 = vadd.f32 %v8029, %v8124
      %v8159 = vadd.f32 %v8030, %v8124
      %v8160 = vadd.f32 %v8031, %v8124
      %v8161 = vadd.f32 %v8032, %v8124
      %v8162 = vadd.f32 %v8033, %v8124
      %v8163 = vadd.f32 %v8034, %v8124
      %v8164 = vadd.f32 %v8035, %v8124
      %v8165 = vadd.f32 %v8036, %v8124
      %v8166 = vadd.f32 %v8037, %v8124
      %v8167 = vadd.f32 %v8038, %v8124
      %v8168 = vadd.f32 %v8039, %v8124
      %v8169 = vadd.f32 %v8040, %v8124
      %v8170 = vadd.f32 %v8041, %v8124
      %v8171 = vadd.f32 %v8042, %v8124
      %v8172 = vadd.f32 %v8043, %v8124
      %v8173 = vadd.f32 %v8044, %v8124
      %v8174 = vadd.f32 %v8045, %v8124
      %v8175 = vadd.f32 %v8046, %v8124
      %v8176 = vadd.f32 %v8047, %v8124
      %v8177 = vadd.f32 %v8048, %v8124
      %v8178 = vadd.f32 %v8049, %v8124
      %v8179 = vadd.f32 %v8050, %v8124
      %v8180 = vadd.f32 %v8051, %v8124
      %v8181 = vadd.f32 %v8052, %v8124
      %v8182 = vadd.f32 %v8053, %v8124
      %v8183 = vadd.f32 %v8054, %v8124
      %v8184 = vadd.f32 %v8055, %v8124
      %v8185 = vadd.f32 %v8056, %v8124
      %v8186 = vadd.f32 %v8057, %v8124
      %v8187 = vadd.f32 %v8058, %v8124
      %v8188 = vadd.f32 %v8059, %v8124
      %v8189 = vadd.f32 %v8060, %v8124
      %v8190 = vadd.f32 %v8061, %v8124
      %v8191 = vadd.f32 %v8062, %v8124
      %v8192 = vadd.f32 %v8063, %v8124
      %v8193 = vadd.f32 %v8064, %v8124
      %v8194 = vadd.f32 %v8065, %v8124
      %v8195 = vadd.f32 %v8066, %v8124
      %v8196 = vadd.f32 %v8067, %v8124
      %v8197 = vadd.f32 %v8068, %v8124
      %v8198 = vadd.f32 %v8069, %v8124
      %v8199 = vadd.f32 %v8070, %v8124
      %v8200 = vadd.f32 %v8071, %v8124
      %v8201 = vadd.f32 %v8072, %v8124
      %v8202 = vadd.f32 %v8073, %v8124
      %v8203 = vadd.f32 %v8074, %v8124
      %v8204 = vadd.f32 %v8075, %v8124
      %v8205 = vadd.f32 %v8076, %v8124
      %v8206 = vadd.f32 %v8077, %v8124
      %v8207 = vadd.f32 %v8078, %v8124
      %v8208 = vadd.f32 %v8079, %v8124
      %v8209 = vadd.f32 %v8080, %v8124
      %v8210 = vadd.f32 %v8081, %v8124
      %v8211 = vadd.f32 %v8082, %v8124
      %v8212 = vadd.f32 %v8083, %v8124
      %v8213 = vadd.f32 %v8084, %v8124
      %v8214 = vadd.f32 %v8085, %v8124
      %v8215 = vadd.f32 %v8086, %v8124
      %v8216 = vadd.f32 %v8087, %v8124
      %v8217 = vadd.f32 %v8088, %v8124
      %v8218 = vadd.f32 %v8089, %v8124
      %v8219 = vadd.f32 %v8090, %v8124
      %v8220 = vadd.f32 %v8091, %v8124
      %v8221 = vadd.f32 %v8092, %v8124
      %v8222 = vadd.f32 %v8093, %v8124
      %v8223 = vadd.f32 %v8094, %v8124
      %v8224 = vadd.f32 %v8095, %v8124
      %v8225 = vadd.f32 %v8096, %v8124
      %v8226 = vadd.f32 %v8097, %v8124
      %v8227 = vadd.f32 %v8098, %v8124
      %v8228 = vadd.f32 %v8099, %v8124
      %v8229 = vadd.f32 %v8100, %v8124
      %v8230 = vadd.f32 %v8101, %v8124
      %v8231 = vadd.f32 %v8102, %v8124
      %v8232 = vadd.f32 %v8103, %v8124
      %v8233 = vadd.f32 %v8104, %v8124
      %v8234 = vadd.f32 %v8105, %v8124
      %v8235 = vadd.f32 %v8106, %v8124
      %v8236 = vadd.f32 %v8107, %v8124
      %v8237 = vadd.f32 %v8108, %v8124
      %v8238 = vadd.f32 %v8109, %v8124
      %v8239 = vadd.f32 %v8110, %v8124
      %v8240 = vadd.f32 %v8111, %v8124
      %v8241 = vadd.f32 %v8112, %v8124
      %v8242 = vadd.f32 %v8113, %v8124
      %v8243 = vadd.f32 %v8114, %v8124
      %v8244 = vadd.f32 %v8115, %v8124
      %v8245 = vadd.f32 %v8116, %v8124
      %v8246 = vadd.f32 %v8117, %v8124
      %v8247 = vadd.f32 %v8118, %v8124
      %v8248 = vadd.f32 %v8119, %v8124
      %v8249 = vadd.f32 %v8120, %v8124
      %v8250 = vadd.f32 %v8121, %v8124
      %v8251 = vadd.f32 %v8122, %v8124
      %v8252 = vadd.f32 %v8123, %v8124
      %v8253 = vmax.f32 %v8125, 0.0
      %v8254 = vmax.f32 %v8126, 0.0
      %v8255 = vmax.f32 %v8127, 0.0
      %v8256 = vmax.f32 %v8128, 0.0
      %v8257 = vmax.f32 %v8129, 0.0
      %v8258 = vmax.f32 %v8130, 0.0
      %v8259 = vmax.f32 %v8131, 0.0
      %v8260 = vmax.f32 %v8132, 0.0
      %v8261 = vmax.f32 %v8133, 0.0
      %v8262 = vmax.f32 %v8134, 0.0
      %v8263 = vmax.f32 %v8135, 0.0
      %v8264 = vmax.f32 %v8136, 0.0
      %v8265 = vmax.f32 %v8137, 0.0
      %v8266 = vmax.f32 %v8138, 0.0
      %v8267 = vmax.f32 %v8139, 0.0
      %v8268 = vmax.f32 %v8140, 0.0
      %v8269 = vmax.f32 %v8141, 0.0
      %v8270 = vmax.f32 %v8142, 0.0
      %v8271 = vmax.f32 %v8143, 0.0
      %v8272 = vmax.f32 %v8144, 0.0
      %v8273 = vmax.f32 %v8145, 0.0
      %v8274 = vmax.f32 %v8146, 0.0
      %v8275 = vmax.f32 %v8147, 0.0
      %v8276 = vmax.f32 %v8148, 0.0
      %v8277 = vmax.f32 %v8149, 0.0
      %v8278 = vmax.f32 %v8150, 0.0
      %v8279 = vmax.f32 %v8151, 0.0
      %v8280 = vmax.f32 %v8152, 0.0
      %v8281 = vmax.f32 %v8153, 0.0
      %v8282 = vmax.f32 %v8154, 0.0
      %v8283 = vmax.f32 %v8155, 0.0
      %v8284 = vmax.f32 %v8156, 0.0
      %v8285 = vmax.f32 %v8157, 0.0
      %v8286 = vmax.f32 %v8158, 0.0
      %v8287 = vmax.f32 %v8159, 0.0
      %v8288 = vmax.f32 %v8160, 0.0
      %v8289 = vmax.f32 %v8161, 0.0
      %v8290 = vmax.f32 %v8162, 0.0
      %v8291 = vmax.f32 %v8163, 0.0
      %v8292 = vmax.f32 %v8164, 0.0
      %v8293 = vmax.f32 %v8165, 0.0
      %v8294 = vmax.f32 %v8166, 0.0
      %v8295 = vmax.f32 %v8167, 0.0
      %v8296 = vmax.f32 %v8168, 0.0
      %v8297 = vmax.f32 %v8169, 0.0
      %v8298 = vmax.f32 %v8170, 0.0
      %v8299 = vmax.f32 %v8171, 0.0
      %v8300 = vmax.f32 %v8172, 0.0
      %v8301 = vmax.f32 %v8173, 0.0
      %v8302 = vmax.f32 %v8174, 0.0
      %v8303 = vmax.f32 %v8175, 0.0
      %v8304 = vmax.f32 %v8176, 0.0
      %v8305 = vmax.f32 %v8177, 0.0
      %v8306 = vmax.f32 %v8178, 0.0
      %v8307 = vmax.f32 %v8179, 0.0
      %v8308 = vmax.f32 %v8180, 0.0
      %v8309 = vmax.f32 %v8181, 0.0
      %v8310 = vmax.f32 %v8182, 0.0
      %v8311 = vmax.f32 %v8183, 0.0
      %v8312 = vmax.f32 %v8184, 0.0
      %v8313 = vmax.f32 %v8185, 0.0
      %v8314 = vmax.f32 %v8186, 0.0
      %v8315 = vmax.f32 %v8187, 0.0
      %v8316 = vmax.f32 %v8188, 0.0
      %v8317 = vmax.f32 %v8189, 0.0
      %v8318 = vmax.f32 %v8190, 0.0
      %v8319 = vmax.f32 %v8191, 0.0
      %v8320 = vmax.f32 %v8192, 0.0
      %v8321 = vmax.f32 %v8193, 0.0
      %v8322 = vmax.f32 %v8194, 0.0
      %v8323 = vmax.f32 %v8195, 0.0
      %v8324 = vmax.f32 %v8196, 0.0
      %v8325 = vmax.f32 %v8197, 0.0
      %v8326 = vmax.f32 %v8198, 0.0
      %v8327 = vmax.f32 %v8199, 0.0
      %v8328 = vmax.f32 %v8200, 0.0
      %v8329 = vmax.f32 %v8201, 0.0
      %v8330 = vmax.f32 %v8202, 0.0
      %v8331 = vmax.f32 %v8203, 0.0
      %v8332 = vmax.f32 %v8204, 0.0
      %v8333 = vmax.f32 %v8205, 0.0
      %v8334 = vmax.f32 %v8206, 0.0
      %v8335 = vmax.f32 %v8207, 0.0
      %v8336 = vmax.f32 %v8208, 0.0
      %v8337 = vmax.f32 %v8209, 0.0
      %v8338 = vmax.f32 %v8210, 0.0
      %v8339 = vmax.f32 %v8211, 0.0
      %v8340 = vmax.f32 %v8212, 0.0
      %v8341 = vmax.f32 %v8213, 0.0
      %v8342 = vmax.f32 %v8214, 0.0
      %v8343 = vmax.f32 %v8215, 0.0
      %v8344 = vmax.f32 %v8216, 0.0
      %v8345 = vmax.f32 %v8217, 0.0
      %v8346 = vmax.f32 %v8218, 0.0
      %v8347 = vmax.f32 %v8219, 0.0
      %v8348 = vmax.f32 %v8220, 0.0
      %v8349 = vmax.f32 %v8221, 0.0
      %v8350 = vmax.f32 %v8222, 0.0
      %v8351 = vmax.f32 %v8223, 0.0
      %v8352 = vmax.f32 %v8224, 0.0
      %v8353 = vmax.f32 %v8225, 0.0
      %v8354 = vmax.f32 %v8226, 0.0
      %v8355 = vmax.f32 %v8227, 0.0
      %v8356 = vmax.f32 %v8228, 0.0
      %v8357 = vmax.f32 %v8229, 0.0
      %v8358 = vmax.f32 %v8230, 0.0
      %v8359 = vmax.f32 %v8231, 0.0
      %v8360 = vmax.f32 %v8232, 0.0
      %v8361 = vmax.f32 %v8233, 0.0
      %v8362 = vmax.f32 %v8234, 0.0
      %v8363 = vmax.f32 %v8235, 0.0
      %v8364 = vmax.f32 %v8236, 0.0
      %v8365 = vmax.f32 %v8237, 0.0
      %v8366 = vmax.f32 %v8238, 0.0
      %v8367 = vmax.f32 %v8239, 0.0
      %v8368 = vmax.f32 %v8240, 0.0
      %v8369 = vmax.f32 %v8241, 0.0
      %v8370 = vmax.f32 %v8242, 0.0
      %v8371 = vmax.f32 %v8243, 0.0
      %v8372 = vmax.f32 %v8244, 0.0
      %v8373 = vmax.f32 %v8245, 0.0
      %v8374 = vmax.f32 %v8246, 0.0
      %v8375 = vmax.f32 %v8247, 0.0
      %v8376 = vmax.f32 %v8248, 0.0
      %v8377 = vmax.f32 %v8249, 0.0
      %v8378 = vmax.f32 %v8250, 0.0
      %v8379 = vmax.f32 %v8251, 0.0
      %v8380 = vmax.f32 %v8252, 0.0
      %v8381 = vpack.c.bf16 %v8254, %v8253
      %v8382 = vpack.c.bf16 %v8256, %v8255
      %v8383 = vpack.c.bf16 %v8258, %v8257
      %v8384 = vpack.c.bf16 %v8260, %v8259
      %v8385 = vpack.c.bf16 %v8262, %v8261
      %v8386 = vpack.c.bf16 %v8264, %v8263
      %v8387 = vpack.c.bf16 %v8266, %v8265
      %v8388 = vpack.c.bf16 %v8268, %v8267
      %v8389 = vpack.c.bf16 %v8270, %v8269
      %v8390 = vpack.c.bf16 %v8272, %v8271
      %v8391 = vpack.c.bf16 %v8274, %v8273
      %v8392 = vpack.c.bf16 %v8276, %v8275
      %v8393 = vpack.c.bf16 %v8278, %v8277
      %v8394 = vpack.c.bf16 %v8280, %v8279
      %v8395 = vpack.c.bf16 %v8282, %v8281
      %v8396 = vpack.c.bf16 %v8284, %v8283
      %v8397 = vpack.c.bf16 %v8286, %v8285
      %v8398 = vpack.c.bf16 %v8288, %v8287
      %v8399 = vpack.c.bf16 %v8290, %v8289
      %v8400 = vpack.c.bf16 %v8292, %v8291
      %v8401 = vpack.c.bf16 %v8294, %v8293
      %v8402 = vpack.c.bf16 %v8296, %v8295
      %v8403 = vpack.c.bf16 %v8298, %v8297
      %v8404 = vpack.c.bf16 %v8300, %v8299
      %v8405 = vpack.c.bf16 %v8302, %v8301
      %v8406 = vpack.c.bf16 %v8304, %v8303
      %v8407 = vpack.c.bf16 %v8306, %v8305
      %v8408 = vpack.c.bf16 %v8308, %v8307
      %v8409 = vpack.c.bf16 %v8310, %v8309
      %v8410 = vpack.c.bf16 %v8312, %v8311
      %v8411 = vpack.c.bf16 %v8314, %v8313
      %v8412 = vpack.c.bf16 %v8316, %v8315
      %v8413 = vpack.c.bf16 %v8318, %v8317
      %v8414 = vpack.c.bf16 %v8320, %v8319
      %v8415 = vpack.c.bf16 %v8322, %v8321
      %v8416 = vpack.c.bf16 %v8324, %v8323
      %v8417 = vpack.c.bf16 %v8326, %v8325
      %v8418 = vpack.c.bf16 %v8328, %v8327
      %v8419 = vpack.c.bf16 %v8330, %v8329
      %v8420 = vpack.c.bf16 %v8332, %v8331
      %v8421 = vpack.c.bf16 %v8334, %v8333
      %v8422 = vpack.c.bf16 %v8336, %v8335
      %v8423 = vpack.c.bf16 %v8338, %v8337
      %v8424 = vpack.c.bf16 %v8340, %v8339
      %v8425 = vpack.c.bf16 %v8342, %v8341
      %v8426 = vpack.c.bf16 %v8344, %v8343
      %v8427 = vpack.c.bf16 %v8346, %v8345
      %v8428 = vpack.c.bf16 %v8348, %v8347
      %v8429 = vpack.c.bf16 %v8350, %v8349
      %v8430 = vpack.c.bf16 %v8352, %v8351
      %v8431 = vpack.c.bf16 %v8354, %v8353
      %v8432 = vpack.c.bf16 %v8356, %v8355
      %v8433 = vpack.c.bf16 %v8358, %v8357
      %v8434 = vpack.c.bf16 %v8360, %v8359
      %v8435 = vpack.c.bf16 %v8362, %v8361
      %v8436 = vpack.c.bf16 %v8364, %v8363
      %v8437 = vpack.c.bf16 %v8366, %v8365
      %v8438 = vpack.c.bf16 %v8368, %v8367
      %v8439 = vpack.c.bf16 %v8370, %v8369
      %v8440 = vpack.c.bf16 %v8372, %v8371
      %v8441 = vpack.c.bf16 %v8374, %v8373
      %v8442 = vpack.c.bf16 %v8376, %v8375
      %v8443 = vpack.c.bf16 %v8378, %v8377
      %v8444 = vpack.c.bf16 %v8380, %v8379
      %s8445 = scalar_lea.vmem %s4, 192
      %v8446 = vld [vmem:[%s8445] sm:$0xf]
      %v8447 = vld [vmem:[%s8445 + $0x4] sm:$0xf]
      %v8448 = vld [vmem:[%s8445 + $0x8] sm:$0xf]
      %v8449 = vld [vmem:[%s8445 + $0xc] sm:$0xf]
      %v8450 = vld [vmem:[%s8445 + $0x10] sm:$0xf]
      %v8451 = vld [vmem:[%s8445 + $0x14] sm:$0xf]
      %v8452 = vld [vmem:[%s8445 + $0x18] sm:$0xf]
      %v8453 = vld [vmem:[%s8445 + $0x1c] sm:$0xf]
      %v8454 = vld [vmem:[%s8445 + $0x20] sm:$0xf]
      %v8455 = vld [vmem:[%s8445 + $0x24] sm:$0xf]
      %v8456 = vld [vmem:[%s8445 + $0x28] sm:$0xf]
      %v8457 = vld [vmem:[%s8445 + $0x2c] sm:$0xf]
      %v8458 = vld [vmem:[%s8445 + $0x30] sm:$0xf]
      %v8459 = vld [vmem:[%s8445 + $0x34] sm:$0xf]
      %v8460 = vld [vmem:[%s8445 + $0x38] sm:$0xf]
      %v8461 = vld [vmem:[%s8445 + $0x3c] sm:$0xf]
      %v8462 = vperm.slane %v303, 0
      %v8479 = vunpack.c.l.b16 %v8446
      %v8480 = vunpack.c.l.b16 %v8447
      %v8481 = vunpack.c.l.b16 %v8448
      %v8482 = vunpack.c.l.b16 %v8449
      %v8483 = vunpack.c.l.b16 %v8450
      %v8484 = vunpack.c.l.b16 %v8451
      %v8485 = vunpack.c.l.b16 %v8452
      %v8486 = vunpack.c.l.b16 %v8453
      %v8487 = vunpack.c.l.b16 %v8454
      %v8488 = vunpack.c.l.b16 %v8455
      %v8489 = vunpack.c.l.b16 %v8456
      %v8490 = vunpack.c.l.b16 %v8457
      %v8491 = vunpack.c.l.b16 %v8458
      %v8492 = vunpack.c.l.b16 %v8459
      %v8493 = vunpack.c.l.b16 %v8460
      %v8494 = vunpack.c.l.b16 %v8461
      %v8495 = vpack.c.b16 %v8480, %v8479
      %v8496 = vpack.c.b16 %v8482, %v8481
      %v8497 = vpack.c.b16 %v8484, %v8483
      %v8498 = vpack.c.b16 %v8486, %v8485
      %v8499 = vpack.c.b16 %v8488, %v8487
      %v8500 = vpack.c.b16 %v8490, %v8489
      %v8501 = vpack.c.b16 %v8492, %v8491
      %v8502 = vpack.c.b16 %v8494, %v8493
      %8511 = vmatpush.bf16.msra.mxu0 %v8502
      %8512 = vmatpush.bf16.msra.mxu0 %v8501
      %8513 = vmatpush.bf16.msra.mxu0 %v8500
      %8514 = vmatpush.bf16.msra.mxu0 %v8499
      %8515 = vmatpush.bf16.msra.mxu0 %v8498
      %8516 = vmatpush.bf16.msra.mxu0 %v8497
      %8517 = vmatpush.bf16.msra.mxu0 %v8496
      %8518 = vmatpush.bf16.msra.mxu0 %v8495
      %8519 = vmatmul.bf16.gmra.mxu0 %v8381
      %v8520 = vpop.f32.mrf.mxu0
      %v8521 = vadd.f32 %v8462, %v8520
      %v8522 = vpop.f32.mrf.mxu0
      %v8523 = vadd.f32 %v8462, %v8522
      %8524 = vmatmul.bf16.gmra.mxu0 %v8382
      %v8525 = vpop.f32.mrf.mxu0
      %v8526 = vadd.f32 %v8462, %v8525
      %v8527 = vpop.f32.mrf.mxu0
      %v8528 = vadd.f32 %v8462, %v8527
      %8529 = vmatmul.bf16.gmra.mxu0 %v8383
      %v8530 = vpop.f32.mrf.mxu0
      %v8531 = vadd.f32 %v8462, %v8530
      %v8532 = vpop.f32.mrf.mxu0
      %v8533 = vadd.f32 %v8462, %v8532
      %8534 = vmatmul.bf16.gmra.mxu0 %v8384
      %v8535 = vpop.f32.mrf.mxu0
      %v8536 = vadd.f32 %v8462, %v8535
      %v8537 = vpop.f32.mrf.mxu0
      %v8538 = vadd.f32 %v8462, %v8537
      %8539 = vmatmul.bf16.gmra.mxu0 %v8385
      %v8540 = vpop.f32.mrf.mxu0
      %v8541 = vadd.f32 %v8462, %v8540
      %v8542 = vpop.f32.mrf.mxu0
      %v8543 = vadd.f32 %v8462, %v8542
      %8544 = vmatmul.bf16.gmra.mxu0 %v8386
      %v8545 = vpop.f32.mrf.mxu0
      %v8546 = vadd.f32 %v8462, %v8545
      %v8547 = vpop.f32.mrf.mxu0
      %v8548 = vadd.f32 %v8462, %v8547
      %8549 = vmatmul.bf16.gmra.mxu0 %v8387
      %v8550 = vpop.f32.mrf.mxu0
      %v8551 = vadd.f32 %v8462, %v8550
      %v8552 = vpop.f32.mrf.mxu0
      %v8553 = vadd.f32 %v8462, %v8552
      %8554 = vmatmul.bf16.gmra.mxu0 %v8388
      %v8555 = vpop.f32.mrf.mxu0
      %v8556 = vadd.f32 %v8462, %v8555
      %v8557 = vpop.f32.mrf.mxu0
      %v8558 = vadd.f32 %v8462, %v8557
      %8559 = vmatmul.bf16.gmra.mxu0 %v8389
      %v8560 = vpop.f32.mrf.mxu0
      %v8561 = vadd.f32 %v8462, %v8560
      %v8562 = vpop.f32.mrf.mxu0
      %v8563 = vadd.f32 %v8462, %v8562
      %8564 = vmatmul.bf16.gmra.mxu0 %v8390
      %v8565 = vpop.f32.mrf.mxu0
      %v8566 = vadd.f32 %v8462, %v8565
      %v8567 = vpop.f32.mrf.mxu0
      %v8568 = vadd.f32 %v8462, %v8567
      %8569 = vmatmul.bf16.gmra.mxu0 %v8391
      %v8570 = vpop.f32.mrf.mxu0
      %v8571 = vadd.f32 %v8462, %v8570
      %v8572 = vpop.f32.mrf.mxu0
      %v8573 = vadd.f32 %v8462, %v8572
      %8574 = vmatmul.bf16.gmra.mxu0 %v8392
      %v8575 = vpop.f32.mrf.mxu0
      %v8576 = vadd.f32 %v8462, %v8575
      %v8577 = vpop.f32.mrf.mxu0
      %v8578 = vadd.f32 %v8462, %v8577
      %8579 = vmatmul.bf16.gmra.mxu0 %v8393
      %v8580 = vpop.f32.mrf.mxu0
      %v8581 = vadd.f32 %v8462, %v8580
      %v8582 = vpop.f32.mrf.mxu0
      %v8583 = vadd.f32 %v8462, %v8582
      %8584 = vmatmul.bf16.gmra.mxu0 %v8394
      %v8585 = vpop.f32.mrf.mxu0
      %v8586 = vadd.f32 %v8462, %v8585
      %v8587 = vpop.f32.mrf.mxu0
      %v8588 = vadd.f32 %v8462, %v8587
      %8589 = vmatmul.bf16.gmra.mxu0 %v8395
      %v8590 = vpop.f32.mrf.mxu0
      %v8591 = vadd.f32 %v8462, %v8590
      %v8592 = vpop.f32.mrf.mxu0
      %v8593 = vadd.f32 %v8462, %v8592
      %8594 = vmatmul.bf16.gmra.mxu0 %v8396
      %v8595 = vpop.f32.mrf.mxu0
      %v8596 = vadd.f32 %v8462, %v8595
      %v8597 = vpop.f32.mrf.mxu0
      %v8598 = vadd.f32 %v8462, %v8597
      %8599 = vmatmul.bf16.gmra.mxu0 %v8397
      %v8600 = vpop.f32.mrf.mxu0
      %v8601 = vadd.f32 %v8462, %v8600
      %v8602 = vpop.f32.mrf.mxu0
      %v8603 = vadd.f32 %v8462, %v8602
      %8604 = vmatmul.bf16.gmra.mxu0 %v8398
      %v8605 = vpop.f32.mrf.mxu0
      %v8606 = vadd.f32 %v8462, %v8605
      %v8607 = vpop.f32.mrf.mxu0
      %v8608 = vadd.f32 %v8462, %v8607
      %8609 = vmatmul.bf16.gmra.mxu0 %v8399
      %v8610 = vpop.f32.mrf.mxu0
      %v8611 = vadd.f32 %v8462, %v8610
      %v8612 = vpop.f32.mrf.mxu0
      %v8613 = vadd.f32 %v8462, %v8612
      %8614 = vmatmul.bf16.gmra.mxu0 %v8400
      %v8615 = vpop.f32.mrf.mxu0
      %v8616 = vadd.f32 %v8462, %v8615
      %v8617 = vpop.f32.mrf.mxu0
      %v8618 = vadd.f32 %v8462, %v8617
      %8619 = vmatmul.bf16.gmra.mxu0 %v8401
      %v8620 = vpop.f32.mrf.mxu0
      %v8621 = vadd.f32 %v8462, %v8620
      %v8622 = vpop.f32.mrf.mxu0
      %v8623 = vadd.f32 %v8462, %v8622
      %8624 = vmatmul.bf16.gmra.mxu0 %v8402
      %v8625 = vpop.f32.mrf.mxu0
      %v8626 = vadd.f32 %v8462, %v8625
      %v8627 = vpop.f32.mrf.mxu0
      %v8628 = vadd.f32 %v8462, %v8627
      %8629 = vmatmul.bf16.gmra.mxu0 %v8403
      %v8630 = vpop.f32.mrf.mxu0
      %v8631 = vadd.f32 %v8462, %v8630
      %v8632 = vpop.f32.mrf.mxu0
      %v8633 = vadd.f32 %v8462, %v8632
      %8634 = vmatmul.bf16.gmra.mxu0 %v8404
      %v8635 = vpop.f32.mrf.mxu0
      %v8636 = vadd.f32 %v8462, %v8635
      %v8637 = vpop.f32.mrf.mxu0
      %v8638 = vadd.f32 %v8462, %v8637
      %8639 = vmatmul.bf16.gmra.mxu0 %v8405
      %v8640 = vpop.f32.mrf.mxu0
      %v8641 = vadd.f32 %v8462, %v8640
      %v8642 = vpop.f32.mrf.mxu0
      %v8643 = vadd.f32 %v8462, %v8642
      %8644 = vmatmul.bf16.gmra.mxu0 %v8406
      %v8645 = vpop.f32.mrf.mxu0
      %v8646 = vadd.f32 %v8462, %v8645
      %v8647 = vpop.f32.mrf.mxu0
      %v8648 = vadd.f32 %v8462, %v8647
      %8649 = vmatmul.bf16.gmra.mxu0 %v8407
      %v8650 = vpop.f32.mrf.mxu0
      %v8651 = vadd.f32 %v8462, %v8650
      %v8652 = vpop.f32.mrf.mxu0
      %v8653 = vadd.f32 %v8462, %v8652
      %8654 = vmatmul.bf16.gmra.mxu0 %v8408
      %v8655 = vpop.f32.mrf.mxu0
      %v8656 = vadd.f32 %v8462, %v8655
      %v8657 = vpop.f32.mrf.mxu0
      %v8658 = vadd.f32 %v8462, %v8657
      %8659 = vmatmul.bf16.gmra.mxu0 %v8409
      %v8660 = vpop.f32.mrf.mxu0
      %v8661 = vadd.f32 %v8462, %v8660
      %v8662 = vpop.f32.mrf.mxu0
      %v8663 = vadd.f32 %v8462, %v8662
      %8664 = vmatmul.bf16.gmra.mxu0 %v8410
      %v8665 = vpop.f32.mrf.mxu0
      %v8666 = vadd.f32 %v8462, %v8665
      %v8667 = vpop.f32.mrf.mxu0
      %v8668 = vadd.f32 %v8462, %v8667
      %8669 = vmatmul.bf16.gmra.mxu0 %v8411
      %v8670 = vpop.f32.mrf.mxu0
      %v8671 = vadd.f32 %v8462, %v8670
      %v8672 = vpop.f32.mrf.mxu0
      %v8673 = vadd.f32 %v8462, %v8672
      %8674 = vmatmul.bf16.gmra.mxu0 %v8412
      %v8675 = vpop.f32.mrf.mxu0
      %v8676 = vadd.f32 %v8462, %v8675
      %v8677 = vpop.f32.mrf.mxu0
      %v8678 = vadd.f32 %v8462, %v8677
      %8679 = vmatmul.bf16.gmra.mxu0 %v8413
      %v8680 = vpop.f32.mrf.mxu0
      %v8681 = vadd.f32 %v8462, %v8680
      %v8682 = vpop.f32.mrf.mxu0
      %v8683 = vadd.f32 %v8462, %v8682
      %8684 = vmatmul.bf16.gmra.mxu0 %v8414
      %v8685 = vpop.f32.mrf.mxu0
      %v8686 = vadd.f32 %v8462, %v8685
      %v8687 = vpop.f32.mrf.mxu0
      %v8688 = vadd.f32 %v8462, %v8687
      %8689 = vmatmul.bf16.gmra.mxu0 %v8415
      %v8690 = vpop.f32.mrf.mxu0
      %v8691 = vadd.f32 %v8462, %v8690
      %v8692 = vpop.f32.mrf.mxu0
      %v8693 = vadd.f32 %v8462, %v8692
      %8694 = vmatmul.bf16.gmra.mxu0 %v8416
      %v8695 = vpop.f32.mrf.mxu0
      %v8696 = vadd.f32 %v8462, %v8695
      %v8697 = vpop.f32.mrf.mxu0
      %v8698 = vadd.f32 %v8462, %v8697
      %8699 = vmatmul.bf16.gmra.mxu0 %v8417
      %v8700 = vpop.f32.mrf.mxu0
      %v8701 = vadd.f32 %v8462, %v8700
      %v8702 = vpop.f32.mrf.mxu0
      %v8703 = vadd.f32 %v8462, %v8702
      %8704 = vmatmul.bf16.gmra.mxu0 %v8418
      %v8705 = vpop.f32.mrf.mxu0
      %v8706 = vadd.f32 %v8462, %v8705
      %v8707 = vpop.f32.mrf.mxu0
      %v8708 = vadd.f32 %v8462, %v8707
      %8709 = vmatmul.bf16.gmra.mxu0 %v8419
      %v8710 = vpop.f32.mrf.mxu0
      %v8711 = vadd.f32 %v8462, %v8710
      %v8712 = vpop.f32.mrf.mxu0
      %v8713 = vadd.f32 %v8462, %v8712
      %8714 = vmatmul.bf16.gmra.mxu0 %v8420
      %v8715 = vpop.f32.mrf.mxu0
      %v8716 = vadd.f32 %v8462, %v8715
      %v8717 = vpop.f32.mrf.mxu0
      %v8718 = vadd.f32 %v8462, %v8717
      %8719 = vmatmul.bf16.gmra.mxu0 %v8421
      %v8720 = vpop.f32.mrf.mxu0
      %v8721 = vadd.f32 %v8462, %v8720
      %v8722 = vpop.f32.mrf.mxu0
      %v8723 = vadd.f32 %v8462, %v8722
      %8724 = vmatmul.bf16.gmra.mxu0 %v8422
      %v8725 = vpop.f32.mrf.mxu0
      %v8726 = vadd.f32 %v8462, %v8725
      %v8727 = vpop.f32.mrf.mxu0
      %v8728 = vadd.f32 %v8462, %v8727
      %8729 = vmatmul.bf16.gmra.mxu0 %v8423
      %v8730 = vpop.f32.mrf.mxu0
      %v8731 = vadd.f32 %v8462, %v8730
      %v8732 = vpop.f32.mrf.mxu0
      %v8733 = vadd.f32 %v8462, %v8732
      %8734 = vmatmul.bf16.gmra.mxu0 %v8424
      %v8735 = vpop.f32.mrf.mxu0
      %v8736 = vadd.f32 %v8462, %v8735
      %v8737 = vpop.f32.mrf.mxu0
      %v8738 = vadd.f32 %v8462, %v8737
      %8739 = vmatmul.bf16.gmra.mxu0 %v8425
      %v8740 = vpop.f32.mrf.mxu0
      %v8741 = vadd.f32 %v8462, %v8740
      %v8742 = vpop.f32.mrf.mxu0
      %v8743 = vadd.f32 %v8462, %v8742
      %8744 = vmatmul.bf16.gmra.mxu0 %v8426
      %v8745 = vpop.f32.mrf.mxu0
      %v8746 = vadd.f32 %v8462, %v8745
      %v8747 = vpop.f32.mrf.mxu0
      %v8748 = vadd.f32 %v8462, %v8747
      %8749 = vmatmul.bf16.gmra.mxu0 %v8427
      %v8750 = vpop.f32.mrf.mxu0
      %v8751 = vadd.f32 %v8462, %v8750
      %v8752 = vpop.f32.mrf.mxu0
      %v8753 = vadd.f32 %v8462, %v8752
      %8754 = vmatmul.bf16.gmra.mxu0 %v8428
      %v8755 = vpop.f32.mrf.mxu0
      %v8756 = vadd.f32 %v8462, %v8755
      %v8757 = vpop.f32.mrf.mxu0
      %v8758 = vadd.f32 %v8462, %v8757
      %8759 = vmatmul.bf16.gmra.mxu0 %v8429
      %v8760 = vpop.f32.mrf.mxu0
      %v8761 = vadd.f32 %v8462, %v8760
      %v8762 = vpop.f32.mrf.mxu0
      %v8763 = vadd.f32 %v8462, %v8762
      %8764 = vmatmul.bf16.gmra.mxu0 %v8430
      %v8765 = vpop.f32.mrf.mxu0
      %v8766 = vadd.f32 %v8462, %v8765
      %v8767 = vpop.f32.mrf.mxu0
      %v8768 = vadd.f32 %v8462, %v8767
      %8769 = vmatmul.bf16.gmra.mxu0 %v8431
      %v8770 = vpop.f32.mrf.mxu0
      %v8771 = vadd.f32 %v8462, %v8770
      %v8772 = vpop.f32.mrf.mxu0
      %v8773 = vadd.f32 %v8462, %v8772
      %8774 = vmatmul.bf16.gmra.mxu0 %v8432
      %v8775 = vpop.f32.mrf.mxu0
      %v8776 = vadd.f32 %v8462, %v8775
      %v8777 = vpop.f32.mrf.mxu0
      %v8778 = vadd.f32 %v8462, %v8777
      %8779 = vmatmul.bf16.gmra.mxu0 %v8433
      %v8780 = vpop.f32.mrf.mxu0
      %v8781 = vadd.f32 %v8462, %v8780
      %v8782 = vpop.f32.mrf.mxu0
      %v8783 = vadd.f32 %v8462, %v8782
      %8784 = vmatmul.bf16.gmra.mxu0 %v8434
      %v8785 = vpop.f32.mrf.mxu0
      %v8786 = vadd.f32 %v8462, %v8785
      %v8787 = vpop.f32.mrf.mxu0
      %v8788 = vadd.f32 %v8462, %v8787
      %8789 = vmatmul.bf16.gmra.mxu0 %v8435
      %v8790 = vpop.f32.mrf.mxu0
      %v8791 = vadd.f32 %v8462, %v8790
      %v8792 = vpop.f32.mrf.mxu0
      %v8793 = vadd.f32 %v8462, %v8792
      %8794 = vmatmul.bf16.gmra.mxu0 %v8436
      %v8795 = vpop.f32.mrf.mxu0
      %v8796 = vadd.f32 %v8462, %v8795
      %v8797 = vpop.f32.mrf.mxu0
      %v8798 = vadd.f32 %v8462, %v8797
      %8799 = vmatmul.bf16.gmra.mxu0 %v8437
      %v8800 = vpop.f32.mrf.mxu0
      %v8801 = vadd.f32 %v8462, %v8800
      %v8802 = vpop.f32.mrf.mxu0
      %v8803 = vadd.f32 %v8462, %v8802
      %8804 = vmatmul.bf16.gmra.mxu0 %v8438
      %v8805 = vpop.f32.mrf.mxu0
      %v8806 = vadd.f32 %v8462, %v8805
      %v8807 = vpop.f32.mrf.mxu0
      %v8808 = vadd.f32 %v8462, %v8807
      %8809 = vmatmul.bf16.gmra.mxu0 %v8439
      %v8810 = vpop.f32.mrf.mxu0
      %v8811 = vadd.f32 %v8462, %v8810
      %v8812 = vpop.f32.mrf.mxu0
      %v8813 = vadd.f32 %v8462, %v8812
      %8814 = vmatmul.bf16.gmra.mxu0 %v8440
      %v8815 = vpop.f32.mrf.mxu0
      %v8816 = vadd.f32 %v8462, %v8815
      %v8817 = vpop.f32.mrf.mxu0
      %v8818 = vadd.f32 %v8462, %v8817
      %8819 = vmatmul.bf16.gmra.mxu0 %v8441
      %v8820 = vpop.f32.mrf.mxu0
      %v8821 = vadd.f32 %v8462, %v8820
      %v8822 = vpop.f32.mrf.mxu0
      %v8823 = vadd.f32 %v8462, %v8822
      %8824 = vmatmul.bf16.gmra.mxu0 %v8442
      %v8825 = vpop.f32.mrf.mxu0
      %v8826 = vadd.f32 %v8462, %v8825
      %v8827 = vpop.f32.mrf.mxu0
      %v8828 = vadd.f32 %v8462, %v8827
      %8829 = vmatmul.bf16.gmra.mxu0 %v8443
      %v8830 = vpop.f32.mrf.mxu0
      %v8831 = vadd.f32 %v8462, %v8830
      %v8832 = vpop.f32.mrf.mxu0
      %v8833 = vadd.f32 %v8462, %v8832
      %8834 = vmatmul.bf16.gmra.mxu0 %v8444
      %v8835 = vpop.f32.mrf.mxu0
      %v8836 = vadd.f32 %v8462, %v8835
      %v8837 = vpop.f32.mrf.mxu0
      %v8838 = vadd.f32 %v8462, %v8837
      %8839 = vdwg.mxu0
      %v8840 = vmax.f32 %v8521, 0.0
      %v8841 = vmax.f32 %v8523, 0.0
      %v8842 = vmax.f32 %v8526, 0.0
      %v8843 = vmax.f32 %v8528, 0.0
      %v8844 = vmax.f32 %v8531, 0.0
      %v8845 = vmax.f32 %v8533, 0.0
      %v8846 = vmax.f32 %v8536, 0.0
      %v8847 = vmax.f32 %v8538, 0.0
      %v8848 = vmax.f32 %v8541, 0.0
      %v8849 = vmax.f32 %v8543, 0.0
      %v8850 = vmax.f32 %v8546, 0.0
      %v8851 = vmax.f32 %v8548, 0.0
      %v8852 = vmax.f32 %v8551, 0.0
      %v8853 = vmax.f32 %v8553, 0.0
      %v8854 = vmax.f32 %v8556, 0.0
      %v8855 = vmax.f32 %v8558, 0.0
      %v8856 = vmax.f32 %v8561, 0.0
      %v8857 = vmax.f32 %v8563, 0.0
      %v8858 = vmax.f32 %v8566, 0.0
      %v8859 = vmax.f32 %v8568, 0.0
      %v8860 = vmax.f32 %v8571, 0.0
      %v8861 = vmax.f32 %v8573, 0.0
      %v8862 = vmax.f32 %v8576, 0.0
      %v8863 = vmax.f32 %v8578, 0.0
      %v8864 = vmax.f32 %v8581, 0.0
      %v8865 = vmax.f32 %v8583, 0.0
      %v8866 = vmax.f32 %v8586, 0.0
      %v8867 = vmax.f32 %v8588, 0.0
      %v8868 = vmax.f32 %v8591, 0.0
      %v8869 = vmax.f32 %v8593, 0.0
      %v8870 = vmax.f32 %v8596, 0.0
      %v8871 = vmax.f32 %v8598, 0.0
      %v8872 = vmax.f32 %v8601, 0.0
      %v8873 = vmax.f32 %v8603, 0.0
      %v8874 = vmax.f32 %v8606, 0.0
      %v8875 = vmax.f32 %v8608, 0.0
      %v8876 = vmax.f32 %v8611, 0.0
      %v8877 = vmax.f32 %v8613, 0.0
      %v8878 = vmax.f32 %v8616, 0.0
      %v8879 = vmax.f32 %v8618, 0.0
      %v8880 = vmax.f32 %v8621, 0.0
      %v8881 = vmax.f32 %v8623, 0.0
      %v8882 = vmax.f32 %v8626, 0.0
      %v8883 = vmax.f32 %v8628, 0.0
      %v8884 = vmax.f32 %v8631, 0.0
      %v8885 = vmax.f32 %v8633, 0.0
      %v8886 = vmax.f32 %v8636, 0.0
      %v8887 = vmax.f32 %v8638, 0.0
      %v8888 = vmax.f32 %v8641, 0.0
      %v8889 = vmax.f32 %v8643, 0.0
      %v8890 = vmax.f32 %v8646, 0.0
      %v8891 = vmax.f32 %v8648, 0.0
      %v8892 = vmax.f32 %v8651, 0.0
      %v8893 = vmax.f32 %v8653, 0.0
      %v8894 = vmax.f32 %v8656, 0.0
      %v8895 = vmax.f32 %v8658, 0.0
      %v8896 = vmax.f32 %v8661, 0.0
      %v8897 = vmax.f32 %v8663, 0.0
      %v8898 = vmax.f32 %v8666, 0.0
      %v8899 = vmax.f32 %v8668, 0.0
      %v8900 = vmax.f32 %v8671, 0.0
      %v8901 = vmax.f32 %v8673, 0.0
      %v8902 = vmax.f32 %v8676, 0.0
      %v8903 = vmax.f32 %v8678, 0.0
      %v8904 = vmax.f32 %v8681, 0.0
      %v8905 = vmax.f32 %v8683, 0.0
      %v8906 = vmax.f32 %v8686, 0.0
      %v8907 = vmax.f32 %v8688, 0.0
      %v8908 = vmax.f32 %v8691, 0.0
      %v8909 = vmax.f32 %v8693, 0.0
      %v8910 = vmax.f32 %v8696, 0.0
      %v8911 = vmax.f32 %v8698, 0.0
      %v8912 = vmax.f32 %v8701, 0.0
      %v8913 = vmax.f32 %v8703, 0.0
      %v8914 = vmax.f32 %v8706, 0.0
      %v8915 = vmax.f32 %v8708, 0.0
      %v8916 = vmax.f32 %v8711, 0.0
      %v8917 = vmax.f32 %v8713, 0.0
      %v8918 = vmax.f32 %v8716, 0.0
      %v8919 = vmax.f32 %v8718, 0.0
      %v8920 = vmax.f32 %v8721, 0.0
      %v8921 = vmax.f32 %v8723, 0.0
      %v8922 = vmax.f32 %v8726, 0.0
      %v8923 = vmax.f32 %v8728, 0.0
      %v8924 = vmax.f32 %v8731, 0.0
      %v8925 = vmax.f32 %v8733, 0.0
      %v8926 = vmax.f32 %v8736, 0.0
      %v8927 = vmax.f32 %v8738, 0.0
      %v8928 = vmax.f32 %v8741, 0.0
      %v8929 = vmax.f32 %v8743, 0.0
      %v8930 = vmax.f32 %v8746, 0.0
      %v8931 = vmax.f32 %v8748, 0.0
      %v8932 = vmax.f32 %v8751, 0.0
      %v8933 = vmax.f32 %v8753, 0.0
      %v8934 = vmax.f32 %v8756, 0.0
      %v8935 = vmax.f32 %v8758, 0.0
      %v8936 = vmax.f32 %v8761, 0.0
      %v8937 = vmax.f32 %v8763, 0.0
      %v8938 = vmax.f32 %v8766, 0.0
      %v8939 = vmax.f32 %v8768, 0.0
      %v8940 = vmax.f32 %v8771, 0.0
      %v8941 = vmax.f32 %v8773, 0.0
      %v8942 = vmax.f32 %v8776, 0.0
      %v8943 = vmax.f32 %v8778, 0.0
      %v8944 = vmax.f32 %v8781, 0.0
      %v8945 = vmax.f32 %v8783, 0.0
      %v8946 = vmax.f32 %v8786, 0.0
      %v8947 = vmax.f32 %v8788, 0.0
      %v8948 = vmax.f32 %v8791, 0.0
      %v8949 = vmax.f32 %v8793, 0.0
      %v8950 = vmax.f32 %v8796, 0.0
      %v8951 = vmax.f32 %v8798, 0.0
      %v8952 = vmax.f32 %v8801, 0.0
      %v8953 = vmax.f32 %v8803, 0.0
      %v8954 = vmax.f32 %v8806, 0.0
      %v8955 = vmax.f32 %v8808, 0.0
      %v8956 = vmax.f32 %v8811, 0.0
      %v8957 = vmax.f32 %v8813, 0.0
      %v8958 = vmax.f32 %v8816, 0.0
      %v8959 = vmax.f32 %v8818, 0.0
      %v8960 = vmax.f32 %v8821, 0.0
      %v8961 = vmax.f32 %v8823, 0.0
      %v8962 = vmax.f32 %v8826, 0.0
      %v8963 = vmax.f32 %v8828, 0.0
      %v8964 = vmax.f32 %v8831, 0.0
      %v8965 = vmax.f32 %v8833, 0.0
      %v8966 = vmax.f32 %v8836, 0.0
      %v8967 = vmax.f32 %v8838, 0.0
      %v8968 = vpack.c.bf16 %v8841, %v8840
      %v8969 = vpack.c.bf16 %v8843, %v8842
      %v8970 = vpack.c.bf16 %v8845, %v8844
      %v8971 = vpack.c.bf16 %v8847, %v8846
      %v8972 = vpack.c.bf16 %v8849, %v8848
      %v8973 = vpack.c.bf16 %v8851, %v8850
      %v8974 = vpack.c.bf16 %v8853, %v8852
      %v8975 = vpack.c.bf16 %v8855, %v8854
      %v8976 = vpack.c.bf16 %v8857, %v8856
      %v8977 = vpack.c.bf16 %v8859, %v8858
      %v8978 = vpack.c.bf16 %v8861, %v8860
      %v8979 = vpack.c.bf16 %v8863, %v8862
      %v8980 = vpack.c.bf16 %v8865, %v8864
      %v8981 = vpack.c.bf16 %v8867, %v8866
      %v8982 = vpack.c.bf16 %v8869, %v8868
      %v8983 = vpack.c.bf16 %v8871, %v8870
      %v8984 = vpack.c.bf16 %v8873, %v8872
      %v8985 = vpack.c.bf16 %v8875, %v8874
      %v8986 = vpack.c.bf16 %v8877, %v8876
      %v8987 = vpack.c.bf16 %v8879, %v8878
      %v8988 = vpack.c.bf16 %v8881, %v8880
      %v8989 = vpack.c.bf16 %v8883, %v8882
      %v8990 = vpack.c.bf16 %v8885, %v8884
      %v8991 = vpack.c.bf16 %v8887, %v8886
      %v8992 = vpack.c.bf16 %v8889, %v8888
      %v8993 = vpack.c.bf16 %v8891, %v8890
      %v8994 = vpack.c.bf16 %v8893, %v8892
      %v8995 = vpack.c.bf16 %v8895, %v8894
      %v8996 = vpack.c.bf16 %v8897, %v8896
      %v8997 = vpack.c.bf16 %v8899, %v8898
      %v8998 = vpack.c.bf16 %v8901, %v8900
      %v8999 = vpack.c.bf16 %v8903, %v8902
      %v9000 = vpack.c.bf16 %v8905, %v8904
      %v9001 = vpack.c.bf16 %v8907, %v8906
      %v9002 = vpack.c.bf16 %v8909, %v8908
      %v9003 = vpack.c.bf16 %v8911, %v8910
      %v9004 = vpack.c.bf16 %v8913, %v8912
      %v9005 = vpack.c.bf16 %v8915, %v8914
      %v9006 = vpack.c.bf16 %v8917, %v8916
      %v9007 = vpack.c.bf16 %v8919, %v8918
      %v9008 = vpack.c.bf16 %v8921, %v8920
      %v9009 = vpack.c.bf16 %v8923, %v8922
      %v9010 = vpack.c.bf16 %v8925, %v8924
      %v9011 = vpack.c.bf16 %v8927, %v8926
      %v9012 = vpack.c.bf16 %v8929, %v8928
      %v9013 = vpack.c.bf16 %v8931, %v8930
      %v9014 = vpack.c.bf16 %v8933, %v8932
      %v9015 = vpack.c.bf16 %v8935, %v8934
      %v9016 = vpack.c.bf16 %v8937, %v8936
      %v9017 = vpack.c.bf16 %v8939, %v8938
      %v9018 = vpack.c.bf16 %v8941, %v8940
      %v9019 = vpack.c.bf16 %v8943, %v8942
      %v9020 = vpack.c.bf16 %v8945, %v8944
      %v9021 = vpack.c.bf16 %v8947, %v8946
      %v9022 = vpack.c.bf16 %v8949, %v8948
      %v9023 = vpack.c.bf16 %v8951, %v8950
      %v9024 = vpack.c.bf16 %v8953, %v8952
      %v9025 = vpack.c.bf16 %v8955, %v8954
      %v9026 = vpack.c.bf16 %v8957, %v8956
      %v9027 = vpack.c.bf16 %v8959, %v8958
      %v9028 = vpack.c.bf16 %v8961, %v8960
      %v9029 = vpack.c.bf16 %v8963, %v8962
      %v9030 = vpack.c.bf16 %v8965, %v8964
      %v9031 = vpack.c.bf16 %v8967, %v8966
      %s9032 = scalar_lea.vmem %s5, 192
      %v9033 = vld [vmem:[%s9032] sm:$0xf]
      %v9034 = vld [vmem:[%s9032 + $0x4] sm:$0xf]
      %v9035 = vld [vmem:[%s9032 + $0x8] sm:$0xf]
      %v9036 = vld [vmem:[%s9032 + $0xc] sm:$0xf]
      %v9037 = vld [vmem:[%s9032 + $0x10] sm:$0xf]
      %v9038 = vld [vmem:[%s9032 + $0x14] sm:$0xf]
      %v9039 = vld [vmem:[%s9032 + $0x18] sm:$0xf]
      %v9040 = vld [vmem:[%s9032 + $0x1c] sm:$0xf]
      %v9041 = vld [vmem:[%s9032 + $0x20] sm:$0xf]
      %v9042 = vld [vmem:[%s9032 + $0x24] sm:$0xf]
      %v9043 = vld [vmem:[%s9032 + $0x28] sm:$0xf]
      %v9044 = vld [vmem:[%s9032 + $0x2c] sm:$0xf]
      %v9045 = vld [vmem:[%s9032 + $0x30] sm:$0xf]
      %v9046 = vld [vmem:[%s9032 + $0x34] sm:$0xf]
      %v9047 = vld [vmem:[%s9032 + $0x38] sm:$0xf]
      %v9048 = vld [vmem:[%s9032 + $0x3c] sm:$0xf]
      %v9049 = vperm.slane %v303, 4
      %v9066 = vunpack.c.l.b16 %v9033
      %v9067 = vunpack.c.l.b16 %v9034
      %v9068 = vunpack.c.l.b16 %v9035
      %v9069 = vunpack.c.l.b16 %v9036
      %v9070 = vunpack.c.l.b16 %v9037
      %v9071 = vunpack.c.l.b16 %v9038
      %v9072 = vunpack.c.l.b16 %v9039
      %v9073 = vunpack.c.l.b16 %v9040
      %v9074 = vunpack.c.l.b16 %v9041
      %v9075 = vunpack.c.l.b16 %v9042
      %v9076 = vunpack.c.l.b16 %v9043
      %v9077 = vunpack.c.l.b16 %v9044
      %v9078 = vunpack.c.l.b16 %v9045
      %v9079 = vunpack.c.l.b16 %v9046
      %v9080 = vunpack.c.l.b16 %v9047
      %v9081 = vunpack.c.l.b16 %v9048
      %v9082 = vpack.c.b16 %v9067, %v9066
      %v9083 = vpack.c.b16 %v9069, %v9068
      %v9084 = vpack.c.b16 %v9071, %v9070
      %v9085 = vpack.c.b16 %v9073, %v9072
      %v9086 = vpack.c.b16 %v9075, %v9074
      %v9087 = vpack.c.b16 %v9077, %v9076
      %v9088 = vpack.c.b16 %v9079, %v9078
      %v9089 = vpack.c.b16 %v9081, %v9080
      %9098 = vmatpush.bf16.msra.mxu0 %v9089
      %9099 = vmatpush.bf16.msra.mxu0 %v9088
      %9100 = vmatpush.bf16.msra.mxu0 %v9087
      %9101 = vmatpush.bf16.msra.mxu0 %v9086
      %9102 = vmatpush.bf16.msra.mxu0 %v9085
      %9103 = vmatpush.bf16.msra.mxu0 %v9084
      %9104 = vmatpush.bf16.msra.mxu0 %v9083
      %9105 = vmatpush.bf16.msra.mxu0 %v9082
      %9106 = vmatmul.bf16.gmra.mxu0 %v8968
      %v9107 = vpop.f32.mrf.mxu0
      %v9108 = vadd.f32 %v9049, %v9107
      %v9109 = vpop.f32.mrf.mxu0
      %v9110 = vadd.f32 %v9049, %v9109
      %9111 = vmatmul.bf16.gmra.mxu0 %v8969
      %v9112 = vpop.f32.mrf.mxu0
      %v9113 = vadd.f32 %v9049, %v9112
      %v9114 = vpop.f32.mrf.mxu0
      %v9115 = vadd.f32 %v9049, %v9114
      %9116 = vmatmul.bf16.gmra.mxu0 %v8970
      %v9117 = vpop.f32.mrf.mxu0
      %v9118 = vadd.f32 %v9049, %v9117
      %v9119 = vpop.f32.mrf.mxu0
      %v9120 = vadd.f32 %v9049, %v9119
      %9121 = vmatmul.bf16.gmra.mxu0 %v8971
      %v9122 = vpop.f32.mrf.mxu0
      %v9123 = vadd.f32 %v9049, %v9122
      %v9124 = vpop.f32.mrf.mxu0
      %v9125 = vadd.f32 %v9049, %v9124
      %9126 = vmatmul.bf16.gmra.mxu0 %v8972
      %v9127 = vpop.f32.mrf.mxu0
      %v9128 = vadd.f32 %v9049, %v9127
      %v9129 = vpop.f32.mrf.mxu0
      %v9130 = vadd.f32 %v9049, %v9129
      %9131 = vmatmul.bf16.gmra.mxu0 %v8973
      %v9132 = vpop.f32.mrf.mxu0
      %v9133 = vadd.f32 %v9049, %v9132
      %v9134 = vpop.f32.mrf.mxu0
      %v9135 = vadd.f32 %v9049, %v9134
      %9136 = vmatmul.bf16.gmra.mxu0 %v8974
      %v9137 = vpop.f32.mrf.mxu0
      %v9138 = vadd.f32 %v9049, %v9137
      %v9139 = vpop.f32.mrf.mxu0
      %v9140 = vadd.f32 %v9049, %v9139
      %9141 = vmatmul.bf16.gmra.mxu0 %v8975
      %v9142 = vpop.f32.mrf.mxu0
      %v9143 = vadd.f32 %v9049, %v9142
      %v9144 = vpop.f32.mrf.mxu0
      %v9145 = vadd.f32 %v9049, %v9144
      %9146 = vmatmul.bf16.gmra.mxu0 %v8976
      %v9147 = vpop.f32.mrf.mxu0
      %v9148 = vadd.f32 %v9049, %v9147
      %v9149 = vpop.f32.mrf.mxu0
      %v9150 = vadd.f32 %v9049, %v9149
      %9151 = vmatmul.bf16.gmra.mxu0 %v8977
      %v9152 = vpop.f32.mrf.mxu0
      %v9153 = vadd.f32 %v9049, %v9152
      %v9154 = vpop.f32.mrf.mxu0
      %v9155 = vadd.f32 %v9049, %v9154
      %9156 = vmatmul.bf16.gmra.mxu0 %v8978
      %v9157 = vpop.f32.mrf.mxu0
      %v9158 = vadd.f32 %v9049, %v9157
      %v9159 = vpop.f32.mrf.mxu0
      %v9160 = vadd.f32 %v9049, %v9159
      %9161 = vmatmul.bf16.gmra.mxu0 %v8979
      %v9162 = vpop.f32.mrf.mxu0
      %v9163 = vadd.f32 %v9049, %v9162
      %v9164 = vpop.f32.mrf.mxu0
      %v9165 = vadd.f32 %v9049, %v9164
      %9166 = vmatmul.bf16.gmra.mxu0 %v8980
      %v9167 = vpop.f32.mrf.mxu0
      %v9168 = vadd.f32 %v9049, %v9167
      %v9169 = vpop.f32.mrf.mxu0
      %v9170 = vadd.f32 %v9049, %v9169
      %9171 = vmatmul.bf16.gmra.mxu0 %v8981
      %v9172 = vpop.f32.mrf.mxu0
      %v9173 = vadd.f32 %v9049, %v9172
      %v9174 = vpop.f32.mrf.mxu0
      %v9175 = vadd.f32 %v9049, %v9174
      %9176 = vmatmul.bf16.gmra.mxu0 %v8982
      %v9177 = vpop.f32.mrf.mxu0
      %v9178 = vadd.f32 %v9049, %v9177
      %v9179 = vpop.f32.mrf.mxu0
      %v9180 = vadd.f32 %v9049, %v9179
      %9181 = vmatmul.bf16.gmra.mxu0 %v8983
      %v9182 = vpop.f32.mrf.mxu0
      %v9183 = vadd.f32 %v9049, %v9182
      %v9184 = vpop.f32.mrf.mxu0
      %v9185 = vadd.f32 %v9049, %v9184
      %9186 = vmatmul.bf16.gmra.mxu0 %v8984
      %v9187 = vpop.f32.mrf.mxu0
      %v9188 = vadd.f32 %v9049, %v9187
      %v9189 = vpop.f32.mrf.mxu0
      %v9190 = vadd.f32 %v9049, %v9189
      %9191 = vmatmul.bf16.gmra.mxu0 %v8985
      %v9192 = vpop.f32.mrf.mxu0
      %v9193 = vadd.f32 %v9049, %v9192
      %v9194 = vpop.f32.mrf.mxu0
      %v9195 = vadd.f32 %v9049, %v9194
      %9196 = vmatmul.bf16.gmra.mxu0 %v8986
      %v9197 = vpop.f32.mrf.mxu0
      %v9198 = vadd.f32 %v9049, %v9197
      %v9199 = vpop.f32.mrf.mxu0
      %v9200 = vadd.f32 %v9049, %v9199
      %9201 = vmatmul.bf16.gmra.mxu0 %v8987
      %v9202 = vpop.f32.mrf.mxu0
      %v9203 = vadd.f32 %v9049, %v9202
      %v9204 = vpop.f32.mrf.mxu0
      %v9205 = vadd.f32 %v9049, %v9204
      %9206 = vmatmul.bf16.gmra.mxu0 %v8988
      %v9207 = vpop.f32.mrf.mxu0
      %v9208 = vadd.f32 %v9049, %v9207
      %v9209 = vpop.f32.mrf.mxu0
      %v9210 = vadd.f32 %v9049, %v9209
      %9211 = vmatmul.bf16.gmra.mxu0 %v8989
      %v9212 = vpop.f32.mrf.mxu0
      %v9213 = vadd.f32 %v9049, %v9212
      %v9214 = vpop.f32.mrf.mxu0
      %v9215 = vadd.f32 %v9049, %v9214
      %9216 = vmatmul.bf16.gmra.mxu0 %v8990
      %v9217 = vpop.f32.mrf.mxu0
      %v9218 = vadd.f32 %v9049, %v9217
      %v9219 = vpop.f32.mrf.mxu0
      %v9220 = vadd.f32 %v9049, %v9219
      %9221 = vmatmul.bf16.gmra.mxu0 %v8991
      %v9222 = vpop.f32.mrf.mxu0
      %v9223 = vadd.f32 %v9049, %v9222
      %v9224 = vpop.f32.mrf.mxu0
      %v9225 = vadd.f32 %v9049, %v9224
      %9226 = vmatmul.bf16.gmra.mxu0 %v8992
      %v9227 = vpop.f32.mrf.mxu0
      %v9228 = vadd.f32 %v9049, %v9227
      %v9229 = vpop.f32.mrf.mxu0
      %v9230 = vadd.f32 %v9049, %v9229
      %9231 = vmatmul.bf16.gmra.mxu0 %v8993
      %v9232 = vpop.f32.mrf.mxu0
      %v9233 = vadd.f32 %v9049, %v9232
      %v9234 = vpop.f32.mrf.mxu0
      %v9235 = vadd.f32 %v9049, %v9234
      %9236 = vmatmul.bf16.gmra.mxu0 %v8994
      %v9237 = vpop.f32.mrf.mxu0
      %v9238 = vadd.f32 %v9049, %v9237
      %v9239 = vpop.f32.mrf.mxu0
      %v9240 = vadd.f32 %v9049, %v9239
      %9241 = vmatmul.bf16.gmra.mxu0 %v8995
      %v9242 = vpop.f32.mrf.mxu0
      %v9243 = vadd.f32 %v9049, %v9242
      %v9244 = vpop.f32.mrf.mxu0
      %v9245 = vadd.f32 %v9049, %v9244
      %9246 = vmatmul.bf16.gmra.mxu0 %v8996
      %v9247 = vpop.f32.mrf.mxu0
      %v9248 = vadd.f32 %v9049, %v9247
      %v9249 = vpop.f32.mrf.mxu0
      %v9250 = vadd.f32 %v9049, %v9249
      %9251 = vmatmul.bf16.gmra.mxu0 %v8997
      %v9252 = vpop.f32.mrf.mxu0
      %v9253 = vadd.f32 %v9049, %v9252
      %v9254 = vpop.f32.mrf.mxu0
      %v9255 = vadd.f32 %v9049, %v9254
      %9256 = vmatmul.bf16.gmra.mxu0 %v8998
      %v9257 = vpop.f32.mrf.mxu0
      %v9258 = vadd.f32 %v9049, %v9257
      %v9259 = vpop.f32.mrf.mxu0
      %v9260 = vadd.f32 %v9049, %v9259
      %9261 = vmatmul.bf16.gmra.mxu0 %v8999
      %v9262 = vpop.f32.mrf.mxu0
      %v9263 = vadd.f32 %v9049, %v9262
      %v9264 = vpop.f32.mrf.mxu0
      %v9265 = vadd.f32 %v9049, %v9264
      %9266 = vmatmul.bf16.gmra.mxu0 %v9000
      %v9267 = vpop.f32.mrf.mxu0
      %v9268 = vadd.f32 %v9049, %v9267
      %v9269 = vpop.f32.mrf.mxu0
      %v9270 = vadd.f32 %v9049, %v9269
      %9271 = vmatmul.bf16.gmra.mxu0 %v9001
      %v9272 = vpop.f32.mrf.mxu0
      %v9273 = vadd.f32 %v9049, %v9272
      %v9274 = vpop.f32.mrf.mxu0
      %v9275 = vadd.f32 %v9049, %v9274
      %9276 = vmatmul.bf16.gmra.mxu0 %v9002
      %v9277 = vpop.f32.mrf.mxu0
      %v9278 = vadd.f32 %v9049, %v9277
      %v9279 = vpop.f32.mrf.mxu0
      %v9280 = vadd.f32 %v9049, %v9279
      %9281 = vmatmul.bf16.gmra.mxu0 %v9003
      %v9282 = vpop.f32.mrf.mxu0
      %v9283 = vadd.f32 %v9049, %v9282
      %v9284 = vpop.f32.mrf.mxu0
      %v9285 = vadd.f32 %v9049, %v9284
      %9286 = vmatmul.bf16.gmra.mxu0 %v9004
      %v9287 = vpop.f32.mrf.mxu0
      %v9288 = vadd.f32 %v9049, %v9287
      %v9289 = vpop.f32.mrf.mxu0
      %v9290 = vadd.f32 %v9049, %v9289
      %9291 = vmatmul.bf16.gmra.mxu0 %v9005
      %v9292 = vpop.f32.mrf.mxu0
      %v9293 = vadd.f32 %v9049, %v9292
      %v9294 = vpop.f32.mrf.mxu0
      %v9295 = vadd.f32 %v9049, %v9294
      %9296 = vmatmul.bf16.gmra.mxu0 %v9006
      %v9297 = vpop.f32.mrf.mxu0
      %v9298 = vadd.f32 %v9049, %v9297
      %v9299 = vpop.f32.mrf.mxu0
      %v9300 = vadd.f32 %v9049, %v9299
      %9301 = vmatmul.bf16.gmra.mxu0 %v9007
      %v9302 = vpop.f32.mrf.mxu0
      %v9303 = vadd.f32 %v9049, %v9302
      %v9304 = vpop.f32.mrf.mxu0
      %v9305 = vadd.f32 %v9049, %v9304
      %9306 = vmatmul.bf16.gmra.mxu0 %v9008
      %v9307 = vpop.f32.mrf.mxu0
      %v9308 = vadd.f32 %v9049, %v9307
      %v9309 = vpop.f32.mrf.mxu0
      %v9310 = vadd.f32 %v9049, %v9309
      %9311 = vmatmul.bf16.gmra.mxu0 %v9009
      %v9312 = vpop.f32.mrf.mxu0
      %v9313 = vadd.f32 %v9049, %v9312
      %v9314 = vpop.f32.mrf.mxu0
      %v9315 = vadd.f32 %v9049, %v9314
      %9316 = vmatmul.bf16.gmra.mxu0 %v9010
      %v9317 = vpop.f32.mrf.mxu0
      %v9318 = vadd.f32 %v9049, %v9317
      %v9319 = vpop.f32.mrf.mxu0
      %v9320 = vadd.f32 %v9049, %v9319
      %9321 = vmatmul.bf16.gmra.mxu0 %v9011
      %v9322 = vpop.f32.mrf.mxu0
      %v9323 = vadd.f32 %v9049, %v9322
      %v9324 = vpop.f32.mrf.mxu0
      %v9325 = vadd.f32 %v9049, %v9324
      %9326 = vmatmul.bf16.gmra.mxu0 %v9012
      %v9327 = vpop.f32.mrf.mxu0
      %v9328 = vadd.f32 %v9049, %v9327
      %v9329 = vpop.f32.mrf.mxu0
      %v9330 = vadd.f32 %v9049, %v9329
      %9331 = vmatmul.bf16.gmra.mxu0 %v9013
      %v9332 = vpop.f32.mrf.mxu0
      %v9333 = vadd.f32 %v9049, %v9332
      %v9334 = vpop.f32.mrf.mxu0
      %v9335 = vadd.f32 %v9049, %v9334
      %9336 = vmatmul.bf16.gmra.mxu0 %v9014
      %v9337 = vpop.f32.mrf.mxu0
      %v9338 = vadd.f32 %v9049, %v9337
      %v9339 = vpop.f32.mrf.mxu0
      %v9340 = vadd.f32 %v9049, %v9339
      %9341 = vmatmul.bf16.gmra.mxu0 %v9015
      %v9342 = vpop.f32.mrf.mxu0
      %v9343 = vadd.f32 %v9049, %v9342
      %v9344 = vpop.f32.mrf.mxu0
      %v9345 = vadd.f32 %v9049, %v9344
      %9346 = vmatmul.bf16.gmra.mxu0 %v9016
      %v9347 = vpop.f32.mrf.mxu0
      %v9348 = vadd.f32 %v9049, %v9347
      %v9349 = vpop.f32.mrf.mxu0
      %v9350 = vadd.f32 %v9049, %v9349
      %9351 = vmatmul.bf16.gmra.mxu0 %v9017
      %v9352 = vpop.f32.mrf.mxu0
      %v9353 = vadd.f32 %v9049, %v9352
      %v9354 = vpop.f32.mrf.mxu0
      %v9355 = vadd.f32 %v9049, %v9354
      %9356 = vmatmul.bf16.gmra.mxu0 %v9018
      %v9357 = vpop.f32.mrf.mxu0
      %v9358 = vadd.f32 %v9049, %v9357
      %v9359 = vpop.f32.mrf.mxu0
      %v9360 = vadd.f32 %v9049, %v9359
      %9361 = vmatmul.bf16.gmra.mxu0 %v9019
      %v9362 = vpop.f32.mrf.mxu0
      %v9363 = vadd.f32 %v9049, %v9362
      %v9364 = vpop.f32.mrf.mxu0
      %v9365 = vadd.f32 %v9049, %v9364
      %9366 = vmatmul.bf16.gmra.mxu0 %v9020
      %v9367 = vpop.f32.mrf.mxu0
      %v9368 = vadd.f32 %v9049, %v9367
      %v9369 = vpop.f32.mrf.mxu0
      %v9370 = vadd.f32 %v9049, %v9369
      %9371 = vmatmul.bf16.gmra.mxu0 %v9021
      %v9372 = vpop.f32.mrf.mxu0
      %v9373 = vadd.f32 %v9049, %v9372
      %v9374 = vpop.f32.mrf.mxu0
      %v9375 = vadd.f32 %v9049, %v9374
      %9376 = vmatmul.bf16.gmra.mxu0 %v9022
      %v9377 = vpop.f32.mrf.mxu0
      %v9378 = vadd.f32 %v9049, %v9377
      %v9379 = vpop.f32.mrf.mxu0
      %v9380 = vadd.f32 %v9049, %v9379
      %9381 = vmatmul.bf16.gmra.mxu0 %v9023
      %v9382 = vpop.f32.mrf.mxu0
      %v9383 = vadd.f32 %v9049, %v9382
      %v9384 = vpop.f32.mrf.mxu0
      %v9385 = vadd.f32 %v9049, %v9384
      %9386 = vmatmul.bf16.gmra.mxu0 %v9024
      %v9387 = vpop.f32.mrf.mxu0
      %v9388 = vadd.f32 %v9049, %v9387
      %v9389 = vpop.f32.mrf.mxu0
      %v9390 = vadd.f32 %v9049, %v9389
      %9391 = vmatmul.bf16.gmra.mxu0 %v9025
      %v9392 = vpop.f32.mrf.mxu0
      %v9393 = vadd.f32 %v9049, %v9392
      %v9394 = vpop.f32.mrf.mxu0
      %v9395 = vadd.f32 %v9049, %v9394
      %9396 = vmatmul.bf16.gmra.mxu0 %v9026
      %v9397 = vpop.f32.mrf.mxu0
      %v9398 = vadd.f32 %v9049, %v9397
      %v9399 = vpop.f32.mrf.mxu0
      %v9400 = vadd.f32 %v9049, %v9399
      %9401 = vmatmul.bf16.gmra.mxu0 %v9027
      %v9402 = vpop.f32.mrf.mxu0
      %v9403 = vadd.f32 %v9049, %v9402
      %v9404 = vpop.f32.mrf.mxu0
      %v9405 = vadd.f32 %v9049, %v9404
      %9406 = vmatmul.bf16.gmra.mxu0 %v9028
      %v9407 = vpop.f32.mrf.mxu0
      %v9408 = vadd.f32 %v9049, %v9407
      %v9409 = vpop.f32.mrf.mxu0
      %v9410 = vadd.f32 %v9049, %v9409
      %9411 = vmatmul.bf16.gmra.mxu0 %v9029
      %v9412 = vpop.f32.mrf.mxu0
      %v9413 = vadd.f32 %v9049, %v9412
      %v9414 = vpop.f32.mrf.mxu0
      %v9415 = vadd.f32 %v9049, %v9414
      %9416 = vmatmul.bf16.gmra.mxu0 %v9030
      %v9417 = vpop.f32.mrf.mxu0
      %v9418 = vadd.f32 %v9049, %v9417
      %v9419 = vpop.f32.mrf.mxu0
      %v9420 = vadd.f32 %v9049, %v9419
      %9421 = vmatmul.bf16.gmra.mxu0 %v9031
      %v9422 = vpop.f32.mrf.mxu0
      %v9423 = vadd.f32 %v9049, %v9422
      %v9424 = vpop.f32.mrf.mxu0
      %v9425 = vadd.f32 %v9049, %v9424
      %9426 = vdwg.mxu0
      %v9427 = vadd.f32 %v8125, %v9108
      %v9428 = vadd.f32 %v8126, %v9110
      %v9429 = vadd.f32 %v8127, %v9113
      %v9430 = vadd.f32 %v8128, %v9115
      %v9431 = vadd.f32 %v8129, %v9118
      %v9432 = vadd.f32 %v8130, %v9120
      %v9433 = vadd.f32 %v8131, %v9123
      %v9434 = vadd.f32 %v8132, %v9125
      %v9435 = vadd.f32 %v8133, %v9128
      %v9436 = vadd.f32 %v8134, %v9130
      %v9437 = vadd.f32 %v8135, %v9133
      %v9438 = vadd.f32 %v8136, %v9135
      %v9439 = vadd.f32 %v8137, %v9138
      %v9440 = vadd.f32 %v8138, %v9140
      %v9441 = vadd.f32 %v8139, %v9143
      %v9442 = vadd.f32 %v8140, %v9145
      %v9443 = vadd.f32 %v8141, %v9148
      %v9444 = vadd.f32 %v8142, %v9150
      %v9445 = vadd.f32 %v8143, %v9153
      %v9446 = vadd.f32 %v8144, %v9155
      %v9447 = vadd.f32 %v8145, %v9158
      %v9448 = vadd.f32 %v8146, %v9160
      %v9449 = vadd.f32 %v8147, %v9163
      %v9450 = vadd.f32 %v8148, %v9165
      %v9451 = vadd.f32 %v8149, %v9168
      %v9452 = vadd.f32 %v8150, %v9170
      %v9453 = vadd.f32 %v8151, %v9173
      %v9454 = vadd.f32 %v8152, %v9175
      %v9455 = vadd.f32 %v8153, %v9178
      %v9456 = vadd.f32 %v8154, %v9180
      %v9457 = vadd.f32 %v8155, %v9183
      %v9458 = vadd.f32 %v8156, %v9185
      %v9459 = vadd.f32 %v8157, %v9188
      %v9460 = vadd.f32 %v8158, %v9190
      %v9461 = vadd.f32 %v8159, %v9193
      %v9462 = vadd.f32 %v8160, %v9195
      %v9463 = vadd.f32 %v8161, %v9198
      %v9464 = vadd.f32 %v8162, %v9200
      %v9465 = vadd.f32 %v8163, %v9203
      %v9466 = vadd.f32 %v8164, %v9205
      %v9467 = vadd.f32 %v8165, %v9208
      %v9468 = vadd.f32 %v8166, %v9210
      %v9469 = vadd.f32 %v8167, %v9213
      %v9470 = vadd.f32 %v8168, %v9215
      %v9471 = vadd.f32 %v8169, %v9218
      %v9472 = vadd.f32 %v8170, %v9220
      %v9473 = vadd.f32 %v8171, %v9223
      %v9474 = vadd.f32 %v8172, %v9225
      %v9475 = vadd.f32 %v8173, %v9228
      %v9476 = vadd.f32 %v8174, %v9230
      %v9477 = vadd.f32 %v8175, %v9233
      %v9478 = vadd.f32 %v8176, %v9235
      %v9479 = vadd.f32 %v8177, %v9238
      %v9480 = vadd.f32 %v8178, %v9240
      %v9481 = vadd.f32 %v8179, %v9243
      %v9482 = vadd.f32 %v8180, %v9245
      %v9483 = vadd.f32 %v8181, %v9248
      %v9484 = vadd.f32 %v8182, %v9250
      %v9485 = vadd.f32 %v8183, %v9253
      %v9486 = vadd.f32 %v8184, %v9255
      %v9487 = vadd.f32 %v8185, %v9258
      %v9488 = vadd.f32 %v8186, %v9260
      %v9489 = vadd.f32 %v8187, %v9263
      %v9490 = vadd.f32 %v8188, %v9265
      %v9491 = vadd.f32 %v8189, %v9268
      %v9492 = vadd.f32 %v8190, %v9270
      %v9493 = vadd.f32 %v8191, %v9273
      %v9494 = vadd.f32 %v8192, %v9275
      %v9495 = vadd.f32 %v8193, %v9278
      %v9496 = vadd.f32 %v8194, %v9280
      %v9497 = vadd.f32 %v8195, %v9283
      %v9498 = vadd.f32 %v8196, %v9285
      %v9499 = vadd.f32 %v8197, %v9288
      %v9500 = vadd.f32 %v8198, %v9290
      %v9501 = vadd.f32 %v8199, %v9293
      %v9502 = vadd.f32 %v8200, %v9295
      %v9503 = vadd.f32 %v8201, %v9298
      %v9504 = vadd.f32 %v8202, %v9300
      %v9505 = vadd.f32 %v8203, %v9303
      %v9506 = vadd.f32 %v8204, %v9305
      %v9507 = vadd.f32 %v8205, %v9308
      %v9508 = vadd.f32 %v8206, %v9310
      %v9509 = vadd.f32 %v8207, %v9313
      %v9510 = vadd.f32 %v8208, %v9315
      %v9511 = vadd.f32 %v8209, %v9318
      %v9512 = vadd.f32 %v8210, %v9320
      %v9513 = vadd.f32 %v8211, %v9323
      %v9514 = vadd.f32 %v8212, %v9325
      %v9515 = vadd.f32 %v8213, %v9328
      %v9516 = vadd.f32 %v8214, %v9330
      %v9517 = vadd.f32 %v8215, %v9333
      %v9518 = vadd.f32 %v8216, %v9335
      %v9519 = vadd.f32 %v8217, %v9338
      %v9520 = vadd.f32 %v8218, %v9340
      %v9521 = vadd.f32 %v8219, %v9343
      %v9522 = vadd.f32 %v8220, %v9345
      %v9523 = vadd.f32 %v8221, %v9348
      %v9524 = vadd.f32 %v8222, %v9350
      %v9525 = vadd.f32 %v8223, %v9353
      %v9526 = vadd.f32 %v8224, %v9355
      %v9527 = vadd.f32 %v8225, %v9358
      %v9528 = vadd.f32 %v8226, %v9360
      %v9529 = vadd.f32 %v8227, %v9363
      %v9530 = vadd.f32 %v8228, %v9365
      %v9531 = vadd.f32 %v8229, %v9368
      %v9532 = vadd.f32 %v8230, %v9370
      %v9533 = vadd.f32 %v8231, %v9373
      %v9534 = vadd.f32 %v8232, %v9375
      %v9535 = vadd.f32 %v8233, %v9378
      %v9536 = vadd.f32 %v8234, %v9380
      %v9537 = vadd.f32 %v8235, %v9383
      %v9538 = vadd.f32 %v8236, %v9385
      %v9539 = vadd.f32 %v8237, %v9388
      %v9540 = vadd.f32 %v8238, %v9390
      %v9541 = vadd.f32 %v8239, %v9393
      %v9542 = vadd.f32 %v8240, %v9395
      %v9543 = vadd.f32 %v8241, %v9398
      %v9544 = vadd.f32 %v8242, %v9400
      %v9545 = vadd.f32 %v8243, %v9403
      %v9546 = vadd.f32 %v8244, %v9405
      %v9547 = vadd.f32 %v8245, %v9408
      %v9548 = vadd.f32 %v8246, %v9410
      %v9549 = vadd.f32 %v8247, %v9413
      %v9550 = vadd.f32 %v8248, %v9415
      %v9551 = vadd.f32 %v8249, %v9418
      %v9552 = vadd.f32 %v8250, %v9420
      %v9553 = vadd.f32 %v8251, %v9423
      %v9554 = vadd.f32 %v8252, %v9425
      %vm9555 = vcmp.gt.f32.partialorder %v9427, 0.0
      %vm9556 = vcmp.gt.f32.partialorder %v9428, 0.0
      %vm9557 = vcmp.gt.f32.partialorder %v9429, 0.0
      %vm9558 = vcmp.gt.f32.partialorder %v9430, 0.0
      %vm9559 = vcmp.gt.f32.partialorder %v9431, 0.0
      %vm9560 = vcmp.gt.f32.partialorder %v9432, 0.0
      %vm9561 = vcmp.gt.f32.partialorder %v9433, 0.0
      %vm9562 = vcmp.gt.f32.partialorder %v9434, 0.0
      %vm9563 = vcmp.gt.f32.partialorder %v9435, 0.0
      %vm9564 = vcmp.gt.f32.partialorder %v9436, 0.0
      %vm9565 = vcmp.gt.f32.partialorder %v9437, 0.0
      %vm9566 = vcmp.gt.f32.partialorder %v9438, 0.0
      %vm9567 = vcmp.gt.f32.partialorder %v9439, 0.0
      %vm9568 = vcmp.gt.f32.partialorder %v9440, 0.0
      %vm9569 = vcmp.gt.f32.partialorder %v9441, 0.0
      %vm9570 = vcmp.gt.f32.partialorder %v9442, 0.0
      %vm9571 = vcmp.gt.f32.partialorder %v9443, 0.0
      %vm9572 = vcmp.gt.f32.partialorder %v9444, 0.0
      %vm9573 = vcmp.gt.f32.partialorder %v9445, 0.0
      %vm9574 = vcmp.gt.f32.partialorder %v9446, 0.0
      %vm9575 = vcmp.gt.f32.partialorder %v9447, 0.0
      %vm9576 = vcmp.gt.f32.partialorder %v9448, 0.0
      %vm9577 = vcmp.gt.f32.partialorder %v9449, 0.0
      %vm9578 = vcmp.gt.f32.partialorder %v9450, 0.0
      %vm9579 = vcmp.gt.f32.partialorder %v9451, 0.0
      %vm9580 = vcmp.gt.f32.partialorder %v9452, 0.0
      %vm9581 = vcmp.gt.f32.partialorder %v9453, 0.0
      %vm9582 = vcmp.gt.f32.partialorder %v9454, 0.0
      %vm9583 = vcmp.gt.f32.partialorder %v9455, 0.0
      %vm9584 = vcmp.gt.f32.partialorder %v9456, 0.0
      %vm9585 = vcmp.gt.f32.partialorder %v9457, 0.0
      %vm9586 = vcmp.gt.f32.partialorder %v9458, 0.0
      %vm9587 = vcmp.gt.f32.partialorder %v9459, 0.0
      %vm9588 = vcmp.gt.f32.partialorder %v9460, 0.0
      %vm9589 = vcmp.gt.f32.partialorder %v9461, 0.0
      %vm9590 = vcmp.gt.f32.partialorder %v9462, 0.0
      %vm9591 = vcmp.gt.f32.partialorder %v9463, 0.0
      %vm9592 = vcmp.gt.f32.partialorder %v9464, 0.0
      %vm9593 = vcmp.gt.f32.partialorder %v9465, 0.0
      %vm9594 = vcmp.gt.f32.partialorder %v9466, 0.0
      %vm9595 = vcmp.gt.f32.partialorder %v9467, 0.0
      %vm9596 = vcmp.gt.f32.partialorder %v9468, 0.0
      %vm9597 = vcmp.gt.f32.partialorder %v9469, 0.0
      %vm9598 = vcmp.gt.f32.partialorder %v9470, 0.0
      %vm9599 = vcmp.gt.f32.partialorder %v9471, 0.0
      %vm9600 = vcmp.gt.f32.partialorder %v9472, 0.0
      %vm9601 = vcmp.gt.f32.partialorder %v9473, 0.0
      %vm9602 = vcmp.gt.f32.partialorder %v9474, 0.0
      %vm9603 = vcmp.gt.f32.partialorder %v9475, 0.0
      %vm9604 = vcmp.gt.f32.partialorder %v9476, 0.0
      %vm9605 = vcmp.gt.f32.partialorder %v9477, 0.0
      %vm9606 = vcmp.gt.f32.partialorder %v9478, 0.0
      %vm9607 = vcmp.gt.f32.partialorder %v9479, 0.0
      %vm9608 = vcmp.gt.f32.partialorder %v9480, 0.0
      %vm9609 = vcmp.gt.f32.partialorder %v9481, 0.0
      %vm9610 = vcmp.gt.f32.partialorder %v9482, 0.0
      %vm9611 = vcmp.gt.f32.partialorder %v9483, 0.0
      %vm9612 = vcmp.gt.f32.partialorder %v9484, 0.0
      %vm9613 = vcmp.gt.f32.partialorder %v9485, 0.0
      %vm9614 = vcmp.gt.f32.partialorder %v9486, 0.0
      %vm9615 = vcmp.gt.f32.partialorder %v9487, 0.0
      %vm9616 = vcmp.gt.f32.partialorder %v9488, 0.0
      %vm9617 = vcmp.gt.f32.partialorder %v9489, 0.0
      %vm9618 = vcmp.gt.f32.partialorder %v9490, 0.0
      %vm9619 = vcmp.gt.f32.partialorder %v9491, 0.0
      %vm9620 = vcmp.gt.f32.partialorder %v9492, 0.0
      %vm9621 = vcmp.gt.f32.partialorder %v9493, 0.0
      %vm9622 = vcmp.gt.f32.partialorder %v9494, 0.0
      %vm9623 = vcmp.gt.f32.partialorder %v9495, 0.0
      %vm9624 = vcmp.gt.f32.partialorder %v9496, 0.0
      %vm9625 = vcmp.gt.f32.partialorder %v9497, 0.0
      %vm9626 = vcmp.gt.f32.partialorder %v9498, 0.0
      %vm9627 = vcmp.gt.f32.partialorder %v9499, 0.0
      %vm9628 = vcmp.gt.f32.partialorder %v9500, 0.0
      %vm9629 = vcmp.gt.f32.partialorder %v9501, 0.0
      %vm9630 = vcmp.gt.f32.partialorder %v9502, 0.0
      %vm9631 = vcmp.gt.f32.partialorder %v9503, 0.0
      %vm9632 = vcmp.gt.f32.partialorder %v9504, 0.0
      %vm9633 = vcmp.gt.f32.partialorder %v9505, 0.0
      %vm9634 = vcmp.gt.f32.partialorder %v9506, 0.0
      %vm9635 = vcmp.gt.f32.partialorder %v9507, 0.0
      %vm9636 = vcmp.gt.f32.partialorder %v9508, 0.0
      %vm9637 = vcmp.gt.f32.partialorder %v9509, 0.0
      %vm9638 = vcmp.gt.f32.partialorder %v9510, 0.0
      %vm9639 = vcmp.gt.f32.partialorder %v9511, 0.0
      %vm9640 = vcmp.gt.f32.partialorder %v9512, 0.0
      %vm9641 = vcmp.gt.f32.partialorder %v9513, 0.0
      %vm9642 = vcmp.gt.f32.partialorder %v9514, 0.0
      %vm9643 = vcmp.gt.f32.partialorder %v9515, 0.0
      %vm9644 = vcmp.gt.f32.partialorder %v9516, 0.0
      %vm9645 = vcmp.gt.f32.partialorder %v9517, 0.0
      %vm9646 = vcmp.gt.f32.partialorder %v9518, 0.0
      %vm9647 = vcmp.gt.f32.partialorder %v9519, 0.0
      %vm9648 = vcmp.gt.f32.partialorder %v9520, 0.0
      %vm9649 = vcmp.gt.f32.partialorder %v9521, 0.0
      %vm9650 = vcmp.gt.f32.partialorder %v9522, 0.0
      %vm9651 = vcmp.gt.f32.partialorder %v9523, 0.0
      %vm9652 = vcmp.gt.f32.partialorder %v9524, 0.0
      %vm9653 = vcmp.gt.f32.partialorder %v9525, 0.0
      %vm9654 = vcmp.gt.f32.partialorder %v9526, 0.0
      %vm9655 = vcmp.gt.f32.partialorder %v9527, 0.0
      %vm9656 = vcmp.gt.f32.partialorder %v9528, 0.0
      %vm9657 = vcmp.gt.f32.partialorder %v9529, 0.0
      %vm9658 = vcmp.gt.f32.partialorder %v9530, 0.0
      %vm9659 = vcmp.gt.f32.partialorder %v9531, 0.0
      %vm9660 = vcmp.gt.f32.partialorder %v9532, 0.0
      %vm9661 = vcmp.gt.f32.partialorder %v9533, 0.0
      %vm9662 = vcmp.gt.f32.partialorder %v9534, 0.0
      %vm9663 = vcmp.gt.f32.partialorder %v9535, 0.0
      %vm9664 = vcmp.gt.f32.partialorder %v9536, 0.0
      %vm9665 = vcmp.gt.f32.partialorder %v9537, 0.0
      %vm9666 = vcmp.gt.f32.partialorder %v9538, 0.0
      %vm9667 = vcmp.gt.f32.partialorder %v9539, 0.0
      %vm9668 = vcmp.gt.f32.partialorder %v9540, 0.0
      %vm9669 = vcmp.gt.f32.partialorder %v9541, 0.0
      %vm9670 = vcmp.gt.f32.partialorder %v9542, 0.0
      %vm9671 = vcmp.gt.f32.partialorder %v9543, 0.0
      %vm9672 = vcmp.gt.f32.partialorder %v9544, 0.0
      %vm9673 = vcmp.gt.f32.partialorder %v9545, 0.0
      %vm9674 = vcmp.gt.f32.partialorder %v9546, 0.0
      %vm9675 = vcmp.gt.f32.partialorder %v9547, 0.0
      %vm9676 = vcmp.gt.f32.partialorder %v9548, 0.0
      %vm9677 = vcmp.gt.f32.partialorder %v9549, 0.0
      %vm9678 = vcmp.gt.f32.partialorder %v9550, 0.0
      %vm9679 = vcmp.gt.f32.partialorder %v9551, 0.0
      %vm9680 = vcmp.gt.f32.partialorder %v9552, 0.0
      %vm9681 = vcmp.gt.f32.partialorder %v9553, 0.0
      %vm9682 = vcmp.gt.f32.partialorder %v9554, 0.0
      %v9683 = vmul.f32 %v9427, 0.2
      %v9684 = vmul.f32 %v9428, 0.2
      %v9685 = vmul.f32 %v9429, 0.2
      %v9686 = vmul.f32 %v9430, 0.2
      %v9687 = vmul.f32 %v9431, 0.2
      %v9688 = vmul.f32 %v9432, 0.2
      %v9689 = vmul.f32 %v9433, 0.2
      %v9690 = vmul.f32 %v9434, 0.2
      %v9691 = vmul.f32 %v9435, 0.2
      %v9692 = vmul.f32 %v9436, 0.2
      %v9693 = vmul.f32 %v9437, 0.2
      %v9694 = vmul.f32 %v9438, 0.2
      %v9695 = vmul.f32 %v9439, 0.2
      %v9696 = vmul.f32 %v9440, 0.2
      %v9697 = vmul.f32 %v9441, 0.2
      %v9698 = vmul.f32 %v9442, 0.2
      %v9699 = vmul.f32 %v9443, 0.2
      %v9700 = vmul.f32 %v9444, 0.2
      %v9701 = vmul.f32 %v9445, 0.2
      %v9702 = vmul.f32 %v9446, 0.2
      %v9703 = vmul.f32 %v9447, 0.2
      %v9704 = vmul.f32 %v9448, 0.2
      %v9705 = vmul.f32 %v9449, 0.2
      %v9706 = vmul.f32 %v9450, 0.2
      %v9707 = vmul.f32 %v9451, 0.2
      %v9708 = vmul.f32 %v9452, 0.2
      %v9709 = vmul.f32 %v9453, 0.2
      %v9710 = vmul.f32 %v9454, 0.2
      %v9711 = vmul.f32 %v9455, 0.2
      %v9712 = vmul.f32 %v9456, 0.2
      %v9713 = vmul.f32 %v9457, 0.2
      %v9714 = vmul.f32 %v9458, 0.2
      %v9715 = vmul.f32 %v9459, 0.2
      %v9716 = vmul.f32 %v9460, 0.2
      %v9717 = vmul.f32 %v9461, 0.2
      %v9718 = vmul.f32 %v9462, 0.2
      %v9719 = vmul.f32 %v9463, 0.2
      %v9720 = vmul.f32 %v9464, 0.2
      %v9721 = vmul.f32 %v9465, 0.2
      %v9722 = vmul.f32 %v9466, 0.2
      %v9723 = vmul.f32 %v9467, 0.2
      %v9724 = vmul.f32 %v9468, 0.2
      %v9725 = vmul.f32 %v9469, 0.2
      %v9726 = vmul.f32 %v9470, 0.2
      %v9727 = vmul.f32 %v9471, 0.2
      %v9728 = vmul.f32 %v9472, 0.2
      %v9729 = vmul.f32 %v9473, 0.2
      %v9730 = vmul.f32 %v9474, 0.2
      %v9731 = vmul.f32 %v9475, 0.2
      %v9732 = vmul.f32 %v9476, 0.2
      %v9733 = vmul.f32 %v9477, 0.2
      %v9734 = vmul.f32 %v9478, 0.2
      %v9735 = vmul.f32 %v9479, 0.2
      %v9736 = vmul.f32 %v9480, 0.2
      %v9737 = vmul.f32 %v9481, 0.2
      %v9738 = vmul.f32 %v9482, 0.2
      %v9739 = vmul.f32 %v9483, 0.2
      %v9740 = vmul.f32 %v9484, 0.2
      %v9741 = vmul.f32 %v9485, 0.2
      %v9742 = vmul.f32 %v9486, 0.2
      %v9743 = vmul.f32 %v9487, 0.2
      %v9744 = vmul.f32 %v9488, 0.2
      %v9745 = vmul.f32 %v9489, 0.2
      %v9746 = vmul.f32 %v9490, 0.2
      %v9747 = vmul.f32 %v9491, 0.2
      %v9748 = vmul.f32 %v9492, 0.2
      %v9749 = vmul.f32 %v9493, 0.2
      %v9750 = vmul.f32 %v9494, 0.2
      %v9751 = vmul.f32 %v9495, 0.2
      %v9752 = vmul.f32 %v9496, 0.2
      %v9753 = vmul.f32 %v9497, 0.2
      %v9754 = vmul.f32 %v9498, 0.2
      %v9755 = vmul.f32 %v9499, 0.2
      %v9756 = vmul.f32 %v9500, 0.2
      %v9757 = vmul.f32 %v9501, 0.2
      %v9758 = vmul.f32 %v9502, 0.2
      %v9759 = vmul.f32 %v9503, 0.2
      %v9760 = vmul.f32 %v9504, 0.2
      %v9761 = vmul.f32 %v9505, 0.2
      %v9762 = vmul.f32 %v9506, 0.2
      %v9763 = vmul.f32 %v9507, 0.2
      %v9764 = vmul.f32 %v9508, 0.2
      %v9765 = vmul.f32 %v9509, 0.2
      %v9766 = vmul.f32 %v9510, 0.2
      %v9767 = vmul.f32 %v9511, 0.2
      %v9768 = vmul.f32 %v9512, 0.2
      %v9769 = vmul.f32 %v9513, 0.2
      %v9770 = vmul.f32 %v9514, 0.2
      %v9771 = vmul.f32 %v9515, 0.2
      %v9772 = vmul.f32 %v9516, 0.2
      %v9773 = vmul.f32 %v9517, 0.2
      %v9774 = vmul.f32 %v9518, 0.2
      %v9775 = vmul.f32 %v9519, 0.2
      %v9776 = vmul.f32 %v9520, 0.2
      %v9777 = vmul.f32 %v9521, 0.2
      %v9778 = vmul.f32 %v9522, 0.2
      %v9779 = vmul.f32 %v9523, 0.2
      %v9780 = vmul.f32 %v9524, 0.2
      %v9781 = vmul.f32 %v9525, 0.2
      %v9782 = vmul.f32 %v9526, 0.2
      %v9783 = vmul.f32 %v9527, 0.2
      %v9784 = vmul.f32 %v9528, 0.2
      %v9785 = vmul.f32 %v9529, 0.2
      %v9786 = vmul.f32 %v9530, 0.2
      %v9787 = vmul.f32 %v9531, 0.2
      %v9788 = vmul.f32 %v9532, 0.2
      %v9789 = vmul.f32 %v9533, 0.2
      %v9790 = vmul.f32 %v9534, 0.2
      %v9791 = vmul.f32 %v9535, 0.2
      %v9792 = vmul.f32 %v9536, 0.2
      %v9793 = vmul.f32 %v9537, 0.2
      %v9794 = vmul.f32 %v9538, 0.2
      %v9795 = vmul.f32 %v9539, 0.2
      %v9796 = vmul.f32 %v9540, 0.2
      %v9797 = vmul.f32 %v9541, 0.2
      %v9798 = vmul.f32 %v9542, 0.2
      %v9799 = vmul.f32 %v9543, 0.2
      %v9800 = vmul.f32 %v9544, 0.2
      %v9801 = vmul.f32 %v9545, 0.2
      %v9802 = vmul.f32 %v9546, 0.2
      %v9803 = vmul.f32 %v9547, 0.2
      %v9804 = vmul.f32 %v9548, 0.2
      %v9805 = vmul.f32 %v9549, 0.2
      %v9806 = vmul.f32 %v9550, 0.2
      %v9807 = vmul.f32 %v9551, 0.2
      %v9808 = vmul.f32 %v9552, 0.2
      %v9809 = vmul.f32 %v9553, 0.2
      %v9810 = vmul.f32 %v9554, 0.2
      %v9811 = vsel %vm9555, %v9427, %v9683
      %v9812 = vsel %vm9556, %v9428, %v9684
      %v9813 = vsel %vm9557, %v9429, %v9685
      %v9814 = vsel %vm9558, %v9430, %v9686
      %v9815 = vsel %vm9559, %v9431, %v9687
      %v9816 = vsel %vm9560, %v9432, %v9688
      %v9817 = vsel %vm9561, %v9433, %v9689
      %v9818 = vsel %vm9562, %v9434, %v9690
      %v9819 = vsel %vm9563, %v9435, %v9691
      %v9820 = vsel %vm9564, %v9436, %v9692
      %v9821 = vsel %vm9565, %v9437, %v9693
      %v9822 = vsel %vm9566, %v9438, %v9694
      %v9823 = vsel %vm9567, %v9439, %v9695
      %v9824 = vsel %vm9568, %v9440, %v9696
      %v9825 = vsel %vm9569, %v9441, %v9697
      %v9826 = vsel %vm9570, %v9442, %v9698
      %v9827 = vsel %vm9571, %v9443, %v9699
      %v9828 = vsel %vm9572, %v9444, %v9700
      %v9829 = vsel %vm9573, %v9445, %v9701
      %v9830 = vsel %vm9574, %v9446, %v9702
      %v9831 = vsel %vm9575, %v9447, %v9703
      %v9832 = vsel %vm9576, %v9448, %v9704
      %v9833 = vsel %vm9577, %v9449, %v9705
      %v9834 = vsel %vm9578, %v9450, %v9706
      %v9835 = vsel %vm9579, %v9451, %v9707
      %v9836 = vsel %vm9580, %v9452, %v9708
      %v9837 = vsel %vm9581, %v9453, %v9709
      %v9838 = vsel %vm9582, %v9454, %v9710
      %v9839 = vsel %vm9583, %v9455, %v9711
      %v9840 = vsel %vm9584, %v9456, %v9712
      %v9841 = vsel %vm9585, %v9457, %v9713
      %v9842 = vsel %vm9586, %v9458, %v9714
      %v9843 = vsel %vm9587, %v9459, %v9715
      %v9844 = vsel %vm9588, %v9460, %v9716
      %v9845 = vsel %vm9589, %v9461, %v9717
      %v9846 = vsel %vm9590, %v9462, %v9718
      %v9847 = vsel %vm9591, %v9463, %v9719
      %v9848 = vsel %vm9592, %v9464, %v9720
      %v9849 = vsel %vm9593, %v9465, %v9721
      %v9850 = vsel %vm9594, %v9466, %v9722
      %v9851 = vsel %vm9595, %v9467, %v9723
      %v9852 = vsel %vm9596, %v9468, %v9724
      %v9853 = vsel %vm9597, %v9469, %v9725
      %v9854 = vsel %vm9598, %v9470, %v9726
      %v9855 = vsel %vm9599, %v9471, %v9727
      %v9856 = vsel %vm9600, %v9472, %v9728
      %v9857 = vsel %vm9601, %v9473, %v9729
      %v9858 = vsel %vm9602, %v9474, %v9730
      %v9859 = vsel %vm9603, %v9475, %v9731
      %v9860 = vsel %vm9604, %v9476, %v9732
      %v9861 = vsel %vm9605, %v9477, %v9733
      %v9862 = vsel %vm9606, %v9478, %v9734
      %v9863 = vsel %vm9607, %v9479, %v9735
      %v9864 = vsel %vm9608, %v9480, %v9736
      %v9865 = vsel %vm9609, %v9481, %v9737
      %v9866 = vsel %vm9610, %v9482, %v9738
      %v9867 = vsel %vm9611, %v9483, %v9739
      %v9868 = vsel %vm9612, %v9484, %v9740
      %v9869 = vsel %vm9613, %v9485, %v9741
      %v9870 = vsel %vm9614, %v9486, %v9742
      %v9871 = vsel %vm9615, %v9487, %v9743
      %v9872 = vsel %vm9616, %v9488, %v9744
      %v9873 = vsel %vm9617, %v9489, %v9745
      %v9874 = vsel %vm9618, %v9490, %v9746
      %v9875 = vsel %vm9619, %v9491, %v9747
      %v9876 = vsel %vm9620, %v9492, %v9748
      %v9877 = vsel %vm9621, %v9493, %v9749
      %v9878 = vsel %vm9622, %v9494, %v9750
      %v9879 = vsel %vm9623, %v9495, %v9751
      %v9880 = vsel %vm9624, %v9496, %v9752
      %v9881 = vsel %vm9625, %v9497, %v9753
      %v9882 = vsel %vm9626, %v9498, %v9754
      %v9883 = vsel %vm9627, %v9499, %v9755
      %v9884 = vsel %vm9628, %v9500, %v9756
      %v9885 = vsel %vm9629, %v9501, %v9757
      %v9886 = vsel %vm9630, %v9502, %v9758
      %v9887 = vsel %vm9631, %v9503, %v9759
      %v9888 = vsel %vm9632, %v9504, %v9760
      %v9889 = vsel %vm9633, %v9505, %v9761
      %v9890 = vsel %vm9634, %v9506, %v9762
      %v9891 = vsel %vm9635, %v9507, %v9763
      %v9892 = vsel %vm9636, %v9508, %v9764
      %v9893 = vsel %vm9637, %v9509, %v9765
      %v9894 = vsel %vm9638, %v9510, %v9766
      %v9895 = vsel %vm9639, %v9511, %v9767
      %v9896 = vsel %vm9640, %v9512, %v9768
      %v9897 = vsel %vm9641, %v9513, %v9769
      %v9898 = vsel %vm9642, %v9514, %v9770
      %v9899 = vsel %vm9643, %v9515, %v9771
      %v9900 = vsel %vm9644, %v9516, %v9772
      %v9901 = vsel %vm9645, %v9517, %v9773
      %v9902 = vsel %vm9646, %v9518, %v9774
      %v9903 = vsel %vm9647, %v9519, %v9775
      %v9904 = vsel %vm9648, %v9520, %v9776
      %v9905 = vsel %vm9649, %v9521, %v9777
      %v9906 = vsel %vm9650, %v9522, %v9778
      %v9907 = vsel %vm9651, %v9523, %v9779
      %v9908 = vsel %vm9652, %v9524, %v9780
      %v9909 = vsel %vm9653, %v9525, %v9781
      %v9910 = vsel %vm9654, %v9526, %v9782
      %v9911 = vsel %vm9655, %v9527, %v9783
      %v9912 = vsel %vm9656, %v9528, %v9784
      %v9913 = vsel %vm9657, %v9529, %v9785
      %v9914 = vsel %vm9658, %v9530, %v9786
      %v9915 = vsel %vm9659, %v9531, %v9787
      %v9916 = vsel %vm9660, %v9532, %v9788
      %v9917 = vsel %vm9661, %v9533, %v9789
      %v9918 = vsel %vm9662, %v9534, %v9790
      %v9919 = vsel %vm9663, %v9535, %v9791
      %v9920 = vsel %vm9664, %v9536, %v9792
      %v9921 = vsel %vm9665, %v9537, %v9793
      %v9922 = vsel %vm9666, %v9538, %v9794
      %v9923 = vsel %vm9667, %v9539, %v9795
      %v9924 = vsel %vm9668, %v9540, %v9796
      %v9925 = vsel %vm9669, %v9541, %v9797
      %v9926 = vsel %vm9670, %v9542, %v9798
      %v9927 = vsel %vm9671, %v9543, %v9799
      %v9928 = vsel %vm9672, %v9544, %v9800
      %v9929 = vsel %vm9673, %v9545, %v9801
      %v9930 = vsel %vm9674, %v9546, %v9802
      %v9931 = vsel %vm9675, %v9547, %v9803
      %v9932 = vsel %vm9676, %v9548, %v9804
      %v9933 = vsel %vm9677, %v9549, %v9805
      %v9934 = vsel %vm9678, %v9550, %v9806
      %v9935 = vsel %vm9679, %v9551, %v9807
      %v9936 = vsel %vm9680, %v9552, %v9808
      %v9937 = vsel %vm9681, %v9553, %v9809
      %v9938 = vsel %vm9682, %v9554, %v9810
      %v9939 = vpack.c.bf16 %v303, %v303
      %9940 = vxpose.xlu0.b32.start [1/16] %v9811, 128
      %9941 = vxpose.xlu0.b32.cont [2/16] %v9812, 128
      %9942 = vxpose.xlu0.b32.cont [3/16] %v9813, 128
      %9943 = vxpose.xlu0.b32.cont [4/16] %v9814, 128
      %9944 = vxpose.xlu0.b32.cont [5/16] %v9815, 128
      %9945 = vxpose.xlu0.b32.cont [6/16] %v9816, 128
      %9946 = vxpose.xlu0.b32.cont [7/16] %v9817, 128
      %9947 = vxpose.xlu0.b32.cont [8/16] %v9818, 128
      %9948 = vxpose.xlu0.b32.cont [9/16] %v9819, 128
      %9949 = vxpose.xlu0.b32.cont [10/16] %v9820, 128
      %9950 = vxpose.xlu0.b32.cont [11/16] %v9821, 128
      %9951 = vxpose.xlu0.b32.cont [12/16] %v9822, 128
      %9952 = vxpose.xlu0.b32.cont [13/16] %v9823, 128
      %9953 = vxpose.xlu0.b32.cont [14/16] %v9824, 128
      %9954 = vxpose.xlu0.b32.cont [15/16] %v9825, 128
      %9955 = vxpose.xlu0.b32.end [16/16] %v9826, 128
      %v9956 = vpop.trf.xlu0
      %v9957 = vpop.trf.xlu0
      %v9958 = vpop.trf.xlu0
      %v9959 = vpop.trf.xlu0
      %v9960 = vpop.trf.xlu0
      %v9961 = vpop.trf.xlu0
      %v9962 = vpop.trf.xlu0
      %v9963 = vpop.trf.xlu0
      %v9964 = vpop.trf.xlu0
      %v9965 = vpop.trf.xlu0
      %v9966 = vpop.trf.xlu0
      %v9967 = vpop.trf.xlu0
      %v9968 = vpop.trf.xlu0
      %v9969 = vpop.trf.xlu0
      %v9970 = vpop.trf.xlu0
      %v9971 = vpop.trf.xlu0
      %v9972 = vpack.c.bf16 %v9957, %v9956
      %v9973 = vpack.c.bf16 %v9959, %v9958
      %v9974 = vpack.c.bf16 %v9961, %v9960
      %v9975 = vpack.c.bf16 %v9963, %v9962
      %v9976 = vpack.c.bf16 %v9965, %v9964
      %v9977 = vpack.c.bf16 %v9967, %v9966
      %v9978 = vpack.c.bf16 %v9969, %v9968
      %v9979 = vpack.c.bf16 %v9971, %v9970
      %v9981 = vrot.slane %v9939, 3
      %9983 = vmatpush.bf16.msra.mxu0 %v9979
      %9984 = vmatpush.bf16.msra.mxu0 %v9978
      %9985 = vmatpush.bf16.msra.mxu0 %v9977
      %9986 = vmatpush.bf16.msra.mxu0 %v9976
      %9987 = vmatpush.bf16.msra.mxu0 %v9975
      %9988 = vmatpush.bf16.msra.mxu0 %v9974
      %9989 = vmatpush.bf16.msra.mxu0 %v9973
      %9990 = vmatpush.bf16.msra.mxu0 %v9972
      %9991 = vmatmul.bf16.gmra.mxu0 %v9981
      %v9992 = vpop.f32.mrf.mxu0
      %v9993 = vadd.f32 0.0, %v9992
      %v9994 = vpop.f32.mrf.mxu0
      %9995 = vdwg.mxu0
      %9996 = vxpose.xlu0.b32.start [1/16] %v9827, 128
      %9997 = vxpose.xlu0.b32.cont [2/16] %v9828, 128
      %9998 = vxpose.xlu0.b32.cont [3/16] %v9829, 128
      %9999 = vxpose.xlu0.b32.cont [4/16] %v9830, 128
      %10000 = vxpose.xlu0.b32.cont [5/16] %v9831, 128
      %10001 = vxpose.xlu0.b32.cont [6/16] %v9832, 128
      %10002 = vxpose.xlu0.b32.cont [7/16] %v9833, 128
      %10003 = vxpose.xlu0.b32.cont [8/16] %v9834, 128
      %10004 = vxpose.xlu0.b32.cont [9/16] %v9835, 128
      %10005 = vxpose.xlu0.b32.cont [10/16] %v9836, 128
      %10006 = vxpose.xlu0.b32.cont [11/16] %v9837, 128
      %10007 = vxpose.xlu0.b32.cont [12/16] %v9838, 128
      %10008 = vxpose.xlu0.b32.cont [13/16] %v9839, 128
      %10009 = vxpose.xlu0.b32.cont [14/16] %v9840, 128
      %10010 = vxpose.xlu0.b32.cont [15/16] %v9841, 128
      %10011 = vxpose.xlu0.b32.end [16/16] %v9842, 128
      %v10012 = vpop.trf.xlu0
      %v10013 = vpop.trf.xlu0
      %v10014 = vpop.trf.xlu0
      %v10015 = vpop.trf.xlu0
      %v10016 = vpop.trf.xlu0
      %v10017 = vpop.trf.xlu0
      %v10018 = vpop.trf.xlu0
      %v10019 = vpop.trf.xlu0
      %v10020 = vpop.trf.xlu0
      %v10021 = vpop.trf.xlu0
      %v10022 = vpop.trf.xlu0
      %v10023 = vpop.trf.xlu0
      %v10024 = vpop.trf.xlu0
      %v10025 = vpop.trf.xlu0
      %v10026 = vpop.trf.xlu0
      %v10027 = vpop.trf.xlu0
      %v10028 = vpack.c.bf16 %v10013, %v10012
      %v10029 = vpack.c.bf16 %v10015, %v10014
      %v10030 = vpack.c.bf16 %v10017, %v10016
      %v10031 = vpack.c.bf16 %v10019, %v10018
      %v10032 = vpack.c.bf16 %v10021, %v10020
      %v10033 = vpack.c.bf16 %v10023, %v10022
      %v10034 = vpack.c.bf16 %v10025, %v10024
      %v10035 = vpack.c.bf16 %v10027, %v10026
      %10036 = vmatpush.bf16.msra.mxu0 %v10035
      %10037 = vmatpush.bf16.msra.mxu0 %v10034
      %10038 = vmatpush.bf16.msra.mxu0 %v10033
      %10039 = vmatpush.bf16.msra.mxu0 %v10032
      %10040 = vmatpush.bf16.msra.mxu0 %v10031
      %10041 = vmatpush.bf16.msra.mxu0 %v10030
      %10042 = vmatpush.bf16.msra.mxu0 %v10029
      %10043 = vmatpush.bf16.msra.mxu0 %v10028
      %10044 = vmatmul.bf16.gmra.mxu0 %v9981
      %v10045 = vpop.f32.mrf.mxu0
      %v10046 = vadd.f32 0.0, %v10045
      %v10047 = vpop.f32.mrf.mxu0
      %10048 = vdwg.mxu0
      %10049 = vxpose.xlu0.b32.start [1/16] %v9843, 128
      %10050 = vxpose.xlu0.b32.cont [2/16] %v9844, 128
      %10051 = vxpose.xlu0.b32.cont [3/16] %v9845, 128
      %10052 = vxpose.xlu0.b32.cont [4/16] %v9846, 128
      %10053 = vxpose.xlu0.b32.cont [5/16] %v9847, 128
      %10054 = vxpose.xlu0.b32.cont [6/16] %v9848, 128
      %10055 = vxpose.xlu0.b32.cont [7/16] %v9849, 128
      %10056 = vxpose.xlu0.b32.cont [8/16] %v9850, 128
      %10057 = vxpose.xlu0.b32.cont [9/16] %v9851, 128
      %10058 = vxpose.xlu0.b32.cont [10/16] %v9852, 128
      %10059 = vxpose.xlu0.b32.cont [11/16] %v9853, 128
      %10060 = vxpose.xlu0.b32.cont [12/16] %v9854, 128
      %10061 = vxpose.xlu0.b32.cont [13/16] %v9855, 128
      %10062 = vxpose.xlu0.b32.cont [14/16] %v9856, 128
      %10063 = vxpose.xlu0.b32.cont [15/16] %v9857, 128
      %10064 = vxpose.xlu0.b32.end [16/16] %v9858, 128
      %v10065 = vpop.trf.xlu0
      %v10066 = vpop.trf.xlu0
      %v10067 = vpop.trf.xlu0
      %v10068 = vpop.trf.xlu0
      %v10069 = vpop.trf.xlu0
      %v10070 = vpop.trf.xlu0
      %v10071 = vpop.trf.xlu0
      %v10072 = vpop.trf.xlu0
      %v10073 = vpop.trf.xlu0
      %v10074 = vpop.trf.xlu0
      %v10075 = vpop.trf.xlu0
      %v10076 = vpop.trf.xlu0
      %v10077 = vpop.trf.xlu0
      %v10078 = vpop.trf.xlu0
      %v10079 = vpop.trf.xlu0
      %v10080 = vpop.trf.xlu0
      %v10081 = vpack.c.bf16 %v10066, %v10065
      %v10082 = vpack.c.bf16 %v10068, %v10067
      %v10083 = vpack.c.bf16 %v10070, %v10069
      %v10084 = vpack.c.bf16 %v10072, %v10071
      %v10085 = vpack.c.bf16 %v10074, %v10073
      %v10086 = vpack.c.bf16 %v10076, %v10075
      %v10087 = vpack.c.bf16 %v10078, %v10077
      %v10088 = vpack.c.bf16 %v10080, %v10079
      %10089 = vmatpush.bf16.msra.mxu0 %v10088
      %10090 = vmatpush.bf16.msra.mxu0 %v10087
      %10091 = vmatpush.bf16.msra.mxu0 %v10086
      %10092 = vmatpush.bf16.msra.mxu0 %v10085
      %10093 = vmatpush.bf16.msra.mxu0 %v10084
      %10094 = vmatpush.bf16.msra.mxu0 %v10083
      %10095 = vmatpush.bf16.msra.mxu0 %v10082
      %10096 = vmatpush.bf16.msra.mxu0 %v10081
      %10097 = vmatmul.bf16.gmra.mxu0 %v9981
      %v10098 = vpop.f32.mrf.mxu0
      %v10099 = vadd.f32 0.0, %v10098
      %v10100 = vpop.f32.mrf.mxu0
      %10101 = vdwg.mxu0
      %10102 = vxpose.xlu0.b32.start [1/16] %v9859, 128
      %10103 = vxpose.xlu0.b32.cont [2/16] %v9860, 128
      %10104 = vxpose.xlu0.b32.cont [3/16] %v9861, 128
      %10105 = vxpose.xlu0.b32.cont [4/16] %v9862, 128
      %10106 = vxpose.xlu0.b32.cont [5/16] %v9863, 128
      %10107 = vxpose.xlu0.b32.cont [6/16] %v9864, 128
      %10108 = vxpose.xlu0.b32.cont [7/16] %v9865, 128
      %10109 = vxpose.xlu0.b32.cont [8/16] %v9866, 128
      %10110 = vxpose.xlu0.b32.cont [9/16] %v9867, 128
      %10111 = vxpose.xlu0.b32.cont [10/16] %v9868, 128
      %10112 = vxpose.xlu0.b32.cont [11/16] %v9869, 128
      %10113 = vxpose.xlu0.b32.cont [12/16] %v9870, 128
      %10114 = vxpose.xlu0.b32.cont [13/16] %v9871, 128
      %10115 = vxpose.xlu0.b32.cont [14/16] %v9872, 128
      %10116 = vxpose.xlu0.b32.cont [15/16] %v9873, 128
      %10117 = vxpose.xlu0.b32.end [16/16] %v9874, 128
      %v10118 = vpop.trf.xlu0
      %v10119 = vpop.trf.xlu0
      %v10120 = vpop.trf.xlu0
      %v10121 = vpop.trf.xlu0
      %v10122 = vpop.trf.xlu0
      %v10123 = vpop.trf.xlu0
      %v10124 = vpop.trf.xlu0
      %v10125 = vpop.trf.xlu0
      %v10126 = vpop.trf.xlu0
      %v10127 = vpop.trf.xlu0
      %v10128 = vpop.trf.xlu0
      %v10129 = vpop.trf.xlu0
      %v10130 = vpop.trf.xlu0
      %v10131 = vpop.trf.xlu0
      %v10132 = vpop.trf.xlu0
      %v10133 = vpop.trf.xlu0
      %v10134 = vpack.c.bf16 %v10119, %v10118
      %v10135 = vpack.c.bf16 %v10121, %v10120
      %v10136 = vpack.c.bf16 %v10123, %v10122
      %v10137 = vpack.c.bf16 %v10125, %v10124
      %v10138 = vpack.c.bf16 %v10127, %v10126
      %v10139 = vpack.c.bf16 %v10129, %v10128
      %v10140 = vpack.c.bf16 %v10131, %v10130
      %v10141 = vpack.c.bf16 %v10133, %v10132
      %10142 = vmatpush.bf16.msra.mxu0 %v10141
      %10143 = vmatpush.bf16.msra.mxu0 %v10140
      %10144 = vmatpush.bf16.msra.mxu0 %v10139
      %10145 = vmatpush.bf16.msra.mxu0 %v10138
      %10146 = vmatpush.bf16.msra.mxu0 %v10137
      %10147 = vmatpush.bf16.msra.mxu0 %v10136
      %10148 = vmatpush.bf16.msra.mxu0 %v10135
      %10149 = vmatpush.bf16.msra.mxu0 %v10134
      %10150 = vmatmul.bf16.gmra.mxu0 %v9981
      %v10151 = vpop.f32.mrf.mxu0
      %v10152 = vadd.f32 0.0, %v10151
      %v10153 = vpop.f32.mrf.mxu0
      %10154 = vdwg.mxu0
      %10155 = vxpose.xlu0.b32.start [1/16] %v9875, 128
      %10156 = vxpose.xlu0.b32.cont [2/16] %v9876, 128
      %10157 = vxpose.xlu0.b32.cont [3/16] %v9877, 128
      %10158 = vxpose.xlu0.b32.cont [4/16] %v9878, 128
      %10159 = vxpose.xlu0.b32.cont [5/16] %v9879, 128
      %10160 = vxpose.xlu0.b32.cont [6/16] %v9880, 128
      %10161 = vxpose.xlu0.b32.cont [7/16] %v9881, 128
      %10162 = vxpose.xlu0.b32.cont [8/16] %v9882, 128
      %10163 = vxpose.xlu0.b32.cont [9/16] %v9883, 128
      %10164 = vxpose.xlu0.b32.cont [10/16] %v9884, 128
      %10165 = vxpose.xlu0.b32.cont [11/16] %v9885, 128
      %10166 = vxpose.xlu0.b32.cont [12/16] %v9886, 128
      %10167 = vxpose.xlu0.b32.cont [13/16] %v9887, 128
      %10168 = vxpose.xlu0.b32.cont [14/16] %v9888, 128
      %10169 = vxpose.xlu0.b32.cont [15/16] %v9889, 128
      %10170 = vxpose.xlu0.b32.end [16/16] %v9890, 128
      %v10171 = vpop.trf.xlu0
      %v10172 = vpop.trf.xlu0
      %v10173 = vpop.trf.xlu0
      %v10174 = vpop.trf.xlu0
      %v10175 = vpop.trf.xlu0
      %v10176 = vpop.trf.xlu0
      %v10177 = vpop.trf.xlu0
      %v10178 = vpop.trf.xlu0
      %v10179 = vpop.trf.xlu0
      %v10180 = vpop.trf.xlu0
      %v10181 = vpop.trf.xlu0
      %v10182 = vpop.trf.xlu0
      %v10183 = vpop.trf.xlu0
      %v10184 = vpop.trf.xlu0
      %v10185 = vpop.trf.xlu0
      %v10186 = vpop.trf.xlu0
      %v10187 = vpack.c.bf16 %v10172, %v10171
      %v10188 = vpack.c.bf16 %v10174, %v10173
      %v10189 = vpack.c.bf16 %v10176, %v10175
      %v10190 = vpack.c.bf16 %v10178, %v10177
      %v10191 = vpack.c.bf16 %v10180, %v10179
      %v10192 = vpack.c.bf16 %v10182, %v10181
      %v10193 = vpack.c.bf16 %v10184, %v10183
      %v10194 = vpack.c.bf16 %v10186, %v10185
      %10195 = vmatpush.bf16.msra.mxu0 %v10194
      %10196 = vmatpush.bf16.msra.mxu0 %v10193
      %10197 = vmatpush.bf16.msra.mxu0 %v10192
      %10198 = vmatpush.bf16.msra.mxu0 %v10191
      %10199 = vmatpush.bf16.msra.mxu0 %v10190
      %10200 = vmatpush.bf16.msra.mxu0 %v10189
      %10201 = vmatpush.bf16.msra.mxu0 %v10188
      %10202 = vmatpush.bf16.msra.mxu0 %v10187
      %10203 = vmatmul.bf16.gmra.mxu0 %v9981
      %v10204 = vpop.f32.mrf.mxu0
      %v10205 = vadd.f32 0.0, %v10204
      %v10206 = vpop.f32.mrf.mxu0
      %10207 = vdwg.mxu0
      %10208 = vxpose.xlu0.b32.start [1/16] %v9891, 128
      %10209 = vxpose.xlu0.b32.cont [2/16] %v9892, 128
      %10210 = vxpose.xlu0.b32.cont [3/16] %v9893, 128
      %10211 = vxpose.xlu0.b32.cont [4/16] %v9894, 128
      %10212 = vxpose.xlu0.b32.cont [5/16] %v9895, 128
      %10213 = vxpose.xlu0.b32.cont [6/16] %v9896, 128
      %10214 = vxpose.xlu0.b32.cont [7/16] %v9897, 128
      %10215 = vxpose.xlu0.b32.cont [8/16] %v9898, 128
      %10216 = vxpose.xlu0.b32.cont [9/16] %v9899, 128
      %10217 = vxpose.xlu0.b32.cont [10/16] %v9900, 128
      %10218 = vxpose.xlu0.b32.cont [11/16] %v9901, 128
      %10219 = vxpose.xlu0.b32.cont [12/16] %v9902, 128
      %10220 = vxpose.xlu0.b32.cont [13/16] %v9903, 128
      %10221 = vxpose.xlu0.b32.cont [14/16] %v9904, 128
      %10222 = vxpose.xlu0.b32.cont [15/16] %v9905, 128
      %10223 = vxpose.xlu0.b32.end [16/16] %v9906, 128
      %v10224 = vpop.trf.xlu0
      %v10225 = vpop.trf.xlu0
      %v10226 = vpop.trf.xlu0
      %v10227 = vpop.trf.xlu0
      %v10228 = vpop.trf.xlu0
      %v10229 = vpop.trf.xlu0
      %v10230 = vpop.trf.xlu0
      %v10231 = vpop.trf.xlu0
      %v10232 = vpop.trf.xlu0
      %v10233 = vpop.trf.xlu0
      %v10234 = vpop.trf.xlu0
      %v10235 = vpop.trf.xlu0
      %v10236 = vpop.trf.xlu0
      %v10237 = vpop.trf.xlu0
      %v10238 = vpop.trf.xlu0
      %v10239 = vpop.trf.xlu0
      %v10240 = vpack.c.bf16 %v10225, %v10224
      %v10241 = vpack.c.bf16 %v10227, %v10226
      %v10242 = vpack.c.bf16 %v10229, %v10228
      %v10243 = vpack.c.bf16 %v10231, %v10230
      %v10244 = vpack.c.bf16 %v10233, %v10232
      %v10245 = vpack.c.bf16 %v10235, %v10234
      %v10246 = vpack.c.bf16 %v10237, %v10236
      %v10247 = vpack.c.bf16 %v10239, %v10238
      %10248 = vmatpush.bf16.msra.mxu0 %v10247
      %10249 = vmatpush.bf16.msra.mxu0 %v10246
      %10250 = vmatpush.bf16.msra.mxu0 %v10245
      %10251 = vmatpush.bf16.msra.mxu0 %v10244
      %10252 = vmatpush.bf16.msra.mxu0 %v10243
      %10253 = vmatpush.bf16.msra.mxu0 %v10242
      %10254 = vmatpush.bf16.msra.mxu0 %v10241
      %10255 = vmatpush.bf16.msra.mxu0 %v10240
      %10256 = vmatmul.bf16.gmra.mxu0 %v9981
      %v10257 = vpop.f32.mrf.mxu0
      %v10258 = vadd.f32 0.0, %v10257
      %v10259 = vpop.f32.mrf.mxu0
      %10260 = vdwg.mxu0
      %10261 = vxpose.xlu0.b32.start [1/16] %v9907, 128
      %10262 = vxpose.xlu0.b32.cont [2/16] %v9908, 128
      %10263 = vxpose.xlu0.b32.cont [3/16] %v9909, 128
      %10264 = vxpose.xlu0.b32.cont [4/16] %v9910, 128
      %10265 = vxpose.xlu0.b32.cont [5/16] %v9911, 128
      %10266 = vxpose.xlu0.b32.cont [6/16] %v9912, 128
      %10267 = vxpose.xlu0.b32.cont [7/16] %v9913, 128
      %10268 = vxpose.xlu0.b32.cont [8/16] %v9914, 128
      %10269 = vxpose.xlu0.b32.cont [9/16] %v9915, 128
      %10270 = vxpose.xlu0.b32.cont [10/16] %v9916, 128
      %10271 = vxpose.xlu0.b32.cont [11/16] %v9917, 128
      %10272 = vxpose.xlu0.b32.cont [12/16] %v9918, 128
      %10273 = vxpose.xlu0.b32.cont [13/16] %v9919, 128
      %10274 = vxpose.xlu0.b32.cont [14/16] %v9920, 128
      %10275 = vxpose.xlu0.b32.cont [15/16] %v9921, 128
      %10276 = vxpose.xlu0.b32.end [16/16] %v9922, 128
      %v10277 = vpop.trf.xlu0
      %v10278 = vpop.trf.xlu0
      %v10279 = vpop.trf.xlu0
      %v10280 = vpop.trf.xlu0
      %v10281 = vpop.trf.xlu0
      %v10282 = vpop.trf.xlu0
      %v10283 = vpop.trf.xlu0
      %v10284 = vpop.trf.xlu0
      %v10285 = vpop.trf.xlu0
      %v10286 = vpop.trf.xlu0
      %v10287 = vpop.trf.xlu0
      %v10288 = vpop.trf.xlu0
      %v10289 = vpop.trf.xlu0
      %v10290 = vpop.trf.xlu0
      %v10291 = vpop.trf.xlu0
      %v10292 = vpop.trf.xlu0
      %v10293 = vpack.c.bf16 %v10278, %v10277
      %v10294 = vpack.c.bf16 %v10280, %v10279
      %v10295 = vpack.c.bf16 %v10282, %v10281
      %v10296 = vpack.c.bf16 %v10284, %v10283
      %v10297 = vpack.c.bf16 %v10286, %v10285
      %v10298 = vpack.c.bf16 %v10288, %v10287
      %v10299 = vpack.c.bf16 %v10290, %v10289
      %v10300 = vpack.c.bf16 %v10292, %v10291
      %10301 = vmatpush.bf16.msra.mxu0 %v10300
      %10302 = vmatpush.bf16.msra.mxu0 %v10299
      %10303 = vmatpush.bf16.msra.mxu0 %v10298
      %10304 = vmatpush.bf16.msra.mxu0 %v10297
      %10305 = vmatpush.bf16.msra.mxu0 %v10296
      %10306 = vmatpush.bf16.msra.mxu0 %v10295
      %10307 = vmatpush.bf16.msra.mxu0 %v10294
      %10308 = vmatpush.bf16.msra.mxu0 %v10293
      %10309 = vmatmul.bf16.gmra.mxu0 %v9981
      %v10310 = vpop.f32.mrf.mxu0
      %v10311 = vadd.f32 0.0, %v10310
      %v10312 = vpop.f32.mrf.mxu0
      %10313 = vdwg.mxu0
      %10314 = vxpose.xlu0.b32.start [1/16] %v9923, 128
      %10315 = vxpose.xlu0.b32.cont [2/16] %v9924, 128
      %10316 = vxpose.xlu0.b32.cont [3/16] %v9925, 128
      %10317 = vxpose.xlu0.b32.cont [4/16] %v9926, 128
      %10318 = vxpose.xlu0.b32.cont [5/16] %v9927, 128
      %10319 = vxpose.xlu0.b32.cont [6/16] %v9928, 128
      %10320 = vxpose.xlu0.b32.cont [7/16] %v9929, 128
      %10321 = vxpose.xlu0.b32.cont [8/16] %v9930, 128
      %10322 = vxpose.xlu0.b32.cont [9/16] %v9931, 128
      %10323 = vxpose.xlu0.b32.cont [10/16] %v9932, 128
      %10324 = vxpose.xlu0.b32.cont [11/16] %v9933, 128
      %10325 = vxpose.xlu0.b32.cont [12/16] %v9934, 128
      %10326 = vxpose.xlu0.b32.cont [13/16] %v9935, 128
      %10327 = vxpose.xlu0.b32.cont [14/16] %v9936, 128
      %10328 = vxpose.xlu0.b32.cont [15/16] %v9937, 128
      %10329 = vxpose.xlu0.b32.end [16/16] %v9938, 128
      %v10330 = vpop.trf.xlu0
      %v10331 = vpop.trf.xlu0
      %v10332 = vpop.trf.xlu0
      %v10333 = vpop.trf.xlu0
      %v10334 = vpop.trf.xlu0
      %v10335 = vpop.trf.xlu0
      %v10336 = vpop.trf.xlu0
      %v10337 = vpop.trf.xlu0
      %v10338 = vpop.trf.xlu0
      %v10339 = vpop.trf.xlu0
      %v10340 = vpop.trf.xlu0
      %v10341 = vpop.trf.xlu0
      %v10342 = vpop.trf.xlu0
      %v10343 = vpop.trf.xlu0
      %v10344 = vpop.trf.xlu0
      %v10345 = vpop.trf.xlu0
      %v10346 = vpack.c.bf16 %v10331, %v10330
      %v10347 = vpack.c.bf16 %v10333, %v10332
      %v10348 = vpack.c.bf16 %v10335, %v10334
      %v10349 = vpack.c.bf16 %v10337, %v10336
      %v10350 = vpack.c.bf16 %v10339, %v10338
      %v10351 = vpack.c.bf16 %v10341, %v10340
      %v10352 = vpack.c.bf16 %v10343, %v10342
      %v10353 = vpack.c.bf16 %v10345, %v10344
      %10354 = vmatpush.bf16.msra.mxu0 %v10353
      %10355 = vmatpush.bf16.msra.mxu0 %v10352
      %10356 = vmatpush.bf16.msra.mxu0 %v10351
      %10357 = vmatpush.bf16.msra.mxu0 %v10350
      %10358 = vmatpush.bf16.msra.mxu0 %v10349
      %10359 = vmatpush.bf16.msra.mxu0 %v10348
      %10360 = vmatpush.bf16.msra.mxu0 %v10347
      %10361 = vmatpush.bf16.msra.mxu0 %v10346
      %10362 = vmatmul.bf16.gmra.mxu0 %v9981
      %v10363 = vpop.f32.mrf.mxu0
      %v10364 = vadd.f32 0.0, %v10363
      %v10365 = vpop.f32.mrf.mxu0
      %10366 = vdwg.mxu0
      %v10368 = vrot.slane %v10046, 7
      %v10371 = vrot.slane %v10099, 6
      %v10374 = vrot.slane %v10152, 5
      %v10377 = vrot.slane %v10205, 4
      %v10380 = vrot.slane %v10258, 3
      %v10383 = vrot.slane %v10311, 2
      %v10386 = vrot.slane %v10364, 1
      %vm10388 = vcmask 1040384
      %v10389 = vsel %vm10388, %v9993, %v10368
      %vm10390 = vcmask 1041408
      %v10391 = vsel %vm10390, %v10389, %v10371
      %vm10392 = vcmask 1042432
      %v10393 = vsel %vm10392, %v10391, %v10374
      %v10394 = vsel %vm1992, %v10393, %v10377
      %vm10395 = vcmask 1044480
      %v10396 = vsel %vm10395, %v10394, %v10380
      %vm10397 = vcmask 1045504
      %v10398 = vsel %vm10397, %v10396, %v10383
      %vm10399 = vcmask 1046528
      %v10400 = vsel %vm10399, %v10398, %v10386
      %v10401 = vperm.slane %v303, 5
      %v10402 = vadd.f32 %v10400, %v10401
      %10403 = vst [vmem:[%s300] sm:$0xff] %v10402
      %p10404 = scmp.lt.s32.totalorder %s18, 1
      %s10405 = scalar_select %p10404, %s18, 1
      %s10406 = smul.addr %s10405, 8
      %s10407 = scalar_lea.vmem %s7, %s10406
      // Predicated region
      $region49: #{decoder_head.1} parent=47 // pred_check
        %p10408 = pneg %p193
      $region50: #{decoder_head.1} parent=47 // pred_check_branch
        %10410 = sbr.rel (%p10408) target = $region52
      $region51: #{decoder_head.1} parent=47 // pred_region
        _
      $region52: #{decoder_head.1} parent=47 // pred_fallthru
        _
    $region48: #{decoder_head.1} parent=5 // pred_fallthru
      _
    %p10411 = scmp.le.s32.totalorder 2, %s13
    // Predicated region
    $region53: #{decoder_head.1} parent=5 // pred_check
      %p10412 = pneg %p10411
    $region54: #{decoder_head.1} parent=5 // pred_check_branch
      %10414 = sbr.rel (%p10412) target = $region56
    $region55: #{decoder_head.1} parent=5 // pred_region
      %s10415 = ssub.s32 %s13, 2
      // Predicated region
      $region57: #{decoder_head.1} parent=55 // pred_check
        %p10416 = pneg %p199
      $region58: #{decoder_head.1} parent=55 // pred_check_branch
        %10418 = sbr.rel (%p10416) target = $region60
      $region59: #{decoder_head.1} parent=55 // pred_region
        %p10419 = scmp.lt.s32.totalorder %s19, 1
        %s10420 = scalar_select %p10419, %s19, 1
        %s10421 = smul.addr %s10420, 8
        %s10422 = scalar_lea.vmem %s7, %s10421
      $region60: #{decoder_head.1} parent=55 // pred_fallthru
        _
    $region56: #{decoder_head.1} parent=5 // pred_fallthru
      _
  $region6: #{decoder_head.1} parent=0 // loop_footer
    %s17 = sadd.s32 1, %s13
  $region7: #{decoder_head.1} parent=0 // loop_footer_branch
    %12 = sbr.rel target = $region3
  $region8: #{decoder_head.1} parent=0 // loop_exit
    _

</llo_original>
